<compile_context>
chip_gen: v7x
topology: tpu7x:2x2x1
jax: 0.10.0
libtpu: 0.0.40
codegen_flags: <defaults>
</compile_context>

<pallas_src>
import functools

import numpy as np

import jax
import jax.numpy as jnp
from jax.experimental import pallas as pl
from jax.experimental.pallas import tpu as pltpu


def _round_up(n, m):
    return (n + m - 1) // m * m


def _slab_layout(hidden_size, input_size):
    """Row offsets of the packed constant-parameter slab (lane width = 8*H)."""
    H, I = hidden_size, input_size
    r_wrec = 0                        # (2H, 8H) block-diagonal recurrent weights
    r_win = r_wrec + 2 * H            # (I, 4H)  layer-0 input weights
    r_wfc = r_win + _round_up(I, 8)   # (H, W)   final FC weights (zero padded)
    r_bias = r_wfc + H                # (1, 8H)  [b_ih0+b_hh0 | b_ih1+b_hh1]
    r_bfc = r_bias + 1                # (1, W)   FC bias (zero padded)
    n_rows = r_bfc + 1
    return r_wrec, r_win, r_wfc, r_bias, r_bfc, n_rows


def _lstm_kernel(x_ref, h_ref, c_ref, w_ref, out_ref, *, hidden_size, input_size):
    """2-layer LSTM wavefront recurrence + final FC, everything VMEM-resident."""
    H, I = hidden_size, input_size
    seq = x_ref.shape[0]
    W = out_ref.shape[1]                                   # = 4H (lane dense)
    r_wrec, r_win, r_wfc, r_bias, r_bfc, _ = _slab_layout(H, I)
    hi = jax.lax.Precision.HIGHEST                         # f32 parity w/ PyTorch

    # Static slices of the packed parameter slab (8-row-aligned blocks).
    w_rec = w_ref[r_wrec:r_wrec + 2 * H, :]                # (2H, 8H)
    w_in = w_ref[r_win:r_win + I, 0:4 * H]                 # (I, 4H)
    w_fc = w_ref[r_wfc:r_wfc + H, 0:W]                     # (H, W)
    b0 = w_ref[r_bias:r_bias + 1, 0:4 * H]                 # (1, 4H)
    b1 = w_ref[r_bias:r_bias + 1, 4 * H:8 * H]             # (1, 4H)
    b_fc = w_ref[r_bfc:r_bfc + 1, 0:W]                     # (1, W)

    # Hoisted layer-0 input projection + bias: one (seq, I)@(I, 4H) dot,
    # entirely off the serial recurrence chain.
    gx0 = jnp.dot(x_ref[...], w_in, preferred_element_type=jnp.float32,
                  precision=hi) + b0                       # (seq, 4H)

    def activate(gates, c):
        # One sigmoid + one tanh over the full (1, 4H) vreg, slice results.
        # TODO(synk): permute gate columns at prep time so f/i/o land
        #             lane-aligned with c (saves ~2 XLU rolls per cell).
        sg = jax.nn.sigmoid(gates)
        tg = jnp.tanh(gates)
        i = sg[:, 0 * H:1 * H]
        f = sg[:, 1 * H:2 * H]
        g = tg[:, 2 * H:3 * H]
        o = sg[:, 3 * H:4 * H]
        c_new = f * c + i * g
        h_new = o * jnp.tanh(c_new)
        return h_new, c_new

    h0 = h_ref[0:1, :]
    h1 = h_ref[1:2, :]
    c0 = c_ref[0:1, :]
    c1 = c_ref[1:2, :]

    # Prologue: layer-0 cell at t=0 (the only stand-alone recurrent dot).
    g0 = gx0[0:1, :] + jnp.dot(h0, w_rec[0:H, 0:4 * H],
                               preferred_element_type=jnp.float32, precision=hi)
    h0, c0 = activate(g0, c0)

    # Wavefront: one fused block-diagonal dot per step.
    #   lanes 0:4H   = h0_t @ W_hh0^T              -> layer-0 gates at t+1
    #   lanes 4H:8H  = h0_t @ W_ih1^T + h1_{t-1} @ W_hh1^T -> layer-1 gates at t
    # The two activations below are independent -> schedulable in parallel.
    for t in range(seq):
        lhs = jnp.concatenate([h0, h1], axis=1)            # (1, 2H)
        big = jnp.dot(lhs, w_rec, preferred_element_type=jnp.float32,
                      precision=hi)                        # (1, 8H)
        h1, c1 = activate(big[:, 4 * H:8 * H] + b1, c1)    # layer 1, time t
        if t + 1 < seq:
            h0, c0 = activate(gx0[t + 1:t + 2, :] + big[:, 0:4 * H], c0)  # layer 0, t+1

    # fc(out[:, -1, :]) == fc on the final top-layer hidden state.
    fc_row = jnp.dot(h1, w_fc, preferred_element_type=jnp.float32,
                     precision=hi) + b_fc                  # (1, W)
    state_row = jnp.concatenate([h0, h1, c0, c1], axis=1)  # (1, 4H) == (1, W)
    out_ref[...] = jnp.concatenate([fc_row, state_row], axis=0)   # (2, W)


def prepare_params(params):
    """One-time packing of all constant parameters into a single f32 slab."""
    H = int(params["w_hh0"].shape[1])
    I = int(params["w_ih0"].shape[1])
    O = int(params["w_fc"].shape[0])
    assert (4 * H) % 128 == 0, "lane-dense layout assumes 4*H is a multiple of 128"
    W = 4 * H                      # output slab / fc lane width (multiple of 128)
    assert O <= W, "output_size must fit in the lane-dense output slab"
    WL = 8 * H                     # slab lane width

    r_wrec, r_win, r_wfc, r_bias, r_bfc, n_rows = _slab_layout(H, I)
    slab = np.zeros((n_rows, WL), np.float32)

    # Block-diagonal recurrent RHS (LHS per step is [h0 | h1]).
    slab[r_wrec:r_wrec + H, 0:4 * H] = np.asarray(params["w_hh0"]).T
    slab[r_wrec:r_wrec + H, 4 * H:8 * H] = np.asarray(params["w_ih1"]).T
    slab[r_wrec + H:r_wrec + 2 * H, 4 * H:8 * H] = np.asarray(params["w_hh1"]).T
    # Layer-0 input projection weights.
    slab[r_win:r_win + I, 0:4 * H] = np.asarray(params["w_ih0"]).T
    # Final FC (zero padded to W lanes -> unmasked lane-dense store).
    slab[r_wfc:r_wfc + H, 0:O] = np.asarray(params["w_fc"]).T
    # Pre-summed biases.
    slab[r_bias, 0:4 * H] = np.asarray(params["b_ih0"] + params["b_hh0"])
    slab[r_bias, 4 * H:8 * H] = np.asarray(params["b_ih1"] + params["b_hh1"])
    slab[r_bfc, 0:O] = np.asarray(params["b_fc"])

    return {"slab": jnp.asarray(slab), "hidden_size": H, "input_size": I,
            "output_size": O, "out_width": W}


@functools.partial(jax.jit,
                   static_argnames=("hidden_size", "input_size",
                                    "output_size", "out_width"))
def _lstm_apply(x, h_state, c_state, slab, *, hidden_size, input_size,
                output_size, out_width):
    H, I, O, W = hidden_size, input_size, output_size, out_width
    assert x.shape[0] == 1, "registered (num_layers, 1, H) state buffers imply batch=1"

    x2d = x[0]                          # (seq, I)
    h_init = h_state[:, 0, :]           # (2, H)
    c_init = c_state[:, 0, :]           # (2, H)

    vmem = pl.BlockSpec(memory_space=pltpu.MemorySpace.VMEM)
    kernel = functools.partial(_lstm_kernel, hidden_size=H, input_size=I)

    slab_out = pl.pallas_call(
        kernel,
        out_shape=jax.ShapeDtypeStruct((2, W), jnp.float32),
        in_specs=[vmem] * 4,
        out_specs=vmem,
    )(x2d, h_init, c_init, slab)

    out = slab_out[0:1, :O]                                  # (1, O)
    h_n = slab_out[1, 0:2 * H].reshape(2, 1, H)              # (2, 1, H)
    c_n = slab_out[1, 2 * H:4 * H].reshape(2, 1, H)          # (2, 1, H)
    return out, h_n, c_n


def make_lstm_forward(params):
    """One-time parameter packing; returns forward(x, h_state, c_state)."""
    p = prepare_params(params)

    def forward(x, h_state, c_state):
        return _lstm_apply(x, h_state, c_state, p["slab"],
                           hidden_size=p["hidden_size"],
                           input_size=p["input_size"],
                           output_size=p["output_size"],
                           out_width=p["out_width"])

    return forward


def init_params(key, input_size, hidden_size, output_size):
    """Deterministic init matching PyTorch parameter shapes (U(-1/sqrt(H), 1/sqrt(H)))."""
    H = hidden_size
    k = 1.0 / jnp.sqrt(jnp.float32(H))
    keys = jax.random.split(key, 10)

    def u(kk, shape):
        return jax.random.uniform(kk, shape, jnp.float32, -k, k)

    return {
        "w_ih0": u(keys[0], (4 * H, input_size)),
        "w_hh0": u(keys[1], (4 * H, H)),
        "b_ih0": u(keys[2], (4 * H,)),
        "b_hh0": u(keys[3], (4 * H,)),
        "w_ih1": u(keys[4], (4 * H, H)),
        "w_hh1": u(keys[5], (4 * H, H)),
        "b_ih1": u(keys[6], (4 * H,)),
        "b_hh1": u(keys[7], (4 * H,)),
        "w_fc": u(keys[8], (output_size, H)),
        "b_fc": u(keys[9], (output_size,)),
    }


def _reference_forward(x, params, h_state, c_state):
    """Pure-JAX f32 reference (mirrors torch.nn.LSTM + Linear forward)."""
    hi = jax.lax.Precision.HIGHEST
    H = params["w_hh0"].shape[1]
    h0, h1 = h_state[0, 0], h_state[1, 0]
    c0, c1 = c_state[0, 0], c_state[1, 0]

    def cell(gates, c):
        i = jax.nn.sigmoid(gates[0:H])
        f = jax.nn.sigmoid(gates[H:2 * H])
        g = jnp.tanh(gates[2 * H:3 * H])
        o = jax.nn.sigmoid(gates[3 * H:4 * H])
        c_new = f * c + i * g
        return o * jnp.tanh(c_new), c_new

    for t in range(x.shape[1]):
        xt = x[0, t]
        g0 = (jnp.dot(params["w_ih0"], xt, precision=hi) + params["b_ih0"]
              + jnp.dot(params["w_hh0"], h0, precision=hi) + params["b_hh0"])
        h0, c0 = cell(g0, c0)
        g1 = (jnp.dot(params["w_ih1"], h0, precision=hi) + params["b_ih1"]
              + jnp.dot(params["w_hh1"], h1, precision=hi) + params["b_hh1"])
        h1, c1 = cell(g1, c1)
    out = jnp.dot(params["w_fc"], h1, precision=hi) + params["b_fc"]
    return (out[None, :],
            jnp.stack([h0, h1])[:, None, :],
            jnp.stack([c0, c1])[:, None, :])


if __name__ == "__main__":
    input_size, hidden_size, output_size, num_layers = 8, 32, 4, 2
    seq_len, batch = 8, 1   # batch forced to 1 by the module's state buffers

    key = jax.random.PRNGKey(0)
    k_param, k_x = jax.random.split(key)
    params = init_params(k_param, input_size, hidden_size, output_size)

    x = jax.random.normal(k_x, (batch, seq_len, input_size), jnp.float32)
    h_state = jnp.zeros((num_layers, 1, hidden_size), jnp.float32)
    c_state = jnp.zeros((num_layers, 1, hidden_size), jnp.float32)

    lstm_forward = make_lstm_forward(params)        # one-time prep + jit

    # First call (zero state) + parity check vs. pure-JAX reference.
    out, h_n, c_n = lstm_forward(x, h_state, c_state)
    jax.block_until_ready((out, h_n, c_n))
    out_r, h_r, c_r = _reference_forward(x, params, h_state, c_state)
    np.testing.assert_allclose(np.asarray(out), np.asarray(out_r), atol=1e-4, rtol=1e-3)
    np.testing.assert_allclose(np.asarray(h_n), np.asarray(h_r), atol=1e-4, rtol=1e-3)
    np.testing.assert_allclose(np.asarray(c_n), np.asarray(c_r), atol=1e-4, rtol=1e-3)

    # Second call with the carried (non-zero) state buffers — mirrors the
    # module's hidden_state/cell_state copy_ and reuses the compiled kernel.
    out2, h_n2, c_n2 = lstm_forward(x, h_n, c_n)
    jax.block_until_ready((out2, h_n2, c_n2))
    out2_r, h2_r, c2_r = _reference_forward(x, params, h_r, c_r)
    np.testing.assert_allclose(np.asarray(out2), np.asarray(out2_r), atol=1e-4, rtol=1e-3)
    np.testing.assert_allclose(np.asarray(h_n2), np.asarray(h2_r), atol=1e-4, rtol=1e-3)
    np.testing.assert_allclose(np.asarray(c_n2), np.asarray(c2_r), atol=1e-4, rtol=1e-3)

    print("KERNEL_OK")
</pallas_src>

<mosaic_0001>
module attributes {stable_mosaic.version = 11 : i64} {
  func.func @_lstm_kernel(%arg0: memref<8x8xf32, #tpu.memory_space<vmem>>, %arg1: memref<2x32xf32, #tpu.memory_space<vmem>>, %arg2: memref<2x32xf32, #tpu.memory_space<vmem>>, %arg3: memref<106x256xf32, #tpu.memory_space<vmem>>, %arg4: memref<2x128xf32, #tpu.memory_space<vmem>>) attributes {dimension_semantics = [], scalar_prefetch = 0 : i64, scratch_operands = 0 : i64, tpu.core_type = #tpu.core_type<tc>} {
    %c0 = arith.constant 0 : index
    %c0_0 = arith.constant 0 : index
    %0 = vector.load %arg3[%c0, %c0_0] : memref<106x256xf32, #tpu.memory_space<vmem>>, vector<64x256xf32>
    %c64 = arith.constant 64 : index
    %c0_1 = arith.constant 0 : index
    %1 = vector.load %arg3[%c64, %c0_1] : memref<106x256xf32, #tpu.memory_space<vmem>>, vector<8x128xf32>
    %c72 = arith.constant 72 : index
    %c0_2 = arith.constant 0 : index
    %2 = vector.load %arg3[%c72, %c0_2] : memref<106x256xf32, #tpu.memory_space<vmem>>, vector<32x128xf32>
    %c104 = arith.constant 104 : index
    %c0_3 = arith.constant 0 : index
    %3 = vector.load %arg3[%c104, %c0_3] : memref<106x256xf32, #tpu.memory_space<vmem>>, vector<1x128xf32>
    %c104_4 = arith.constant 104 : index
    %c128 = arith.constant 128 : index
    %4 = vector.load %arg3[%c104_4, %c128] : memref<106x256xf32, #tpu.memory_space<vmem>>, vector<1x128xf32>
    %c105 = arith.constant 105 : index
    %c0_5 = arith.constant 0 : index
    %5 = vector.load %arg3[%c105, %c0_5] : memref<106x256xf32, #tpu.memory_space<vmem>>, vector<1x128xf32>
    %c0_6 = arith.constant 0 : index
    %c0_7 = arith.constant 0 : index
    %6 = vector.load %arg0[%c0_6, %c0_7] : memref<8x8xf32, #tpu.memory_space<vmem>>, vector<8x8xf32>
    %cst = arith.constant dense<0.000000e+00> : vector<8x128xf32>
    %7 = tpu.matmul %6, %1, %cst {dimension_numbers = #tpu.dot_dimension_numbers<[1], [0], [0], [1], [0, 0, 1, 1], [], []>, precision = #tpu.contract_precision<fp32>} : vector<8x8xf32>, vector<8x128xf32>, vector<8x128xf32> -> vector<8x128xf32>
    %8 = vector.broadcast %3 : vector<1x128xf32> to vector<8x128xf32>
    %9 = arith.addf %7, %8 : vector<8x128xf32>
    %c0_8 = arith.constant 0 : index
    %c0_9 = arith.constant 0 : index
    %10 = vector.load %arg1[%c0_8, %c0_9] : memref<2x32xf32, #tpu.memory_space<vmem>>, vector<1x32xf32>
    %c1 = arith.constant 1 : index
    %c0_10 = arith.constant 0 : index
    %11 = vector.load %arg1[%c1, %c0_10] : memref<2x32xf32, #tpu.memory_space<vmem>>, vector<1x32xf32>
    %c0_11 = arith.constant 0 : index
    %c0_12 = arith.constant 0 : index
    %12 = vector.load %arg2[%c0_11, %c0_12] : memref<2x32xf32, #tpu.memory_space<vmem>>, vector<1x32xf32>
    %c1_13 = arith.constant 1 : index
    %c0_14 = arith.constant 0 : index
    %13 = vector.load %arg2[%c1_13, %c0_14] : memref<2x32xf32, #tpu.memory_space<vmem>>, vector<1x32xf32>
    %14 = vector.extract_strided_slice %9 {offsets = [0, 0], sizes = [1, 128], strides = [1, 1]} : vector<8x128xf32> to vector<1x128xf32>
    %15 = vector.extract_strided_slice %0 {offsets = [0, 0], sizes = [32, 128], strides = [1, 1]} : vector<64x256xf32> to vector<32x128xf32>
    %cst_15 = arith.constant dense<0.000000e+00> : vector<1x128xf32>
    %16 = tpu.matmul %10, %15, %cst_15 {dimension_numbers = #tpu.dot_dimension_numbers<[1], [0], [0], [1], [0, 0, 1, 1], [], []>, precision = #tpu.contract_precision<fp32>} : vector<1x32xf32>, vector<32x128xf32>, vector<1x128xf32> -> vector<1x128xf32>
    %17 = arith.addf %14, %16 : vector<1x128xf32>
    %18 = arith.negf %17 : vector<1x128xf32>
    %19 = math.exp %18 : vector<1x128xf32>
    %cst_16 = arith.constant 1.000000e+00 : f32
    %20 = vector.broadcast %cst_16 : f32 to vector<1x128xf32>
    %21 = arith.addf %20, %19 : vector<1x128xf32>
    %22 = arith.divf %20, %21 : vector<1x128xf32>
    %23 = math.tanh %17 : vector<1x128xf32>
    %24 = vector.extract_strided_slice %22 {offsets = [0, 0], sizes = [1, 32], strides = [1, 1]} : vector<1x128xf32> to vector<1x32xf32>
    %25 = vector.extract_strided_slice %22 {offsets = [0, 32], sizes = [1, 32], strides = [1, 1]} : vector<1x128xf32> to vector<1x32xf32>
    %26 = vector.extract_strided_slice %23 {offsets = [0, 64], sizes = [1, 32], strides = [1, 1]} : vector<1x128xf32> to vector<1x32xf32>
    %27 = vector.extract_strided_slice %22 {offsets = [0, 96], sizes = [1, 32], strides = [1, 1]} : vector<1x128xf32> to vector<1x32xf32>
    %28 = arith.mulf %25, %12 : vector<1x32xf32>
    %29 = arith.mulf %24, %26 : vector<1x32xf32>
    %30 = arith.addf %28, %29 : vector<1x32xf32>
    %31 = math.tanh %30 : vector<1x32xf32>
    %32 = arith.mulf %27, %31 : vector<1x32xf32>
    %33 = tpu.concatenate %32, %11 in 1 : vector<1x32xf32>, vector<1x32xf32> -> vector<1x64xf32>
    %cst_17 = arith.constant dense<0.000000e+00> : vector<1x256xf32>
    %34 = tpu.matmul %33, %0, %cst_17 {dimension_numbers = #tpu.dot_dimension_numbers<[1], [0], [0], [1], [0, 0, 1, 1], [], []>, precision = #tpu.contract_precision<fp32>} : vector<1x64xf32>, vector<64x256xf32>, vector<1x256xf32> -> vector<1x256xf32>
    %35 = vector.extract_strided_slice %34 {offsets = [0, 128], sizes = [1, 128], strides = [1, 1]} : vector<1x256xf32> to vector<1x128xf32>
    %36 = arith.addf %35, %4 : vector<1x128xf32>
    %37 = arith.negf %36 : vector<1x128xf32>
    %38 = math.exp %37 : vector<1x128xf32>
    %cst_18 = arith.constant 1.000000e+00 : f32
    %39 = vector.broadcast %cst_18 : f32 to vector<1x128xf32>
    %40 = arith.addf %39, %38 : vector<1x128xf32>
    %41 = arith.divf %39, %40 : vector<1x128xf32>
    %42 = math.tanh %36 : vector<1x128xf32>
    %43 = vector.extract_strided_slice %41 {offsets = [0, 0], sizes = [1, 32], strides = [1, 1]} : vector<1x128xf32> to vector<1x32xf32>
    %44 = vector.extract_strided_slice %41 {offsets = [0, 32], sizes = [1, 32], strides = [1, 1]} : vector<1x128xf32> to vector<1x32xf32>
    %45 = vector.extract_strided_slice %42 {offsets = [0, 64], sizes = [1, 32], strides = [1, 1]} : vector<1x128xf32> to vector<1x32xf32>
    %46 = vector.extract_strided_slice %41 {offsets = [0, 96], sizes = [1, 32], strides = [1, 1]} : vector<1x128xf32> to vector<1x32xf32>
    %47 = arith.mulf %44, %13 : vector<1x32xf32>
    %48 = arith.mulf %43, %45 : vector<1x32xf32>
    %49 = arith.addf %47, %48 : vector<1x32xf32>
    %50 = math.tanh %49 : vector<1x32xf32>
    %51 = arith.mulf %46, %50 : vector<1x32xf32>
    %52 = vector.extract_strided_slice %9 {offsets = [1, 0], sizes = [1, 128], strides = [1, 1]} : vector<8x128xf32> to vector<1x128xf32>
    %53 = vector.extract_strided_slice %34 {offsets = [0, 0], sizes = [1, 128], strides = [1, 1]} : vector<1x256xf32> to vector<1x128xf32>
    %54 = arith.addf %52, %53 : vector<1x128xf32>
    %55 = arith.negf %54 : vector<1x128xf32>
    %56 = math.exp %55 : vector<1x128xf32>
    %cst_19 = arith.constant 1.000000e+00 : f32
    %57 = vector.broadcast %cst_19 : f32 to vector<1x128xf32>
    %58 = arith.addf %57, %56 : vector<1x128xf32>
    %59 = arith.divf %57, %58 : vector<1x128xf32>
    %60 = math.tanh %54 : vector<1x128xf32>
    %61 = vector.extract_strided_slice %59 {offsets = [0, 0], sizes = [1, 32], strides = [1, 1]} : vector<1x128xf32> to vector<1x32xf32>
    %62 = vector.extract_strided_slice %59 {offsets = [0, 32], sizes = [1, 32], strides = [1, 1]} : vector<1x128xf32> to vector<1x32xf32>
    %63 = vector.extract_strided_slice %60 {offsets = [0, 64], sizes = [1, 32], strides = [1, 1]} : vector<1x128xf32> to vector<1x32xf32>
    %64 = vector.extract_strided_slice %59 {offsets = [0, 96], sizes = [1, 32], strides = [1, 1]} : vector<1x128xf32> to vector<1x32xf32>
    %65 = arith.mulf %62, %30 : vector<1x32xf32>
    %66 = arith.mulf %61, %63 : vector<1x32xf32>
    %67 = arith.addf %65, %66 : vector<1x32xf32>
    %68 = math.tanh %67 : vector<1x32xf32>
    %69 = arith.mulf %64, %68 : vector<1x32xf32>
    %70 = tpu.concatenate %69, %51 in 1 : vector<1x32xf32>, vector<1x32xf32> -> vector<1x64xf32>
    %cst_20 = arith.constant dense<0.000000e+00> : vector<1x256xf32>
    %71 = tpu.matmul %70, %0, %cst_20 {dimension_numbers = #tpu.dot_dimension_numbers<[1], [0], [0], [1], [0, 0, 1, 1], [], []>, precision = #tpu.contract_precision<fp32>} : vector<1x64xf32>, vector<64x256xf32>, vector<1x256xf32> -> vector<1x256xf32>
    %72 = vector.extract_strided_slice %71 {offsets = [0, 128], sizes = [1, 128], strides = [1, 1]} : vector<1x256xf32> to vector<1x128xf32>
    %73 = arith.addf %72, %4 : vector<1x128xf32>
    %74 = arith.negf %73 : vector<1x128xf32>
    %75 = math.exp %74 : vector<1x128xf32>
    %cst_21 = arith.constant 1.000000e+00 : f32
    %76 = vector.broadcast %cst_21 : f32 to vector<1x128xf32>
    %77 = arith.addf %76, %75 : vector<1x128xf32>
    %78 = arith.divf %76, %77 : vector<1x128xf32>
    %79 = math.tanh %73 : vector<1x128xf32>
    %80 = vector.extract_strided_slice %78 {offsets = [0, 0], sizes = [1, 32], strides = [1, 1]} : vector<1x128xf32> to vector<1x32xf32>
    %81 = vector.extract_strided_slice %78 {offsets = [0, 32], sizes = [1, 32], strides = [1, 1]} : vector<1x128xf32> to vector<1x32xf32>
    %82 = vector.extract_strided_slice %79 {offsets = [0, 64], sizes = [1, 32], strides = [1, 1]} : vector<1x128xf32> to vector<1x32xf32>
    %83 = vector.extract_strided_slice %78 {offsets = [0, 96], sizes = [1, 32], strides = [1, 1]} : vector<1x128xf32> to vector<1x32xf32>
    %84 = arith.mulf %81, %49 : vector<1x32xf32>
    %85 = arith.mulf %80, %82 : vector<1x32xf32>
    %86 = arith.addf %84, %85 : vector<1x32xf32>
    %87 = math.tanh %86 : vector<1x32xf32>
    %88 = arith.mulf %83, %87 : vector<1x32xf32>
    %89 = vector.extract_strided_slice %9 {offsets = [2, 0], sizes = [1, 128], strides = [1, 1]} : vector<8x128xf32> to vector<1x128xf32>
    %90 = vector.extract_strided_slice %71 {offsets = [0, 0], sizes = [1, 128], strides = [1, 1]} : vector<1x256xf32> to vector<1x128xf32>
    %91 = arith.addf %89, %90 : vector<1x128xf32>
    %92 = arith.negf %91 : vector<1x128xf32>
    %93 = math.exp %92 : vector<1x128xf32>
    %cst_22 = arith.constant 1.000000e+00 : f32
    %94 = vector.broadcast %cst_22 : f32 to vector<1x128xf32>
    %95 = arith.addf %94, %93 : vector<1x128xf32>
    %96 = arith.divf %94, %95 : vector<1x128xf32>
    %97 = math.tanh %91 : vector<1x128xf32>
    %98 = vector.extract_strided_slice %96 {offsets = [0, 0], sizes = [1, 32], strides = [1, 1]} : vector<1x128xf32> to vector<1x32xf32>
    %99 = vector.extract_strided_slice %96 {offsets = [0, 32], sizes = [1, 32], strides = [1, 1]} : vector<1x128xf32> to vector<1x32xf32>
    %100 = vector.extract_strided_slice %97 {offsets = [0, 64], sizes = [1, 32], strides = [1, 1]} : vector<1x128xf32> to vector<1x32xf32>
    %101 = vector.extract_strided_slice %96 {offsets = [0, 96], sizes = [1, 32], strides = [1, 1]} : vector<1x128xf32> to vector<1x32xf32>
    %102 = arith.mulf %99, %67 : vector<1x32xf32>
    %103 = arith.mulf %98, %100 : vector<1x32xf32>
    %104 = arith.addf %102, %103 : vector<1x32xf32>
    %105 = math.tanh %104 : vector<1x32xf32>
    %106 = arith.mulf %101, %105 : vector<1x32xf32>
    %107 = tpu.concatenate %106, %88 in 1 : vector<1x32xf32>, vector<1x32xf32> -> vector<1x64xf32>
    %cst_23 = arith.constant dense<0.000000e+00> : vector<1x256xf32>
    %108 = tpu.matmul %107, %0, %cst_23 {dimension_numbers = #tpu.dot_dimension_numbers<[1], [0], [0], [1], [0, 0, 1, 1], [], []>, precision = #tpu.contract_precision<fp32>} : vector<1x64xf32>, vector<64x256xf32>, vector<1x256xf32> -> vector<1x256xf32>
    %109 = vector.extract_strided_slice %108 {offsets = [0, 128], sizes = [1, 128], strides = [1, 1]} : vector<1x256xf32> to vector<1x128xf32>
    %110 = arith.addf %109, %4 : vector<1x128xf32>
    %111 = arith.negf %110 : vector<1x128xf32>
    %112 = math.exp %111 : vector<1x128xf32>
    %cst_24 = arith.constant 1.000000e+00 : f32
    %113 = vector.broadcast %cst_24 : f32 to vector<1x128xf32>
    %114 = arith.addf %113, %112 : vector<1x128xf32>
    %115 = arith.divf %113, %114 : vector<1x128xf32>
    %116 = math.tanh %110 : vector<1x128xf32>
    %117 = vector.extract_strided_slice %115 {offsets = [0, 0], sizes = [1, 32], strides = [1, 1]} : vector<1x128xf32> to vector<1x32xf32>
    %118 = vector.extract_strided_slice %115 {offsets = [0, 32], sizes = [1, 32], strides = [1, 1]} : vector<1x128xf32> to vector<1x32xf32>
    %119 = vector.extract_strided_slice %116 {offsets = [0, 64], sizes = [1, 32], strides = [1, 1]} : vector<1x128xf32> to vector<1x32xf32>
    %120 = vector.extract_strided_slice %115 {offsets = [0, 96], sizes = [1, 32], strides = [1, 1]} : vector<1x128xf32> to vector<1x32xf32>
    %121 = arith.mulf %118, %86 : vector<1x32xf32>
    %122 = arith.mulf %117, %119 : vector<1x32xf32>
    %123 = arith.addf %121, %122 : vector<1x32xf32>
    %124 = math.tanh %123 : vector<1x32xf32>
    %125 = arith.mulf %120, %124 : vector<1x32xf32>
    %126 = vector.extract_strided_slice %9 {offsets = [3, 0], sizes = [1, 128], strides = [1, 1]} : vector<8x128xf32> to vector<1x128xf32>
    %127 = vector.extract_strided_slice %108 {offsets = [0, 0], sizes = [1, 128], strides = [1, 1]} : vector<1x256xf32> to vector<1x128xf32>
    %128 = arith.addf %126, %127 : vector<1x128xf32>
    %129 = arith.negf %128 : vector<1x128xf32>
    %130 = math.exp %129 : vector<1x128xf32>
    %cst_25 = arith.constant 1.000000e+00 : f32
    %131 = vector.broadcast %cst_25 : f32 to vector<1x128xf32>
    %132 = arith.addf %131, %130 : vector<1x128xf32>
    %133 = arith.divf %131, %132 : vector<1x128xf32>
    %134 = math.tanh %128 : vector<1x128xf32>
    %135 = vector.extract_strided_slice %133 {offsets = [0, 0], sizes = [1, 32], strides = [1, 1]} : vector<1x128xf32> to vector<1x32xf32>
    %136 = vector.extract_strided_slice %133 {offsets = [0, 32], sizes = [1, 32], strides = [1, 1]} : vector<1x128xf32> to vector<1x32xf32>
    %137 = vector.extract_strided_slice %134 {offsets = [0, 64], sizes = [1, 32], strides = [1, 1]} : vector<1x128xf32> to vector<1x32xf32>
    %138 = vector.extract_strided_slice %133 {offsets = [0, 96], sizes = [1, 32], strides = [1, 1]} : vector<1x128xf32> to vector<1x32xf32>
    %139 = arith.mulf %136, %104 : vector<1x32xf32>
    %140 = arith.mulf %135, %137 : vector<1x32xf32>
    %141 = arith.addf %139, %140 : vector<1x32xf32>
    %142 = math.tanh %141 : vector<1x32xf32>
    %143 = arith.mulf %138, %142 : vector<1x32xf32>
    %144 = tpu.concatenate %143, %125 in 1 : vector<1x32xf32>, vector<1x32xf32> -> vector<1x64xf32>
    %cst_26 = arith.constant dense<0.000000e+00> : vector<1x256xf32>
    %145 = tpu.matmul %144, %0, %cst_26 {dimension_numbers = #tpu.dot_dimension_numbers<[1], [0], [0], [1], [0, 0, 1, 1], [], []>, precision = #tpu.contract_precision<fp32>} : vector<1x64xf32>, vector<64x256xf32>, vector<1x256xf32> -> vector<1x256xf32>
    %146 = vector.extract_strided_slice %145 {offsets = [0, 128], sizes = [1, 128], strides = [1, 1]} : vector<1x256xf32> to vector<1x128xf32>
    %147 = arith.addf %146, %4 : vector<1x128xf32>
    %148 = arith.negf %147 : vector<1x128xf32>
    %149 = math.exp %148 : vector<1x128xf32>
    %cst_27 = arith.constant 1.000000e+00 : f32
    %150 = vector.broadcast %cst_27 : f32 to vector<1x128xf32>
    %151 = arith.addf %150, %149 : vector<1x128xf32>
    %152 = arith.divf %150, %151 : vector<1x128xf32>
    %153 = math.tanh %147 : vector<1x128xf32>
    %154 = vector.extract_strided_slice %152 {offsets = [0, 0], sizes = [1, 32], strides = [1, 1]} : vector<1x128xf32> to vector<1x32xf32>
    %155 = vector.extract_strided_slice %152 {offsets = [0, 32], sizes = [1, 32], strides = [1, 1]} : vector<1x128xf32> to vector<1x32xf32>
    %156 = vector.extract_strided_slice %153 {offsets = [0, 64], sizes = [1, 32], strides = [1, 1]} : vector<1x128xf32> to vector<1x32xf32>
    %157 = vector.extract_strided_slice %152 {offsets = [0, 96], sizes = [1, 32], strides = [1, 1]} : vector<1x128xf32> to vector<1x32xf32>
    %158 = arith.mulf %155, %123 : vector<1x32xf32>
    %159 = arith.mulf %154, %156 : vector<1x32xf32>
    %160 = arith.addf %158, %159 : vector<1x32xf32>
    %161 = math.tanh %160 : vector<1x32xf32>
    %162 = arith.mulf %157, %161 : vector<1x32xf32>
    %163 = vector.extract_strided_slice %9 {offsets = [4, 0], sizes = [1, 128], strides = [1, 1]} : vector<8x128xf32> to vector<1x128xf32>
    %164 = vector.extract_strided_slice %145 {offsets = [0, 0], sizes = [1, 128], strides = [1, 1]} : vector<1x256xf32> to vector<1x128xf32>
    %165 = arith.addf %163, %164 : vector<1x128xf32>
    %166 = arith.negf %165 : vector<1x128xf32>
    %167 = math.exp %166 : vector<1x128xf32>
    %cst_28 = arith.constant 1.000000e+00 : f32
    %168 = vector.broadcast %cst_28 : f32 to vector<1x128xf32>
    %169 = arith.addf %168, %167 : vector<1x128xf32>
    %170 = arith.divf %168, %169 : vector<1x128xf32>
    %171 = math.tanh %165 : vector<1x128xf32>
    %172 = vector.extract_strided_slice %170 {offsets = [0, 0], sizes = [1, 32], strides = [1, 1]} : vector<1x128xf32> to vector<1x32xf32>
    %173 = vector.extract_strided_slice %170 {offsets = [0, 32], sizes = [1, 32], strides = [1, 1]} : vector<1x128xf32> to vector<1x32xf32>
    %174 = vector.extract_strided_slice %171 {offsets = [0, 64], sizes = [1, 32], strides = [1, 1]} : vector<1x128xf32> to vector<1x32xf32>
    %175 = vector.extract_strided_slice %170 {offsets = [0, 96], sizes = [1, 32], strides = [1, 1]} : vector<1x128xf32> to vector<1x32xf32>
    %176 = arith.mulf %173, %141 : vector<1x32xf32>
    %177 = arith.mulf %172, %174 : vector<1x32xf32>
    %178 = arith.addf %176, %177 : vector<1x32xf32>
    %179 = math.tanh %178 : vector<1x32xf32>
    %180 = arith.mulf %175, %179 : vector<1x32xf32>
    %181 = tpu.concatenate %180, %162 in 1 : vector<1x32xf32>, vector<1x32xf32> -> vector<1x64xf32>
    %cst_29 = arith.constant dense<0.000000e+00> : vector<1x256xf32>
    %182 = tpu.matmul %181, %0, %cst_29 {dimension_numbers = #tpu.dot_dimension_numbers<[1], [0], [0], [1], [0, 0, 1, 1], [], []>, precision = #tpu.contract_precision<fp32>} : vector<1x64xf32>, vector<64x256xf32>, vector<1x256xf32> -> vector<1x256xf32>
    %183 = vector.extract_strided_slice %182 {offsets = [0, 128], sizes = [1, 128], strides = [1, 1]} : vector<1x256xf32> to vector<1x128xf32>
    %184 = arith.addf %183, %4 : vector<1x128xf32>
    %185 = arith.negf %184 : vector<1x128xf32>
    %186 = math.exp %185 : vector<1x128xf32>
    %cst_30 = arith.constant 1.000000e+00 : f32
    %187 = vector.broadcast %cst_30 : f32 to vector<1x128xf32>
    %188 = arith.addf %187, %186 : vector<1x128xf32>
    %189 = arith.divf %187, %188 : vector<1x128xf32>
    %190 = math.tanh %184 : vector<1x128xf32>
    %191 = vector.extract_strided_slice %189 {offsets = [0, 0], sizes = [1, 32], strides = [1, 1]} : vector<1x128xf32> to vector<1x32xf32>
    %192 = vector.extract_strided_slice %189 {offsets = [0, 32], sizes = [1, 32], strides = [1, 1]} : vector<1x128xf32> to vector<1x32xf32>
    %193 = vector.extract_strided_slice %190 {offsets = [0, 64], sizes = [1, 32], strides = [1, 1]} : vector<1x128xf32> to vector<1x32xf32>
    %194 = vector.extract_strided_slice %189 {offsets = [0, 96], sizes = [1, 32], strides = [1, 1]} : vector<1x128xf32> to vector<1x32xf32>
    %195 = arith.mulf %192, %160 : vector<1x32xf32>
    %196 = arith.mulf %191, %193 : vector<1x32xf32>
    %197 = arith.addf %195, %196 : vector<1x32xf32>
    %198 = math.tanh %197 : vector<1x32xf32>
    %199 = arith.mulf %194, %198 : vector<1x32xf32>
    %200 = vector.extract_strided_slice %9 {offsets = [5, 0], sizes = [1, 128], strides = [1, 1]} : vector<8x128xf32> to vector<1x128xf32>
    %201 = vector.extract_strided_slice %182 {offsets = [0, 0], sizes = [1, 128], strides = [1, 1]} : vector<1x256xf32> to vector<1x128xf32>
    %202 = arith.addf %200, %201 : vector<1x128xf32>
    %203 = arith.negf %202 : vector<1x128xf32>
    %204 = math.exp %203 : vector<1x128xf32>
    %cst_31 = arith.constant 1.000000e+00 : f32
    %205 = vector.broadcast %cst_31 : f32 to vector<1x128xf32>
    %206 = arith.addf %205, %204 : vector<1x128xf32>
    %207 = arith.divf %205, %206 : vector<1x128xf32>
    %208 = math.tanh %202 : vector<1x128xf32>
    %209 = vector.extract_strided_slice %207 {offsets = [0, 0], sizes = [1, 32], strides = [1, 1]} : vector<1x128xf32> to vector<1x32xf32>
    %210 = vector.extract_strided_slice %207 {offsets = [0, 32], sizes = [1, 32], strides = [1, 1]} : vector<1x128xf32> to vector<1x32xf32>
    %211 = vector.extract_strided_slice %208 {offsets = [0, 64], sizes = [1, 32], strides = [1, 1]} : vector<1x128xf32> to vector<1x32xf32>
    %212 = vector.extract_strided_slice %207 {offsets = [0, 96], sizes = [1, 32], strides = [1, 1]} : vector<1x128xf32> to vector<1x32xf32>
    %213 = arith.mulf %210, %178 : vector<1x32xf32>
    %214 = arith.mulf %209, %211 : vector<1x32xf32>
    %215 = arith.addf %213, %214 : vector<1x32xf32>
    %216 = math.tanh %215 : vector<1x32xf32>
    %217 = arith.mulf %212, %216 : vector<1x32xf32>
    %218 = tpu.concatenate %217, %199 in 1 : vector<1x32xf32>, vector<1x32xf32> -> vector<1x64xf32>
    %cst_32 = arith.constant dense<0.000000e+00> : vector<1x256xf32>
    %219 = tpu.matmul %218, %0, %cst_32 {dimension_numbers = #tpu.dot_dimension_numbers<[1], [0], [0], [1], [0, 0, 1, 1], [], []>, precision = #tpu.contract_precision<fp32>} : vector<1x64xf32>, vector<64x256xf32>, vector<1x256xf32> -> vector<1x256xf32>
    %220 = vector.extract_strided_slice %219 {offsets = [0, 128], sizes = [1, 128], strides = [1, 1]} : vector<1x256xf32> to vector<1x128xf32>
    %221 = arith.addf %220, %4 : vector<1x128xf32>
    %222 = arith.negf %221 : vector<1x128xf32>
    %223 = math.exp %222 : vector<1x128xf32>
    %cst_33 = arith.constant 1.000000e+00 : f32
    %224 = vector.broadcast %cst_33 : f32 to vector<1x128xf32>
    %225 = arith.addf %224, %223 : vector<1x128xf32>
    %226 = arith.divf %224, %225 : vector<1x128xf32>
    %227 = math.tanh %221 : vector<1x128xf32>
    %228 = vector.extract_strided_slice %226 {offsets = [0, 0], sizes = [1, 32], strides = [1, 1]} : vector<1x128xf32> to vector<1x32xf32>
    %229 = vector.extract_strided_slice %226 {offsets = [0, 32], sizes = [1, 32], strides = [1, 1]} : vector<1x128xf32> to vector<1x32xf32>
    %230 = vector.extract_strided_slice %227 {offsets = [0, 64], sizes = [1, 32], strides = [1, 1]} : vector<1x128xf32> to vector<1x32xf32>
    %231 = vector.extract_strided_slice %226 {offsets = [0, 96], sizes = [1, 32], strides = [1, 1]} : vector<1x128xf32> to vector<1x32xf32>
    %232 = arith.mulf %229, %197 : vector<1x32xf32>
    %233 = arith.mulf %228, %230 : vector<1x32xf32>
    %234 = arith.addf %232, %233 : vector<1x32xf32>
    %235 = math.tanh %234 : vector<1x32xf32>
    %236 = arith.mulf %231, %235 : vector<1x32xf32>
    %237 = vector.extract_strided_slice %9 {offsets = [6, 0], sizes = [1, 128], strides = [1, 1]} : vector<8x128xf32> to vector<1x128xf32>
    %238 = vector.extract_strided_slice %219 {offsets = [0, 0], sizes = [1, 128], strides = [1, 1]} : vector<1x256xf32> to vector<1x128xf32>
    %239 = arith.addf %237, %238 : vector<1x128xf32>
    %240 = arith.negf %239 : vector<1x128xf32>
    %241 = math.exp %240 : vector<1x128xf32>
    %cst_34 = arith.constant 1.000000e+00 : f32
    %242 = vector.broadcast %cst_34 : f32 to vector<1x128xf32>
    %243 = arith.addf %242, %241 : vector<1x128xf32>
    %244 = arith.divf %242, %243 : vector<1x128xf32>
    %245 = math.tanh %239 : vector<1x128xf32>
    %246 = vector.extract_strided_slice %244 {offsets = [0, 0], sizes = [1, 32], strides = [1, 1]} : vector<1x128xf32> to vector<1x32xf32>
    %247 = vector.extract_strided_slice %244 {offsets = [0, 32], sizes = [1, 32], strides = [1, 1]} : vector<1x128xf32> to vector<1x32xf32>
    %248 = vector.extract_strided_slice %245 {offsets = [0, 64], sizes = [1, 32], strides = [1, 1]} : vector<1x128xf32> to vector<1x32xf32>
    %249 = vector.extract_strided_slice %244 {offsets = [0, 96], sizes = [1, 32], strides = [1, 1]} : vector<1x128xf32> to vector<1x32xf32>
    %250 = arith.mulf %247, %215 : vector<1x32xf32>
    %251 = arith.mulf %246, %248 : vector<1x32xf32>
    %252 = arith.addf %250, %251 : vector<1x32xf32>
    %253 = math.tanh %252 : vector<1x32xf32>
    %254 = arith.mulf %249, %253 : vector<1x32xf32>
    %255 = tpu.concatenate %254, %236 in 1 : vector<1x32xf32>, vector<1x32xf32> -> vector<1x64xf32>
    %cst_35 = arith.constant dense<0.000000e+00> : vector<1x256xf32>
    %256 = tpu.matmul %255, %0, %cst_35 {dimension_numbers = #tpu.dot_dimension_numbers<[1], [0], [0], [1], [0, 0, 1, 1], [], []>, precision = #tpu.contract_precision<fp32>} : vector<1x64xf32>, vector<64x256xf32>, vector<1x256xf32> -> vector<1x256xf32>
    %257 = vector.extract_strided_slice %256 {offsets = [0, 128], sizes = [1, 128], strides = [1, 1]} : vector<1x256xf32> to vector<1x128xf32>
    %258 = arith.addf %257, %4 : vector<1x128xf32>
    %259 = arith.negf %258 : vector<1x128xf32>
    %260 = math.exp %259 : vector<1x128xf32>
    %cst_36 = arith.constant 1.000000e+00 : f32
    %261 = vector.broadcast %cst_36 : f32 to vector<1x128xf32>
    %262 = arith.addf %261, %260 : vector<1x128xf32>
    %263 = arith.divf %261, %262 : vector<1x128xf32>
    %264 = math.tanh %258 : vector<1x128xf32>
    %265 = vector.extract_strided_slice %263 {offsets = [0, 0], sizes = [1, 32], strides = [1, 1]} : vector<1x128xf32> to vector<1x32xf32>
    %266 = vector.extract_strided_slice %263 {offsets = [0, 32], sizes = [1, 32], strides = [1, 1]} : vector<1x128xf32> to vector<1x32xf32>
    %267 = vector.extract_strided_slice %264 {offsets = [0, 64], sizes = [1, 32], strides = [1, 1]} : vector<1x128xf32> to vector<1x32xf32>
    %268 = vector.extract_strided_slice %263 {offsets = [0, 96], sizes = [1, 32], strides = [1, 1]} : vector<1x128xf32> to vector<1x32xf32>
    %269 = arith.mulf %266, %234 : vector<1x32xf32>
    %270 = arith.mulf %265, %267 : vector<1x32xf32>
    %271 = arith.addf %269, %270 : vector<1x32xf32>
    %272 = math.tanh %271 : vector<1x32xf32>
    %273 = arith.mulf %268, %272 : vector<1x32xf32>
    %274 = vector.extract_strided_slice %9 {offsets = [7, 0], sizes = [1, 128], strides = [1, 1]} : vector<8x128xf32> to vector<1x128xf32>
    %275 = vector.extract_strided_slice %256 {offsets = [0, 0], sizes = [1, 128], strides = [1, 1]} : vector<1x256xf32> to vector<1x128xf32>
    %276 = arith.addf %274, %275 : vector<1x128xf32>
    %277 = arith.negf %276 : vector<1x128xf32>
    %278 = math.exp %277 : vector<1x128xf32>
    %cst_37 = arith.constant 1.000000e+00 : f32
    %279 = vector.broadcast %cst_37 : f32 to vector<1x128xf32>
    %280 = arith.addf %279, %278 : vector<1x128xf32>
    %281 = arith.divf %279, %280 : vector<1x128xf32>
    %282 = math.tanh %276 : vector<1x128xf32>
    %283 = vector.extract_strided_slice %281 {offsets = [0, 0], sizes = [1, 32], strides = [1, 1]} : vector<1x128xf32> to vector<1x32xf32>
    %284 = vector.extract_strided_slice %281 {offsets = [0, 32], sizes = [1, 32], strides = [1, 1]} : vector<1x128xf32> to vector<1x32xf32>
    %285 = vector.extract_strided_slice %282 {offsets = [0, 64], sizes = [1, 32], strides = [1, 1]} : vector<1x128xf32> to vector<1x32xf32>
    %286 = vector.extract_strided_slice %281 {offsets = [0, 96], sizes = [1, 32], strides = [1, 1]} : vector<1x128xf32> to vector<1x32xf32>
    %287 = arith.mulf %284, %252 : vector<1x32xf32>
    %288 = arith.mulf %283, %285 : vector<1x32xf32>
    %289 = arith.addf %287, %288 : vector<1x32xf32>
    %290 = math.tanh %289 : vector<1x32xf32>
    %291 = arith.mulf %286, %290 : vector<1x32xf32>
    %292 = tpu.concatenate %291, %273 in 1 : vector<1x32xf32>, vector<1x32xf32> -> vector<1x64xf32>
    %cst_38 = arith.constant dense<0.000000e+00> : vector<1x256xf32>
    %293 = tpu.matmul %292, %0, %cst_38 {dimension_numbers = #tpu.dot_dimension_numbers<[1], [0], [0], [1], [0, 0, 1, 1], [], []>, precision = #tpu.contract_precision<fp32>} : vector<1x64xf32>, vector<64x256xf32>, vector<1x256xf32> -> vector<1x256xf32>
    %294 = vector.extract_strided_slice %293 {offsets = [0, 128], sizes = [1, 128], strides = [1, 1]} : vector<1x256xf32> to vector<1x128xf32>
    %295 = arith.addf %294, %4 : vector<1x128xf32>
    %296 = arith.negf %295 : vector<1x128xf32>
    %297 = math.exp %296 : vector<1x128xf32>
    %cst_39 = arith.constant 1.000000e+00 : f32
    %298 = vector.broadcast %cst_39 : f32 to vector<1x128xf32>
    %299 = arith.addf %298, %297 : vector<1x128xf32>
    %300 = arith.divf %298, %299 : vector<1x128xf32>
    %301 = math.tanh %295 : vector<1x128xf32>
    %302 = vector.extract_strided_slice %300 {offsets = [0, 0], sizes = [1, 32], strides = [1, 1]} : vector<1x128xf32> to vector<1x32xf32>
    %303 = vector.extract_strided_slice %300 {offsets = [0, 32], sizes = [1, 32], strides = [1, 1]} : vector<1x128xf32> to vector<1x32xf32>
    %304 = vector.extract_strided_slice %301 {offsets = [0, 64], sizes = [1, 32], strides = [1, 1]} : vector<1x128xf32> to vector<1x32xf32>
    %305 = vector.extract_strided_slice %300 {offsets = [0, 96], sizes = [1, 32], strides = [1, 1]} : vector<1x128xf32> to vector<1x32xf32>
    %306 = arith.mulf %303, %271 : vector<1x32xf32>
    %307 = arith.mulf %302, %304 : vector<1x32xf32>
    %308 = arith.addf %306, %307 : vector<1x32xf32>
    %309 = math.tanh %308 : vector<1x32xf32>
    %310 = arith.mulf %305, %309 : vector<1x32xf32>
    %cst_40 = arith.constant dense<0.000000e+00> : vector<1x128xf32>
    %311 = tpu.matmul %310, %2, %cst_40 {dimension_numbers = #tpu.dot_dimension_numbers<[1], [0], [0], [1], [0, 0, 1, 1], [], []>, precision = #tpu.contract_precision<fp32>} : vector<1x32xf32>, vector<32x128xf32>, vector<1x128xf32> -> vector<1x128xf32>
    %312 = arith.addf %311, %5 : vector<1x128xf32>
    %313 = tpu.concatenate %291, %310, %289, %308 in 1 : vector<1x32xf32>, vector<1x32xf32>, vector<1x32xf32>, vector<1x32xf32> -> vector<1x128xf32>
    %314 = tpu.concatenate %312, %313 in 0 : vector<1x128xf32>, vector<1x128xf32> -> vector<2x128xf32>
    %c0_41 = arith.constant 0 : index
    %c0_42 = arith.constant 0 : index
    %315 = vector.load %arg4[%c0_41, %c0_42] : memref<2x128xf32, #tpu.memory_space<vmem>>, vector<2x128xf32>
    tpu.vector_store %arg4[%c0_41, %c0_42], %314 {strides = array<i32>} : memref<2x128xf32, #tpu.memory_space<vmem>>, vector<2x128xf32>,
    return
  }
}

</mosaic_0001>

<llo_original>
// kernel: squeeze.9
$region0: #{squeeze.9}
  %s0 = inlined_call_operand.vmem [shape: f32[64], index: 0, kind: input, shape index: {}]
  %s1 = inlined_call_operand.hbm [shape: f32[2,1,32], index: 1, kind: output, shape index: {}]
  $region1: #{squeeze.9} parent=0
    #allocation0 [shape = 'u8[1024]{0}', space=vmem, size = 0x400, scoped, tag = 'operand span for operand 1']
    #allocation1 [shape = 's32[1]{0}', space=sflag, size = 0x4, scoped, tag = 'scoped memory for squeeze.9']
    #allocation2 [shape = 'u8[4096]{0}', space=vmem, size = 0x1000, scoped, tag = 'scoped mem for output reshape']
    #allocation3 [shape = 'u8[4096]{0}', space=vmem, size = 0x1000, scoped, tag = 'scoped mem for input reshape']
    %2 = vsyncpa [#allocation1], 0
    %s4 = sshllo.u32 0, 1
    %v5 = vld [vmem:[%s0] sm:%s4]
    %6 = vst [vmem:[#allocation3] sm:%s4] %v5
    %v7 = vld [vmem:[#allocation3] sm:$0x1]
    %vm8 = vcmask 261120
    %9 = vst.msk [vmem:[#allocation2] sm:$0x1] %vm8, %v7
    %v10 = vld [vmem:[#allocation3] sm:$0x1]
    %11 = vrot.lane.b32.xlu0 %v10, 96
    %v12 = vpop.permute.xlu0 %11
    %vm13 = vcmask 261120
    %s14 = scalar_lea.vmem [#allocation2], 1
    %15 = vst.msk [vmem:[%s14] sm:$0x1] %vm13, %v12
    %s17 = sshllo.u32 0, 2
    %v19 = vld [vmem:[#allocation2] sm:%s17]
    %s20 = sshllo.u32 0, 2
    %21 = vst [vmem:[#allocation0] sm:%s20] %v19
    %s23 = ssub.s32 32, 32
    %24 = vsyncadd [#allocation1], %s23
    %s26 = sshll.u32 [#allocation0], 4
    %s27 = int_to_ptr.vmem [resolvable:$true] %s26
    %29 = dma.vmem_to_hbm [thread:$0]  %s27, 32, %s1, [#allocation1]
    %30 = dma.done [#allocation1], 32
    %31 = vsyncpa [#allocation1], 1

// kernel: _lstm_apply.1
$region0: #{_lstm_apply.1}
  #allocation0 [shape = 'u32[]', space=smem, size = 0x4, offset = 0x4, fixed_abs, tag = 'smem constant byte address 0x4 - core index']
  #allocation1 [shape = 'u32[144,128]{1,0:T(1,128)}', space=vmem, size = 0x12000, scoped, tag = 'internal scratch']
  %s0 = inlined_call_operand.vmem [shape: f32[8,8], index: 0, kind: input, shape index: {}]
  %s1 = inlined_call_operand.vmem [shape: f32[2,32], index: 1, kind: input, shape index: {}]
  %s2 = inlined_call_operand.vmem [shape: f32[2,32], index: 2, kind: input, shape index: {}]
  %s3 = inlined_call_operand.hbm [shape: f32[106,256], index: 3, kind: input, shape index: {}]
  %s4 = inlined_call_operand.vmem [shape: f32[2,128], index: 4, kind: output, shape index: {}]
  %s5 = sld [smem:[#allocation0]]
  $region30: #{_lstm_apply.1} parent=0
    _
  %s7 = ssub.s32 1, %s5
  %s8 = scalar_select 0, %s7, %s5
  $region1: #{_lstm_apply.1} parent=0
    #allocation2 [shape = 'u8[114688]{0}', space=vmem, size = 0x1c000, scoped, tag = 'input window, operand 3, single buffered']
    #allocation3 [shape = 's32[1]{0}', space=sflag, size = 0x4, scoped, tag = 'scoped memory for _lstm_apply.1']
    %9 = vsyncpa [#allocation3], 0
    // Predicated region
    $region2: #{_lstm_apply.1} parent=1 // pred_check
      _
    $region3: #{_lstm_apply.1} parent=1 // pred_check_branch
      %11 = sbr.rel (0) target = $region5
    $region4: #{_lstm_apply.1} parent=1 // pred_region
      _
    $region5: #{_lstm_apply.1} parent=1 // pred_fallthru
      _
    // Predicated region
    $region6: #{_lstm_apply.1} parent=1 // pred_check
      _
    $region7: #{_lstm_apply.1} parent=1 // pred_check_branch
      %13 = sbr.rel (0) target = $region9
    $region8: #{_lstm_apply.1} parent=1 // pred_region
      _
    $region9: #{_lstm_apply.1} parent=1 // pred_fallthru
      _
    // Predicated region
    $region10: #{_lstm_apply.1} parent=1 // pred_check
      _
    $region11: #{_lstm_apply.1} parent=1 // pred_check_branch
      %15 = sbr.rel (0) target = $region13
    $region12: #{_lstm_apply.1} parent=1 // pred_region
      _
    $region13: #{_lstm_apply.1} parent=1 // pred_fallthru
      _
    // Predicated region
    $region14: #{_lstm_apply.1} parent=1 // pred_check
      _
    $region15: #{_lstm_apply.1} parent=1 // pred_check_branch
      %17 = sbr.rel (0) target = $region17
    $region16: #{_lstm_apply.1} parent=1 // pred_region
      %s19 = ssub.s32 3584, 3584
      %20 = vsyncadd [#allocation3], %s19
      %s21 = sshll.u32 [#allocation2], 4
      %s22 = int_to_ptr.vmem [resolvable:$true] %s21
      %27 = dma.hbm_to_vmem [thread:$0]  %s3, 3584, %s22, [#allocation3], 256, 256, 16
    $region17: #{_lstm_apply.1} parent=1 // pred_fallthru
      _
    // Predicated region
    $region18: #{_lstm_apply.1} parent=1 // pred_check
      _
    $region19: #{_lstm_apply.1} parent=1 // pred_check_branch
      %29 = sbr.rel (0) target = $region21
    $region20: #{_lstm_apply.1} parent=1 // pred_region
      %30 = dma.done [#allocation3], 3584
    $region21: #{_lstm_apply.1} parent=1 // pred_fallthru
      _
    %v31 = vld [vmem:[#allocation2] sm:$0xff]
    %v32 = vld [vmem:[#allocation2 + $0x8] sm:$0xff]
    %v33 = vld [vmem:[#allocation2 + $0x10] sm:$0xff]
    %v34 = vld [vmem:[#allocation2 + $0x18] sm:$0xff]
    %v35 = vld [vmem:[#allocation2 + $0x20] sm:$0xff]
    %v36 = vld [vmem:[#allocation2 + $0x28] sm:$0xff]
    %v37 = vld [vmem:[#allocation2 + $0x30] sm:$0xff]
    %v38 = vld [vmem:[#allocation2 + $0x38] sm:$0xff]
    %v39 = vld [vmem:[#allocation2 + $0x40] sm:$0xff]
    %v40 = vld [vmem:[#allocation2 + $0x48] sm:$0xff]
    %v41 = vld [vmem:[#allocation2 + $0x50] sm:$0xff]
    %v42 = vld [vmem:[#allocation2 + $0x58] sm:$0xff]
    %v43 = vld [vmem:[#allocation2 + $0x60] sm:$0xff]
    %v44 = vld [vmem:[#allocation2 + $0x68] sm:$0xff]
    %v45 = vld [vmem:[#allocation2 + $0x70] sm:$0xff]
    %v46 = vld [vmem:[#allocation2 + $0x78] sm:$0xff]
    %v47 = vld [vmem:[#allocation2 + $0x80] sm:$0xff]
    %v48 = vld [vmem:[#allocation2 + $0x90] sm:$0xff]
    %v49 = vld [vmem:[#allocation2 + $0xa0] sm:$0xff]
    %v50 = vld [vmem:[#allocation2 + $0xb0] sm:$0xff]
    %v51 = vld [vmem:[#allocation2 + $0xc0] sm:$0xff]
    %v52 = vld [vmem:[#allocation2 + $0xd0] ss:$0 sm:$0xff]
    %v53 = vld [vmem:[#allocation2 + $0xd8] ss:$0 sm:$0xff]
    %v54 = vld [vmem:[#allocation2 + $0xd1] ss:$0 sm:$0xff]
    %v55 = vld [vmem:[%s0] sm:$0xff]
    %vm56 = vcmask 64512
    %v58 = vsel %vm56, %v55, 0
    %60 = vmatprep.subr.mxu0 0.0
    %v61 = vand.u32 %v47, 4294901760
    %62 = vmatpush1.msra.mxu0 %v61
    %63 = vmatprep.subr.mxu0 0.0
    %64 = vmatpush1.msra.mxu0 0.0
    %65 = vmatprep.subr.mxu0 0.0
    %66 = vmatpush1.msra.mxu0 0.0
    %67 = vmatprep.subr.mxu0 0.0
    %68 = vmatpush1.msra.mxu0 0.0
    %69 = vmatprep.subr.mxu0 0.0
    %70 = vmatpush1.msra.mxu0 0.0
    %71 = vmatprep.subr.mxu0 0.0
    %72 = vmatpush1.msra.mxu0 0.0
    %73 = vmatprep.subr.mxu0 0.0
    %74 = vmatpush1.msra.mxu0 0.0
    %75 = vmatprep.subr.mxu0 0.0
    %76 = vmatpush1.msra.mxu0 0.0
    %77 = vmatprep.subr.mxu0 0.0
    %78 = vmatpush1.msra.mxu0 0.0
    %79 = vmatprep.subr.mxu0 0.0
    %80 = vmatpush1.msra.mxu0 0.0
    %81 = vmatprep.subr.mxu0 0.0
    %82 = vmatpush1.msra.mxu0 0.0
    %83 = vmatprep.subr.mxu0 0.0
    %84 = vmatpush1.msra.mxu0 0.0
    %85 = vmatprep.subr.mxu0 0.0
    %86 = vmatpush1.msra.mxu0 0.0
    %87 = vmatprep.subr.mxu0 0.0
    %88 = vmatpush1.msra.mxu0 0.0
    %89 = vmatprep.subr.mxu0 0.0
    %90 = vmatpush1.msra.mxu0 0.0
    %91 = vmatprep.subr.mxu0 0.0
    %92 = vmatpush1.msra.mxu0 0.0
    %93 = vmatprep.subr.mxu0 0.0
    %94 = vmatpush1.msra.mxu0 0.0
    %95 = vmatprep.subr.mxu0 0.0
    %96 = vmatpush1.msra.mxu0 0.0
    %97 = vmatprep.subr.mxu0 0.0
    %98 = vmatpush1.msra.mxu0 0.0
    %99 = vmatprep.subr.mxu0 0.0
    %100 = vmatpush1.msra.mxu0 0.0
    %101 = vmatprep.subr.mxu0 0.0
    %102 = vmatpush1.msra.mxu0 0.0
    %103 = vmatprep.subr.mxu0 0.0
    %104 = vmatpush1.msra.mxu0 0.0
    %105 = vmatprep.subr.mxu0 0.0
    %106 = vmatpush1.msra.mxu0 0.0
    %107 = vmatprep.subr.mxu0 0.0
    %108 = vmatpush1.msra.mxu0 0.0
    %109 = vmatprep.subr.mxu0 0.0
    %110 = vmatpush1.msra.mxu0 0.0
    %111 = vmatprep.subr.mxu0 0.0
    %112 = vmatpush1.msra.mxu0 0.0
    %113 = vmatprep.subr.mxu0 0.0
    %114 = vmatpush1.msra.mxu0 0.0
    %115 = vmatprep.subr.mxu0 0.0
    %116 = vmatpush1.msra.mxu0 0.0
    %117 = vmatprep.subr.mxu0 0.0
    %118 = vmatpush1.msra.mxu0 0.0
    %119 = vmatprep.subr.mxu0 0.0
    %120 = vmatpush1.msra.mxu0 0.0
    %121 = vmatprep.subr.mxu0 0.0
    %122 = vmatpush1.msra.mxu0 0.0
    %123 = vmatprep.subr.mxu0 0.0
    %124 = vmatpush1.msra.mxu0 0.0
    %125 = vmatprep.mubr.f32.mxu0 0.0
    %v126 = vand.u32 %v58, 4294901760
    %v127 = vsub.f32 %v58, %v126
    %v128 = vand.u32 %v127, 4294901760
    %v129 = vsub.f32 %v127, %v128
    %v130 = vand.u32 %v129, 4294901760
    %131 = vmatmul.mubr.f32.gmra.mrb[0].mxu0 %v130
    %v132 = vpop.f32.mrb[0].mxu0
    %v133 = vadd.f32 %v52, %v132
    %v134 = vpop.f32.mrb[0].mxu0
    %135 = vdwg.mxu0
    %136 = vmatprep.subr.mxu0 0.0
    %v137 = vand.u32 %v47, 4294901760
    %v138 = vsub.f32 %v47, %v137
    %v139 = vand.u32 %v138, 4294901760
    %v140 = vsub.f32 %v138, %v139
    %v141 = vand.u32 %v140, 4294901760
    %142 = vmatpush1.msra.mxu0 %v141
    %143 = vmatprep.subr.mxu0 0.0
    %144 = vmatpush1.msra.mxu0 0.0
    %145 = vmatprep.subr.mxu0 0.0
    %146 = vmatpush1.msra.mxu0 0.0
    %147 = vmatprep.subr.mxu0 0.0
    %148 = vmatpush1.msra.mxu0 0.0
    %149 = vmatprep.subr.mxu0 0.0
    %150 = vmatpush1.msra.mxu0 0.0
    %151 = vmatprep.subr.mxu0 0.0
    %152 = vmatpush1.msra.mxu0 0.0
    %153 = vmatprep.subr.mxu0 0.0
    %154 = vmatpush1.msra.mxu0 0.0
    %155 = vmatprep.subr.mxu0 0.0
    %156 = vmatpush1.msra.mxu0 0.0
    %157 = vmatprep.subr.mxu0 0.0
    %158 = vmatpush1.msra.mxu0 0.0
    %159 = vmatprep.subr.mxu0 0.0
    %160 = vmatpush1.msra.mxu0 0.0
    %161 = vmatprep.subr.mxu0 0.0
    %162 = vmatpush1.msra.mxu0 0.0
    %163 = vmatprep.subr.mxu0 0.0
    %164 = vmatpush1.msra.mxu0 0.0
    %165 = vmatprep.subr.mxu0 0.0
    %166 = vmatpush1.msra.mxu0 0.0
    %167 = vmatprep.subr.mxu0 0.0
    %168 = vmatpush1.msra.mxu0 0.0
    %169 = vmatprep.subr.mxu0 0.0
    %170 = vmatpush1.msra.mxu0 0.0
    %171 = vmatprep.subr.mxu0 0.0
    %172 = vmatpush1.msra.mxu0 0.0
    %173 = vmatprep.subr.mxu0 0.0
    %174 = vmatpush1.msra.mxu0 0.0
    %175 = vmatprep.subr.mxu0 0.0
    %176 = vmatpush1.msra.mxu0 0.0
    %177 = vmatprep.subr.mxu0 0.0
    %178 = vmatpush1.msra.mxu0 0.0
    %179 = vmatprep.subr.mxu0 0.0
    %180 = vmatpush1.msra.mxu0 0.0
    %181 = vmatprep.subr.mxu0 0.0
    %182 = vmatpush1.msra.mxu0 0.0
    %183 = vmatprep.subr.mxu0 0.0
    %184 = vmatpush1.msra.mxu0 0.0
    %185 = vmatprep.subr.mxu0 0.0
    %186 = vmatpush1.msra.mxu0 0.0
    %187 = vmatprep.subr.mxu0 0.0
    %188 = vmatpush1.msra.mxu0 0.0
    %189 = vmatprep.subr.mxu0 0.0
    %190 = vmatpush1.msra.mxu0 0.0
    %191 = vmatprep.subr.mxu0 0.0
    %192 = vmatpush1.msra.mxu0 0.0
    %193 = vmatprep.subr.mxu0 0.0
    %194 = vmatpush1.msra.mxu0 0.0
    %195 = vmatprep.subr.mxu0 0.0
    %196 = vmatpush1.msra.mxu0 0.0
    %197 = vmatprep.subr.mxu0 0.0
    %198 = vmatpush1.msra.mxu0 0.0
    %199 = vmatprep.subr.mxu0 0.0
    %200 = vmatpush1.msra.mxu0 0.0
    %201 = vmatprep.subr.mxu0 0.0
    %202 = vmatpush1.msra.mxu0 0.0
    %203 = vmatprep.subr.mxu0 0.0
    %204 = vmatpush1.msra.mxu0 0.0
    %205 = vmatprep.mubr.f32.mxu0 0.0
    %v206 = vand.u32 %v58, 4294901760
    %207 = vmatmul.mubr.f32.gmra.mrb[0].mxu0 %v206
    %v208 = vpop.f32.mrb[0].mxu0
    %v209 = vadd.f32 %v133, %v208
    %v210 = vpop.f32.mrb[0].mxu0
    %211 = vdwg.mxu0
    %212 = vmatprep.subr.mxu0 0.0
    %v213 = vand.u32 %v47, 4294901760
    %v214 = vsub.f32 %v47, %v213
    %215 = vmatpush1.msra.mxu0 %v214
    %216 = vmatprep.subr.mxu0 0.0
    %217 = vmatpush1.msra.mxu0 0.0
    %218 = vmatprep.subr.mxu0 0.0
    %219 = vmatpush1.msra.mxu0 0.0
    %220 = vmatprep.subr.mxu0 0.0
    %221 = vmatpush1.msra.mxu0 0.0
    %222 = vmatprep.subr.mxu0 0.0
    %223 = vmatpush1.msra.mxu0 0.0
    %224 = vmatprep.subr.mxu0 0.0
    %225 = vmatpush1.msra.mxu0 0.0
    %226 = vmatprep.subr.mxu0 0.0
    %227 = vmatpush1.msra.mxu0 0.0
    %228 = vmatprep.subr.mxu0 0.0
    %229 = vmatpush1.msra.mxu0 0.0
    %230 = vmatprep.subr.mxu0 0.0
    %231 = vmatpush1.msra.mxu0 0.0
    %232 = vmatprep.subr.mxu0 0.0
    %233 = vmatpush1.msra.mxu0 0.0
    %234 = vmatprep.subr.mxu0 0.0
    %235 = vmatpush1.msra.mxu0 0.0
    %236 = vmatprep.subr.mxu0 0.0
    %237 = vmatpush1.msra.mxu0 0.0
    %238 = vmatprep.subr.mxu0 0.0
    %239 = vmatpush1.msra.mxu0 0.0
    %240 = vmatprep.subr.mxu0 0.0
    %241 = vmatpush1.msra.mxu0 0.0
    %242 = vmatprep.subr.mxu0 0.0
    %243 = vmatpush1.msra.mxu0 0.0
    %244 = vmatprep.subr.mxu0 0.0
    %245 = vmatpush1.msra.mxu0 0.0
    %246 = vmatprep.subr.mxu0 0.0
    %247 = vmatpush1.msra.mxu0 0.0
    %248 = vmatprep.subr.mxu0 0.0
    %249 = vmatpush1.msra.mxu0 0.0
    %250 = vmatprep.subr.mxu0 0.0
    %251 = vmatpush1.msra.mxu0 0.0
    %252 = vmatprep.subr.mxu0 0.0
    %253 = vmatpush1.msra.mxu0 0.0
    %254 = vmatprep.subr.mxu0 0.0
    %255 = vmatpush1.msra.mxu0 0.0
    %256 = vmatprep.subr.mxu0 0.0
    %257 = vmatpush1.msra.mxu0 0.0
    %258 = vmatprep.subr.mxu0 0.0
    %259 = vmatpush1.msra.mxu0 0.0
    %260 = vmatprep.subr.mxu0 0.0
    %261 = vmatpush1.msra.mxu0 0.0
    %262 = vmatprep.subr.mxu0 0.0
    %263 = vmatpush1.msra.mxu0 0.0
    %264 = vmatprep.subr.mxu0 0.0
    %265 = vmatpush1.msra.mxu0 0.0
    %266 = vmatprep.subr.mxu0 0.0
    %267 = vmatpush1.msra.mxu0 0.0
    %268 = vmatprep.subr.mxu0 0.0
    %269 = vmatpush1.msra.mxu0 0.0
    %270 = vmatprep.subr.mxu0 0.0
    %271 = vmatpush1.msra.mxu0 0.0
    %272 = vmatprep.subr.mxu0 0.0
    %273 = vmatpush1.msra.mxu0 0.0
    %274 = vmatprep.subr.mxu0 0.0
    %275 = vmatpush1.msra.mxu0 0.0
    %276 = vmatprep.subr.mxu0 0.0
    %277 = vmatpush1.msra.mxu0 0.0
    %278 = vmatprep.mubr.f32.mxu0 0.0
    %v279 = vand.u32 %v58, 4294901760
    %v280 = vsub.f32 %v58, %v279
    %281 = vmatmul.mubr.f32.gmra.mrb[0].mxu0 %v280
    %v282 = vpop.f32.mrb[0].mxu0
    %v283 = vadd.f32 %v209, %v282
    %v284 = vpop.f32.mrb[0].mxu0
    %285 = vdwg.mxu0
    %286 = vmatprep.subr.mxu0 0.0
    %v287 = vand.u32 %v47, 4294901760
    %288 = vmatpush1.msra.mxu0 %v287
    %289 = vmatprep.subr.mxu0 0.0
    %290 = vmatpush1.msra.mxu0 0.0
    %291 = vmatprep.subr.mxu0 0.0
    %292 = vmatpush1.msra.mxu0 0.0
    %293 = vmatprep.subr.mxu0 0.0
    %294 = vmatpush1.msra.mxu0 0.0
    %295 = vmatprep.subr.mxu0 0.0
    %296 = vmatpush1.msra.mxu0 0.0
    %297 = vmatprep.subr.mxu0 0.0
    %298 = vmatpush1.msra.mxu0 0.0
    %299 = vmatprep.subr.mxu0 0.0
    %300 = vmatpush1.msra.mxu0 0.0
    %301 = vmatprep.subr.mxu0 0.0
    %302 = vmatpush1.msra.mxu0 0.0
    %303 = vmatprep.subr.mxu0 0.0
    %304 = vmatpush1.msra.mxu0 0.0
    %305 = vmatprep.subr.mxu0 0.0
    %306 = vmatpush1.msra.mxu0 0.0
    %307 = vmatprep.subr.mxu0 0.0
    %308 = vmatpush1.msra.mxu0 0.0
    %309 = vmatprep.subr.mxu0 0.0
    %310 = vmatpush1.msra.mxu0 0.0
    %311 = vmatprep.subr.mxu0 0.0
    %312 = vmatpush1.msra.mxu0 0.0
    %313 = vmatprep.subr.mxu0 0.0
    %314 = vmatpush1.msra.mxu0 0.0
    %315 = vmatprep.subr.mxu0 0.0
    %316 = vmatpush1.msra.mxu0 0.0
    %317 = vmatprep.subr.mxu0 0.0
    %318 = vmatpush1.msra.mxu0 0.0
    %319 = vmatprep.subr.mxu0 0.0
    %320 = vmatpush1.msra.mxu0 0.0
    %321 = vmatprep.subr.mxu0 0.0
    %322 = vmatpush1.msra.mxu0 0.0
    %323 = vmatprep.subr.mxu0 0.0
    %324 = vmatpush1.msra.mxu0 0.0
    %325 = vmatprep.subr.mxu0 0.0
    %326 = vmatpush1.msra.mxu0 0.0
    %327 = vmatprep.subr.mxu0 0.0
    %328 = vmatpush1.msra.mxu0 0.0
    %329 = vmatprep.subr.mxu0 0.0
    %330 = vmatpush1.msra.mxu0 0.0
    %331 = vmatprep.subr.mxu0 0.0
    %332 = vmatpush1.msra.mxu0 0.0
    %333 = vmatprep.subr.mxu0 0.0
    %334 = vmatpush1.msra.mxu0 0.0
    %335 = vmatprep.subr.mxu0 0.0
    %336 = vmatpush1.msra.mxu0 0.0
    %337 = vmatprep.subr.mxu0 0.0
    %338 = vmatpush1.msra.mxu0 0.0
    %339 = vmatprep.subr.mxu0 0.0
    %340 = vmatpush1.msra.mxu0 0.0
    %341 = vmatprep.subr.mxu0 0.0
    %342 = vmatpush1.msra.mxu0 0.0
    %343 = vmatprep.subr.mxu0 0.0
    %344 = vmatpush1.msra.mxu0 0.0
    %345 = vmatprep.subr.mxu0 0.0
    %346 = vmatpush1.msra.mxu0 0.0
    %347 = vmatprep.subr.mxu0 0.0
    %348 = vmatpush1.msra.mxu0 0.0
    %349 = vmatprep.subr.mxu0 0.0
    %350 = vmatpush1.msra.mxu0 0.0
    %351 = vmatprep.mubr.f32.mxu0 0.0
    %v352 = vand.u32 %v58, 4294901760
    %v353 = vsub.f32 %v58, %v352
    %v354 = vand.u32 %v353, 4294901760
    %355 = vmatmul.mubr.f32.gmra.mrb[0].mxu0 %v354
    %v356 = vpop.f32.mrb[0].mxu0
    %v357 = vadd.f32 %v283, %v356
    %v358 = vpop.f32.mrb[0].mxu0
    %359 = vdwg.mxu0
    %360 = vmatprep.subr.mxu0 0.0
    %v361 = vand.u32 %v47, 4294901760
    %v362 = vsub.f32 %v47, %v361
    %v363 = vand.u32 %v362, 4294901760
    %364 = vmatpush1.msra.mxu0 %v363
    %365 = vmatprep.subr.mxu0 0.0
    %366 = vmatpush1.msra.mxu0 0.0
    %367 = vmatprep.subr.mxu0 0.0
    %368 = vmatpush1.msra.mxu0 0.0
    %369 = vmatprep.subr.mxu0 0.0
    %370 = vmatpush1.msra.mxu0 0.0
    %371 = vmatprep.subr.mxu0 0.0
    %372 = vmatpush1.msra.mxu0 0.0
    %373 = vmatprep.subr.mxu0 0.0
    %374 = vmatpush1.msra.mxu0 0.0
    %375 = vmatprep.subr.mxu0 0.0
    %376 = vmatpush1.msra.mxu0 0.0
    %377 = vmatprep.subr.mxu0 0.0
    %378 = vmatpush1.msra.mxu0 0.0
    %379 = vmatprep.subr.mxu0 0.0
    %380 = vmatpush1.msra.mxu0 0.0
    %381 = vmatprep.subr.mxu0 0.0
    %382 = vmatpush1.msra.mxu0 0.0
    %383 = vmatprep.subr.mxu0 0.0
    %384 = vmatpush1.msra.mxu0 0.0
    %385 = vmatprep.subr.mxu0 0.0
    %386 = vmatpush1.msra.mxu0 0.0
    %387 = vmatprep.subr.mxu0 0.0
    %388 = vmatpush1.msra.mxu0 0.0
    %389 = vmatprep.subr.mxu0 0.0
    %390 = vmatpush1.msra.mxu0 0.0
    %391 = vmatprep.subr.mxu0 0.0
    %392 = vmatpush1.msra.mxu0 0.0
    %393 = vmatprep.subr.mxu0 0.0
    %394 = vmatpush1.msra.mxu0 0.0
    %395 = vmatprep.subr.mxu0 0.0
    %396 = vmatpush1.msra.mxu0 0.0
    %397 = vmatprep.subr.mxu0 0.0
    %398 = vmatpush1.msra.mxu0 0.0
    %399 = vmatprep.subr.mxu0 0.0
    %400 = vmatpush1.msra.mxu0 0.0
    %401 = vmatprep.subr.mxu0 0.0
    %402 = vmatpush1.msra.mxu0 0.0
    %403 = vmatprep.subr.mxu0 0.0
    %404 = vmatpush1.msra.mxu0 0.0
    %405 = vmatprep.subr.mxu0 0.0
    %406 = vmatpush1.msra.mxu0 0.0
    %407 = vmatprep.subr.mxu0 0.0
    %408 = vmatpush1.msra.mxu0 0.0
    %409 = vmatprep.subr.mxu0 0.0
    %410 = vmatpush1.msra.mxu0 0.0
    %411 = vmatprep.subr.mxu0 0.0
    %412 = vmatpush1.msra.mxu0 0.0
    %413 = vmatprep.subr.mxu0 0.0
    %414 = vmatpush1.msra.mxu0 0.0
    %415 = vmatprep.subr.mxu0 0.0
    %416 = vmatpush1.msra.mxu0 0.0
    %417 = vmatprep.subr.mxu0 0.0
    %418 = vmatpush1.msra.mxu0 0.0
    %419 = vmatprep.subr.mxu0 0.0
    %420 = vmatpush1.msra.mxu0 0.0
    %421 = vmatprep.subr.mxu0 0.0
    %422 = vmatpush1.msra.mxu0 0.0
    %423 = vmatprep.subr.mxu0 0.0
    %424 = vmatpush1.msra.mxu0 0.0
    %425 = vmatprep.subr.mxu0 0.0
    %426 = vmatpush1.msra.mxu0 0.0
    %427 = vmatprep.mubr.f32.mxu0 0.0
    %v428 = vand.u32 %v58, 4294901760
    %429 = vmatmul.mubr.f32.gmra.mrb[0].mxu0 %v428
    %v430 = vpop.f32.mrb[0].mxu0
    %v431 = vadd.f32 %v357, %v430
    %v432 = vpop.f32.mrb[0].mxu0
    %433 = vdwg.mxu0
    %434 = vmatprep.subr.mxu0 0.0
    %v435 = vand.u32 %v47, 4294901760
    %436 = vmatpush1.msra.mxu0 %v435
    %437 = vmatprep.subr.mxu0 0.0
    %438 = vmatpush1.msra.mxu0 0.0
    %439 = vmatprep.subr.mxu0 0.0
    %440 = vmatpush1.msra.mxu0 0.0
    %441 = vmatprep.subr.mxu0 0.0
    %442 = vmatpush1.msra.mxu0 0.0
    %443 = vmatprep.subr.mxu0 0.0
    %444 = vmatpush1.msra.mxu0 0.0
    %445 = vmatprep.subr.mxu0 0.0
    %446 = vmatpush1.msra.mxu0 0.0
    %447 = vmatprep.subr.mxu0 0.0
    %448 = vmatpush1.msra.mxu0 0.0
    %449 = vmatprep.subr.mxu0 0.0
    %450 = vmatpush1.msra.mxu0 0.0
    %451 = vmatprep.subr.mxu0 0.0
    %452 = vmatpush1.msra.mxu0 0.0
    %453 = vmatprep.subr.mxu0 0.0
    %454 = vmatpush1.msra.mxu0 0.0
    %455 = vmatprep.subr.mxu0 0.0
    %456 = vmatpush1.msra.mxu0 0.0
    %457 = vmatprep.subr.mxu0 0.0
    %458 = vmatpush1.msra.mxu0 0.0
    %459 = vmatprep.subr.mxu0 0.0
    %460 = vmatpush1.msra.mxu0 0.0
    %461 = vmatprep.subr.mxu0 0.0
    %462 = vmatpush1.msra.mxu0 0.0
    %463 = vmatprep.subr.mxu0 0.0
    %464 = vmatpush1.msra.mxu0 0.0
    %465 = vmatprep.subr.mxu0 0.0
    %466 = vmatpush1.msra.mxu0 0.0
    %467 = vmatprep.subr.mxu0 0.0
    %468 = vmatpush1.msra.mxu0 0.0
    %469 = vmatprep.subr.mxu0 0.0
    %470 = vmatpush1.msra.mxu0 0.0
    %471 = vmatprep.subr.mxu0 0.0
    %472 = vmatpush1.msra.mxu0 0.0
    %473 = vmatprep.subr.mxu0 0.0
    %474 = vmatpush1.msra.mxu0 0.0
    %475 = vmatprep.subr.mxu0 0.0
    %476 = vmatpush1.msra.mxu0 0.0
    %477 = vmatprep.subr.mxu0 0.0
    %478 = vmatpush1.msra.mxu0 0.0
    %479 = vmatprep.subr.mxu0 0.0
    %480 = vmatpush1.msra.mxu0 0.0
    %481 = vmatprep.subr.mxu0 0.0
    %482 = vmatpush1.msra.mxu0 0.0
    %483 = vmatprep.subr.mxu0 0.0
    %484 = vmatpush1.msra.mxu0 0.0
    %485 = vmatprep.subr.mxu0 0.0
    %486 = vmatpush1.msra.mxu0 0.0
    %487 = vmatprep.subr.mxu0 0.0
    %488 = vmatpush1.msra.mxu0 0.0
    %489 = vmatprep.subr.mxu0 0.0
    %490 = vmatpush1.msra.mxu0 0.0
    %491 = vmatprep.subr.mxu0 0.0
    %492 = vmatpush1.msra.mxu0 0.0
    %493 = vmatprep.subr.mxu0 0.0
    %494 = vmatpush1.msra.mxu0 0.0
    %495 = vmatprep.subr.mxu0 0.0
    %496 = vmatpush1.msra.mxu0 0.0
    %497 = vmatprep.subr.mxu0 0.0
    %498 = vmatpush1.msra.mxu0 0.0
    %499 = vmatprep.mubr.f32.mxu0 0.0
    %v500 = vand.u32 %v58, 4294901760
    %501 = vmatmul.mubr.f32.gmra.mrb[0].mxu0 %v500
    %v502 = vpop.f32.mrb[0].mxu0
    %v503 = vadd.f32 %v431, %v502
    %v504 = vpop.f32.mrb[0].mxu0
    %505 = vdwg.mxu0
    %v506 = vld [vmem:[%s1] sm:$0x1]
    %v507 = vld [vmem:[%s1 + $0x1] sm:$0x1]
    %v508 = vld [vmem:[%s2] sm:$0x1]
    %v509 = vld [vmem:[%s2 + $0x1] sm:$0x1]
    %vm510 = vcmask 261120
    %v512 = vsel %vm510, %v506, 0
    %514 = vmatprep.subr.mxu0 0.0
    %v515 = vand.u32 %v31, 4294901760
    %516 = vmatpush1.msra.mxu0 %v515
    %517 = vmatprep.subr.mxu0 0.0
    %v518 = vand.u32 %v33, 4294901760
    %519 = vmatpush1.msra.mxu0 %v518
    %520 = vmatprep.subr.mxu0 0.0
    %v521 = vand.u32 %v35, 4294901760
    %522 = vmatpush1.msra.mxu0 %v521
    %523 = vmatprep.subr.mxu0 0.0
    %v524 = vand.u32 %v37, 4294901760
    %525 = vmatpush1.msra.mxu0 %v524
    %526 = vmatprep.subr.mxu0 0.0
    %527 = vmatpush1.msra.mxu0 0.0
    %528 = vmatprep.subr.mxu0 0.0
    %529 = vmatpush1.msra.mxu0 0.0
    %530 = vmatprep.subr.mxu0 0.0
    %531 = vmatpush1.msra.mxu0 0.0
    %532 = vmatprep.subr.mxu0 0.0
    %533 = vmatpush1.msra.mxu0 0.0
    %534 = vmatprep.subr.mxu0 0.0
    %535 = vmatpush1.msra.mxu0 0.0
    %536 = vmatprep.subr.mxu0 0.0
    %537 = vmatpush1.msra.mxu0 0.0
    %538 = vmatprep.subr.mxu0 0.0
    %539 = vmatpush1.msra.mxu0 0.0
    %540 = vmatprep.subr.mxu0 0.0
    %541 = vmatpush1.msra.mxu0 0.0
    %542 = vmatprep.subr.mxu0 0.0
    %543 = vmatpush1.msra.mxu0 0.0
    %544 = vmatprep.subr.mxu0 0.0
    %545 = vmatpush1.msra.mxu0 0.0
    %546 = vmatprep.subr.mxu0 0.0
    %547 = vmatpush1.msra.mxu0 0.0
    %548 = vmatprep.subr.mxu0 0.0
    %549 = vmatpush1.msra.mxu0 0.0
    %550 = vmatprep.subr.mxu0 0.0
    %551 = vmatpush1.msra.mxu0 0.0
    %552 = vmatprep.subr.mxu0 0.0
    %553 = vmatpush1.msra.mxu0 0.0
    %554 = vmatprep.subr.mxu0 0.0
    %555 = vmatpush1.msra.mxu0 0.0
    %556 = vmatprep.subr.mxu0 0.0
    %557 = vmatpush1.msra.mxu0 0.0
    %558 = vmatprep.subr.mxu0 0.0
    %559 = vmatpush1.msra.mxu0 0.0
    %560 = vmatprep.subr.mxu0 0.0
    %561 = vmatpush1.msra.mxu0 0.0
    %562 = vmatprep.subr.mxu0 0.0
    %563 = vmatpush1.msra.mxu0 0.0
    %564 = vmatprep.subr.mxu0 0.0
    %565 = vmatpush1.msra.mxu0 0.0
    %566 = vmatprep.subr.mxu0 0.0
    %567 = vmatpush1.msra.mxu0 0.0
    %568 = vmatprep.subr.mxu0 0.0
    %569 = vmatpush1.msra.mxu0 0.0
    %570 = vmatprep.subr.mxu0 0.0
    %571 = vmatpush1.msra.mxu0 0.0
    %572 = vmatprep.subr.mxu0 0.0
    %573 = vmatpush1.msra.mxu0 0.0
    %574 = vmatprep.subr.mxu0 0.0
    %575 = vmatpush1.msra.mxu0 0.0
    %576 = vmatprep.subr.mxu0 0.0
    %577 = vmatpush1.msra.mxu0 0.0
    %578 = vmatprep.subr.mxu0 0.0
    %579 = vmatpush1.msra.mxu0 0.0
    %580 = vmatprep.subr.mxu0 0.0
    %581 = vmatpush1.msra.mxu0 0.0
    %582 = vmatprep.mubr.f32.mxu0 0.0
    %v583 = vand.u32 %v512, 4294901760
    %v584 = vsub.f32 %v512, %v583
    %v585 = vand.u32 %v584, 4294901760
    %v586 = vsub.f32 %v584, %v585
    %v587 = vand.u32 %v586, 4294901760
    %588 = vmatmul.mubr.f32.gmra.mrb[0].mxu0 %v587
    %v589 = vpop.f32.mrb[0].mxu0
    %v590 = vadd.f32 0.0, %v589
    %v591 = vpop.f32.mrb[0].mxu0
    %592 = vdwg.mxu0
    %593 = vmatprep.subr.mxu0 0.0
    %v594 = vand.u32 %v31, 4294901760
    %v595 = vsub.f32 %v31, %v594
    %v596 = vand.u32 %v595, 4294901760
    %v597 = vsub.f32 %v595, %v596
    %v598 = vand.u32 %v597, 4294901760
    %599 = vmatpush1.msra.mxu0 %v598
    %600 = vmatprep.subr.mxu0 0.0
    %v601 = vand.u32 %v33, 4294901760
    %v602 = vsub.f32 %v33, %v601
    %v603 = vand.u32 %v602, 4294901760
    %v604 = vsub.f32 %v602, %v603
    %v605 = vand.u32 %v604, 4294901760
    %606 = vmatpush1.msra.mxu0 %v605
    %607 = vmatprep.subr.mxu0 0.0
    %v608 = vand.u32 %v35, 4294901760
    %v609 = vsub.f32 %v35, %v608
    %v610 = vand.u32 %v609, 4294901760
    %v611 = vsub.f32 %v609, %v610
    %v612 = vand.u32 %v611, 4294901760
    %613 = vmatpush1.msra.mxu0 %v612
    %614 = vmatprep.subr.mxu0 0.0
    %v615 = vand.u32 %v37, 4294901760
    %v616 = vsub.f32 %v37, %v615
    %v617 = vand.u32 %v616, 4294901760
    %v618 = vsub.f32 %v616, %v617
    %v619 = vand.u32 %v618, 4294901760
    %620 = vmatpush1.msra.mxu0 %v619
    %621 = vmatprep.subr.mxu0 0.0
    %622 = vmatpush1.msra.mxu0 0.0
    %623 = vmatprep.subr.mxu0 0.0
    %624 = vmatpush1.msra.mxu0 0.0
    %625 = vmatprep.subr.mxu0 0.0
    %626 = vmatpush1.msra.mxu0 0.0
    %627 = vmatprep.subr.mxu0 0.0
    %628 = vmatpush1.msra.mxu0 0.0
    %629 = vmatprep.subr.mxu0 0.0
    %630 = vmatpush1.msra.mxu0 0.0
    %631 = vmatprep.subr.mxu0 0.0
    %632 = vmatpush1.msra.mxu0 0.0
    %633 = vmatprep.subr.mxu0 0.0
    %634 = vmatpush1.msra.mxu0 0.0
    %635 = vmatprep.subr.mxu0 0.0
    %636 = vmatpush1.msra.mxu0 0.0
    %637 = vmatprep.subr.mxu0 0.0
    %638 = vmatpush1.msra.mxu0 0.0
    %639 = vmatprep.subr.mxu0 0.0
    %640 = vmatpush1.msra.mxu0 0.0
    %641 = vmatprep.subr.mxu0 0.0
    %642 = vmatpush1.msra.mxu0 0.0
    %643 = vmatprep.subr.mxu0 0.0
    %644 = vmatpush1.msra.mxu0 0.0
    %645 = vmatprep.subr.mxu0 0.0
    %646 = vmatpush1.msra.mxu0 0.0
    %647 = vmatprep.subr.mxu0 0.0
    %648 = vmatpush1.msra.mxu0 0.0
    %649 = vmatprep.subr.mxu0 0.0
    %650 = vmatpush1.msra.mxu0 0.0
    %651 = vmatprep.subr.mxu0 0.0
    %652 = vmatpush1.msra.mxu0 0.0
    %653 = vmatprep.subr.mxu0 0.0
    %654 = vmatpush1.msra.mxu0 0.0
    %655 = vmatprep.subr.mxu0 0.0
    %656 = vmatpush1.msra.mxu0 0.0
    %657 = vmatprep.subr.mxu0 0.0
    %658 = vmatpush1.msra.mxu0 0.0
    %659 = vmatprep.subr.mxu0 0.0
    %660 = vmatpush1.msra.mxu0 0.0
    %661 = vmatprep.subr.mxu0 0.0
    %662 = vmatpush1.msra.mxu0 0.0
    %663 = vmatprep.subr.mxu0 0.0
    %664 = vmatpush1.msra.mxu0 0.0
    %665 = vmatprep.subr.mxu0 0.0
    %666 = vmatpush1.msra.mxu0 0.0
    %667 = vmatprep.subr.mxu0 0.0
    %668 = vmatpush1.msra.mxu0 0.0
    %669 = vmatprep.subr.mxu0 0.0
    %670 = vmatpush1.msra.mxu0 0.0
    %671 = vmatprep.subr.mxu0 0.0
    %672 = vmatpush1.msra.mxu0 0.0
    %673 = vmatprep.subr.mxu0 0.0
    %674 = vmatpush1.msra.mxu0 0.0
    %675 = vmatprep.subr.mxu0 0.0
    %676 = vmatpush1.msra.mxu0 0.0
    %677 = vmatprep.mubr.f32.mxu0 0.0
    %v678 = vand.u32 %v512, 4294901760
    %679 = vmatmul.mubr.f32.gmra.mrb[0].mxu0 %v678
    %v680 = vpop.f32.mrb[0].mxu0
    %v681 = vadd.f32 %v590, %v680
    %v682 = vpop.f32.mrb[0].mxu0
    %683 = vdwg.mxu0
    %684 = vmatprep.subr.mxu0 0.0
    %v685 = vand.u32 %v31, 4294901760
    %v686 = vsub.f32 %v31, %v685
    %687 = vmatpush1.msra.mxu0 %v686
    %688 = vmatprep.subr.mxu0 0.0
    %v689 = vand.u32 %v33, 4294901760
    %v690 = vsub.f32 %v33, %v689
    %691 = vmatpush1.msra.mxu0 %v690
    %692 = vmatprep.subr.mxu0 0.0
    %v693 = vand.u32 %v35, 4294901760
    %v694 = vsub.f32 %v35, %v693
    %695 = vmatpush1.msra.mxu0 %v694
    %696 = vmatprep.subr.mxu0 0.0
    %v697 = vand.u32 %v37, 4294901760
    %v698 = vsub.f32 %v37, %v697
    %699 = vmatpush1.msra.mxu0 %v698
    %700 = vmatprep.subr.mxu0 0.0
    %701 = vmatpush1.msra.mxu0 0.0
    %702 = vmatprep.subr.mxu0 0.0
    %703 = vmatpush1.msra.mxu0 0.0
    %704 = vmatprep.subr.mxu0 0.0
    %705 = vmatpush1.msra.mxu0 0.0
    %706 = vmatprep.subr.mxu0 0.0
    %707 = vmatpush1.msra.mxu0 0.0
    %708 = vmatprep.subr.mxu0 0.0
    %709 = vmatpush1.msra.mxu0 0.0
    %710 = vmatprep.subr.mxu0 0.0
    %711 = vmatpush1.msra.mxu0 0.0
    %712 = vmatprep.subr.mxu0 0.0
    %713 = vmatpush1.msra.mxu0 0.0
    %714 = vmatprep.subr.mxu0 0.0
    %715 = vmatpush1.msra.mxu0 0.0
    %716 = vmatprep.subr.mxu0 0.0
    %717 = vmatpush1.msra.mxu0 0.0
    %718 = vmatprep.subr.mxu0 0.0
    %719 = vmatpush1.msra.mxu0 0.0
    %720 = vmatprep.subr.mxu0 0.0
    %721 = vmatpush1.msra.mxu0 0.0
    %722 = vmatprep.subr.mxu0 0.0
    %723 = vmatpush1.msra.mxu0 0.0
    %724 = vmatprep.subr.mxu0 0.0
    %725 = vmatpush1.msra.mxu0 0.0
    %726 = vmatprep.subr.mxu0 0.0
    %727 = vmatpush1.msra.mxu0 0.0
    %728 = vmatprep.subr.mxu0 0.0
    %729 = vmatpush1.msra.mxu0 0.0
    %730 = vmatprep.subr.mxu0 0.0
    %731 = vmatpush1.msra.mxu0 0.0
    %732 = vmatprep.subr.mxu0 0.0
    %733 = vmatpush1.msra.mxu0 0.0
    %734 = vmatprep.subr.mxu0 0.0
    %735 = vmatpush1.msra.mxu0 0.0
    %736 = vmatprep.subr.mxu0 0.0
    %737 = vmatpush1.msra.mxu0 0.0
    %738 = vmatprep.subr.mxu0 0.0
    %739 = vmatpush1.msra.mxu0 0.0
    %740 = vmatprep.subr.mxu0 0.0
    %741 = vmatpush1.msra.mxu0 0.0
    %742 = vmatprep.subr.mxu0 0.0
    %743 = vmatpush1.msra.mxu0 0.0
    %744 = vmatprep.subr.mxu0 0.0
    %745 = vmatpush1.msra.mxu0 0.0
    %746 = vmatprep.subr.mxu0 0.0
    %747 = vmatpush1.msra.mxu0 0.0
    %748 = vmatprep.subr.mxu0 0.0
    %749 = vmatpush1.msra.mxu0 0.0
    %750 = vmatprep.subr.mxu0 0.0
    %751 = vmatpush1.msra.mxu0 0.0
    %752 = vmatprep.subr.mxu0 0.0
    %753 = vmatpush1.msra.mxu0 0.0
    %754 = vmatprep.subr.mxu0 0.0
    %755 = vmatpush1.msra.mxu0 0.0
    %756 = vmatprep.mubr.f32.mxu0 0.0
    %v757 = vand.u32 %v512, 4294901760
    %v758 = vsub.f32 %v512, %v757
    %759 = vmatmul.mubr.f32.gmra.mrb[0].mxu0 %v758
    %v760 = vpop.f32.mrb[0].mxu0
    %v761 = vadd.f32 %v681, %v760
    %v762 = vpop.f32.mrb[0].mxu0
    %763 = vdwg.mxu0
    %764 = vmatprep.subr.mxu0 0.0
    %v765 = vand.u32 %v31, 4294901760
    %766 = vmatpush1.msra.mxu0 %v765
    %767 = vmatprep.subr.mxu0 0.0
    %v768 = vand.u32 %v33, 4294901760
    %769 = vmatpush1.msra.mxu0 %v768
    %770 = vmatprep.subr.mxu0 0.0
    %v771 = vand.u32 %v35, 4294901760
    %772 = vmatpush1.msra.mxu0 %v771
    %773 = vmatprep.subr.mxu0 0.0
    %v774 = vand.u32 %v37, 4294901760
    %775 = vmatpush1.msra.mxu0 %v774
    %776 = vmatprep.subr.mxu0 0.0
    %777 = vmatpush1.msra.mxu0 0.0
    %778 = vmatprep.subr.mxu0 0.0
    %779 = vmatpush1.msra.mxu0 0.0
    %780 = vmatprep.subr.mxu0 0.0
    %781 = vmatpush1.msra.mxu0 0.0
    %782 = vmatprep.subr.mxu0 0.0
    %783 = vmatpush1.msra.mxu0 0.0
    %784 = vmatprep.subr.mxu0 0.0
    %785 = vmatpush1.msra.mxu0 0.0
    %786 = vmatprep.subr.mxu0 0.0
    %787 = vmatpush1.msra.mxu0 0.0
    %788 = vmatprep.subr.mxu0 0.0
    %789 = vmatpush1.msra.mxu0 0.0
    %790 = vmatprep.subr.mxu0 0.0
    %791 = vmatpush1.msra.mxu0 0.0
    %792 = vmatprep.subr.mxu0 0.0
    %793 = vmatpush1.msra.mxu0 0.0
    %794 = vmatprep.subr.mxu0 0.0
    %795 = vmatpush1.msra.mxu0 0.0
    %796 = vmatprep.subr.mxu0 0.0
    %797 = vmatpush1.msra.mxu0 0.0
    %798 = vmatprep.subr.mxu0 0.0
    %799 = vmatpush1.msra.mxu0 0.0
    %800 = vmatprep.subr.mxu0 0.0
    %801 = vmatpush1.msra.mxu0 0.0
    %802 = vmatprep.subr.mxu0 0.0
    %803 = vmatpush1.msra.mxu0 0.0
    %804 = vmatprep.subr.mxu0 0.0
    %805 = vmatpush1.msra.mxu0 0.0
    %806 = vmatprep.subr.mxu0 0.0
    %807 = vmatpush1.msra.mxu0 0.0
    %808 = vmatprep.subr.mxu0 0.0
    %809 = vmatpush1.msra.mxu0 0.0
    %810 = vmatprep.subr.mxu0 0.0
    %811 = vmatpush1.msra.mxu0 0.0
    %812 = vmatprep.subr.mxu0 0.0
    %813 = vmatpush1.msra.mxu0 0.0
    %814 = vmatprep.subr.mxu0 0.0
    %815 = vmatpush1.msra.mxu0 0.0
    %816 = vmatprep.subr.mxu0 0.0
    %817 = vmatpush1.msra.mxu0 0.0
    %818 = vmatprep.subr.mxu0 0.0
    %819 = vmatpush1.msra.mxu0 0.0
    %820 = vmatprep.subr.mxu0 0.0
    %821 = vmatpush1.msra.mxu0 0.0
    %822 = vmatprep.subr.mxu0 0.0
    %823 = vmatpush1.msra.mxu0 0.0
    %824 = vmatprep.subr.mxu0 0.0
    %825 = vmatpush1.msra.mxu0 0.0
    %826 = vmatprep.subr.mxu0 0.0
    %827 = vmatpush1.msra.mxu0 0.0
    %828 = vmatprep.subr.mxu0 0.0
    %829 = vmatpush1.msra.mxu0 0.0
    %830 = vmatprep.subr.mxu0 0.0
    %831 = vmatpush1.msra.mxu0 0.0
    %832 = vmatprep.mubr.f32.mxu0 0.0
    %v833 = vand.u32 %v512, 4294901760
    %v834 = vsub.f32 %v512, %v833
    %v835 = vand.u32 %v834, 4294901760
    %836 = vmatmul.mubr.f32.gmra.mrb[0].mxu0 %v835
    %v837 = vpop.f32.mrb[0].mxu0
    %v838 = vadd.f32 %v761, %v837
    %v839 = vpop.f32.mrb[0].mxu0
    %840 = vdwg.mxu0
    %841 = vmatprep.subr.mxu0 0.0
    %v842 = vand.u32 %v31, 4294901760
    %v843 = vsub.f32 %v31, %v842
    %v844 = vand.u32 %v843, 4294901760
    %845 = vmatpush1.msra.mxu0 %v844
    %846 = vmatprep.subr.mxu0 0.0
    %v847 = vand.u32 %v33, 4294901760
    %v848 = vsub.f32 %v33, %v847
    %v849 = vand.u32 %v848, 4294901760
    %850 = vmatpush1.msra.mxu0 %v849
    %851 = vmatprep.subr.mxu0 0.0
    %v852 = vand.u32 %v35, 4294901760
    %v853 = vsub.f32 %v35, %v852
    %v854 = vand.u32 %v853, 4294901760
    %855 = vmatpush1.msra.mxu0 %v854
    %856 = vmatprep.subr.mxu0 0.0
    %v857 = vand.u32 %v37, 4294901760
    %v858 = vsub.f32 %v37, %v857
    %v859 = vand.u32 %v858, 4294901760
    %860 = vmatpush1.msra.mxu0 %v859
    %861 = vmatprep.subr.mxu0 0.0
    %862 = vmatpush1.msra.mxu0 0.0
    %863 = vmatprep.subr.mxu0 0.0
    %864 = vmatpush1.msra.mxu0 0.0
    %865 = vmatprep.subr.mxu0 0.0
    %866 = vmatpush1.msra.mxu0 0.0
    %867 = vmatprep.subr.mxu0 0.0
    %868 = vmatpush1.msra.mxu0 0.0
    %869 = vmatprep.subr.mxu0 0.0
    %870 = vmatpush1.msra.mxu0 0.0
    %871 = vmatprep.subr.mxu0 0.0
    %872 = vmatpush1.msra.mxu0 0.0
    %873 = vmatprep.subr.mxu0 0.0
    %874 = vmatpush1.msra.mxu0 0.0
    %875 = vmatprep.subr.mxu0 0.0
    %876 = vmatpush1.msra.mxu0 0.0
    %877 = vmatprep.subr.mxu0 0.0
    %878 = vmatpush1.msra.mxu0 0.0
    %879 = vmatprep.subr.mxu0 0.0
    %880 = vmatpush1.msra.mxu0 0.0
    %881 = vmatprep.subr.mxu0 0.0
    %882 = vmatpush1.msra.mxu0 0.0
    %883 = vmatprep.subr.mxu0 0.0
    %884 = vmatpush1.msra.mxu0 0.0
    %885 = vmatprep.subr.mxu0 0.0
    %886 = vmatpush1.msra.mxu0 0.0
    %887 = vmatprep.subr.mxu0 0.0
    %888 = vmatpush1.msra.mxu0 0.0
    %889 = vmatprep.subr.mxu0 0.0
    %890 = vmatpush1.msra.mxu0 0.0
    %891 = vmatprep.subr.mxu0 0.0
    %892 = vmatpush1.msra.mxu0 0.0
    %893 = vmatprep.subr.mxu0 0.0
    %894 = vmatpush1.msra.mxu0 0.0
    %895 = vmatprep.subr.mxu0 0.0
    %896 = vmatpush1.msra.mxu0 0.0
    %897 = vmatprep.subr.mxu0 0.0
    %898 = vmatpush1.msra.mxu0 0.0
    %899 = vmatprep.subr.mxu0 0.0
    %900 = vmatpush1.msra.mxu0 0.0
    %901 = vmatprep.subr.mxu0 0.0
    %902 = vmatpush1.msra.mxu0 0.0
    %903 = vmatprep.subr.mxu0 0.0
    %904 = vmatpush1.msra.mxu0 0.0
    %905 = vmatprep.subr.mxu0 0.0
    %906 = vmatpush1.msra.mxu0 0.0
    %907 = vmatprep.subr.mxu0 0.0
    %908 = vmatpush1.msra.mxu0 0.0
    %909 = vmatprep.subr.mxu0 0.0
    %910 = vmatpush1.msra.mxu0 0.0
    %911 = vmatprep.subr.mxu0 0.0
    %912 = vmatpush1.msra.mxu0 0.0
    %913 = vmatprep.subr.mxu0 0.0
    %914 = vmatpush1.msra.mxu0 0.0
    %915 = vmatprep.subr.mxu0 0.0
    %916 = vmatpush1.msra.mxu0 0.0
    %917 = vmatprep.mubr.f32.mxu0 0.0
    %v918 = vand.u32 %v512, 4294901760
    %919 = vmatmul.mubr.f32.gmra.mrb[0].mxu0 %v918
    %v920 = vpop.f32.mrb[0].mxu0
    %v921 = vadd.f32 %v838, %v920
    %v922 = vpop.f32.mrb[0].mxu0
    %923 = vdwg.mxu0
    %924 = vmatprep.subr.mxu0 0.0
    %v925 = vand.u32 %v31, 4294901760
    %926 = vmatpush1.msra.mxu0 %v925
    %927 = vmatprep.subr.mxu0 0.0
    %v928 = vand.u32 %v33, 4294901760
    %929 = vmatpush1.msra.mxu0 %v928
    %930 = vmatprep.subr.mxu0 0.0
    %v931 = vand.u32 %v35, 4294901760
    %932 = vmatpush1.msra.mxu0 %v931
    %933 = vmatprep.subr.mxu0 0.0
    %v934 = vand.u32 %v37, 4294901760
    %935 = vmatpush1.msra.mxu0 %v934
    %936 = vmatprep.subr.mxu0 0.0
    %937 = vmatpush1.msra.mxu0 0.0
    %938 = vmatprep.subr.mxu0 0.0
    %939 = vmatpush1.msra.mxu0 0.0
    %940 = vmatprep.subr.mxu0 0.0
    %941 = vmatpush1.msra.mxu0 0.0
    %942 = vmatprep.subr.mxu0 0.0
    %943 = vmatpush1.msra.mxu0 0.0
    %944 = vmatprep.subr.mxu0 0.0
    %945 = vmatpush1.msra.mxu0 0.0
    %946 = vmatprep.subr.mxu0 0.0
    %947 = vmatpush1.msra.mxu0 0.0
    %948 = vmatprep.subr.mxu0 0.0
    %949 = vmatpush1.msra.mxu0 0.0
    %950 = vmatprep.subr.mxu0 0.0
    %951 = vmatpush1.msra.mxu0 0.0
    %952 = vmatprep.subr.mxu0 0.0
    %953 = vmatpush1.msra.mxu0 0.0
    %954 = vmatprep.subr.mxu0 0.0
    %955 = vmatpush1.msra.mxu0 0.0
    %956 = vmatprep.subr.mxu0 0.0
    %957 = vmatpush1.msra.mxu0 0.0
    %958 = vmatprep.subr.mxu0 0.0
    %959 = vmatpush1.msra.mxu0 0.0
    %960 = vmatprep.subr.mxu0 0.0
    %961 = vmatpush1.msra.mxu0 0.0
    %962 = vmatprep.subr.mxu0 0.0
    %963 = vmatpush1.msra.mxu0 0.0
    %964 = vmatprep.subr.mxu0 0.0
    %965 = vmatpush1.msra.mxu0 0.0
    %966 = vmatprep.subr.mxu0 0.0
    %967 = vmatpush1.msra.mxu0 0.0
    %968 = vmatprep.subr.mxu0 0.0
    %969 = vmatpush1.msra.mxu0 0.0
    %970 = vmatprep.subr.mxu0 0.0
    %971 = vmatpush1.msra.mxu0 0.0
    %972 = vmatprep.subr.mxu0 0.0
    %973 = vmatpush1.msra.mxu0 0.0
    %974 = vmatprep.subr.mxu0 0.0
    %975 = vmatpush1.msra.mxu0 0.0
    %976 = vmatprep.subr.mxu0 0.0
    %977 = vmatpush1.msra.mxu0 0.0
    %978 = vmatprep.subr.mxu0 0.0
    %979 = vmatpush1.msra.mxu0 0.0
    %980 = vmatprep.subr.mxu0 0.0
    %981 = vmatpush1.msra.mxu0 0.0
    %982 = vmatprep.subr.mxu0 0.0
    %983 = vmatpush1.msra.mxu0 0.0
    %984 = vmatprep.subr.mxu0 0.0
    %985 = vmatpush1.msra.mxu0 0.0
    %986 = vmatprep.subr.mxu0 0.0
    %987 = vmatpush1.msra.mxu0 0.0
    %988 = vmatprep.subr.mxu0 0.0
    %989 = vmatpush1.msra.mxu0 0.0
    %990 = vmatprep.subr.mxu0 0.0
    %991 = vmatpush1.msra.mxu0 0.0
    %992 = vmatprep.mubr.f32.mxu0 0.0
    %v993 = vand.u32 %v512, 4294901760
    %994 = vmatmul.mubr.f32.gmra.mrb[0].mxu0 %v993
    %v995 = vpop.f32.mrb[0].mxu0
    %v996 = vadd.f32 %v921, %v995
    %v997 = vpop.f32.mrb[0].mxu0
    %998 = vdwg.mxu0
    %v999 = vadd.f32 %v503, %v996
    %v1000 = vxor.u32 %v999, 2147483648
    %v1001 = vmul.f32 %v1000, 1.442695
    %v1002 = vpow.pop %v1001
    %v1003 = vadd.f32 %v1002, 1.0
    %v1004 = vrcp.pop %v1003
    %v1005 = vmul.f32 1.0, %v1004
    %v1006 = vtanh.pop %v999
    %1008 = vrot.lane.b32.xlu0 %v508, 32
    %v1009 = vpop.permute.xlu0 %1008
    %v1011 = vmul.f32 %v1005, %v1009
    %1013 = vrot.lane.b32.xlu0 %v1006, 64
    %v1014 = vpop.permute.xlu0 %1013
    %v1016 = vmul.f32 %v1005, %v1014
    %1018 = vrot.lane.b32.xlu0 %v1016, 32
    %v1019 = vpop.permute.xlu0 %1018
    %v1021 = vadd.f32 %v1011, %v1019
    %v1022 = vtanh.pop %v1021
    %1024 = vrot.lane.b32.xlu0 %v1022, 64
    %v1025 = vpop.permute.xlu0 %1024
    %v1027 = vmul.f32 %v1005, %v1025
    %1029 = vrot.lane.b32.xlu0 %v1027, 32
    %v1030 = vpop.permute.xlu0 %1029
    %1033 = vrot.lane.b32.xlu0 %v507, 32
    %v1034 = vpop.permute.xlu0 %1033
    %v1036 = vsel %vm510, %v1030, %v1034
    %vm1037 = vcmask 523264
    %v1039 = vsel %vm1037, %v1036, 0
    %v1041 = vand.u32 %v32, 4294901760
    %1042 = vmatprep.subr.mxu0 %v1041
    %v1043 = vand.u32 %v31, 4294901760
    %1044 = vmatpush1.msra.mxu0 %v1043
    %v1045 = vand.u32 %v34, 4294901760
    %1046 = vmatprep.subr.mxu0 %v1045
    %v1047 = vand.u32 %v33, 4294901760
    %1048 = vmatpush1.msra.mxu0 %v1047
    %v1049 = vand.u32 %v36, 4294901760
    %1050 = vmatprep.subr.mxu0 %v1049
    %v1051 = vand.u32 %v35, 4294901760
    %1052 = vmatpush1.msra.mxu0 %v1051
    %v1053 = vand.u32 %v38, 4294901760
    %1054 = vmatprep.subr.mxu0 %v1053
    %v1055 = vand.u32 %v37, 4294901760
    %1056 = vmatpush1.msra.mxu0 %v1055
    %v1057 = vand.u32 %v40, 4294901760
    %1058 = vmatprep.subr.mxu0 %v1057
    %v1059 = vand.u32 %v39, 4294901760
    %1060 = vmatpush1.msra.mxu0 %v1059
    %v1061 = vand.u32 %v42, 4294901760
    %1062 = vmatprep.subr.mxu0 %v1061
    %v1063 = vand.u32 %v41, 4294901760
    %1064 = vmatpush1.msra.mxu0 %v1063
    %v1065 = vand.u32 %v44, 4294901760
    %1066 = vmatprep.subr.mxu0 %v1065
    %v1067 = vand.u32 %v43, 4294901760
    %1068 = vmatpush1.msra.mxu0 %v1067
    %v1069 = vand.u32 %v46, 4294901760
    %1070 = vmatprep.subr.mxu0 %v1069
    %v1071 = vand.u32 %v45, 4294901760
    %1072 = vmatpush1.msra.mxu0 %v1071
    %1073 = vmatprep.subr.mxu0 0.0
    %1074 = vmatpush1.msra.mxu0 0.0
    %1075 = vmatprep.subr.mxu0 0.0
    %1076 = vmatpush1.msra.mxu0 0.0
    %1077 = vmatprep.subr.mxu0 0.0
    %1078 = vmatpush1.msra.mxu0 0.0
    %1079 = vmatprep.subr.mxu0 0.0
    %1080 = vmatpush1.msra.mxu0 0.0
    %1081 = vmatprep.subr.mxu0 0.0
    %1082 = vmatpush1.msra.mxu0 0.0
    %1083 = vmatprep.subr.mxu0 0.0
    %1084 = vmatpush1.msra.mxu0 0.0
    %1085 = vmatprep.subr.mxu0 0.0
    %1086 = vmatpush1.msra.mxu0 0.0
    %1087 = vmatprep.subr.mxu0 0.0
    %1088 = vmatpush1.msra.mxu0 0.0
    %1089 = vmatprep.subr.mxu0 0.0
    %1090 = vmatpush1.msra.mxu0 0.0
    %1091 = vmatprep.subr.mxu0 0.0
    %1092 = vmatpush1.msra.mxu0 0.0
    %1093 = vmatprep.subr.mxu0 0.0
    %1094 = vmatpush1.msra.mxu0 0.0
    %1095 = vmatprep.subr.mxu0 0.0
    %1096 = vmatpush1.msra.mxu0 0.0
    %1097 = vmatprep.subr.mxu0 0.0
    %1098 = vmatpush1.msra.mxu0 0.0
    %1099 = vmatprep.subr.mxu0 0.0
    %1100 = vmatpush1.msra.mxu0 0.0
    %1101 = vmatprep.subr.mxu0 0.0
    %1102 = vmatpush1.msra.mxu0 0.0
    %1103 = vmatprep.subr.mxu0 0.0
    %1104 = vmatpush1.msra.mxu0 0.0
    %1105 = vmatprep.subr.mxu0 0.0
    %1106 = vmatpush1.msra.mxu0 0.0
    %1107 = vmatprep.subr.mxu0 0.0
    %1108 = vmatpush1.msra.mxu0 0.0
    %1109 = vmatprep.subr.mxu0 0.0
    %1110 = vmatpush1.msra.mxu0 0.0
    %1111 = vmatprep.subr.mxu0 0.0
    %1112 = vmatpush1.msra.mxu0 0.0
    %1113 = vmatprep.subr.mxu0 0.0
    %1114 = vmatpush1.msra.mxu0 0.0
    %1115 = vmatprep.subr.mxu0 0.0
    %1116 = vmatpush1.msra.mxu0 0.0
    %1117 = vmatprep.subr.mxu0 0.0
    %1118 = vmatpush1.msra.mxu0 0.0
    %1119 = vmatprep.subr.mxu0 0.0
    %1120 = vmatpush1.msra.mxu0 0.0
    %1121 = vmatprep.mubr.f32.mxu0 0.0
    %v1122 = vand.u32 %v1039, 4294901760
    %v1123 = vsub.f32 %v1039, %v1122
    %v1124 = vand.u32 %v1123, 4294901760
    %v1125 = vsub.f32 %v1123, %v1124
    %v1126 = vand.u32 %v1125, 4294901760
    %1127 = vmatmul.mubr.f32.gmra.mrb[0].mxu0 %v1126
    %v1128 = vpop.f32.mrb[0].mxu0
    %v1129 = vadd.f32 0.0, %v1128
    %v1130 = vpop.f32.mrb[0].mxu0
    %v1131 = vadd.f32 0.0, %v1130
    %1132 = vdwg.mxu0
    %v1133 = vand.u32 %v32, 4294901760
    %v1134 = vsub.f32 %v32, %v1133
    %v1135 = vand.u32 %v1134, 4294901760
    %v1136 = vsub.f32 %v1134, %v1135
    %v1137 = vand.u32 %v1136, 4294901760
    %1138 = vmatprep.subr.mxu0 %v1137
    %v1139 = vand.u32 %v31, 4294901760
    %v1140 = vsub.f32 %v31, %v1139
    %v1141 = vand.u32 %v1140, 4294901760
    %v1142 = vsub.f32 %v1140, %v1141
    %v1143 = vand.u32 %v1142, 4294901760
    %1144 = vmatpush1.msra.mxu0 %v1143
    %v1145 = vand.u32 %v34, 4294901760
    %v1146 = vsub.f32 %v34, %v1145
    %v1147 = vand.u32 %v1146, 4294901760
    %v1148 = vsub.f32 %v1146, %v1147
    %v1149 = vand.u32 %v1148, 4294901760
    %1150 = vmatprep.subr.mxu0 %v1149
    %v1151 = vand.u32 %v33, 4294901760
    %v1152 = vsub.f32 %v33, %v1151
    %v1153 = vand.u32 %v1152, 4294901760
    %v1154 = vsub.f32 %v1152, %v1153
    %v1155 = vand.u32 %v1154, 4294901760
    %1156 = vmatpush1.msra.mxu0 %v1155
    %v1157 = vand.u32 %v36, 4294901760
    %v1158 = vsub.f32 %v36, %v1157
    %v1159 = vand.u32 %v1158, 4294901760
    %v1160 = vsub.f32 %v1158, %v1159
    %v1161 = vand.u32 %v1160, 4294901760
    %1162 = vmatprep.subr.mxu0 %v1161
    %v1163 = vand.u32 %v35, 4294901760
    %v1164 = vsub.f32 %v35, %v1163
    %v1165 = vand.u32 %v1164, 4294901760
    %v1166 = vsub.f32 %v1164, %v1165
    %v1167 = vand.u32 %v1166, 4294901760
    %1168 = vmatpush1.msra.mxu0 %v1167
    %v1169 = vand.u32 %v38, 4294901760
    %v1170 = vsub.f32 %v38, %v1169
    %v1171 = vand.u32 %v1170, 4294901760
    %v1172 = vsub.f32 %v1170, %v1171
    %v1173 = vand.u32 %v1172, 4294901760
    %1174 = vmatprep.subr.mxu0 %v1173
    %v1175 = vand.u32 %v37, 4294901760
    %v1176 = vsub.f32 %v37, %v1175
    %v1177 = vand.u32 %v1176, 4294901760
    %v1178 = vsub.f32 %v1176, %v1177
    %v1179 = vand.u32 %v1178, 4294901760
    %1180 = vmatpush1.msra.mxu0 %v1179
    %v1181 = vand.u32 %v40, 4294901760
    %v1182 = vsub.f32 %v40, %v1181
    %v1183 = vand.u32 %v1182, 4294901760
    %v1184 = vsub.f32 %v1182, %v1183
    %v1185 = vand.u32 %v1184, 4294901760
    %1186 = vmatprep.subr.mxu0 %v1185
    %v1187 = vand.u32 %v39, 4294901760
    %v1188 = vsub.f32 %v39, %v1187
    %v1189 = vand.u32 %v1188, 4294901760
    %v1190 = vsub.f32 %v1188, %v1189
    %v1191 = vand.u32 %v1190, 4294901760
    %1192 = vmatpush1.msra.mxu0 %v1191
    %v1193 = vand.u32 %v42, 4294901760
    %v1194 = vsub.f32 %v42, %v1193
    %v1195 = vand.u32 %v1194, 4294901760
    %v1196 = vsub.f32 %v1194, %v1195
    %v1197 = vand.u32 %v1196, 4294901760
    %1198 = vmatprep.subr.mxu0 %v1197
    %v1199 = vand.u32 %v41, 4294901760
    %v1200 = vsub.f32 %v41, %v1199
    %v1201 = vand.u32 %v1200, 4294901760
    %v1202 = vsub.f32 %v1200, %v1201
    %v1203 = vand.u32 %v1202, 4294901760
    %1204 = vmatpush1.msra.mxu0 %v1203
    %v1205 = vand.u32 %v44, 4294901760
    %v1206 = vsub.f32 %v44, %v1205
    %v1207 = vand.u32 %v1206, 4294901760
    %v1208 = vsub.f32 %v1206, %v1207
    %v1209 = vand.u32 %v1208, 4294901760
    %1210 = vmatprep.subr.mxu0 %v1209
    %v1211 = vand.u32 %v43, 4294901760
    %v1212 = vsub.f32 %v43, %v1211
    %v1213 = vand.u32 %v1212, 4294901760
    %v1214 = vsub.f32 %v1212, %v1213
    %v1215 = vand.u32 %v1214, 4294901760
    %1216 = vmatpush1.msra.mxu0 %v1215
    %v1217 = vand.u32 %v46, 4294901760
    %v1218 = vsub.f32 %v46, %v1217
    %v1219 = vand.u32 %v1218, 4294901760
    %v1220 = vsub.f32 %v1218, %v1219
    %v1221 = vand.u32 %v1220, 4294901760
    %1222 = vmatprep.subr.mxu0 %v1221
    %v1223 = vand.u32 %v45, 4294901760
    %v1224 = vsub.f32 %v45, %v1223
    %v1225 = vand.u32 %v1224, 4294901760
    %v1226 = vsub.f32 %v1224, %v1225
    %v1227 = vand.u32 %v1226, 4294901760
    %1228 = vmatpush1.msra.mxu0 %v1227
    %1229 = vmatprep.subr.mxu0 0.0
    %1230 = vmatpush1.msra.mxu0 0.0
    %1231 = vmatprep.subr.mxu0 0.0
    %1232 = vmatpush1.msra.mxu0 0.0
    %1233 = vmatprep.subr.mxu0 0.0
    %1234 = vmatpush1.msra.mxu0 0.0
    %1235 = vmatprep.subr.mxu0 0.0
    %1236 = vmatpush1.msra.mxu0 0.0
    %1237 = vmatprep.subr.mxu0 0.0
    %1238 = vmatpush1.msra.mxu0 0.0
    %1239 = vmatprep.subr.mxu0 0.0
    %1240 = vmatpush1.msra.mxu0 0.0
    %1241 = vmatprep.subr.mxu0 0.0
    %1242 = vmatpush1.msra.mxu0 0.0
    %1243 = vmatprep.subr.mxu0 0.0
    %1244 = vmatpush1.msra.mxu0 0.0
    %1245 = vmatprep.subr.mxu0 0.0
    %1246 = vmatpush1.msra.mxu0 0.0
    %1247 = vmatprep.subr.mxu0 0.0
    %1248 = vmatpush1.msra.mxu0 0.0
    %1249 = vmatprep.subr.mxu0 0.0
    %1250 = vmatpush1.msra.mxu0 0.0
    %1251 = vmatprep.subr.mxu0 0.0
    %1252 = vmatpush1.msra.mxu0 0.0
    %1253 = vmatprep.subr.mxu0 0.0
    %1254 = vmatpush1.msra.mxu0 0.0
    %1255 = vmatprep.subr.mxu0 0.0
    %1256 = vmatpush1.msra.mxu0 0.0
    %1257 = vmatprep.subr.mxu0 0.0
    %1258 = vmatpush1.msra.mxu0 0.0
    %1259 = vmatprep.subr.mxu0 0.0
    %1260 = vmatpush1.msra.mxu0 0.0
    %1261 = vmatprep.subr.mxu0 0.0
    %1262 = vmatpush1.msra.mxu0 0.0
    %1263 = vmatprep.subr.mxu0 0.0
    %1264 = vmatpush1.msra.mxu0 0.0
    %1265 = vmatprep.subr.mxu0 0.0
    %1266 = vmatpush1.msra.mxu0 0.0
    %1267 = vmatprep.subr.mxu0 0.0
    %1268 = vmatpush1.msra.mxu0 0.0
    %1269 = vmatprep.subr.mxu0 0.0
    %1270 = vmatpush1.msra.mxu0 0.0
    %1271 = vmatprep.subr.mxu0 0.0
    %1272 = vmatpush1.msra.mxu0 0.0
    %1273 = vmatprep.subr.mxu0 0.0
    %1274 = vmatpush1.msra.mxu0 0.0
    %1275 = vmatprep.subr.mxu0 0.0
    %1276 = vmatpush1.msra.mxu0 0.0
    %1277 = vmatprep.mubr.f32.mxu0 0.0
    %v1278 = vand.u32 %v1039, 4294901760
    %1279 = vmatmul.mubr.f32.gmra.mrb[0].mxu0 %v1278
    %v1280 = vpop.f32.mrb[0].mxu0
    %v1281 = vadd.f32 %v1129, %v1280
    %v1282 = vpop.f32.mrb[0].mxu0
    %v1283 = vadd.f32 %v1131, %v1282
    %1284 = vdwg.mxu0
    %v1285 = vand.u32 %v32, 4294901760
    %v1286 = vsub.f32 %v32, %v1285
    %1287 = vmatprep.subr.mxu0 %v1286
    %v1288 = vand.u32 %v31, 4294901760
    %v1289 = vsub.f32 %v31, %v1288
    %1290 = vmatpush1.msra.mxu0 %v1289
    %v1291 = vand.u32 %v34, 4294901760
    %v1292 = vsub.f32 %v34, %v1291
    %1293 = vmatprep.subr.mxu0 %v1292
    %v1294 = vand.u32 %v33, 4294901760
    %v1295 = vsub.f32 %v33, %v1294
    %1296 = vmatpush1.msra.mxu0 %v1295
    %v1297 = vand.u32 %v36, 4294901760
    %v1298 = vsub.f32 %v36, %v1297
    %1299 = vmatprep.subr.mxu0 %v1298
    %v1300 = vand.u32 %v35, 4294901760
    %v1301 = vsub.f32 %v35, %v1300
    %1302 = vmatpush1.msra.mxu0 %v1301
    %v1303 = vand.u32 %v38, 4294901760
    %v1304 = vsub.f32 %v38, %v1303
    %1305 = vmatprep.subr.mxu0 %v1304
    %v1306 = vand.u32 %v37, 4294901760
    %v1307 = vsub.f32 %v37, %v1306
    %1308 = vmatpush1.msra.mxu0 %v1307
    %v1309 = vand.u32 %v40, 4294901760
    %v1310 = vsub.f32 %v40, %v1309
    %1311 = vmatprep.subr.mxu0 %v1310
    %v1312 = vand.u32 %v39, 4294901760
    %v1313 = vsub.f32 %v39, %v1312
    %1314 = vmatpush1.msra.mxu0 %v1313
    %v1315 = vand.u32 %v42, 4294901760
    %v1316 = vsub.f32 %v42, %v1315
    %1317 = vmatprep.subr.mxu0 %v1316
    %v1318 = vand.u32 %v41, 4294901760
    %v1319 = vsub.f32 %v41, %v1318
    %1320 = vmatpush1.msra.mxu0 %v1319
    %v1321 = vand.u32 %v44, 4294901760
    %v1322 = vsub.f32 %v44, %v1321
    %1323 = vmatprep.subr.mxu0 %v1322
    %v1324 = vand.u32 %v43, 4294901760
    %v1325 = vsub.f32 %v43, %v1324
    %1326 = vmatpush1.msra.mxu0 %v1325
    %v1327 = vand.u32 %v46, 4294901760
    %v1328 = vsub.f32 %v46, %v1327
    %1329 = vmatprep.subr.mxu0 %v1328
    %v1330 = vand.u32 %v45, 4294901760
    %v1331 = vsub.f32 %v45, %v1330
    %1332 = vmatpush1.msra.mxu0 %v1331
    %1333 = vmatprep.subr.mxu0 0.0
    %1334 = vmatpush1.msra.mxu0 0.0
    %1335 = vmatprep.subr.mxu0 0.0
    %1336 = vmatpush1.msra.mxu0 0.0
    %1337 = vmatprep.subr.mxu0 0.0
    %1338 = vmatpush1.msra.mxu0 0.0
    %1339 = vmatprep.subr.mxu0 0.0
    %1340 = vmatpush1.msra.mxu0 0.0
    %1341 = vmatprep.subr.mxu0 0.0
    %1342 = vmatpush1.msra.mxu0 0.0
    %1343 = vmatprep.subr.mxu0 0.0
    %1344 = vmatpush1.msra.mxu0 0.0
    %1345 = vmatprep.subr.mxu0 0.0
    %1346 = vmatpush1.msra.mxu0 0.0
    %1347 = vmatprep.subr.mxu0 0.0
    %1348 = vmatpush1.msra.mxu0 0.0
    %1349 = vmatprep.subr.mxu0 0.0
    %1350 = vmatpush1.msra.mxu0 0.0
    %1351 = vmatprep.subr.mxu0 0.0
    %1352 = vmatpush1.msra.mxu0 0.0
    %1353 = vmatprep.subr.mxu0 0.0
    %1354 = vmatpush1.msra.mxu0 0.0
    %1355 = vmatprep.subr.mxu0 0.0
    %1356 = vmatpush1.msra.mxu0 0.0
    %1357 = vmatprep.subr.mxu0 0.0
    %1358 = vmatpush1.msra.mxu0 0.0
    %1359 = vmatprep.subr.mxu0 0.0
    %1360 = vmatpush1.msra.mxu0 0.0
    %1361 = vmatprep.subr.mxu0 0.0
    %1362 = vmatpush1.msra.mxu0 0.0
    %1363 = vmatprep.subr.mxu0 0.0
    %1364 = vmatpush1.msra.mxu0 0.0
    %1365 = vmatprep.subr.mxu0 0.0
    %1366 = vmatpush1.msra.mxu0 0.0
    %1367 = vmatprep.subr.mxu0 0.0
    %1368 = vmatpush1.msra.mxu0 0.0
    %1369 = vmatprep.subr.mxu0 0.0
    %1370 = vmatpush1.msra.mxu0 0.0
    %1371 = vmatprep.subr.mxu0 0.0
    %1372 = vmatpush1.msra.mxu0 0.0
    %1373 = vmatprep.subr.mxu0 0.0
    %1374 = vmatpush1.msra.mxu0 0.0
    %1375 = vmatprep.subr.mxu0 0.0
    %1376 = vmatpush1.msra.mxu0 0.0
    %1377 = vmatprep.subr.mxu0 0.0
    %1378 = vmatpush1.msra.mxu0 0.0
    %1379 = vmatprep.subr.mxu0 0.0
    %1380 = vmatpush1.msra.mxu0 0.0
    %1381 = vmatprep.mubr.f32.mxu0 0.0
    %v1382 = vand.u32 %v1039, 4294901760
    %v1383 = vsub.f32 %v1039, %v1382
    %1384 = vmatmul.mubr.f32.gmra.mrb[0].mxu0 %v1383
    %v1385 = vpop.f32.mrb[0].mxu0
    %v1386 = vadd.f32 %v1281, %v1385
    %v1387 = vpop.f32.mrb[0].mxu0
    %v1388 = vadd.f32 %v1283, %v1387
    %1389 = vdwg.mxu0
    %v1390 = vand.u32 %v32, 4294901760
    %1391 = vmatprep.subr.mxu0 %v1390
    %v1392 = vand.u32 %v31, 4294901760
    %1393 = vmatpush1.msra.mxu0 %v1392
    %v1394 = vand.u32 %v34, 4294901760
    %1395 = vmatprep.subr.mxu0 %v1394
    %v1396 = vand.u32 %v33, 4294901760
    %1397 = vmatpush1.msra.mxu0 %v1396
    %v1398 = vand.u32 %v36, 4294901760
    %1399 = vmatprep.subr.mxu0 %v1398
    %v1400 = vand.u32 %v35, 4294901760
    %1401 = vmatpush1.msra.mxu0 %v1400
    %v1402 = vand.u32 %v38, 4294901760
    %1403 = vmatprep.subr.mxu0 %v1402
    %v1404 = vand.u32 %v37, 4294901760
    %1405 = vmatpush1.msra.mxu0 %v1404
    %v1406 = vand.u32 %v40, 4294901760
    %1407 = vmatprep.subr.mxu0 %v1406
    %v1408 = vand.u32 %v39, 4294901760
    %1409 = vmatpush1.msra.mxu0 %v1408
    %v1410 = vand.u32 %v42, 4294901760
    %1411 = vmatprep.subr.mxu0 %v1410
    %v1412 = vand.u32 %v41, 4294901760
    %1413 = vmatpush1.msra.mxu0 %v1412
    %v1414 = vand.u32 %v44, 4294901760
    %1415 = vmatprep.subr.mxu0 %v1414
    %v1416 = vand.u32 %v43, 4294901760
    %1417 = vmatpush1.msra.mxu0 %v1416
    %v1418 = vand.u32 %v46, 4294901760
    %1419 = vmatprep.subr.mxu0 %v1418
    %v1420 = vand.u32 %v45, 4294901760
    %1421 = vmatpush1.msra.mxu0 %v1420
    %1422 = vmatprep.subr.mxu0 0.0
    %1423 = vmatpush1.msra.mxu0 0.0
    %1424 = vmatprep.subr.mxu0 0.0
    %1425 = vmatpush1.msra.mxu0 0.0
    %1426 = vmatprep.subr.mxu0 0.0
    %1427 = vmatpush1.msra.mxu0 0.0
    %1428 = vmatprep.subr.mxu0 0.0
    %1429 = vmatpush1.msra.mxu0 0.0
    %1430 = vmatprep.subr.mxu0 0.0
    %1431 = vmatpush1.msra.mxu0 0.0
    %1432 = vmatprep.subr.mxu0 0.0
    %1433 = vmatpush1.msra.mxu0 0.0
    %1434 = vmatprep.subr.mxu0 0.0
    %1435 = vmatpush1.msra.mxu0 0.0
    %1436 = vmatprep.subr.mxu0 0.0
    %1437 = vmatpush1.msra.mxu0 0.0
    %1438 = vmatprep.subr.mxu0 0.0
    %1439 = vmatpush1.msra.mxu0 0.0
    %1440 = vmatprep.subr.mxu0 0.0
    %1441 = vmatpush1.msra.mxu0 0.0
    %1442 = vmatprep.subr.mxu0 0.0
    %1443 = vmatpush1.msra.mxu0 0.0
    %1444 = vmatprep.subr.mxu0 0.0
    %1445 = vmatpush1.msra.mxu0 0.0
    %1446 = vmatprep.subr.mxu0 0.0
    %1447 = vmatpush1.msra.mxu0 0.0
    %1448 = vmatprep.subr.mxu0 0.0
    %1449 = vmatpush1.msra.mxu0 0.0
    %1450 = vmatprep.subr.mxu0 0.0
    %1451 = vmatpush1.msra.mxu0 0.0
    %1452 = vmatprep.subr.mxu0 0.0
    %1453 = vmatpush1.msra.mxu0 0.0
    %1454 = vmatprep.subr.mxu0 0.0
    %1455 = vmatpush1.msra.mxu0 0.0
    %1456 = vmatprep.subr.mxu0 0.0
    %1457 = vmatpush1.msra.mxu0 0.0
    %1458 = vmatprep.subr.mxu0 0.0
    %1459 = vmatpush1.msra.mxu0 0.0
    %1460 = vmatprep.subr.mxu0 0.0
    %1461 = vmatpush1.msra.mxu0 0.0
    %1462 = vmatprep.subr.mxu0 0.0
    %1463 = vmatpush1.msra.mxu0 0.0
    %1464 = vmatprep.subr.mxu0 0.0
    %1465 = vmatpush1.msra.mxu0 0.0
    %1466 = vmatprep.subr.mxu0 0.0
    %1467 = vmatpush1.msra.mxu0 0.0
    %1468 = vmatprep.subr.mxu0 0.0
    %1469 = vmatpush1.msra.mxu0 0.0
    %1470 = vmatprep.mubr.f32.mxu0 0.0
    %v1471 = vand.u32 %v1039, 4294901760
    %v1472 = vsub.f32 %v1039, %v1471
    %v1473 = vand.u32 %v1472, 4294901760
    %1474 = vmatmul.mubr.f32.gmra.mrb[0].mxu0 %v1473
    %v1475 = vpop.f32.mrb[0].mxu0
    %v1476 = vadd.f32 %v1386, %v1475
    %v1477 = vpop.f32.mrb[0].mxu0
    %v1478 = vadd.f32 %v1388, %v1477
    %1479 = vdwg.mxu0
    %v1480 = vand.u32 %v32, 4294901760
    %v1481 = vsub.f32 %v32, %v1480
    %v1482 = vand.u32 %v1481, 4294901760
    %1483 = vmatprep.subr.mxu0 %v1482
    %v1484 = vand.u32 %v31, 4294901760
    %v1485 = vsub.f32 %v31, %v1484
    %v1486 = vand.u32 %v1485, 4294901760
    %1487 = vmatpush1.msra.mxu0 %v1486
    %v1488 = vand.u32 %v34, 4294901760
    %v1489 = vsub.f32 %v34, %v1488
    %v1490 = vand.u32 %v1489, 4294901760
    %1491 = vmatprep.subr.mxu0 %v1490
    %v1492 = vand.u32 %v33, 4294901760
    %v1493 = vsub.f32 %v33, %v1492
    %v1494 = vand.u32 %v1493, 4294901760
    %1495 = vmatpush1.msra.mxu0 %v1494
    %v1496 = vand.u32 %v36, 4294901760
    %v1497 = vsub.f32 %v36, %v1496
    %v1498 = vand.u32 %v1497, 4294901760
    %1499 = vmatprep.subr.mxu0 %v1498
    %v1500 = vand.u32 %v35, 4294901760
    %v1501 = vsub.f32 %v35, %v1500
    %v1502 = vand.u32 %v1501, 4294901760
    %1503 = vmatpush1.msra.mxu0 %v1502
    %v1504 = vand.u32 %v38, 4294901760
    %v1505 = vsub.f32 %v38, %v1504
    %v1506 = vand.u32 %v1505, 4294901760
    %1507 = vmatprep.subr.mxu0 %v1506
    %v1508 = vand.u32 %v37, 4294901760
    %v1509 = vsub.f32 %v37, %v1508
    %v1510 = vand.u32 %v1509, 4294901760
    %1511 = vmatpush1.msra.mxu0 %v1510
    %v1512 = vand.u32 %v40, 4294901760
    %v1513 = vsub.f32 %v40, %v1512
    %v1514 = vand.u32 %v1513, 4294901760
    %1515 = vmatprep.subr.mxu0 %v1514
    %v1516 = vand.u32 %v39, 4294901760
    %v1517 = vsub.f32 %v39, %v1516
    %v1518 = vand.u32 %v1517, 4294901760
    %1519 = vmatpush1.msra.mxu0 %v1518
    %v1520 = vand.u32 %v42, 4294901760
    %v1521 = vsub.f32 %v42, %v1520
    %v1522 = vand.u32 %v1521, 4294901760
    %1523 = vmatprep.subr.mxu0 %v1522
    %v1524 = vand.u32 %v41, 4294901760
    %v1525 = vsub.f32 %v41, %v1524
    %v1526 = vand.u32 %v1525, 4294901760
    %1527 = vmatpush1.msra.mxu0 %v1526
    %v1528 = vand.u32 %v44, 4294901760
    %v1529 = vsub.f32 %v44, %v1528
    %v1530 = vand.u32 %v1529, 4294901760
    %1531 = vmatprep.subr.mxu0 %v1530
    %v1532 = vand.u32 %v43, 4294901760
    %v1533 = vsub.f32 %v43, %v1532
    %v1534 = vand.u32 %v1533, 4294901760
    %1535 = vmatpush1.msra.mxu0 %v1534
    %v1536 = vand.u32 %v46, 4294901760
    %v1537 = vsub.f32 %v46, %v1536
    %v1538 = vand.u32 %v1537, 4294901760
    %1539 = vmatprep.subr.mxu0 %v1538
    %v1540 = vand.u32 %v45, 4294901760
    %v1541 = vsub.f32 %v45, %v1540
    %v1542 = vand.u32 %v1541, 4294901760
    %1543 = vmatpush1.msra.mxu0 %v1542
    %1544 = vmatprep.subr.mxu0 0.0
    %1545 = vmatpush1.msra.mxu0 0.0
    %1546 = vmatprep.subr.mxu0 0.0
    %1547 = vmatpush1.msra.mxu0 0.0
    %1548 = vmatprep.subr.mxu0 0.0
    %1549 = vmatpush1.msra.mxu0 0.0
    %1550 = vmatprep.subr.mxu0 0.0
    %1551 = vmatpush1.msra.mxu0 0.0
    %1552 = vmatprep.subr.mxu0 0.0
    %1553 = vmatpush1.msra.mxu0 0.0
    %1554 = vmatprep.subr.mxu0 0.0
    %1555 = vmatpush1.msra.mxu0 0.0
    %1556 = vmatprep.subr.mxu0 0.0
    %1557 = vmatpush1.msra.mxu0 0.0
    %1558 = vmatprep.subr.mxu0 0.0
    %1559 = vmatpush1.msra.mxu0 0.0
    %1560 = vmatprep.subr.mxu0 0.0
    %1561 = vmatpush1.msra.mxu0 0.0
    %1562 = vmatprep.subr.mxu0 0.0
    %1563 = vmatpush1.msra.mxu0 0.0
    %1564 = vmatprep.subr.mxu0 0.0
    %1565 = vmatpush1.msra.mxu0 0.0
    %1566 = vmatprep.subr.mxu0 0.0
    %1567 = vmatpush1.msra.mxu0 0.0
    %1568 = vmatprep.subr.mxu0 0.0
    %1569 = vmatpush1.msra.mxu0 0.0
    %1570 = vmatprep.subr.mxu0 0.0
    %1571 = vmatpush1.msra.mxu0 0.0
    %1572 = vmatprep.subr.mxu0 0.0
    %1573 = vmatpush1.msra.mxu0 0.0
    %1574 = vmatprep.subr.mxu0 0.0
    %1575 = vmatpush1.msra.mxu0 0.0
    %1576 = vmatprep.subr.mxu0 0.0
    %1577 = vmatpush1.msra.mxu0 0.0
    %1578 = vmatprep.subr.mxu0 0.0
    %1579 = vmatpush1.msra.mxu0 0.0
    %1580 = vmatprep.subr.mxu0 0.0
    %1581 = vmatpush1.msra.mxu0 0.0
    %1582 = vmatprep.subr.mxu0 0.0
    %1583 = vmatpush1.msra.mxu0 0.0
    %1584 = vmatprep.subr.mxu0 0.0
    %1585 = vmatpush1.msra.mxu0 0.0
    %1586 = vmatprep.subr.mxu0 0.0
    %1587 = vmatpush1.msra.mxu0 0.0
    %1588 = vmatprep.subr.mxu0 0.0
    %1589 = vmatpush1.msra.mxu0 0.0
    %1590 = vmatprep.subr.mxu0 0.0
    %1591 = vmatpush1.msra.mxu0 0.0
    %1592 = vmatprep.mubr.f32.mxu0 0.0
    %v1593 = vand.u32 %v1039, 4294901760
    %1594 = vmatmul.mubr.f32.gmra.mrb[0].mxu0 %v1593
    %v1595 = vpop.f32.mrb[0].mxu0
    %v1596 = vadd.f32 %v1476, %v1595
    %v1597 = vpop.f32.mrb[0].mxu0
    %v1598 = vadd.f32 %v1478, %v1597
    %1599 = vdwg.mxu0
    %v1600 = vand.u32 %v32, 4294901760
    %1601 = vmatprep.subr.mxu0 %v1600
    %v1602 = vand.u32 %v31, 4294901760
    %1603 = vmatpush1.msra.mxu0 %v1602
    %v1604 = vand.u32 %v34, 4294901760
    %1605 = vmatprep.subr.mxu0 %v1604
    %v1606 = vand.u32 %v33, 4294901760
    %1607 = vmatpush1.msra.mxu0 %v1606
    %v1608 = vand.u32 %v36, 4294901760
    %1609 = vmatprep.subr.mxu0 %v1608
    %v1610 = vand.u32 %v35, 4294901760
    %1611 = vmatpush1.msra.mxu0 %v1610
    %v1612 = vand.u32 %v38, 4294901760
    %1613 = vmatprep.subr.mxu0 %v1612
    %v1614 = vand.u32 %v37, 4294901760
    %1615 = vmatpush1.msra.mxu0 %v1614
    %v1616 = vand.u32 %v40, 4294901760
    %1617 = vmatprep.subr.mxu0 %v1616
    %v1618 = vand.u32 %v39, 4294901760
    %1619 = vmatpush1.msra.mxu0 %v1618
    %v1620 = vand.u32 %v42, 4294901760
    %1621 = vmatprep.subr.mxu0 %v1620
    %v1622 = vand.u32 %v41, 4294901760
    %1623 = vmatpush1.msra.mxu0 %v1622
    %v1624 = vand.u32 %v44, 4294901760
    %1625 = vmatprep.subr.mxu0 %v1624
    %v1626 = vand.u32 %v43, 4294901760
    %1627 = vmatpush1.msra.mxu0 %v1626
    %v1628 = vand.u32 %v46, 4294901760
    %1629 = vmatprep.subr.mxu0 %v1628
    %v1630 = vand.u32 %v45, 4294901760
    %1631 = vmatpush1.msra.mxu0 %v1630
    %1632 = vmatprep.subr.mxu0 0.0
    %1633 = vmatpush1.msra.mxu0 0.0
    %1634 = vmatprep.subr.mxu0 0.0
    %1635 = vmatpush1.msra.mxu0 0.0
    %1636 = vmatprep.subr.mxu0 0.0
    %1637 = vmatpush1.msra.mxu0 0.0
    %1638 = vmatprep.subr.mxu0 0.0
    %1639 = vmatpush1.msra.mxu0 0.0
    %1640 = vmatprep.subr.mxu0 0.0
    %1641 = vmatpush1.msra.mxu0 0.0
    %1642 = vmatprep.subr.mxu0 0.0
    %1643 = vmatpush1.msra.mxu0 0.0
    %1644 = vmatprep.subr.mxu0 0.0
    %1645 = vmatpush1.msra.mxu0 0.0
    %1646 = vmatprep.subr.mxu0 0.0
    %1647 = vmatpush1.msra.mxu0 0.0
    %1648 = vmatprep.subr.mxu0 0.0
    %1649 = vmatpush1.msra.mxu0 0.0
    %1650 = vmatprep.subr.mxu0 0.0
    %1651 = vmatpush1.msra.mxu0 0.0
    %1652 = vmatprep.subr.mxu0 0.0
    %1653 = vmatpush1.msra.mxu0 0.0
    %1654 = vmatprep.subr.mxu0 0.0
    %1655 = vmatpush1.msra.mxu0 0.0
    %1656 = vmatprep.subr.mxu0 0.0
    %1657 = vmatpush1.msra.mxu0 0.0
    %1658 = vmatprep.subr.mxu0 0.0
    %1659 = vmatpush1.msra.mxu0 0.0
    %1660 = vmatprep.subr.mxu0 0.0
    %1661 = vmatpush1.msra.mxu0 0.0
    %1662 = vmatprep.subr.mxu0 0.0
    %1663 = vmatpush1.msra.mxu0 0.0
    %1664 = vmatprep.subr.mxu0 0.0
    %1665 = vmatpush1.msra.mxu0 0.0
    %1666 = vmatprep.subr.mxu0 0.0
    %1667 = vmatpush1.msra.mxu0 0.0
    %1668 = vmatprep.subr.mxu0 0.0
    %1669 = vmatpush1.msra.mxu0 0.0
    %1670 = vmatprep.subr.mxu0 0.0
    %1671 = vmatpush1.msra.mxu0 0.0
    %1672 = vmatprep.subr.mxu0 0.0
    %1673 = vmatpush1.msra.mxu0 0.0
    %1674 = vmatprep.subr.mxu0 0.0
    %1675 = vmatpush1.msra.mxu0 0.0
    %1676 = vmatprep.subr.mxu0 0.0
    %1677 = vmatpush1.msra.mxu0 0.0
    %1678 = vmatprep.subr.mxu0 0.0
    %1679 = vmatpush1.msra.mxu0 0.0
    %1680 = vmatprep.mubr.f32.mxu0 0.0
    %v1681 = vand.u32 %v1039, 4294901760
    %1682 = vmatmul.mubr.f32.gmra.mrb[0].mxu0 %v1681
    %v1683 = vpop.f32.mrb[0].mxu0
    %v1684 = vadd.f32 %v1596, %v1683
    %v1685 = vpop.f32.mrb[0].mxu0
    %v1686 = vadd.f32 %v1598, %v1685
    %1687 = vdwg.mxu0
    %v1688 = vadd.f32 %v1686, %v53
    %v1689 = vxor.u32 %v1688, 2147483648
    %v1690 = vmul.f32 %v1689, 1.442695
    %v1691 = vpow.pop %v1690
    %v1692 = vadd.f32 %v1691, 1.0
    %v1693 = vrcp.pop %v1692
    %v1694 = vmul.f32 1.0, %v1693
    %v1695 = vtanh.pop %v1688
    %1697 = vrot.lane.b32.xlu0 %v509, 32
    %v1698 = vpop.permute.xlu0 %1697
    %v1700 = vmul.f32 %v1694, %v1698
    %1702 = vrot.lane.b32.xlu0 %v1695, 64
    %v1703 = vpop.permute.xlu0 %1702
    %v1705 = vmul.f32 %v1694, %v1703
    %1707 = vrot.lane.b32.xlu0 %v1705, 32
    %v1708 = vpop.permute.xlu0 %1707
    %v1710 = vadd.f32 %v1700, %v1708
    %v1711 = vtanh.pop %v1710
    %1713 = vrot.lane.b32.xlu0 %v1711, 64
    %v1714 = vpop.permute.xlu0 %1713
    %v1716 = vmul.f32 %v1694, %v1714
    %v1718 = vrot.slane %v1684, 7
    %v1720 = vadd.f32 %v503, %v1718
    %v1721 = vxor.u32 %v1720, 2147483648
    %v1722 = vmul.f32 %v1721, 1.442695
    %v1723 = vpow.pop %v1722
    %v1724 = vadd.f32 %v1723, 1.0
    %v1725 = vrcp.pop %v1724
    %v1726 = vmul.f32 1.0, %v1725
    %v1727 = vtanh.pop %v1720
    %v1729 = vrot.slane %v1021, 7
    %v1731 = vmul.f32 %v1726, %v1729
    %1733 = vrot.lane.b32.xlu0 %v1727, 64
    %v1734 = vpop.permute.xlu0 %1733
    %v1736 = vmul.f32 %v1726, %v1734
    %1738 = vrot.lane.b32.xlu0 %v1736, 32
    %v1739 = vpop.permute.xlu0 %1738
    %v1741 = vadd.f32 %v1731, %v1739
    %v1742 = vtanh.pop %v1741
    %1744 = vrot.lane.b32.xlu0 %v1742, 64
    %v1745 = vpop.permute.xlu0 %1744
    %v1747 = vmul.f32 %v1726, %v1745
    %1749 = vrot.lane.b32.xlu0 %v1747, 32
    %v1750 = vpop.permute.xlu0 %1749
    %v1753 = vrot.slane %v1716, 7
    %1754 = vrot.lane.b32.xlu0 %v1753, 64
    %v1755 = vpop.permute.xlu0 %1754
    %v1757 = vsel %vm510, %v1750, %v1755
    %v1759 = vrot.slane %v1757, 1
    %v1760 = vsel %vm1037, %v1759, 0
    %v1762 = vand.u32 %v32, 4294901760
    %1763 = vmatprep.subr.mxu0 %v1762
    %v1764 = vand.u32 %v31, 4294901760
    %1765 = vmatpush1.msra.mxu0 %v1764
    %v1766 = vand.u32 %v34, 4294901760
    %1767 = vmatprep.subr.mxu0 %v1766
    %v1768 = vand.u32 %v33, 4294901760
    %1769 = vmatpush1.msra.mxu0 %v1768
    %v1770 = vand.u32 %v36, 4294901760
    %1771 = vmatprep.subr.mxu0 %v1770
    %v1772 = vand.u32 %v35, 4294901760
    %1773 = vmatpush1.msra.mxu0 %v1772
    %v1774 = vand.u32 %v38, 4294901760
    %1775 = vmatprep.subr.mxu0 %v1774
    %v1776 = vand.u32 %v37, 4294901760
    %1777 = vmatpush1.msra.mxu0 %v1776
    %v1778 = vand.u32 %v40, 4294901760
    %1779 = vmatprep.subr.mxu0 %v1778
    %v1780 = vand.u32 %v39, 4294901760
    %1781 = vmatpush1.msra.mxu0 %v1780
    %v1782 = vand.u32 %v42, 4294901760
    %1783 = vmatprep.subr.mxu0 %v1782
    %v1784 = vand.u32 %v41, 4294901760
    %1785 = vmatpush1.msra.mxu0 %v1784
    %v1786 = vand.u32 %v44, 4294901760
    %1787 = vmatprep.subr.mxu0 %v1786
    %v1788 = vand.u32 %v43, 4294901760
    %1789 = vmatpush1.msra.mxu0 %v1788
    %v1790 = vand.u32 %v46, 4294901760
    %1791 = vmatprep.subr.mxu0 %v1790
    %v1792 = vand.u32 %v45, 4294901760
    %1793 = vmatpush1.msra.mxu0 %v1792
    %1794 = vmatprep.subr.mxu0 0.0
    %1795 = vmatpush1.msra.mxu0 0.0
    %1796 = vmatprep.subr.mxu0 0.0
    %1797 = vmatpush1.msra.mxu0 0.0
    %1798 = vmatprep.subr.mxu0 0.0
    %1799 = vmatpush1.msra.mxu0 0.0
    %1800 = vmatprep.subr.mxu0 0.0
    %1801 = vmatpush1.msra.mxu0 0.0
    %1802 = vmatprep.subr.mxu0 0.0
    %1803 = vmatpush1.msra.mxu0 0.0
    %1804 = vmatprep.subr.mxu0 0.0
    %1805 = vmatpush1.msra.mxu0 0.0
    %1806 = vmatprep.subr.mxu0 0.0
    %1807 = vmatpush1.msra.mxu0 0.0
    %1808 = vmatprep.subr.mxu0 0.0
    %1809 = vmatpush1.msra.mxu0 0.0
    %1810 = vmatprep.subr.mxu0 0.0
    %1811 = vmatpush1.msra.mxu0 0.0
    %1812 = vmatprep.subr.mxu0 0.0
    %1813 = vmatpush1.msra.mxu0 0.0
    %1814 = vmatprep.subr.mxu0 0.0
    %1815 = vmatpush1.msra.mxu0 0.0
    %1816 = vmatprep.subr.mxu0 0.0
    %1817 = vmatpush1.msra.mxu0 0.0
    %1818 = vmatprep.subr.mxu0 0.0
    %1819 = vmatpush1.msra.mxu0 0.0
    %1820 = vmatprep.subr.mxu0 0.0
    %1821 = vmatpush1.msra.mxu0 0.0
    %1822 = vmatprep.subr.mxu0 0.0
    %1823 = vmatpush1.msra.mxu0 0.0
    %1824 = vmatprep.subr.mxu0 0.0
    %1825 = vmatpush1.msra.mxu0 0.0
    %1826 = vmatprep.subr.mxu0 0.0
    %1827 = vmatpush1.msra.mxu0 0.0
    %1828 = vmatprep.subr.mxu0 0.0
    %1829 = vmatpush1.msra.mxu0 0.0
    %1830 = vmatprep.subr.mxu0 0.0
    %1831 = vmatpush1.msra.mxu0 0.0
    %1832 = vmatprep.subr.mxu0 0.0
    %1833 = vmatpush1.msra.mxu0 0.0
    %1834 = vmatprep.subr.mxu0 0.0
    %1835 = vmatpush1.msra.mxu0 0.0
    %1836 = vmatprep.subr.mxu0 0.0
    %1837 = vmatpush1.msra.mxu0 0.0
    %1838 = vmatprep.subr.mxu0 0.0
    %1839 = vmatpush1.msra.mxu0 0.0
    %1840 = vmatprep.subr.mxu0 0.0
    %1841 = vmatpush1.msra.mxu0 0.0
    %1842 = vmatprep.mubr.f32.mxu0 0.0
    %v1843 = vand.u32 %v1760, 4294901760
    %v1844 = vsub.f32 %v1760, %v1843
    %v1845 = vand.u32 %v1844, 4294901760
    %v1846 = vsub.f32 %v1844, %v1845
    %v1847 = vand.u32 %v1846, 4294901760
    %1848 = vmatmul.mubr.f32.gmra.mrb[0].mxu0 %v1847
    %v1849 = vpop.f32.mrb[0].mxu0
    %v1850 = vadd.f32 0.0, %v1849
    %v1851 = vpop.f32.mrb[0].mxu0
    %v1852 = vadd.f32 0.0, %v1851
    %1853 = vdwg.mxu0
    %v1854 = vand.u32 %v32, 4294901760
    %v1855 = vsub.f32 %v32, %v1854
    %v1856 = vand.u32 %v1855, 4294901760
    %v1857 = vsub.f32 %v1855, %v1856
    %v1858 = vand.u32 %v1857, 4294901760
    %1859 = vmatprep.subr.mxu0 %v1858
    %v1860 = vand.u32 %v31, 4294901760
    %v1861 = vsub.f32 %v31, %v1860
    %v1862 = vand.u32 %v1861, 4294901760
    %v1863 = vsub.f32 %v1861, %v1862
    %v1864 = vand.u32 %v1863, 4294901760
    %1865 = vmatpush1.msra.mxu0 %v1864
    %v1866 = vand.u32 %v34, 4294901760
    %v1867 = vsub.f32 %v34, %v1866
    %v1868 = vand.u32 %v1867, 4294901760
    %v1869 = vsub.f32 %v1867, %v1868
    %v1870 = vand.u32 %v1869, 4294901760
    %1871 = vmatprep.subr.mxu0 %v1870
    %v1872 = vand.u32 %v33, 4294901760
    %v1873 = vsub.f32 %v33, %v1872
    %v1874 = vand.u32 %v1873, 4294901760
    %v1875 = vsub.f32 %v1873, %v1874
    %v1876 = vand.u32 %v1875, 4294901760
    %1877 = vmatpush1.msra.mxu0 %v1876
    %v1878 = vand.u32 %v36, 4294901760
    %v1879 = vsub.f32 %v36, %v1878
    %v1880 = vand.u32 %v1879, 4294901760
    %v1881 = vsub.f32 %v1879, %v1880
    %v1882 = vand.u32 %v1881, 4294901760
    %1883 = vmatprep.subr.mxu0 %v1882
    %v1884 = vand.u32 %v35, 4294901760
    %v1885 = vsub.f32 %v35, %v1884
    %v1886 = vand.u32 %v1885, 4294901760
    %v1887 = vsub.f32 %v1885, %v1886
    %v1888 = vand.u32 %v1887, 4294901760
    %1889 = vmatpush1.msra.mxu0 %v1888
    %v1890 = vand.u32 %v38, 4294901760
    %v1891 = vsub.f32 %v38, %v1890
    %v1892 = vand.u32 %v1891, 4294901760
    %v1893 = vsub.f32 %v1891, %v1892
    %v1894 = vand.u32 %v1893, 4294901760
    %1895 = vmatprep.subr.mxu0 %v1894
    %v1896 = vand.u32 %v37, 4294901760
    %v1897 = vsub.f32 %v37, %v1896
    %v1898 = vand.u32 %v1897, 4294901760
    %v1899 = vsub.f32 %v1897, %v1898
    %v1900 = vand.u32 %v1899, 4294901760
    %1901 = vmatpush1.msra.mxu0 %v1900
    %v1902 = vand.u32 %v40, 4294901760
    %v1903 = vsub.f32 %v40, %v1902
    %v1904 = vand.u32 %v1903, 4294901760
    %v1905 = vsub.f32 %v1903, %v1904
    %v1906 = vand.u32 %v1905, 4294901760
    %1907 = vmatprep.subr.mxu0 %v1906
    %v1908 = vand.u32 %v39, 4294901760
    %v1909 = vsub.f32 %v39, %v1908
    %v1910 = vand.u32 %v1909, 4294901760
    %v1911 = vsub.f32 %v1909, %v1910
    %v1912 = vand.u32 %v1911, 4294901760
    %1913 = vmatpush1.msra.mxu0 %v1912
    %v1914 = vand.u32 %v42, 4294901760
    %v1915 = vsub.f32 %v42, %v1914
    %v1916 = vand.u32 %v1915, 4294901760
    %v1917 = vsub.f32 %v1915, %v1916
    %v1918 = vand.u32 %v1917, 4294901760
    %1919 = vmatprep.subr.mxu0 %v1918
    %v1920 = vand.u32 %v41, 4294901760
    %v1921 = vsub.f32 %v41, %v1920
    %v1922 = vand.u32 %v1921, 4294901760
    %v1923 = vsub.f32 %v1921, %v1922
    %v1924 = vand.u32 %v1923, 4294901760
    %1925 = vmatpush1.msra.mxu0 %v1924
    %v1926 = vand.u32 %v44, 4294901760
    %v1927 = vsub.f32 %v44, %v1926
    %v1928 = vand.u32 %v1927, 4294901760
    %v1929 = vsub.f32 %v1927, %v1928
    %v1930 = vand.u32 %v1929, 4294901760
    %1931 = vmatprep.subr.mxu0 %v1930
    %v1932 = vand.u32 %v43, 4294901760
    %v1933 = vsub.f32 %v43, %v1932
    %v1934 = vand.u32 %v1933, 4294901760
    %v1935 = vsub.f32 %v1933, %v1934
    %v1936 = vand.u32 %v1935, 4294901760
    %1937 = vmatpush1.msra.mxu0 %v1936
    %v1938 = vand.u32 %v46, 4294901760
    %v1939 = vsub.f32 %v46, %v1938
    %v1940 = vand.u32 %v1939, 4294901760
    %v1941 = vsub.f32 %v1939, %v1940
    %v1942 = vand.u32 %v1941, 4294901760
    %1943 = vmatprep.subr.mxu0 %v1942
    %v1944 = vand.u32 %v45, 4294901760
    %v1945 = vsub.f32 %v45, %v1944
    %v1946 = vand.u32 %v1945, 4294901760
    %v1947 = vsub.f32 %v1945, %v1946
    %v1948 = vand.u32 %v1947, 4294901760
    %1949 = vmatpush1.msra.mxu0 %v1948
    %1950 = vmatprep.subr.mxu0 0.0
    %1951 = vmatpush1.msra.mxu0 0.0
    %1952 = vmatprep.subr.mxu0 0.0
    %1953 = vmatpush1.msra.mxu0 0.0
    %1954 = vmatprep.subr.mxu0 0.0
    %1955 = vmatpush1.msra.mxu0 0.0
    %1956 = vmatprep.subr.mxu0 0.0
    %1957 = vmatpush1.msra.mxu0 0.0
    %1958 = vmatprep.subr.mxu0 0.0
    %1959 = vmatpush1.msra.mxu0 0.0
    %1960 = vmatprep.subr.mxu0 0.0
    %1961 = vmatpush1.msra.mxu0 0.0
    %1962 = vmatprep.subr.mxu0 0.0
    %1963 = vmatpush1.msra.mxu0 0.0
    %1964 = vmatprep.subr.mxu0 0.0
    %1965 = vmatpush1.msra.mxu0 0.0
    %1966 = vmatprep.subr.mxu0 0.0
    %1967 = vmatpush1.msra.mxu0 0.0
    %1968 = vmatprep.subr.mxu0 0.0
    %1969 = vmatpush1.msra.mxu0 0.0
    %1970 = vmatprep.subr.mxu0 0.0
    %1971 = vmatpush1.msra.mxu0 0.0
    %1972 = vmatprep.subr.mxu0 0.0
    %1973 = vmatpush1.msra.mxu0 0.0
    %1974 = vmatprep.subr.mxu0 0.0
    %1975 = vmatpush1.msra.mxu0 0.0
    %1976 = vmatprep.subr.mxu0 0.0
    %1977 = vmatpush1.msra.mxu0 0.0
    %1978 = vmatprep.subr.mxu0 0.0
    %1979 = vmatpush1.msra.mxu0 0.0
    %1980 = vmatprep.subr.mxu0 0.0
    %1981 = vmatpush1.msra.mxu0 0.0
    %1982 = vmatprep.subr.mxu0 0.0
    %1983 = vmatpush1.msra.mxu0 0.0
    %1984 = vmatprep.subr.mxu0 0.0
    %1985 = vmatpush1.msra.mxu0 0.0
    %1986 = vmatprep.subr.mxu0 0.0
    %1987 = vmatpush1.msra.mxu0 0.0
    %1988 = vmatprep.subr.mxu0 0.0
    %1989 = vmatpush1.msra.mxu0 0.0
    %1990 = vmatprep.subr.mxu0 0.0
    %1991 = vmatpush1.msra.mxu0 0.0
    %1992 = vmatprep.subr.mxu0 0.0
    %1993 = vmatpush1.msra.mxu0 0.0
    %1994 = vmatprep.subr.mxu0 0.0
    %1995 = vmatpush1.msra.mxu0 0.0
    %1996 = vmatprep.subr.mxu0 0.0
    %1997 = vmatpush1.msra.mxu0 0.0
    %1998 = vmatprep.mubr.f32.mxu0 0.0
    %v1999 = vand.u32 %v1760, 4294901760
    %2000 = vmatmul.mubr.f32.gmra.mrb[0].mxu0 %v1999
    %v2001 = vpop.f32.mrb[0].mxu0
    %v2002 = vadd.f32 %v1850, %v2001
    %v2003 = vpop.f32.mrb[0].mxu0
    %v2004 = vadd.f32 %v1852, %v2003
    %2005 = vdwg.mxu0
    %v2006 = vand.u32 %v32, 4294901760
    %v2007 = vsub.f32 %v32, %v2006
    %2008 = vmatprep.subr.mxu0 %v2007
    %v2009 = vand.u32 %v31, 4294901760
    %v2010 = vsub.f32 %v31, %v2009
    %2011 = vmatpush1.msra.mxu0 %v2010
    %v2012 = vand.u32 %v34, 4294901760
    %v2013 = vsub.f32 %v34, %v2012
    %2014 = vmatprep.subr.mxu0 %v2013
    %v2015 = vand.u32 %v33, 4294901760
    %v2016 = vsub.f32 %v33, %v2015
    %2017 = vmatpush1.msra.mxu0 %v2016
    %v2018 = vand.u32 %v36, 4294901760
    %v2019 = vsub.f32 %v36, %v2018
    %2020 = vmatprep.subr.mxu0 %v2019
    %v2021 = vand.u32 %v35, 4294901760
    %v2022 = vsub.f32 %v35, %v2021
    %2023 = vmatpush1.msra.mxu0 %v2022
    %v2024 = vand.u32 %v38, 4294901760
    %v2025 = vsub.f32 %v38, %v2024
    %2026 = vmatprep.subr.mxu0 %v2025
    %v2027 = vand.u32 %v37, 4294901760
    %v2028 = vsub.f32 %v37, %v2027
    %2029 = vmatpush1.msra.mxu0 %v2028
    %v2030 = vand.u32 %v40, 4294901760
    %v2031 = vsub.f32 %v40, %v2030
    %2032 = vmatprep.subr.mxu0 %v2031
    %v2033 = vand.u32 %v39, 4294901760
    %v2034 = vsub.f32 %v39, %v2033
    %2035 = vmatpush1.msra.mxu0 %v2034
    %v2036 = vand.u32 %v42, 4294901760
    %v2037 = vsub.f32 %v42, %v2036
    %2038 = vmatprep.subr.mxu0 %v2037
    %v2039 = vand.u32 %v41, 4294901760
    %v2040 = vsub.f32 %v41, %v2039
    %2041 = vmatpush1.msra.mxu0 %v2040
    %v2042 = vand.u32 %v44, 4294901760
    %v2043 = vsub.f32 %v44, %v2042
    %2044 = vmatprep.subr.mxu0 %v2043
    %v2045 = vand.u32 %v43, 4294901760
    %v2046 = vsub.f32 %v43, %v2045
    %2047 = vmatpush1.msra.mxu0 %v2046
    %v2048 = vand.u32 %v46, 4294901760
    %v2049 = vsub.f32 %v46, %v2048
    %2050 = vmatprep.subr.mxu0 %v2049
    %v2051 = vand.u32 %v45, 4294901760
    %v2052 = vsub.f32 %v45, %v2051
    %2053 = vmatpush1.msra.mxu0 %v2052
    %2054 = vmatprep.subr.mxu0 0.0
    %2055 = vmatpush1.msra.mxu0 0.0
    %2056 = vmatprep.subr.mxu0 0.0
    %2057 = vmatpush1.msra.mxu0 0.0
    %2058 = vmatprep.subr.mxu0 0.0
    %2059 = vmatpush1.msra.mxu0 0.0
    %2060 = vmatprep.subr.mxu0 0.0
    %2061 = vmatpush1.msra.mxu0 0.0
    %2062 = vmatprep.subr.mxu0 0.0
    %2063 = vmatpush1.msra.mxu0 0.0
    %2064 = vmatprep.subr.mxu0 0.0
    %2065 = vmatpush1.msra.mxu0 0.0
    %2066 = vmatprep.subr.mxu0 0.0
    %2067 = vmatpush1.msra.mxu0 0.0
    %2068 = vmatprep.subr.mxu0 0.0
    %2069 = vmatpush1.msra.mxu0 0.0
    %2070 = vmatprep.subr.mxu0 0.0
    %2071 = vmatpush1.msra.mxu0 0.0
    %2072 = vmatprep.subr.mxu0 0.0
    %2073 = vmatpush1.msra.mxu0 0.0
    %2074 = vmatprep.subr.mxu0 0.0
    %2075 = vmatpush1.msra.mxu0 0.0
    %2076 = vmatprep.subr.mxu0 0.0
    %2077 = vmatpush1.msra.mxu0 0.0
    %2078 = vmatprep.subr.mxu0 0.0
    %2079 = vmatpush1.msra.mxu0 0.0
    %2080 = vmatprep.subr.mxu0 0.0
    %2081 = vmatpush1.msra.mxu0 0.0
    %2082 = vmatprep.subr.mxu0 0.0
    %2083 = vmatpush1.msra.mxu0 0.0
    %2084 = vmatprep.subr.mxu0 0.0
    %2085 = vmatpush1.msra.mxu0 0.0
    %2086 = vmatprep.subr.mxu0 0.0
    %2087 = vmatpush1.msra.mxu0 0.0
    %2088 = vmatprep.subr.mxu0 0.0
    %2089 = vmatpush1.msra.mxu0 0.0
    %2090 = vmatprep.subr.mxu0 0.0
    %2091 = vmatpush1.msra.mxu0 0.0
    %2092 = vmatprep.subr.mxu0 0.0
    %2093 = vmatpush1.msra.mxu0 0.0
    %2094 = vmatprep.subr.mxu0 0.0
    %2095 = vmatpush1.msra.mxu0 0.0
    %2096 = vmatprep.subr.mxu0 0.0
    %2097 = vmatpush1.msra.mxu0 0.0
    %2098 = vmatprep.subr.mxu0 0.0
    %2099 = vmatpush1.msra.mxu0 0.0
    %2100 = vmatprep.subr.mxu0 0.0
    %2101 = vmatpush1.msra.mxu0 0.0
    %2102 = vmatprep.mubr.f32.mxu0 0.0
    %v2103 = vand.u32 %v1760, 4294901760
    %v2104 = vsub.f32 %v1760, %v2103
    %2105 = vmatmul.mubr.f32.gmra.mrb[0].mxu0 %v2104
    %v2106 = vpop.f32.mrb[0].mxu0
    %v2107 = vadd.f32 %v2002, %v2106
    %v2108 = vpop.f32.mrb[0].mxu0
    %v2109 = vadd.f32 %v2004, %v2108
    %2110 = vdwg.mxu0
    %v2111 = vand.u32 %v32, 4294901760
    %2112 = vmatprep.subr.mxu0 %v2111
    %v2113 = vand.u32 %v31, 4294901760
    %2114 = vmatpush1.msra.mxu0 %v2113
    %v2115 = vand.u32 %v34, 4294901760
    %2116 = vmatprep.subr.mxu0 %v2115
    %v2117 = vand.u32 %v33, 4294901760
    %2118 = vmatpush1.msra.mxu0 %v2117
    %v2119 = vand.u32 %v36, 4294901760
    %2120 = vmatprep.subr.mxu0 %v2119
    %v2121 = vand.u32 %v35, 4294901760
    %2122 = vmatpush1.msra.mxu0 %v2121
    %v2123 = vand.u32 %v38, 4294901760
    %2124 = vmatprep.subr.mxu0 %v2123
    %v2125 = vand.u32 %v37, 4294901760
    %2126 = vmatpush1.msra.mxu0 %v2125
    %v2127 = vand.u32 %v40, 4294901760
    %2128 = vmatprep.subr.mxu0 %v2127
    %v2129 = vand.u32 %v39, 4294901760
    %2130 = vmatpush1.msra.mxu0 %v2129
    %v2131 = vand.u32 %v42, 4294901760
    %2132 = vmatprep.subr.mxu0 %v2131
    %v2133 = vand.u32 %v41, 4294901760
    %2134 = vmatpush1.msra.mxu0 %v2133
    %v2135 = vand.u32 %v44, 4294901760
    %2136 = vmatprep.subr.mxu0 %v2135
    %v2137 = vand.u32 %v43, 4294901760
    %2138 = vmatpush1.msra.mxu0 %v2137
    %v2139 = vand.u32 %v46, 4294901760
    %2140 = vmatprep.subr.mxu0 %v2139
    %v2141 = vand.u32 %v45, 4294901760
    %2142 = vmatpush1.msra.mxu0 %v2141
    %2143 = vmatprep.subr.mxu0 0.0
    %2144 = vmatpush1.msra.mxu0 0.0
    %2145 = vmatprep.subr.mxu0 0.0
    %2146 = vmatpush1.msra.mxu0 0.0
    %2147 = vmatprep.subr.mxu0 0.0
    %2148 = vmatpush1.msra.mxu0 0.0
    %2149 = vmatprep.subr.mxu0 0.0
    %2150 = vmatpush1.msra.mxu0 0.0
    %2151 = vmatprep.subr.mxu0 0.0
    %2152 = vmatpush1.msra.mxu0 0.0
    %2153 = vmatprep.subr.mxu0 0.0
    %2154 = vmatpush1.msra.mxu0 0.0
    %2155 = vmatprep.subr.mxu0 0.0
    %2156 = vmatpush1.msra.mxu0 0.0
    %2157 = vmatprep.subr.mxu0 0.0
    %2158 = vmatpush1.msra.mxu0 0.0
    %2159 = vmatprep.subr.mxu0 0.0
    %2160 = vmatpush1.msra.mxu0 0.0
    %2161 = vmatprep.subr.mxu0 0.0
    %2162 = vmatpush1.msra.mxu0 0.0
    %2163 = vmatprep.subr.mxu0 0.0
    %2164 = vmatpush1.msra.mxu0 0.0
    %2165 = vmatprep.subr.mxu0 0.0
    %2166 = vmatpush1.msra.mxu0 0.0
    %2167 = vmatprep.subr.mxu0 0.0
    %2168 = vmatpush1.msra.mxu0 0.0
    %2169 = vmatprep.subr.mxu0 0.0
    %2170 = vmatpush1.msra.mxu0 0.0
    %2171 = vmatprep.subr.mxu0 0.0
    %2172 = vmatpush1.msra.mxu0 0.0
    %2173 = vmatprep.subr.mxu0 0.0
    %2174 = vmatpush1.msra.mxu0 0.0
    %2175 = vmatprep.subr.mxu0 0.0
    %2176 = vmatpush1.msra.mxu0 0.0
    %2177 = vmatprep.subr.mxu0 0.0
    %2178 = vmatpush1.msra.mxu0 0.0
    %2179 = vmatprep.subr.mxu0 0.0
    %2180 = vmatpush1.msra.mxu0 0.0
    %2181 = vmatprep.subr.mxu0 0.0
    %2182 = vmatpush1.msra.mxu0 0.0
    %2183 = vmatprep.subr.mxu0 0.0
    %2184 = vmatpush1.msra.mxu0 0.0
    %2185 = vmatprep.subr.mxu0 0.0
    %2186 = vmatpush1.msra.mxu0 0.0
    %2187 = vmatprep.subr.mxu0 0.0
    %2188 = vmatpush1.msra.mxu0 0.0
    %2189 = vmatprep.subr.mxu0 0.0
    %2190 = vmatpush1.msra.mxu0 0.0
    %2191 = vmatprep.mubr.f32.mxu0 0.0
    %v2192 = vand.u32 %v1760, 4294901760
    %v2193 = vsub.f32 %v1760, %v2192
    %v2194 = vand.u32 %v2193, 4294901760
    %2195 = vmatmul.mubr.f32.gmra.mrb[0].mxu0 %v2194
    %v2196 = vpop.f32.mrb[0].mxu0
    %v2197 = vadd.f32 %v2107, %v2196
    %v2198 = vpop.f32.mrb[0].mxu0
    %v2199 = vadd.f32 %v2109, %v2198
    %2200 = vdwg.mxu0
    %v2201 = vand.u32 %v32, 4294901760
    %v2202 = vsub.f32 %v32, %v2201
    %v2203 = vand.u32 %v2202, 4294901760
    %2204 = vmatprep.subr.mxu0 %v2203
    %v2205 = vand.u32 %v31, 4294901760
    %v2206 = vsub.f32 %v31, %v2205
    %v2207 = vand.u32 %v2206, 4294901760
    %2208 = vmatpush1.msra.mxu0 %v2207
    %v2209 = vand.u32 %v34, 4294901760
    %v2210 = vsub.f32 %v34, %v2209
    %v2211 = vand.u32 %v2210, 4294901760
    %2212 = vmatprep.subr.mxu0 %v2211
    %v2213 = vand.u32 %v33, 4294901760
    %v2214 = vsub.f32 %v33, %v2213
    %v2215 = vand.u32 %v2214, 4294901760
    %2216 = vmatpush1.msra.mxu0 %v2215
    %v2217 = vand.u32 %v36, 4294901760
    %v2218 = vsub.f32 %v36, %v2217
    %v2219 = vand.u32 %v2218, 4294901760
    %2220 = vmatprep.subr.mxu0 %v2219
    %v2221 = vand.u32 %v35, 4294901760
    %v2222 = vsub.f32 %v35, %v2221
    %v2223 = vand.u32 %v2222, 4294901760
    %2224 = vmatpush1.msra.mxu0 %v2223
    %v2225 = vand.u32 %v38, 4294901760
    %v2226 = vsub.f32 %v38, %v2225
    %v2227 = vand.u32 %v2226, 4294901760
    %2228 = vmatprep.subr.mxu0 %v2227
    %v2229 = vand.u32 %v37, 4294901760
    %v2230 = vsub.f32 %v37, %v2229
    %v2231 = vand.u32 %v2230, 4294901760
    %2232 = vmatpush1.msra.mxu0 %v2231
    %v2233 = vand.u32 %v40, 4294901760
    %v2234 = vsub.f32 %v40, %v2233
    %v2235 = vand.u32 %v2234, 4294901760
    %2236 = vmatprep.subr.mxu0 %v2235
    %v2237 = vand.u32 %v39, 4294901760
    %v2238 = vsub.f32 %v39, %v2237
    %v2239 = vand.u32 %v2238, 4294901760
    %2240 = vmatpush1.msra.mxu0 %v2239
    %v2241 = vand.u32 %v42, 4294901760
    %v2242 = vsub.f32 %v42, %v2241
    %v2243 = vand.u32 %v2242, 4294901760
    %2244 = vmatprep.subr.mxu0 %v2243
    %v2245 = vand.u32 %v41, 4294901760
    %v2246 = vsub.f32 %v41, %v2245
    %v2247 = vand.u32 %v2246, 4294901760
    %2248 = vmatpush1.msra.mxu0 %v2247
    %v2249 = vand.u32 %v44, 4294901760
    %v2250 = vsub.f32 %v44, %v2249
    %v2251 = vand.u32 %v2250, 4294901760
    %2252 = vmatprep.subr.mxu0 %v2251
    %v2253 = vand.u32 %v43, 4294901760
    %v2254 = vsub.f32 %v43, %v2253
    %v2255 = vand.u32 %v2254, 4294901760
    %2256 = vmatpush1.msra.mxu0 %v2255
    %v2257 = vand.u32 %v46, 4294901760
    %v2258 = vsub.f32 %v46, %v2257
    %v2259 = vand.u32 %v2258, 4294901760
    %2260 = vmatprep.subr.mxu0 %v2259
    %v2261 = vand.u32 %v45, 4294901760
    %v2262 = vsub.f32 %v45, %v2261
    %v2263 = vand.u32 %v2262, 4294901760
    %2264 = vmatpush1.msra.mxu0 %v2263
    %2265 = vmatprep.subr.mxu0 0.0
    %2266 = vmatpush1.msra.mxu0 0.0
    %2267 = vmatprep.subr.mxu0 0.0
    %2268 = vmatpush1.msra.mxu0 0.0
    %2269 = vmatprep.subr.mxu0 0.0
    %2270 = vmatpush1.msra.mxu0 0.0
    %2271 = vmatprep.subr.mxu0 0.0
    %2272 = vmatpush1.msra.mxu0 0.0
    %2273 = vmatprep.subr.mxu0 0.0
    %2274 = vmatpush1.msra.mxu0 0.0
    %2275 = vmatprep.subr.mxu0 0.0
    %2276 = vmatpush1.msra.mxu0 0.0
    %2277 = vmatprep.subr.mxu0 0.0
    %2278 = vmatpush1.msra.mxu0 0.0
    %2279 = vmatprep.subr.mxu0 0.0
    %2280 = vmatpush1.msra.mxu0 0.0
    %2281 = vmatprep.subr.mxu0 0.0
    %2282 = vmatpush1.msra.mxu0 0.0
    %2283 = vmatprep.subr.mxu0 0.0
    %2284 = vmatpush1.msra.mxu0 0.0
    %2285 = vmatprep.subr.mxu0 0.0
    %2286 = vmatpush1.msra.mxu0 0.0
    %2287 = vmatprep.subr.mxu0 0.0
    %2288 = vmatpush1.msra.mxu0 0.0
    %2289 = vmatprep.subr.mxu0 0.0
    %2290 = vmatpush1.msra.mxu0 0.0
    %2291 = vmatprep.subr.mxu0 0.0
    %2292 = vmatpush1.msra.mxu0 0.0
    %2293 = vmatprep.subr.mxu0 0.0
    %2294 = vmatpush1.msra.mxu0 0.0
    %2295 = vmatprep.subr.mxu0 0.0
    %2296 = vmatpush1.msra.mxu0 0.0
    %2297 = vmatprep.subr.mxu0 0.0
    %2298 = vmatpush1.msra.mxu0 0.0
    %2299 = vmatprep.subr.mxu0 0.0
    %2300 = vmatpush1.msra.mxu0 0.0
    %2301 = vmatprep.subr.mxu0 0.0
    %2302 = vmatpush1.msra.mxu0 0.0
    %2303 = vmatprep.subr.mxu0 0.0
    %2304 = vmatpush1.msra.mxu0 0.0
    %2305 = vmatprep.subr.mxu0 0.0
    %2306 = vmatpush1.msra.mxu0 0.0
    %2307 = vmatprep.subr.mxu0 0.0
    %2308 = vmatpush1.msra.mxu0 0.0
    %2309 = vmatprep.subr.mxu0 0.0
    %2310 = vmatpush1.msra.mxu0 0.0
    %2311 = vmatprep.subr.mxu0 0.0
    %2312 = vmatpush1.msra.mxu0 0.0
    %2313 = vmatprep.mubr.f32.mxu0 0.0
    %v2314 = vand.u32 %v1760, 4294901760
    %2315 = vmatmul.mubr.f32.gmra.mrb[0].mxu0 %v2314
    %v2316 = vpop.f32.mrb[0].mxu0
    %v2317 = vadd.f32 %v2197, %v2316
    %v2318 = vpop.f32.mrb[0].mxu0
    %v2319 = vadd.f32 %v2199, %v2318
    %2320 = vdwg.mxu0
    %v2321 = vand.u32 %v32, 4294901760
    %2322 = vmatprep.subr.mxu0 %v2321
    %v2323 = vand.u32 %v31, 4294901760
    %2324 = vmatpush1.msra.mxu0 %v2323
    %v2325 = vand.u32 %v34, 4294901760
    %2326 = vmatprep.subr.mxu0 %v2325
    %v2327 = vand.u32 %v33, 4294901760
    %2328 = vmatpush1.msra.mxu0 %v2327
    %v2329 = vand.u32 %v36, 4294901760
    %2330 = vmatprep.subr.mxu0 %v2329
    %v2331 = vand.u32 %v35, 4294901760
    %2332 = vmatpush1.msra.mxu0 %v2331
    %v2333 = vand.u32 %v38, 4294901760
    %2334 = vmatprep.subr.mxu0 %v2333
    %v2335 = vand.u32 %v37, 4294901760
    %2336 = vmatpush1.msra.mxu0 %v2335
    %v2337 = vand.u32 %v40, 4294901760
    %2338 = vmatprep.subr.mxu0 %v2337
    %v2339 = vand.u32 %v39, 4294901760
    %2340 = vmatpush1.msra.mxu0 %v2339
    %v2341 = vand.u32 %v42, 4294901760
    %2342 = vmatprep.subr.mxu0 %v2341
    %v2343 = vand.u32 %v41, 4294901760
    %2344 = vmatpush1.msra.mxu0 %v2343
    %v2345 = vand.u32 %v44, 4294901760
    %2346 = vmatprep.subr.mxu0 %v2345
    %v2347 = vand.u32 %v43, 4294901760
    %2348 = vmatpush1.msra.mxu0 %v2347
    %v2349 = vand.u32 %v46, 4294901760
    %2350 = vmatprep.subr.mxu0 %v2349
    %v2351 = vand.u32 %v45, 4294901760
    %2352 = vmatpush1.msra.mxu0 %v2351
    %2353 = vmatprep.subr.mxu0 0.0
    %2354 = vmatpush1.msra.mxu0 0.0
    %2355 = vmatprep.subr.mxu0 0.0
    %2356 = vmatpush1.msra.mxu0 0.0
    %2357 = vmatprep.subr.mxu0 0.0
    %2358 = vmatpush1.msra.mxu0 0.0
    %2359 = vmatprep.subr.mxu0 0.0
    %2360 = vmatpush1.msra.mxu0 0.0
    %2361 = vmatprep.subr.mxu0 0.0
    %2362 = vmatpush1.msra.mxu0 0.0
    %2363 = vmatprep.subr.mxu0 0.0
    %2364 = vmatpush1.msra.mxu0 0.0
    %2365 = vmatprep.subr.mxu0 0.0
    %2366 = vmatpush1.msra.mxu0 0.0
    %2367 = vmatprep.subr.mxu0 0.0
    %2368 = vmatpush1.msra.mxu0 0.0
    %2369 = vmatprep.subr.mxu0 0.0
    %2370 = vmatpush1.msra.mxu0 0.0
    %2371 = vmatprep.subr.mxu0 0.0
    %2372 = vmatpush1.msra.mxu0 0.0
    %2373 = vmatprep.subr.mxu0 0.0
    %2374 = vmatpush1.msra.mxu0 0.0
    %2375 = vmatprep.subr.mxu0 0.0
    %2376 = vmatpush1.msra.mxu0 0.0
    %2377 = vmatprep.subr.mxu0 0.0
    %2378 = vmatpush1.msra.mxu0 0.0
    %2379 = vmatprep.subr.mxu0 0.0
    %2380 = vmatpush1.msra.mxu0 0.0
    %2381 = vmatprep.subr.mxu0 0.0
    %2382 = vmatpush1.msra.mxu0 0.0
    %2383 = vmatprep.subr.mxu0 0.0
    %2384 = vmatpush1.msra.mxu0 0.0
    %2385 = vmatprep.subr.mxu0 0.0
    %2386 = vmatpush1.msra.mxu0 0.0
    %2387 = vmatprep.subr.mxu0 0.0
    %2388 = vmatpush1.msra.mxu0 0.0
    %2389 = vmatprep.subr.mxu0 0.0
    %2390 = vmatpush1.msra.mxu0 0.0
    %2391 = vmatprep.subr.mxu0 0.0
    %2392 = vmatpush1.msra.mxu0 0.0
    %2393 = vmatprep.subr.mxu0 0.0
    %2394 = vmatpush1.msra.mxu0 0.0
    %2395 = vmatprep.subr.mxu0 0.0
    %2396 = vmatpush1.msra.mxu0 0.0
    %2397 = vmatprep.subr.mxu0 0.0
    %2398 = vmatpush1.msra.mxu0 0.0
    %2399 = vmatprep.subr.mxu0 0.0
    %2400 = vmatpush1.msra.mxu0 0.0
    %2401 = vmatprep.mubr.f32.mxu0 0.0
    %v2402 = vand.u32 %v1760, 4294901760
    %2403 = vmatmul.mubr.f32.gmra.mrb[0].mxu0 %v2402
    %v2404 = vpop.f32.mrb[0].mxu0
    %v2405 = vadd.f32 %v2317, %v2404
    %v2406 = vpop.f32.mrb[0].mxu0
    %v2407 = vadd.f32 %v2319, %v2406
    %2408 = vdwg.mxu0
    %v2409 = vadd.f32 %v2407, %v53
    %v2410 = vxor.u32 %v2409, 2147483648
    %v2411 = vmul.f32 %v2410, 1.442695
    %v2412 = vpow.pop %v2411
    %v2413 = vadd.f32 %v2412, 1.0
    %v2414 = vrcp.pop %v2413
    %v2415 = vmul.f32 1.0, %v2414
    %v2416 = vtanh.pop %v2409
    %v2417 = vmul.f32 %v2415, %v1710
    %2419 = vrot.lane.b32.xlu0 %v2416, 64
    %v2420 = vpop.permute.xlu0 %2419
    %v2422 = vmul.f32 %v2415, %v2420
    %2424 = vrot.lane.b32.xlu0 %v2422, 32
    %v2425 = vpop.permute.xlu0 %2424
    %v2427 = vadd.f32 %v2417, %v2425
    %v2428 = vtanh.pop %v2427
    %2430 = vrot.lane.b32.xlu0 %v2428, 64
    %v2431 = vpop.permute.xlu0 %2430
    %v2433 = vmul.f32 %v2415, %v2431
    %v2435 = vrot.slane %v2405, 6
    %v2437 = vadd.f32 %v503, %v2435
    %v2438 = vxor.u32 %v2437, 2147483648
    %v2439 = vmul.f32 %v2438, 1.442695
    %v2440 = vpow.pop %v2439
    %v2441 = vadd.f32 %v2440, 1.0
    %v2442 = vrcp.pop %v2441
    %v2443 = vmul.f32 1.0, %v2442
    %v2444 = vtanh.pop %v2437
    %v2446 = vrot.slane %v1741, 7
    %v2448 = vmul.f32 %v2443, %v2446
    %2450 = vrot.lane.b32.xlu0 %v2444, 64
    %v2451 = vpop.permute.xlu0 %2450
    %v2453 = vmul.f32 %v2443, %v2451
    %2455 = vrot.lane.b32.xlu0 %v2453, 32
    %v2456 = vpop.permute.xlu0 %2455
    %v2458 = vadd.f32 %v2448, %v2456
    %v2459 = vtanh.pop %v2458
    %2461 = vrot.lane.b32.xlu0 %v2459, 64
    %v2462 = vpop.permute.xlu0 %2461
    %v2464 = vmul.f32 %v2443, %v2462
    %2466 = vrot.lane.b32.xlu0 %v2464, 32
    %v2467 = vpop.permute.xlu0 %2466
    %v2470 = vrot.slane %v2433, 6
    %2471 = vrot.lane.b32.xlu0 %v2470, 64
    %v2472 = vpop.permute.xlu0 %2471
    %v2474 = vsel %vm510, %v2467, %v2472
    %v2476 = vrot.slane %v2474, 2
    %v2477 = vsel %vm1037, %v2476, 0
    %v2479 = vand.u32 %v32, 4294901760
    %2480 = vmatprep.subr.mxu0 %v2479
    %v2481 = vand.u32 %v31, 4294901760
    %2482 = vmatpush1.msra.mxu0 %v2481
    %v2483 = vand.u32 %v34, 4294901760
    %2484 = vmatprep.subr.mxu0 %v2483
    %v2485 = vand.u32 %v33, 4294901760
    %2486 = vmatpush1.msra.mxu0 %v2485
    %v2487 = vand.u32 %v36, 4294901760
    %2488 = vmatprep.subr.mxu0 %v2487
    %v2489 = vand.u32 %v35, 4294901760
    %2490 = vmatpush1.msra.mxu0 %v2489
    %v2491 = vand.u32 %v38, 4294901760
    %2492 = vmatprep.subr.mxu0 %v2491
    %v2493 = vand.u32 %v37, 4294901760
    %2494 = vmatpush1.msra.mxu0 %v2493
    %v2495 = vand.u32 %v40, 4294901760
    %2496 = vmatprep.subr.mxu0 %v2495
    %v2497 = vand.u32 %v39, 4294901760
    %2498 = vmatpush1.msra.mxu0 %v2497
    %v2499 = vand.u32 %v42, 4294901760
    %2500 = vmatprep.subr.mxu0 %v2499
    %v2501 = vand.u32 %v41, 4294901760
    %2502 = vmatpush1.msra.mxu0 %v2501
    %v2503 = vand.u32 %v44, 4294901760
    %2504 = vmatprep.subr.mxu0 %v2503
    %v2505 = vand.u32 %v43, 4294901760
    %2506 = vmatpush1.msra.mxu0 %v2505
    %v2507 = vand.u32 %v46, 4294901760
    %2508 = vmatprep.subr.mxu0 %v2507
    %v2509 = vand.u32 %v45, 4294901760
    %2510 = vmatpush1.msra.mxu0 %v2509
    %2511 = vmatprep.subr.mxu0 0.0
    %2512 = vmatpush1.msra.mxu0 0.0
    %2513 = vmatprep.subr.mxu0 0.0
    %2514 = vmatpush1.msra.mxu0 0.0
    %2515 = vmatprep.subr.mxu0 0.0
    %2516 = vmatpush1.msra.mxu0 0.0
    %2517 = vmatprep.subr.mxu0 0.0
    %2518 = vmatpush1.msra.mxu0 0.0
    %2519 = vmatprep.subr.mxu0 0.0
    %2520 = vmatpush1.msra.mxu0 0.0
    %2521 = vmatprep.subr.mxu0 0.0
    %2522 = vmatpush1.msra.mxu0 0.0
    %2523 = vmatprep.subr.mxu0 0.0
    %2524 = vmatpush1.msra.mxu0 0.0
    %2525 = vmatprep.subr.mxu0 0.0
    %2526 = vmatpush1.msra.mxu0 0.0
    %2527 = vmatprep.subr.mxu0 0.0
    %2528 = vmatpush1.msra.mxu0 0.0
    %2529 = vmatprep.subr.mxu0 0.0
    %2530 = vmatpush1.msra.mxu0 0.0
    %2531 = vmatprep.subr.mxu0 0.0
    %2532 = vmatpush1.msra.mxu0 0.0
    %2533 = vmatprep.subr.mxu0 0.0
    %2534 = vmatpush1.msra.mxu0 0.0
    %2535 = vmatprep.subr.mxu0 0.0
    %2536 = vmatpush1.msra.mxu0 0.0
    %2537 = vmatprep.subr.mxu0 0.0
    %2538 = vmatpush1.msra.mxu0 0.0
    %2539 = vmatprep.subr.mxu0 0.0
    %2540 = vmatpush1.msra.mxu0 0.0
    %2541 = vmatprep.subr.mxu0 0.0
    %2542 = vmatpush1.msra.mxu0 0.0
    %2543 = vmatprep.subr.mxu0 0.0
    %2544 = vmatpush1.msra.mxu0 0.0
    %2545 = vmatprep.subr.mxu0 0.0
    %2546 = vmatpush1.msra.mxu0 0.0
    %2547 = vmatprep.subr.mxu0 0.0
    %2548 = vmatpush1.msra.mxu0 0.0
    %2549 = vmatprep.subr.mxu0 0.0
    %2550 = vmatpush1.msra.mxu0 0.0
    %2551 = vmatprep.subr.mxu0 0.0
    %2552 = vmatpush1.msra.mxu0 0.0
    %2553 = vmatprep.subr.mxu0 0.0
    %2554 = vmatpush1.msra.mxu0 0.0
    %2555 = vmatprep.subr.mxu0 0.0
    %2556 = vmatpush1.msra.mxu0 0.0
    %2557 = vmatprep.subr.mxu0 0.0
    %2558 = vmatpush1.msra.mxu0 0.0
    %2559 = vmatprep.mubr.f32.mxu0 0.0
    %v2560 = vand.u32 %v2477, 4294901760
    %v2561 = vsub.f32 %v2477, %v2560
    %v2562 = vand.u32 %v2561, 4294901760
    %v2563 = vsub.f32 %v2561, %v2562
    %v2564 = vand.u32 %v2563, 4294901760
    %2565 = vmatmul.mubr.f32.gmra.mrb[0].mxu0 %v2564
    %v2566 = vpop.f32.mrb[0].mxu0
    %v2567 = vadd.f32 0.0, %v2566
    %v2568 = vpop.f32.mrb[0].mxu0
    %v2569 = vadd.f32 0.0, %v2568
    %2570 = vdwg.mxu0
    %v2571 = vand.u32 %v32, 4294901760
    %v2572 = vsub.f32 %v32, %v2571
    %v2573 = vand.u32 %v2572, 4294901760
    %v2574 = vsub.f32 %v2572, %v2573
    %v2575 = vand.u32 %v2574, 4294901760
    %2576 = vmatprep.subr.mxu0 %v2575
    %v2577 = vand.u32 %v31, 4294901760
    %v2578 = vsub.f32 %v31, %v2577
    %v2579 = vand.u32 %v2578, 4294901760
    %v2580 = vsub.f32 %v2578, %v2579
    %v2581 = vand.u32 %v2580, 4294901760
    %2582 = vmatpush1.msra.mxu0 %v2581
    %v2583 = vand.u32 %v34, 4294901760
    %v2584 = vsub.f32 %v34, %v2583
    %v2585 = vand.u32 %v2584, 4294901760
    %v2586 = vsub.f32 %v2584, %v2585
    %v2587 = vand.u32 %v2586, 4294901760
    %2588 = vmatprep.subr.mxu0 %v2587
    %v2589 = vand.u32 %v33, 4294901760
    %v2590 = vsub.f32 %v33, %v2589
    %v2591 = vand.u32 %v2590, 4294901760
    %v2592 = vsub.f32 %v2590, %v2591
    %v2593 = vand.u32 %v2592, 4294901760
    %2594 = vmatpush1.msra.mxu0 %v2593
    %v2595 = vand.u32 %v36, 4294901760
    %v2596 = vsub.f32 %v36, %v2595
    %v2597 = vand.u32 %v2596, 4294901760
    %v2598 = vsub.f32 %v2596, %v2597
    %v2599 = vand.u32 %v2598, 4294901760
    %2600 = vmatprep.subr.mxu0 %v2599
    %v2601 = vand.u32 %v35, 4294901760
    %v2602 = vsub.f32 %v35, %v2601
    %v2603 = vand.u32 %v2602, 4294901760
    %v2604 = vsub.f32 %v2602, %v2603
    %v2605 = vand.u32 %v2604, 4294901760
    %2606 = vmatpush1.msra.mxu0 %v2605
    %v2607 = vand.u32 %v38, 4294901760
    %v2608 = vsub.f32 %v38, %v2607
    %v2609 = vand.u32 %v2608, 4294901760
    %v2610 = vsub.f32 %v2608, %v2609
    %v2611 = vand.u32 %v2610, 4294901760
    %2612 = vmatprep.subr.mxu0 %v2611
    %v2613 = vand.u32 %v37, 4294901760
    %v2614 = vsub.f32 %v37, %v2613
    %v2615 = vand.u32 %v2614, 4294901760
    %v2616 = vsub.f32 %v2614, %v2615
    %v2617 = vand.u32 %v2616, 4294901760
    %2618 = vmatpush1.msra.mxu0 %v2617
    %v2619 = vand.u32 %v40, 4294901760
    %v2620 = vsub.f32 %v40, %v2619
    %v2621 = vand.u32 %v2620, 4294901760
    %v2622 = vsub.f32 %v2620, %v2621
    %v2623 = vand.u32 %v2622, 4294901760
    %2624 = vmatprep.subr.mxu0 %v2623
    %v2625 = vand.u32 %v39, 4294901760
    %v2626 = vsub.f32 %v39, %v2625
    %v2627 = vand.u32 %v2626, 4294901760
    %v2628 = vsub.f32 %v2626, %v2627
    %v2629 = vand.u32 %v2628, 4294901760
    %2630 = vmatpush1.msra.mxu0 %v2629
    %v2631 = vand.u32 %v42, 4294901760
    %v2632 = vsub.f32 %v42, %v2631
    %v2633 = vand.u32 %v2632, 4294901760
    %v2634 = vsub.f32 %v2632, %v2633
    %v2635 = vand.u32 %v2634, 4294901760
    %2636 = vmatprep.subr.mxu0 %v2635
    %v2637 = vand.u32 %v41, 4294901760
    %v2638 = vsub.f32 %v41, %v2637
    %v2639 = vand.u32 %v2638, 4294901760
    %v2640 = vsub.f32 %v2638, %v2639
    %v2641 = vand.u32 %v2640, 4294901760
    %2642 = vmatpush1.msra.mxu0 %v2641
    %v2643 = vand.u32 %v44, 4294901760
    %v2644 = vsub.f32 %v44, %v2643
    %v2645 = vand.u32 %v2644, 4294901760
    %v2646 = vsub.f32 %v2644, %v2645
    %v2647 = vand.u32 %v2646, 4294901760
    %2648 = vmatprep.subr.mxu0 %v2647
    %v2649 = vand.u32 %v43, 4294901760
    %v2650 = vsub.f32 %v43, %v2649
    %v2651 = vand.u32 %v2650, 4294901760
    %v2652 = vsub.f32 %v2650, %v2651
    %v2653 = vand.u32 %v2652, 4294901760
    %2654 = vmatpush1.msra.mxu0 %v2653
    %v2655 = vand.u32 %v46, 4294901760
    %v2656 = vsub.f32 %v46, %v2655
    %v2657 = vand.u32 %v2656, 4294901760
    %v2658 = vsub.f32 %v2656, %v2657
    %v2659 = vand.u32 %v2658, 4294901760
    %2660 = vmatprep.subr.mxu0 %v2659
    %v2661 = vand.u32 %v45, 4294901760
    %v2662 = vsub.f32 %v45, %v2661
    %v2663 = vand.u32 %v2662, 4294901760
    %v2664 = vsub.f32 %v2662, %v2663
    %v2665 = vand.u32 %v2664, 4294901760
    %2666 = vmatpush1.msra.mxu0 %v2665
    %2667 = vmatprep.subr.mxu0 0.0
    %2668 = vmatpush1.msra.mxu0 0.0
    %2669 = vmatprep.subr.mxu0 0.0
    %2670 = vmatpush1.msra.mxu0 0.0
    %2671 = vmatprep.subr.mxu0 0.0
    %2672 = vmatpush1.msra.mxu0 0.0
    %2673 = vmatprep.subr.mxu0 0.0
    %2674 = vmatpush1.msra.mxu0 0.0
    %2675 = vmatprep.subr.mxu0 0.0
    %2676 = vmatpush1.msra.mxu0 0.0
    %2677 = vmatprep.subr.mxu0 0.0
    %2678 = vmatpush1.msra.mxu0 0.0
    %2679 = vmatprep.subr.mxu0 0.0
    %2680 = vmatpush1.msra.mxu0 0.0
    %2681 = vmatprep.subr.mxu0 0.0
    %2682 = vmatpush1.msra.mxu0 0.0
    %2683 = vmatprep.subr.mxu0 0.0
    %2684 = vmatpush1.msra.mxu0 0.0
    %2685 = vmatprep.subr.mxu0 0.0
    %2686 = vmatpush1.msra.mxu0 0.0
    %2687 = vmatprep.subr.mxu0 0.0
    %2688 = vmatpush1.msra.mxu0 0.0
    %2689 = vmatprep.subr.mxu0 0.0
    %2690 = vmatpush1.msra.mxu0 0.0
    %2691 = vmatprep.subr.mxu0 0.0
    %2692 = vmatpush1.msra.mxu0 0.0
    %2693 = vmatprep.subr.mxu0 0.0
    %2694 = vmatpush1.msra.mxu0 0.0
    %2695 = vmatprep.subr.mxu0 0.0
    %2696 = vmatpush1.msra.mxu0 0.0
    %2697 = vmatprep.subr.mxu0 0.0
    %2698 = vmatpush1.msra.mxu0 0.0
    %2699 = vmatprep.subr.mxu0 0.0
    %2700 = vmatpush1.msra.mxu0 0.0
    %2701 = vmatprep.subr.mxu0 0.0
    %2702 = vmatpush1.msra.mxu0 0.0
    %2703 = vmatprep.subr.mxu0 0.0
    %2704 = vmatpush1.msra.mxu0 0.0
    %2705 = vmatprep.subr.mxu0 0.0
    %2706 = vmatpush1.msra.mxu0 0.0
    %2707 = vmatprep.subr.mxu0 0.0
    %2708 = vmatpush1.msra.mxu0 0.0
    %2709 = vmatprep.subr.mxu0 0.0
    %2710 = vmatpush1.msra.mxu0 0.0
    %2711 = vmatprep.subr.mxu0 0.0
    %2712 = vmatpush1.msra.mxu0 0.0
    %2713 = vmatprep.subr.mxu0 0.0
    %2714 = vmatpush1.msra.mxu0 0.0
    %2715 = vmatprep.mubr.f32.mxu0 0.0
    %v2716 = vand.u32 %v2477, 4294901760
    %2717 = vmatmul.mubr.f32.gmra.mrb[0].mxu0 %v2716
    %v2718 = vpop.f32.mrb[0].mxu0
    %v2719 = vadd.f32 %v2567, %v2718
    %v2720 = vpop.f32.mrb[0].mxu0
    %v2721 = vadd.f32 %v2569, %v2720
    %2722 = vdwg.mxu0
    %v2723 = vand.u32 %v32, 4294901760
    %v2724 = vsub.f32 %v32, %v2723
    %2725 = vmatprep.subr.mxu0 %v2724
    %v2726 = vand.u32 %v31, 4294901760
    %v2727 = vsub.f32 %v31, %v2726
    %2728 = vmatpush1.msra.mxu0 %v2727
    %v2729 = vand.u32 %v34, 4294901760
    %v2730 = vsub.f32 %v34, %v2729
    %2731 = vmatprep.subr.mxu0 %v2730
    %v2732 = vand.u32 %v33, 4294901760
    %v2733 = vsub.f32 %v33, %v2732
    %2734 = vmatpush1.msra.mxu0 %v2733
    %v2735 = vand.u32 %v36, 4294901760
    %v2736 = vsub.f32 %v36, %v2735
    %2737 = vmatprep.subr.mxu0 %v2736
    %v2738 = vand.u32 %v35, 4294901760
    %v2739 = vsub.f32 %v35, %v2738
    %2740 = vmatpush1.msra.mxu0 %v2739
    %v2741 = vand.u32 %v38, 4294901760
    %v2742 = vsub.f32 %v38, %v2741
    %2743 = vmatprep.subr.mxu0 %v2742
    %v2744 = vand.u32 %v37, 4294901760
    %v2745 = vsub.f32 %v37, %v2744
    %2746 = vmatpush1.msra.mxu0 %v2745
    %v2747 = vand.u32 %v40, 4294901760
    %v2748 = vsub.f32 %v40, %v2747
    %2749 = vmatprep.subr.mxu0 %v2748
    %v2750 = vand.u32 %v39, 4294901760
    %v2751 = vsub.f32 %v39, %v2750
    %2752 = vmatpush1.msra.mxu0 %v2751
    %v2753 = vand.u32 %v42, 4294901760
    %v2754 = vsub.f32 %v42, %v2753
    %2755 = vmatprep.subr.mxu0 %v2754
    %v2756 = vand.u32 %v41, 4294901760
    %v2757 = vsub.f32 %v41, %v2756
    %2758 = vmatpush1.msra.mxu0 %v2757
    %v2759 = vand.u32 %v44, 4294901760
    %v2760 = vsub.f32 %v44, %v2759
    %2761 = vmatprep.subr.mxu0 %v2760
    %v2762 = vand.u32 %v43, 4294901760
    %v2763 = vsub.f32 %v43, %v2762
    %2764 = vmatpush1.msra.mxu0 %v2763
    %v2765 = vand.u32 %v46, 4294901760
    %v2766 = vsub.f32 %v46, %v2765
    %2767 = vmatprep.subr.mxu0 %v2766
    %v2768 = vand.u32 %v45, 4294901760
    %v2769 = vsub.f32 %v45, %v2768
    %2770 = vmatpush1.msra.mxu0 %v2769
    %2771 = vmatprep.subr.mxu0 0.0
    %2772 = vmatpush1.msra.mxu0 0.0
    %2773 = vmatprep.subr.mxu0 0.0
    %2774 = vmatpush1.msra.mxu0 0.0
    %2775 = vmatprep.subr.mxu0 0.0
    %2776 = vmatpush1.msra.mxu0 0.0
    %2777 = vmatprep.subr.mxu0 0.0
    %2778 = vmatpush1.msra.mxu0 0.0
    %2779 = vmatprep.subr.mxu0 0.0
    %2780 = vmatpush1.msra.mxu0 0.0
    %2781 = vmatprep.subr.mxu0 0.0
    %2782 = vmatpush1.msra.mxu0 0.0
    %2783 = vmatprep.subr.mxu0 0.0
    %2784 = vmatpush1.msra.mxu0 0.0
    %2785 = vmatprep.subr.mxu0 0.0
    %2786 = vmatpush1.msra.mxu0 0.0
    %2787 = vmatprep.subr.mxu0 0.0
    %2788 = vmatpush1.msra.mxu0 0.0
    %2789 = vmatprep.subr.mxu0 0.0
    %2790 = vmatpush1.msra.mxu0 0.0
    %2791 = vmatprep.subr.mxu0 0.0
    %2792 = vmatpush1.msra.mxu0 0.0
    %2793 = vmatprep.subr.mxu0 0.0
    %2794 = vmatpush1.msra.mxu0 0.0
    %2795 = vmatprep.subr.mxu0 0.0
    %2796 = vmatpush1.msra.mxu0 0.0
    %2797 = vmatprep.subr.mxu0 0.0
    %2798 = vmatpush1.msra.mxu0 0.0
    %2799 = vmatprep.subr.mxu0 0.0
    %2800 = vmatpush1.msra.mxu0 0.0
    %2801 = vmatprep.subr.mxu0 0.0
    %2802 = vmatpush1.msra.mxu0 0.0
    %2803 = vmatprep.subr.mxu0 0.0
    %2804 = vmatpush1.msra.mxu0 0.0
    %2805 = vmatprep.subr.mxu0 0.0
    %2806 = vmatpush1.msra.mxu0 0.0
    %2807 = vmatprep.subr.mxu0 0.0
    %2808 = vmatpush1.msra.mxu0 0.0
    %2809 = vmatprep.subr.mxu0 0.0
    %2810 = vmatpush1.msra.mxu0 0.0
    %2811 = vmatprep.subr.mxu0 0.0
    %2812 = vmatpush1.msra.mxu0 0.0
    %2813 = vmatprep.subr.mxu0 0.0
    %2814 = vmatpush1.msra.mxu0 0.0
    %2815 = vmatprep.subr.mxu0 0.0
    %2816 = vmatpush1.msra.mxu0 0.0
    %2817 = vmatprep.subr.mxu0 0.0
    %2818 = vmatpush1.msra.mxu0 0.0
    %2819 = vmatprep.mubr.f32.mxu0 0.0
    %v2820 = vand.u32 %v2477, 4294901760
    %v2821 = vsub.f32 %v2477, %v2820
    %2822 = vmatmul.mubr.f32.gmra.mrb[0].mxu0 %v2821
    %v2823 = vpop.f32.mrb[0].mxu0
    %v2824 = vadd.f32 %v2719, %v2823
    %v2825 = vpop.f32.mrb[0].mxu0
    %v2826 = vadd.f32 %v2721, %v2825
    %2827 = vdwg.mxu0
    %v2828 = vand.u32 %v32, 4294901760
    %2829 = vmatprep.subr.mxu0 %v2828
    %v2830 = vand.u32 %v31, 4294901760
    %2831 = vmatpush1.msra.mxu0 %v2830
    %v2832 = vand.u32 %v34, 4294901760
    %2833 = vmatprep.subr.mxu0 %v2832
    %v2834 = vand.u32 %v33, 4294901760
    %2835 = vmatpush1.msra.mxu0 %v2834
    %v2836 = vand.u32 %v36, 4294901760
    %2837 = vmatprep.subr.mxu0 %v2836
    %v2838 = vand.u32 %v35, 4294901760
    %2839 = vmatpush1.msra.mxu0 %v2838
    %v2840 = vand.u32 %v38, 4294901760
    %2841 = vmatprep.subr.mxu0 %v2840
    %v2842 = vand.u32 %v37, 4294901760
    %2843 = vmatpush1.msra.mxu0 %v2842
    %v2844 = vand.u32 %v40, 4294901760
    %2845 = vmatprep.subr.mxu0 %v2844
    %v2846 = vand.u32 %v39, 4294901760
    %2847 = vmatpush1.msra.mxu0 %v2846
    %v2848 = vand.u32 %v42, 4294901760
    %2849 = vmatprep.subr.mxu0 %v2848
    %v2850 = vand.u32 %v41, 4294901760
    %2851 = vmatpush1.msra.mxu0 %v2850
    %v2852 = vand.u32 %v44, 4294901760
    %2853 = vmatprep.subr.mxu0 %v2852
    %v2854 = vand.u32 %v43, 4294901760
    %2855 = vmatpush1.msra.mxu0 %v2854
    %v2856 = vand.u32 %v46, 4294901760
    %2857 = vmatprep.subr.mxu0 %v2856
    %v2858 = vand.u32 %v45, 4294901760
    %2859 = vmatpush1.msra.mxu0 %v2858
    %2860 = vmatprep.subr.mxu0 0.0
    %2861 = vmatpush1.msra.mxu0 0.0
    %2862 = vmatprep.subr.mxu0 0.0
    %2863 = vmatpush1.msra.mxu0 0.0
    %2864 = vmatprep.subr.mxu0 0.0
    %2865 = vmatpush1.msra.mxu0 0.0
    %2866 = vmatprep.subr.mxu0 0.0
    %2867 = vmatpush1.msra.mxu0 0.0
    %2868 = vmatprep.subr.mxu0 0.0
    %2869 = vmatpush1.msra.mxu0 0.0
    %2870 = vmatprep.subr.mxu0 0.0
    %2871 = vmatpush1.msra.mxu0 0.0
    %2872 = vmatprep.subr.mxu0 0.0
    %2873 = vmatpush1.msra.mxu0 0.0
    %2874 = vmatprep.subr.mxu0 0.0
    %2875 = vmatpush1.msra.mxu0 0.0
    %2876 = vmatprep.subr.mxu0 0.0
    %2877 = vmatpush1.msra.mxu0 0.0
    %2878 = vmatprep.subr.mxu0 0.0
    %2879 = vmatpush1.msra.mxu0 0.0
    %2880 = vmatprep.subr.mxu0 0.0
    %2881 = vmatpush1.msra.mxu0 0.0
    %2882 = vmatprep.subr.mxu0 0.0
    %2883 = vmatpush1.msra.mxu0 0.0
    %2884 = vmatprep.subr.mxu0 0.0
    %2885 = vmatpush1.msra.mxu0 0.0
    %2886 = vmatprep.subr.mxu0 0.0
    %2887 = vmatpush1.msra.mxu0 0.0
    %2888 = vmatprep.subr.mxu0 0.0
    %2889 = vmatpush1.msra.mxu0 0.0
    %2890 = vmatprep.subr.mxu0 0.0
    %2891 = vmatpush1.msra.mxu0 0.0
    %2892 = vmatprep.subr.mxu0 0.0
    %2893 = vmatpush1.msra.mxu0 0.0
    %2894 = vmatprep.subr.mxu0 0.0
    %2895 = vmatpush1.msra.mxu0 0.0
    %2896 = vmatprep.subr.mxu0 0.0
    %2897 = vmatpush1.msra.mxu0 0.0
    %2898 = vmatprep.subr.mxu0 0.0
    %2899 = vmatpush1.msra.mxu0 0.0
    %2900 = vmatprep.subr.mxu0 0.0
    %2901 = vmatpush1.msra.mxu0 0.0
    %2902 = vmatprep.subr.mxu0 0.0
    %2903 = vmatpush1.msra.mxu0 0.0
    %2904 = vmatprep.subr.mxu0 0.0
    %2905 = vmatpush1.msra.mxu0 0.0
    %2906 = vmatprep.subr.mxu0 0.0
    %2907 = vmatpush1.msra.mxu0 0.0
    %2908 = vmatprep.mubr.f32.mxu0 0.0
    %v2909 = vand.u32 %v2477, 4294901760
    %v2910 = vsub.f32 %v2477, %v2909
    %v2911 = vand.u32 %v2910, 4294901760
    %2912 = vmatmul.mubr.f32.gmra.mrb[0].mxu0 %v2911
    %v2913 = vpop.f32.mrb[0].mxu0
    %v2914 = vadd.f32 %v2824, %v2913
    %v2915 = vpop.f32.mrb[0].mxu0
    %v2916 = vadd.f32 %v2826, %v2915
    %2917 = vdwg.mxu0
    %v2918 = vand.u32 %v32, 4294901760
    %v2919 = vsub.f32 %v32, %v2918
    %v2920 = vand.u32 %v2919, 4294901760
    %2921 = vmatprep.subr.mxu0 %v2920
    %v2922 = vand.u32 %v31, 4294901760
    %v2923 = vsub.f32 %v31, %v2922
    %v2924 = vand.u32 %v2923, 4294901760
    %2925 = vmatpush1.msra.mxu0 %v2924
    %v2926 = vand.u32 %v34, 4294901760
    %v2927 = vsub.f32 %v34, %v2926
    %v2928 = vand.u32 %v2927, 4294901760
    %2929 = vmatprep.subr.mxu0 %v2928
    %v2930 = vand.u32 %v33, 4294901760
    %v2931 = vsub.f32 %v33, %v2930
    %v2932 = vand.u32 %v2931, 4294901760
    %2933 = vmatpush1.msra.mxu0 %v2932
    %v2934 = vand.u32 %v36, 4294901760
    %v2935 = vsub.f32 %v36, %v2934
    %v2936 = vand.u32 %v2935, 4294901760
    %2937 = vmatprep.subr.mxu0 %v2936
    %v2938 = vand.u32 %v35, 4294901760
    %v2939 = vsub.f32 %v35, %v2938
    %v2940 = vand.u32 %v2939, 4294901760
    %2941 = vmatpush1.msra.mxu0 %v2940
    %v2942 = vand.u32 %v38, 4294901760
    %v2943 = vsub.f32 %v38, %v2942
    %v2944 = vand.u32 %v2943, 4294901760
    %2945 = vmatprep.subr.mxu0 %v2944
    %v2946 = vand.u32 %v37, 4294901760
    %v2947 = vsub.f32 %v37, %v2946
    %v2948 = vand.u32 %v2947, 4294901760
    %2949 = vmatpush1.msra.mxu0 %v2948
    %v2950 = vand.u32 %v40, 4294901760
    %v2951 = vsub.f32 %v40, %v2950
    %v2952 = vand.u32 %v2951, 4294901760
    %2953 = vmatprep.subr.mxu0 %v2952
    %v2954 = vand.u32 %v39, 4294901760
    %v2955 = vsub.f32 %v39, %v2954
    %v2956 = vand.u32 %v2955, 4294901760
    %2957 = vmatpush1.msra.mxu0 %v2956
    %v2958 = vand.u32 %v42, 4294901760
    %v2959 = vsub.f32 %v42, %v2958
    %v2960 = vand.u32 %v2959, 4294901760
    %2961 = vmatprep.subr.mxu0 %v2960
    %v2962 = vand.u32 %v41, 4294901760
    %v2963 = vsub.f32 %v41, %v2962
    %v2964 = vand.u32 %v2963, 4294901760
    %2965 = vmatpush1.msra.mxu0 %v2964
    %v2966 = vand.u32 %v44, 4294901760
    %v2967 = vsub.f32 %v44, %v2966
    %v2968 = vand.u32 %v2967, 4294901760
    %2969 = vmatprep.subr.mxu0 %v2968
    %v2970 = vand.u32 %v43, 4294901760
    %v2971 = vsub.f32 %v43, %v2970
    %v2972 = vand.u32 %v2971, 4294901760
    %2973 = vmatpush1.msra.mxu0 %v2972
    %v2974 = vand.u32 %v46, 4294901760
    %v2975 = vsub.f32 %v46, %v2974
    %v2976 = vand.u32 %v2975, 4294901760
    %2977 = vmatprep.subr.mxu0 %v2976
    %v2978 = vand.u32 %v45, 4294901760
    %v2979 = vsub.f32 %v45, %v2978
    %v2980 = vand.u32 %v2979, 4294901760
    %2981 = vmatpush1.msra.mxu0 %v2980
    %2982 = vmatprep.subr.mxu0 0.0
    %2983 = vmatpush1.msra.mxu0 0.0
    %2984 = vmatprep.subr.mxu0 0.0
    %2985 = vmatpush1.msra.mxu0 0.0
    %2986 = vmatprep.subr.mxu0 0.0
    %2987 = vmatpush1.msra.mxu0 0.0
    %2988 = vmatprep.subr.mxu0 0.0
    %2989 = vmatpush1.msra.mxu0 0.0
    %2990 = vmatprep.subr.mxu0 0.0
    %2991 = vmatpush1.msra.mxu0 0.0
    %2992 = vmatprep.subr.mxu0 0.0
    %2993 = vmatpush1.msra.mxu0 0.0
    %2994 = vmatprep.subr.mxu0 0.0
    %2995 = vmatpush1.msra.mxu0 0.0
    %2996 = vmatprep.subr.mxu0 0.0
    %2997 = vmatpush1.msra.mxu0 0.0
    %2998 = vmatprep.subr.mxu0 0.0
    %2999 = vmatpush1.msra.mxu0 0.0
    %3000 = vmatprep.subr.mxu0 0.0
    %3001 = vmatpush1.msra.mxu0 0.0
    %3002 = vmatprep.subr.mxu0 0.0
    %3003 = vmatpush1.msra.mxu0 0.0
    %3004 = vmatprep.subr.mxu0 0.0
    %3005 = vmatpush1.msra.mxu0 0.0
    %3006 = vmatprep.subr.mxu0 0.0
    %3007 = vmatpush1.msra.mxu0 0.0
    %3008 = vmatprep.subr.mxu0 0.0
    %3009 = vmatpush1.msra.mxu0 0.0
    %3010 = vmatprep.subr.mxu0 0.0
    %3011 = vmatpush1.msra.mxu0 0.0
    %3012 = vmatprep.subr.mxu0 0.0
    %3013 = vmatpush1.msra.mxu0 0.0
    %3014 = vmatprep.subr.mxu0 0.0
    %3015 = vmatpush1.msra.mxu0 0.0
    %3016 = vmatprep.subr.mxu0 0.0
    %3017 = vmatpush1.msra.mxu0 0.0
    %3018 = vmatprep.subr.mxu0 0.0
    %3019 = vmatpush1.msra.mxu0 0.0
    %3020 = vmatprep.subr.mxu0 0.0
    %3021 = vmatpush1.msra.mxu0 0.0
    %3022 = vmatprep.subr.mxu0 0.0
    %3023 = vmatpush1.msra.mxu0 0.0
    %3024 = vmatprep.subr.mxu0 0.0
    %3025 = vmatpush1.msra.mxu0 0.0
    %3026 = vmatprep.subr.mxu0 0.0
    %3027 = vmatpush1.msra.mxu0 0.0
    %3028 = vmatprep.subr.mxu0 0.0
    %3029 = vmatpush1.msra.mxu0 0.0
    %3030 = vmatprep.mubr.f32.mxu0 0.0
    %v3031 = vand.u32 %v2477, 4294901760
    %3032 = vmatmul.mubr.f32.gmra.mrb[0].mxu0 %v3031
    %v3033 = vpop.f32.mrb[0].mxu0
    %v3034 = vadd.f32 %v2914, %v3033
    %v3035 = vpop.f32.mrb[0].mxu0
    %v3036 = vadd.f32 %v2916, %v3035
    %3037 = vdwg.mxu0
    %v3038 = vand.u32 %v32, 4294901760
    %3039 = vmatprep.subr.mxu0 %v3038
    %v3040 = vand.u32 %v31, 4294901760
    %3041 = vmatpush1.msra.mxu0 %v3040
    %v3042 = vand.u32 %v34, 4294901760
    %3043 = vmatprep.subr.mxu0 %v3042
    %v3044 = vand.u32 %v33, 4294901760
    %3045 = vmatpush1.msra.mxu0 %v3044
    %v3046 = vand.u32 %v36, 4294901760
    %3047 = vmatprep.subr.mxu0 %v3046
    %v3048 = vand.u32 %v35, 4294901760
    %3049 = vmatpush1.msra.mxu0 %v3048
    %v3050 = vand.u32 %v38, 4294901760
    %3051 = vmatprep.subr.mxu0 %v3050
    %v3052 = vand.u32 %v37, 4294901760
    %3053 = vmatpush1.msra.mxu0 %v3052
    %v3054 = vand.u32 %v40, 4294901760
    %3055 = vmatprep.subr.mxu0 %v3054
    %v3056 = vand.u32 %v39, 4294901760
    %3057 = vmatpush1.msra.mxu0 %v3056
    %v3058 = vand.u32 %v42, 4294901760
    %3059 = vmatprep.subr.mxu0 %v3058
    %v3060 = vand.u32 %v41, 4294901760
    %3061 = vmatpush1.msra.mxu0 %v3060
    %v3062 = vand.u32 %v44, 4294901760
    %3063 = vmatprep.subr.mxu0 %v3062
    %v3064 = vand.u32 %v43, 4294901760
    %3065 = vmatpush1.msra.mxu0 %v3064
    %v3066 = vand.u32 %v46, 4294901760
    %3067 = vmatprep.subr.mxu0 %v3066
    %v3068 = vand.u32 %v45, 4294901760
    %3069 = vmatpush1.msra.mxu0 %v3068
    %3070 = vmatprep.subr.mxu0 0.0
    %3071 = vmatpush1.msra.mxu0 0.0
    %3072 = vmatprep.subr.mxu0 0.0
    %3073 = vmatpush1.msra.mxu0 0.0
    %3074 = vmatprep.subr.mxu0 0.0
    %3075 = vmatpush1.msra.mxu0 0.0
    %3076 = vmatprep.subr.mxu0 0.0
    %3077 = vmatpush1.msra.mxu0 0.0
    %3078 = vmatprep.subr.mxu0 0.0
    %3079 = vmatpush1.msra.mxu0 0.0
    %3080 = vmatprep.subr.mxu0 0.0
    %3081 = vmatpush1.msra.mxu0 0.0
    %3082 = vmatprep.subr.mxu0 0.0
    %3083 = vmatpush1.msra.mxu0 0.0
    %3084 = vmatprep.subr.mxu0 0.0
    %3085 = vmatpush1.msra.mxu0 0.0
    %3086 = vmatprep.subr.mxu0 0.0
    %3087 = vmatpush1.msra.mxu0 0.0
    %3088 = vmatprep.subr.mxu0 0.0
    %3089 = vmatpush1.msra.mxu0 0.0
    %3090 = vmatprep.subr.mxu0 0.0
    %3091 = vmatpush1.msra.mxu0 0.0
    %3092 = vmatprep.subr.mxu0 0.0
    %3093 = vmatpush1.msra.mxu0 0.0
    %3094 = vmatprep.subr.mxu0 0.0
    %3095 = vmatpush1.msra.mxu0 0.0
    %3096 = vmatprep.subr.mxu0 0.0
    %3097 = vmatpush1.msra.mxu0 0.0
    %3098 = vmatprep.subr.mxu0 0.0
    %3099 = vmatpush1.msra.mxu0 0.0
    %3100 = vmatprep.subr.mxu0 0.0
    %3101 = vmatpush1.msra.mxu0 0.0
    %3102 = vmatprep.subr.mxu0 0.0
    %3103 = vmatpush1.msra.mxu0 0.0
    %3104 = vmatprep.subr.mxu0 0.0
    %3105 = vmatpush1.msra.mxu0 0.0
    %3106 = vmatprep.subr.mxu0 0.0
    %3107 = vmatpush1.msra.mxu0 0.0
    %3108 = vmatprep.subr.mxu0 0.0
    %3109 = vmatpush1.msra.mxu0 0.0
    %3110 = vmatprep.subr.mxu0 0.0
    %3111 = vmatpush1.msra.mxu0 0.0
    %3112 = vmatprep.subr.mxu0 0.0
    %3113 = vmatpush1.msra.mxu0 0.0
    %3114 = vmatprep.subr.mxu0 0.0
    %3115 = vmatpush1.msra.mxu0 0.0
    %3116 = vmatprep.subr.mxu0 0.0
    %3117 = vmatpush1.msra.mxu0 0.0
    %3118 = vmatprep.mubr.f32.mxu0 0.0
    %v3119 = vand.u32 %v2477, 4294901760
    %3120 = vmatmul.mubr.f32.gmra.mrb[0].mxu0 %v3119
    %v3121 = vpop.f32.mrb[0].mxu0
    %v3122 = vadd.f32 %v3034, %v3121
    %v3123 = vpop.f32.mrb[0].mxu0
    %v3124 = vadd.f32 %v3036, %v3123
    %3125 = vdwg.mxu0
    %v3126 = vadd.f32 %v3124, %v53
    %v3127 = vxor.u32 %v3126, 2147483648
    %v3128 = vmul.f32 %v3127, 1.442695
    %v3129 = vpow.pop %v3128
    %v3130 = vadd.f32 %v3129, 1.0
    %v3131 = vrcp.pop %v3130
    %v3132 = vmul.f32 1.0, %v3131
    %v3133 = vtanh.pop %v3126
    %v3134 = vmul.f32 %v3132, %v2427
    %3136 = vrot.lane.b32.xlu0 %v3133, 64
    %v3137 = vpop.permute.xlu0 %3136
    %v3139 = vmul.f32 %v3132, %v3137
    %3141 = vrot.lane.b32.xlu0 %v3139, 32
    %v3142 = vpop.permute.xlu0 %3141
    %v3144 = vadd.f32 %v3134, %v3142
    %v3145 = vtanh.pop %v3144
    %3147 = vrot.lane.b32.xlu0 %v3145, 64
    %v3148 = vpop.permute.xlu0 %3147
    %v3150 = vmul.f32 %v3132, %v3148
    %v3152 = vrot.slane %v3122, 5
    %v3154 = vadd.f32 %v503, %v3152
    %v3155 = vxor.u32 %v3154, 2147483648
    %v3156 = vmul.f32 %v3155, 1.442695
    %v3157 = vpow.pop %v3156
    %v3158 = vadd.f32 %v3157, 1.0
    %v3159 = vrcp.pop %v3158
    %v3160 = vmul.f32 1.0, %v3159
    %v3161 = vtanh.pop %v3154
    %v3163 = vrot.slane %v2458, 7
    %v3165 = vmul.f32 %v3160, %v3163
    %3167 = vrot.lane.b32.xlu0 %v3161, 64
    %v3168 = vpop.permute.xlu0 %3167
    %v3170 = vmul.f32 %v3160, %v3168
    %3172 = vrot.lane.b32.xlu0 %v3170, 32
    %v3173 = vpop.permute.xlu0 %3172
    %v3175 = vadd.f32 %v3165, %v3173
    %v3176 = vtanh.pop %v3175
    %3178 = vrot.lane.b32.xlu0 %v3176, 64
    %v3179 = vpop.permute.xlu0 %3178
    %v3181 = vmul.f32 %v3160, %v3179
    %3183 = vrot.lane.b32.xlu0 %v3181, 32
    %v3184 = vpop.permute.xlu0 %3183
    %v3187 = vrot.slane %v3150, 5
    %3188 = vrot.lane.b32.xlu0 %v3187, 64
    %v3189 = vpop.permute.xlu0 %3188
    %v3191 = vsel %vm510, %v3184, %v3189
    %v3193 = vrot.slane %v3191, 3
    %v3194 = vsel %vm1037, %v3193, 0
    %v3196 = vand.u32 %v32, 4294901760
    %3197 = vmatprep.subr.mxu0 %v3196
    %v3198 = vand.u32 %v31, 4294901760
    %3199 = vmatpush1.msra.mxu0 %v3198
    %v3200 = vand.u32 %v34, 4294901760
    %3201 = vmatprep.subr.mxu0 %v3200
    %v3202 = vand.u32 %v33, 4294901760
    %3203 = vmatpush1.msra.mxu0 %v3202
    %v3204 = vand.u32 %v36, 4294901760
    %3205 = vmatprep.subr.mxu0 %v3204
    %v3206 = vand.u32 %v35, 4294901760
    %3207 = vmatpush1.msra.mxu0 %v3206
    %v3208 = vand.u32 %v38, 4294901760
    %3209 = vmatprep.subr.mxu0 %v3208
    %v3210 = vand.u32 %v37, 4294901760
    %3211 = vmatpush1.msra.mxu0 %v3210
    %v3212 = vand.u32 %v40, 4294901760
    %3213 = vmatprep.subr.mxu0 %v3212
    %v3214 = vand.u32 %v39, 4294901760
    %3215 = vmatpush1.msra.mxu0 %v3214
    %v3216 = vand.u32 %v42, 4294901760
    %3217 = vmatprep.subr.mxu0 %v3216
    %v3218 = vand.u32 %v41, 4294901760
    %3219 = vmatpush1.msra.mxu0 %v3218
    %v3220 = vand.u32 %v44, 4294901760
    %3221 = vmatprep.subr.mxu0 %v3220
    %v3222 = vand.u32 %v43, 4294901760
    %3223 = vmatpush1.msra.mxu0 %v3222
    %v3224 = vand.u32 %v46, 4294901760
    %3225 = vmatprep.subr.mxu0 %v3224
    %v3226 = vand.u32 %v45, 4294901760
    %3227 = vmatpush1.msra.mxu0 %v3226
    %3228 = vmatprep.subr.mxu0 0.0
    %3229 = vmatpush1.msra.mxu0 0.0
    %3230 = vmatprep.subr.mxu0 0.0
    %3231 = vmatpush1.msra.mxu0 0.0
    %3232 = vmatprep.subr.mxu0 0.0
    %3233 = vmatpush1.msra.mxu0 0.0
    %3234 = vmatprep.subr.mxu0 0.0
    %3235 = vmatpush1.msra.mxu0 0.0
    %3236 = vmatprep.subr.mxu0 0.0
    %3237 = vmatpush1.msra.mxu0 0.0
    %3238 = vmatprep.subr.mxu0 0.0
    %3239 = vmatpush1.msra.mxu0 0.0
    %3240 = vmatprep.subr.mxu0 0.0
    %3241 = vmatpush1.msra.mxu0 0.0
    %3242 = vmatprep.subr.mxu0 0.0
    %3243 = vmatpush1.msra.mxu0 0.0
    %3244 = vmatprep.subr.mxu0 0.0
    %3245 = vmatpush1.msra.mxu0 0.0
    %3246 = vmatprep.subr.mxu0 0.0
    %3247 = vmatpush1.msra.mxu0 0.0
    %3248 = vmatprep.subr.mxu0 0.0
    %3249 = vmatpush1.msra.mxu0 0.0
    %3250 = vmatprep.subr.mxu0 0.0
    %3251 = vmatpush1.msra.mxu0 0.0
    %3252 = vmatprep.subr.mxu0 0.0
    %3253 = vmatpush1.msra.mxu0 0.0
    %3254 = vmatprep.subr.mxu0 0.0
    %3255 = vmatpush1.msra.mxu0 0.0
    %3256 = vmatprep.subr.mxu0 0.0
    %3257 = vmatpush1.msra.mxu0 0.0
    %3258 = vmatprep.subr.mxu0 0.0
    %3259 = vmatpush1.msra.mxu0 0.0
    %3260 = vmatprep.subr.mxu0 0.0
    %3261 = vmatpush1.msra.mxu0 0.0
    %3262 = vmatprep.subr.mxu0 0.0
    %3263 = vmatpush1.msra.mxu0 0.0
    %3264 = vmatprep.subr.mxu0 0.0
    %3265 = vmatpush1.msra.mxu0 0.0
    %3266 = vmatprep.subr.mxu0 0.0
    %3267 = vmatpush1.msra.mxu0 0.0
    %3268 = vmatprep.subr.mxu0 0.0
    %3269 = vmatpush1.msra.mxu0 0.0
    %3270 = vmatprep.subr.mxu0 0.0
    %3271 = vmatpush1.msra.mxu0 0.0
    %3272 = vmatprep.subr.mxu0 0.0
    %3273 = vmatpush1.msra.mxu0 0.0
    %3274 = vmatprep.subr.mxu0 0.0
    %3275 = vmatpush1.msra.mxu0 0.0
    %3276 = vmatprep.mubr.f32.mxu0 0.0
    %v3277 = vand.u32 %v3194, 4294901760
    %v3278 = vsub.f32 %v3194, %v3277
    %v3279 = vand.u32 %v3278, 4294901760
    %v3280 = vsub.f32 %v3278, %v3279
    %v3281 = vand.u32 %v3280, 4294901760
    %3282 = vmatmul.mubr.f32.gmra.mrb[0].mxu0 %v3281
    %v3283 = vpop.f32.mrb[0].mxu0
    %v3284 = vadd.f32 0.0, %v3283
    %v3285 = vpop.f32.mrb[0].mxu0
    %v3286 = vadd.f32 0.0, %v3285
    %3287 = vdwg.mxu0
    %v3288 = vand.u32 %v32, 4294901760
    %v3289 = vsub.f32 %v32, %v3288
    %v3290 = vand.u32 %v3289, 4294901760
    %v3291 = vsub.f32 %v3289, %v3290
    %v3292 = vand.u32 %v3291, 4294901760
    %3293 = vmatprep.subr.mxu0 %v3292
    %v3294 = vand.u32 %v31, 4294901760
    %v3295 = vsub.f32 %v31, %v3294
    %v3296 = vand.u32 %v3295, 4294901760
    %v3297 = vsub.f32 %v3295, %v3296
    %v3298 = vand.u32 %v3297, 4294901760
    %3299 = vmatpush1.msra.mxu0 %v3298
    %v3300 = vand.u32 %v34, 4294901760
    %v3301 = vsub.f32 %v34, %v3300
    %v3302 = vand.u32 %v3301, 4294901760
    %v3303 = vsub.f32 %v3301, %v3302
    %v3304 = vand.u32 %v3303, 4294901760
    %3305 = vmatprep.subr.mxu0 %v3304
    %v3306 = vand.u32 %v33, 4294901760
    %v3307 = vsub.f32 %v33, %v3306
    %v3308 = vand.u32 %v3307, 4294901760
    %v3309 = vsub.f32 %v3307, %v3308
    %v3310 = vand.u32 %v3309, 4294901760
    %3311 = vmatpush1.msra.mxu0 %v3310
    %v3312 = vand.u32 %v36, 4294901760
    %v3313 = vsub.f32 %v36, %v3312
    %v3314 = vand.u32 %v3313, 4294901760
    %v3315 = vsub.f32 %v3313, %v3314
    %v3316 = vand.u32 %v3315, 4294901760
    %3317 = vmatprep.subr.mxu0 %v3316
    %v3318 = vand.u32 %v35, 4294901760
    %v3319 = vsub.f32 %v35, %v3318
    %v3320 = vand.u32 %v3319, 4294901760
    %v3321 = vsub.f32 %v3319, %v3320
    %v3322 = vand.u32 %v3321, 4294901760
    %3323 = vmatpush1.msra.mxu0 %v3322
    %v3324 = vand.u32 %v38, 4294901760
    %v3325 = vsub.f32 %v38, %v3324
    %v3326 = vand.u32 %v3325, 4294901760
    %v3327 = vsub.f32 %v3325, %v3326
    %v3328 = vand.u32 %v3327, 4294901760
    %3329 = vmatprep.subr.mxu0 %v3328
    %v3330 = vand.u32 %v37, 4294901760
    %v3331 = vsub.f32 %v37, %v3330
    %v3332 = vand.u32 %v3331, 4294901760
    %v3333 = vsub.f32 %v3331, %v3332
    %v3334 = vand.u32 %v3333, 4294901760
    %3335 = vmatpush1.msra.mxu0 %v3334
    %v3336 = vand.u32 %v40, 4294901760
    %v3337 = vsub.f32 %v40, %v3336
    %v3338 = vand.u32 %v3337, 4294901760
    %v3339 = vsub.f32 %v3337, %v3338
    %v3340 = vand.u32 %v3339, 4294901760
    %3341 = vmatprep.subr.mxu0 %v3340
    %v3342 = vand.u32 %v39, 4294901760
    %v3343 = vsub.f32 %v39, %v3342
    %v3344 = vand.u32 %v3343, 4294901760
    %v3345 = vsub.f32 %v3343, %v3344
    %v3346 = vand.u32 %v3345, 4294901760
    %3347 = vmatpush1.msra.mxu0 %v3346
    %v3348 = vand.u32 %v42, 4294901760
    %v3349 = vsub.f32 %v42, %v3348
    %v3350 = vand.u32 %v3349, 4294901760
    %v3351 = vsub.f32 %v3349, %v3350
    %v3352 = vand.u32 %v3351, 4294901760
    %3353 = vmatprep.subr.mxu0 %v3352
    %v3354 = vand.u32 %v41, 4294901760
    %v3355 = vsub.f32 %v41, %v3354
    %v3356 = vand.u32 %v3355, 4294901760
    %v3357 = vsub.f32 %v3355, %v3356
    %v3358 = vand.u32 %v3357, 4294901760
    %3359 = vmatpush1.msra.mxu0 %v3358
    %v3360 = vand.u32 %v44, 4294901760
    %v3361 = vsub.f32 %v44, %v3360
    %v3362 = vand.u32 %v3361, 4294901760
    %v3363 = vsub.f32 %v3361, %v3362
    %v3364 = vand.u32 %v3363, 4294901760
    %3365 = vmatprep.subr.mxu0 %v3364
    %v3366 = vand.u32 %v43, 4294901760
    %v3367 = vsub.f32 %v43, %v3366
    %v3368 = vand.u32 %v3367, 4294901760
    %v3369 = vsub.f32 %v3367, %v3368
    %v3370 = vand.u32 %v3369, 4294901760
    %3371 = vmatpush1.msra.mxu0 %v3370
    %v3372 = vand.u32 %v46, 4294901760
    %v3373 = vsub.f32 %v46, %v3372
    %v3374 = vand.u32 %v3373, 4294901760
    %v3375 = vsub.f32 %v3373, %v3374
    %v3376 = vand.u32 %v3375, 4294901760
    %3377 = vmatprep.subr.mxu0 %v3376
    %v3378 = vand.u32 %v45, 4294901760
    %v3379 = vsub.f32 %v45, %v3378
    %v3380 = vand.u32 %v3379, 4294901760
    %v3381 = vsub.f32 %v3379, %v3380
    %v3382 = vand.u32 %v3381, 4294901760
    %3383 = vmatpush1.msra.mxu0 %v3382
    %3384 = vmatprep.subr.mxu0 0.0
    %3385 = vmatpush1.msra.mxu0 0.0
    %3386 = vmatprep.subr.mxu0 0.0
    %3387 = vmatpush1.msra.mxu0 0.0
    %3388 = vmatprep.subr.mxu0 0.0
    %3389 = vmatpush1.msra.mxu0 0.0
    %3390 = vmatprep.subr.mxu0 0.0
    %3391 = vmatpush1.msra.mxu0 0.0
    %3392 = vmatprep.subr.mxu0 0.0
    %3393 = vmatpush1.msra.mxu0 0.0
    %3394 = vmatprep.subr.mxu0 0.0
    %3395 = vmatpush1.msra.mxu0 0.0
    %3396 = vmatprep.subr.mxu0 0.0
    %3397 = vmatpush1.msra.mxu0 0.0
    %3398 = vmatprep.subr.mxu0 0.0
    %3399 = vmatpush1.msra.mxu0 0.0
    %3400 = vmatprep.subr.mxu0 0.0
    %3401 = vmatpush1.msra.mxu0 0.0
    %3402 = vmatprep.subr.mxu0 0.0
    %3403 = vmatpush1.msra.mxu0 0.0
    %3404 = vmatprep.subr.mxu0 0.0
    %3405 = vmatpush1.msra.mxu0 0.0
    %3406 = vmatprep.subr.mxu0 0.0
    %3407 = vmatpush1.msra.mxu0 0.0
    %3408 = vmatprep.subr.mxu0 0.0
    %3409 = vmatpush1.msra.mxu0 0.0
    %3410 = vmatprep.subr.mxu0 0.0
    %3411 = vmatpush1.msra.mxu0 0.0
    %3412 = vmatprep.subr.mxu0 0.0
    %3413 = vmatpush1.msra.mxu0 0.0
    %3414 = vmatprep.subr.mxu0 0.0
    %3415 = vmatpush1.msra.mxu0 0.0
    %3416 = vmatprep.subr.mxu0 0.0
    %3417 = vmatpush1.msra.mxu0 0.0
    %3418 = vmatprep.subr.mxu0 0.0
    %3419 = vmatpush1.msra.mxu0 0.0
    %3420 = vmatprep.subr.mxu0 0.0
    %3421 = vmatpush1.msra.mxu0 0.0
    %3422 = vmatprep.subr.mxu0 0.0
    %3423 = vmatpush1.msra.mxu0 0.0
    %3424 = vmatprep.subr.mxu0 0.0
    %3425 = vmatpush1.msra.mxu0 0.0
    %3426 = vmatprep.subr.mxu0 0.0
    %3427 = vmatpush1.msra.mxu0 0.0
    %3428 = vmatprep.subr.mxu0 0.0
    %3429 = vmatpush1.msra.mxu0 0.0
    %3430 = vmatprep.subr.mxu0 0.0
    %3431 = vmatpush1.msra.mxu0 0.0
    %3432 = vmatprep.mubr.f32.mxu0 0.0
    %v3433 = vand.u32 %v3194, 4294901760
    %3434 = vmatmul.mubr.f32.gmra.mrb[0].mxu0 %v3433
    %v3435 = vpop.f32.mrb[0].mxu0
    %v3436 = vadd.f32 %v3284, %v3435
    %v3437 = vpop.f32.mrb[0].mxu0
    %v3438 = vadd.f32 %v3286, %v3437
    %3439 = vdwg.mxu0
    %v3440 = vand.u32 %v32, 4294901760
    %v3441 = vsub.f32 %v32, %v3440
    %3442 = vmatprep.subr.mxu0 %v3441
    %v3443 = vand.u32 %v31, 4294901760
    %v3444 = vsub.f32 %v31, %v3443
    %3445 = vmatpush1.msra.mxu0 %v3444
    %v3446 = vand.u32 %v34, 4294901760
    %v3447 = vsub.f32 %v34, %v3446
    %3448 = vmatprep.subr.mxu0 %v3447
    %v3449 = vand.u32 %v33, 4294901760
    %v3450 = vsub.f32 %v33, %v3449
    %3451 = vmatpush1.msra.mxu0 %v3450
    %v3452 = vand.u32 %v36, 4294901760
    %v3453 = vsub.f32 %v36, %v3452
    %3454 = vmatprep.subr.mxu0 %v3453
    %v3455 = vand.u32 %v35, 4294901760
    %v3456 = vsub.f32 %v35, %v3455
    %3457 = vmatpush1.msra.mxu0 %v3456
    %v3458 = vand.u32 %v38, 4294901760
    %v3459 = vsub.f32 %v38, %v3458
    %3460 = vmatprep.subr.mxu0 %v3459
    %v3461 = vand.u32 %v37, 4294901760
    %v3462 = vsub.f32 %v37, %v3461
    %3463 = vmatpush1.msra.mxu0 %v3462
    %v3464 = vand.u32 %v40, 4294901760
    %v3465 = vsub.f32 %v40, %v3464
    %3466 = vmatprep.subr.mxu0 %v3465
    %v3467 = vand.u32 %v39, 4294901760
    %v3468 = vsub.f32 %v39, %v3467
    %3469 = vmatpush1.msra.mxu0 %v3468
    %v3470 = vand.u32 %v42, 4294901760
    %v3471 = vsub.f32 %v42, %v3470
    %3472 = vmatprep.subr.mxu0 %v3471
    %v3473 = vand.u32 %v41, 4294901760
    %v3474 = vsub.f32 %v41, %v3473
    %3475 = vmatpush1.msra.mxu0 %v3474
    %v3476 = vand.u32 %v44, 4294901760
    %v3477 = vsub.f32 %v44, %v3476
    %3478 = vmatprep.subr.mxu0 %v3477
    %v3479 = vand.u32 %v43, 4294901760
    %v3480 = vsub.f32 %v43, %v3479
    %3481 = vmatpush1.msra.mxu0 %v3480
    %v3482 = vand.u32 %v46, 4294901760
    %v3483 = vsub.f32 %v46, %v3482
    %3484 = vmatprep.subr.mxu0 %v3483
    %v3485 = vand.u32 %v45, 4294901760
    %v3486 = vsub.f32 %v45, %v3485
    %3487 = vmatpush1.msra.mxu0 %v3486
    %3488 = vmatprep.subr.mxu0 0.0
    %3489 = vmatpush1.msra.mxu0 0.0
    %3490 = vmatprep.subr.mxu0 0.0
    %3491 = vmatpush1.msra.mxu0 0.0
    %3492 = vmatprep.subr.mxu0 0.0
    %3493 = vmatpush1.msra.mxu0 0.0
    %3494 = vmatprep.subr.mxu0 0.0
    %3495 = vmatpush1.msra.mxu0 0.0
    %3496 = vmatprep.subr.mxu0 0.0
    %3497 = vmatpush1.msra.mxu0 0.0
    %3498 = vmatprep.subr.mxu0 0.0
    %3499 = vmatpush1.msra.mxu0 0.0
    %3500 = vmatprep.subr.mxu0 0.0
    %3501 = vmatpush1.msra.mxu0 0.0
    %3502 = vmatprep.subr.mxu0 0.0
    %3503 = vmatpush1.msra.mxu0 0.0
    %3504 = vmatprep.subr.mxu0 0.0
    %3505 = vmatpush1.msra.mxu0 0.0
    %3506 = vmatprep.subr.mxu0 0.0
    %3507 = vmatpush1.msra.mxu0 0.0
    %3508 = vmatprep.subr.mxu0 0.0
    %3509 = vmatpush1.msra.mxu0 0.0
    %3510 = vmatprep.subr.mxu0 0.0
    %3511 = vmatpush1.msra.mxu0 0.0
    %3512 = vmatprep.subr.mxu0 0.0
    %3513 = vmatpush1.msra.mxu0 0.0
    %3514 = vmatprep.subr.mxu0 0.0
    %3515 = vmatpush1.msra.mxu0 0.0
    %3516 = vmatprep.subr.mxu0 0.0
    %3517 = vmatpush1.msra.mxu0 0.0
    %3518 = vmatprep.subr.mxu0 0.0
    %3519 = vmatpush1.msra.mxu0 0.0
    %3520 = vmatprep.subr.mxu0 0.0
    %3521 = vmatpush1.msra.mxu0 0.0
    %3522 = vmatprep.subr.mxu0 0.0
    %3523 = vmatpush1.msra.mxu0 0.0
    %3524 = vmatprep.subr.mxu0 0.0
    %3525 = vmatpush1.msra.mxu0 0.0
    %3526 = vmatprep.subr.mxu0 0.0
    %3527 = vmatpush1.msra.mxu0 0.0
    %3528 = vmatprep.subr.mxu0 0.0
    %3529 = vmatpush1.msra.mxu0 0.0
    %3530 = vmatprep.subr.mxu0 0.0
    %3531 = vmatpush1.msra.mxu0 0.0
    %3532 = vmatprep.subr.mxu0 0.0
    %3533 = vmatpush1.msra.mxu0 0.0
    %3534 = vmatprep.subr.mxu0 0.0
    %3535 = vmatpush1.msra.mxu0 0.0
    %3536 = vmatprep.mubr.f32.mxu0 0.0
    %v3537 = vand.u32 %v3194, 4294901760
    %v3538 = vsub.f32 %v3194, %v3537
    %3539 = vmatmul.mubr.f32.gmra.mrb[0].mxu0 %v3538
    %v3540 = vpop.f32.mrb[0].mxu0
    %v3541 = vadd.f32 %v3436, %v3540
    %v3542 = vpop.f32.mrb[0].mxu0
    %v3543 = vadd.f32 %v3438, %v3542
    %3544 = vdwg.mxu0
    %v3545 = vand.u32 %v32, 4294901760
    %3546 = vmatprep.subr.mxu0 %v3545
    %v3547 = vand.u32 %v31, 4294901760
    %3548 = vmatpush1.msra.mxu0 %v3547
    %v3549 = vand.u32 %v34, 4294901760
    %3550 = vmatprep.subr.mxu0 %v3549
    %v3551 = vand.u32 %v33, 4294901760
    %3552 = vmatpush1.msra.mxu0 %v3551
    %v3553 = vand.u32 %v36, 4294901760
    %3554 = vmatprep.subr.mxu0 %v3553
    %v3555 = vand.u32 %v35, 4294901760
    %3556 = vmatpush1.msra.mxu0 %v3555
    %v3557 = vand.u32 %v38, 4294901760
    %3558 = vmatprep.subr.mxu0 %v3557
    %v3559 = vand.u32 %v37, 4294901760
    %3560 = vmatpush1.msra.mxu0 %v3559
    %v3561 = vand.u32 %v40, 4294901760
    %3562 = vmatprep.subr.mxu0 %v3561
    %v3563 = vand.u32 %v39, 4294901760
    %3564 = vmatpush1.msra.mxu0 %v3563
    %v3565 = vand.u32 %v42, 4294901760
    %3566 = vmatprep.subr.mxu0 %v3565
    %v3567 = vand.u32 %v41, 4294901760
    %3568 = vmatpush1.msra.mxu0 %v3567
    %v3569 = vand.u32 %v44, 4294901760
    %3570 = vmatprep.subr.mxu0 %v3569
    %v3571 = vand.u32 %v43, 4294901760
    %3572 = vmatpush1.msra.mxu0 %v3571
    %v3573 = vand.u32 %v46, 4294901760
    %3574 = vmatprep.subr.mxu0 %v3573
    %v3575 = vand.u32 %v45, 4294901760
    %3576 = vmatpush1.msra.mxu0 %v3575
    %3577 = vmatprep.subr.mxu0 0.0
    %3578 = vmatpush1.msra.mxu0 0.0
    %3579 = vmatprep.subr.mxu0 0.0
    %3580 = vmatpush1.msra.mxu0 0.0
    %3581 = vmatprep.subr.mxu0 0.0
    %3582 = vmatpush1.msra.mxu0 0.0
    %3583 = vmatprep.subr.mxu0 0.0
    %3584 = vmatpush1.msra.mxu0 0.0
    %3585 = vmatprep.subr.mxu0 0.0
    %3586 = vmatpush1.msra.mxu0 0.0
    %3587 = vmatprep.subr.mxu0 0.0
    %3588 = vmatpush1.msra.mxu0 0.0
    %3589 = vmatprep.subr.mxu0 0.0
    %3590 = vmatpush1.msra.mxu0 0.0
    %3591 = vmatprep.subr.mxu0 0.0
    %3592 = vmatpush1.msra.mxu0 0.0
    %3593 = vmatprep.subr.mxu0 0.0
    %3594 = vmatpush1.msra.mxu0 0.0
    %3595 = vmatprep.subr.mxu0 0.0
    %3596 = vmatpush1.msra.mxu0 0.0
    %3597 = vmatprep.subr.mxu0 0.0
    %3598 = vmatpush1.msra.mxu0 0.0
    %3599 = vmatprep.subr.mxu0 0.0
    %3600 = vmatpush1.msra.mxu0 0.0
    %3601 = vmatprep.subr.mxu0 0.0
    %3602 = vmatpush1.msra.mxu0 0.0
    %3603 = vmatprep.subr.mxu0 0.0
    %3604 = vmatpush1.msra.mxu0 0.0
    %3605 = vmatprep.subr.mxu0 0.0
    %3606 = vmatpush1.msra.mxu0 0.0
    %3607 = vmatprep.subr.mxu0 0.0
    %3608 = vmatpush1.msra.mxu0 0.0
    %3609 = vmatprep.subr.mxu0 0.0
    %3610 = vmatpush1.msra.mxu0 0.0
    %3611 = vmatprep.subr.mxu0 0.0
    %3612 = vmatpush1.msra.mxu0 0.0
    %3613 = vmatprep.subr.mxu0 0.0
    %3614 = vmatpush1.msra.mxu0 0.0
    %3615 = vmatprep.subr.mxu0 0.0
    %3616 = vmatpush1.msra.mxu0 0.0
    %3617 = vmatprep.subr.mxu0 0.0
    %3618 = vmatpush1.msra.mxu0 0.0
    %3619 = vmatprep.subr.mxu0 0.0
    %3620 = vmatpush1.msra.mxu0 0.0
    %3621 = vmatprep.subr.mxu0 0.0
    %3622 = vmatpush1.msra.mxu0 0.0
    %3623 = vmatprep.subr.mxu0 0.0
    %3624 = vmatpush1.msra.mxu0 0.0
    %3625 = vmatprep.mubr.f32.mxu0 0.0
    %v3626 = vand.u32 %v3194, 4294901760
    %v3627 = vsub.f32 %v3194, %v3626
    %v3628 = vand.u32 %v3627, 4294901760
    %3629 = vmatmul.mubr.f32.gmra.mrb[0].mxu0 %v3628
    %v3630 = vpop.f32.mrb[0].mxu0
    %v3631 = vadd.f32 %v3541, %v3630
    %v3632 = vpop.f32.mrb[0].mxu0
    %v3633 = vadd.f32 %v3543, %v3632
    %3634 = vdwg.mxu0
    %v3635 = vand.u32 %v32, 4294901760
    %v3636 = vsub.f32 %v32, %v3635
    %v3637 = vand.u32 %v3636, 4294901760
    %3638 = vmatprep.subr.mxu0 %v3637
    %v3639 = vand.u32 %v31, 4294901760
    %v3640 = vsub.f32 %v31, %v3639
    %v3641 = vand.u32 %v3640, 4294901760
    %3642 = vmatpush1.msra.mxu0 %v3641
    %v3643 = vand.u32 %v34, 4294901760
    %v3644 = vsub.f32 %v34, %v3643
    %v3645 = vand.u32 %v3644, 4294901760
    %3646 = vmatprep.subr.mxu0 %v3645
    %v3647 = vand.u32 %v33, 4294901760
    %v3648 = vsub.f32 %v33, %v3647
    %v3649 = vand.u32 %v3648, 4294901760
    %3650 = vmatpush1.msra.mxu0 %v3649
    %v3651 = vand.u32 %v36, 4294901760
    %v3652 = vsub.f32 %v36, %v3651
    %v3653 = vand.u32 %v3652, 4294901760
    %3654 = vmatprep.subr.mxu0 %v3653
    %v3655 = vand.u32 %v35, 4294901760
    %v3656 = vsub.f32 %v35, %v3655
    %v3657 = vand.u32 %v3656, 4294901760
    %3658 = vmatpush1.msra.mxu0 %v3657
    %v3659 = vand.u32 %v38, 4294901760
    %v3660 = vsub.f32 %v38, %v3659
    %v3661 = vand.u32 %v3660, 4294901760
    %3662 = vmatprep.subr.mxu0 %v3661
    %v3663 = vand.u32 %v37, 4294901760
    %v3664 = vsub.f32 %v37, %v3663
    %v3665 = vand.u32 %v3664, 4294901760
    %3666 = vmatpush1.msra.mxu0 %v3665
    %v3667 = vand.u32 %v40, 4294901760
    %v3668 = vsub.f32 %v40, %v3667
    %v3669 = vand.u32 %v3668, 4294901760
    %3670 = vmatprep.subr.mxu0 %v3669
    %v3671 = vand.u32 %v39, 4294901760
    %v3672 = vsub.f32 %v39, %v3671
    %v3673 = vand.u32 %v3672, 4294901760
    %3674 = vmatpush1.msra.mxu0 %v3673
    %v3675 = vand.u32 %v42, 4294901760
    %v3676 = vsub.f32 %v42, %v3675
    %v3677 = vand.u32 %v3676, 4294901760
    %3678 = vmatprep.subr.mxu0 %v3677
    %v3679 = vand.u32 %v41, 4294901760
    %v3680 = vsub.f32 %v41, %v3679
    %v3681 = vand.u32 %v3680, 4294901760
    %3682 = vmatpush1.msra.mxu0 %v3681
    %v3683 = vand.u32 %v44, 4294901760
    %v3684 = vsub.f32 %v44, %v3683
    %v3685 = vand.u32 %v3684, 4294901760
    %3686 = vmatprep.subr.mxu0 %v3685
    %v3687 = vand.u32 %v43, 4294901760
    %v3688 = vsub.f32 %v43, %v3687
    %v3689 = vand.u32 %v3688, 4294901760
    %3690 = vmatpush1.msra.mxu0 %v3689
    %v3691 = vand.u32 %v46, 4294901760
    %v3692 = vsub.f32 %v46, %v3691
    %v3693 = vand.u32 %v3692, 4294901760
    %3694 = vmatprep.subr.mxu0 %v3693
    %v3695 = vand.u32 %v45, 4294901760
    %v3696 = vsub.f32 %v45, %v3695
    %v3697 = vand.u32 %v3696, 4294901760
    %3698 = vmatpush1.msra.mxu0 %v3697
    %3699 = vmatprep.subr.mxu0 0.0
    %3700 = vmatpush1.msra.mxu0 0.0
    %3701 = vmatprep.subr.mxu0 0.0
    %3702 = vmatpush1.msra.mxu0 0.0
    %3703 = vmatprep.subr.mxu0 0.0
    %3704 = vmatpush1.msra.mxu0 0.0
    %3705 = vmatprep.subr.mxu0 0.0
    %3706 = vmatpush1.msra.mxu0 0.0
    %3707 = vmatprep.subr.mxu0 0.0
    %3708 = vmatpush1.msra.mxu0 0.0
    %3709 = vmatprep.subr.mxu0 0.0
    %3710 = vmatpush1.msra.mxu0 0.0
    %3711 = vmatprep.subr.mxu0 0.0
    %3712 = vmatpush1.msra.mxu0 0.0
    %3713 = vmatprep.subr.mxu0 0.0
    %3714 = vmatpush1.msra.mxu0 0.0
    %3715 = vmatprep.subr.mxu0 0.0
    %3716 = vmatpush1.msra.mxu0 0.0
    %3717 = vmatprep.subr.mxu0 0.0
    %3718 = vmatpush1.msra.mxu0 0.0
    %3719 = vmatprep.subr.mxu0 0.0
    %3720 = vmatpush1.msra.mxu0 0.0
    %3721 = vmatprep.subr.mxu0 0.0
    %3722 = vmatpush1.msra.mxu0 0.0
    %3723 = vmatprep.subr.mxu0 0.0
    %3724 = vmatpush1.msra.mxu0 0.0
    %3725 = vmatprep.subr.mxu0 0.0
    %3726 = vmatpush1.msra.mxu0 0.0
    %3727 = vmatprep.subr.mxu0 0.0
    %3728 = vmatpush1.msra.mxu0 0.0
    %3729 = vmatprep.subr.mxu0 0.0
    %3730 = vmatpush1.msra.mxu0 0.0
    %3731 = vmatprep.subr.mxu0 0.0
    %3732 = vmatpush1.msra.mxu0 0.0
    %3733 = vmatprep.subr.mxu0 0.0
    %3734 = vmatpush1.msra.mxu0 0.0
    %3735 = vmatprep.subr.mxu0 0.0
    %3736 = vmatpush1.msra.mxu0 0.0
    %3737 = vmatprep.subr.mxu0 0.0
    %3738 = vmatpush1.msra.mxu0 0.0
    %3739 = vmatprep.subr.mxu0 0.0
    %3740 = vmatpush1.msra.mxu0 0.0
    %3741 = vmatprep.subr.mxu0 0.0
    %3742 = vmatpush1.msra.mxu0 0.0
    %3743 = vmatprep.subr.mxu0 0.0
    %3744 = vmatpush1.msra.mxu0 0.0
    %3745 = vmatprep.subr.mxu0 0.0
    %3746 = vmatpush1.msra.mxu0 0.0
    %3747 = vmatprep.mubr.f32.mxu0 0.0
    %v3748 = vand.u32 %v3194, 4294901760
    %3749 = vmatmul.mubr.f32.gmra.mrb[0].mxu0 %v3748
    %v3750 = vpop.f32.mrb[0].mxu0
    %v3751 = vadd.f32 %v3631, %v3750
    %v3752 = vpop.f32.mrb[0].mxu0
    %v3753 = vadd.f32 %v3633, %v3752
    %3754 = vdwg.mxu0
    %v3755 = vand.u32 %v32, 4294901760
    %3756 = vmatprep.subr.mxu0 %v3755
    %v3757 = vand.u32 %v31, 4294901760
    %3758 = vmatpush1.msra.mxu0 %v3757
    %v3759 = vand.u32 %v34, 4294901760
    %3760 = vmatprep.subr.mxu0 %v3759
    %v3761 = vand.u32 %v33, 4294901760
    %3762 = vmatpush1.msra.mxu0 %v3761
    %v3763 = vand.u32 %v36, 4294901760
    %3764 = vmatprep.subr.mxu0 %v3763
    %v3765 = vand.u32 %v35, 4294901760
    %3766 = vmatpush1.msra.mxu0 %v3765
    %v3767 = vand.u32 %v38, 4294901760
    %3768 = vmatprep.subr.mxu0 %v3767
    %v3769 = vand.u32 %v37, 4294901760
    %3770 = vmatpush1.msra.mxu0 %v3769
    %v3771 = vand.u32 %v40, 4294901760
    %3772 = vmatprep.subr.mxu0 %v3771
    %v3773 = vand.u32 %v39, 4294901760
    %3774 = vmatpush1.msra.mxu0 %v3773
    %v3775 = vand.u32 %v42, 4294901760
    %3776 = vmatprep.subr.mxu0 %v3775
    %v3777 = vand.u32 %v41, 4294901760
    %3778 = vmatpush1.msra.mxu0 %v3777
    %v3779 = vand.u32 %v44, 4294901760
    %3780 = vmatprep.subr.mxu0 %v3779
    %v3781 = vand.u32 %v43, 4294901760
    %3782 = vmatpush1.msra.mxu0 %v3781
    %v3783 = vand.u32 %v46, 4294901760
    %3784 = vmatprep.subr.mxu0 %v3783
    %v3785 = vand.u32 %v45, 4294901760
    %3786 = vmatpush1.msra.mxu0 %v3785
    %3787 = vmatprep.subr.mxu0 0.0
    %3788 = vmatpush1.msra.mxu0 0.0
    %3789 = vmatprep.subr.mxu0 0.0
    %3790 = vmatpush1.msra.mxu0 0.0
    %3791 = vmatprep.subr.mxu0 0.0
    %3792 = vmatpush1.msra.mxu0 0.0
    %3793 = vmatprep.subr.mxu0 0.0
    %3794 = vmatpush1.msra.mxu0 0.0
    %3795 = vmatprep.subr.mxu0 0.0
    %3796 = vmatpush1.msra.mxu0 0.0
    %3797 = vmatprep.subr.mxu0 0.0
    %3798 = vmatpush1.msra.mxu0 0.0
    %3799 = vmatprep.subr.mxu0 0.0
    %3800 = vmatpush1.msra.mxu0 0.0
    %3801 = vmatprep.subr.mxu0 0.0
    %3802 = vmatpush1.msra.mxu0 0.0
    %3803 = vmatprep.subr.mxu0 0.0
    %3804 = vmatpush1.msra.mxu0 0.0
    %3805 = vmatprep.subr.mxu0 0.0
    %3806 = vmatpush1.msra.mxu0 0.0
    %3807 = vmatprep.subr.mxu0 0.0
    %3808 = vmatpush1.msra.mxu0 0.0
    %3809 = vmatprep.subr.mxu0 0.0
    %3810 = vmatpush1.msra.mxu0 0.0
    %3811 = vmatprep.subr.mxu0 0.0
    %3812 = vmatpush1.msra.mxu0 0.0
    %3813 = vmatprep.subr.mxu0 0.0
    %3814 = vmatpush1.msra.mxu0 0.0
    %3815 = vmatprep.subr.mxu0 0.0
    %3816 = vmatpush1.msra.mxu0 0.0
    %3817 = vmatprep.subr.mxu0 0.0
    %3818 = vmatpush1.msra.mxu0 0.0
    %3819 = vmatprep.subr.mxu0 0.0
    %3820 = vmatpush1.msra.mxu0 0.0
    %3821 = vmatprep.subr.mxu0 0.0
    %3822 = vmatpush1.msra.mxu0 0.0
    %3823 = vmatprep.subr.mxu0 0.0
    %3824 = vmatpush1.msra.mxu0 0.0
    %3825 = vmatprep.subr.mxu0 0.0
    %3826 = vmatpush1.msra.mxu0 0.0
    %3827 = vmatprep.subr.mxu0 0.0
    %3828 = vmatpush1.msra.mxu0 0.0
    %3829 = vmatprep.subr.mxu0 0.0
    %3830 = vmatpush1.msra.mxu0 0.0
    %3831 = vmatprep.subr.mxu0 0.0
    %3832 = vmatpush1.msra.mxu0 0.0
    %3833 = vmatprep.subr.mxu0 0.0
    %3834 = vmatpush1.msra.mxu0 0.0
    %3835 = vmatprep.mubr.f32.mxu0 0.0
    %v3836 = vand.u32 %v3194, 4294901760
    %3837 = vmatmul.mubr.f32.gmra.mrb[0].mxu0 %v3836
    %v3838 = vpop.f32.mrb[0].mxu0
    %v3839 = vadd.f32 %v3751, %v3838
    %v3840 = vpop.f32.mrb[0].mxu0
    %v3841 = vadd.f32 %v3753, %v3840
    %3842 = vdwg.mxu0
    %v3843 = vadd.f32 %v3841, %v53
    %v3844 = vxor.u32 %v3843, 2147483648
    %v3845 = vmul.f32 %v3844, 1.442695
    %v3846 = vpow.pop %v3845
    %v3847 = vadd.f32 %v3846, 1.0
    %v3848 = vrcp.pop %v3847
    %v3849 = vmul.f32 1.0, %v3848
    %v3850 = vtanh.pop %v3843
    %v3851 = vmul.f32 %v3849, %v3144
    %3853 = vrot.lane.b32.xlu0 %v3850, 64
    %v3854 = vpop.permute.xlu0 %3853
    %v3856 = vmul.f32 %v3849, %v3854
    %3858 = vrot.lane.b32.xlu0 %v3856, 32
    %v3859 = vpop.permute.xlu0 %3858
    %v3861 = vadd.f32 %v3851, %v3859
    %v3862 = vtanh.pop %v3861
    %3864 = vrot.lane.b32.xlu0 %v3862, 64
    %v3865 = vpop.permute.xlu0 %3864
    %v3867 = vmul.f32 %v3849, %v3865
    %v3869 = vrot.slane %v3839, 4
    %v3871 = vadd.f32 %v503, %v3869
    %v3872 = vxor.u32 %v3871, 2147483648
    %v3873 = vmul.f32 %v3872, 1.442695
    %v3874 = vpow.pop %v3873
    %v3875 = vadd.f32 %v3874, 1.0
    %v3876 = vrcp.pop %v3875
    %v3877 = vmul.f32 1.0, %v3876
    %v3878 = vtanh.pop %v3871
    %v3880 = vrot.slane %v3175, 7
    %v3882 = vmul.f32 %v3877, %v3880
    %3884 = vrot.lane.b32.xlu0 %v3878, 64
    %v3885 = vpop.permute.xlu0 %3884
    %v3887 = vmul.f32 %v3877, %v3885
    %3889 = vrot.lane.b32.xlu0 %v3887, 32
    %v3890 = vpop.permute.xlu0 %3889
    %v3892 = vadd.f32 %v3882, %v3890
    %v3893 = vtanh.pop %v3892
    %3895 = vrot.lane.b32.xlu0 %v3893, 64
    %v3896 = vpop.permute.xlu0 %3895
    %v3898 = vmul.f32 %v3877, %v3896
    %3900 = vrot.lane.b32.xlu0 %v3898, 32
    %v3901 = vpop.permute.xlu0 %3900
    %v3904 = vrot.slane %v3867, 4
    %3905 = vrot.lane.b32.xlu0 %v3904, 64
    %v3906 = vpop.permute.xlu0 %3905
    %v3908 = vsel %vm510, %v3901, %v3906
    %v3910 = vrot.slane %v3908, 4
    %v3911 = vsel %vm1037, %v3910, 0
    %v3913 = vand.u32 %v32, 4294901760
    %3914 = vmatprep.subr.mxu0 %v3913
    %v3915 = vand.u32 %v31, 4294901760
    %3916 = vmatpush1.msra.mxu0 %v3915
    %v3917 = vand.u32 %v34, 4294901760
    %3918 = vmatprep.subr.mxu0 %v3917
    %v3919 = vand.u32 %v33, 4294901760
    %3920 = vmatpush1.msra.mxu0 %v3919
    %v3921 = vand.u32 %v36, 4294901760
    %3922 = vmatprep.subr.mxu0 %v3921
    %v3923 = vand.u32 %v35, 4294901760
    %3924 = vmatpush1.msra.mxu0 %v3923
    %v3925 = vand.u32 %v38, 4294901760
    %3926 = vmatprep.subr.mxu0 %v3925
    %v3927 = vand.u32 %v37, 4294901760
    %3928 = vmatpush1.msra.mxu0 %v3927
    %v3929 = vand.u32 %v40, 4294901760
    %3930 = vmatprep.subr.mxu0 %v3929
    %v3931 = vand.u32 %v39, 4294901760
    %3932 = vmatpush1.msra.mxu0 %v3931
    %v3933 = vand.u32 %v42, 4294901760
    %3934 = vmatprep.subr.mxu0 %v3933
    %v3935 = vand.u32 %v41, 4294901760
    %3936 = vmatpush1.msra.mxu0 %v3935
    %v3937 = vand.u32 %v44, 4294901760
    %3938 = vmatprep.subr.mxu0 %v3937
    %v3939 = vand.u32 %v43, 4294901760
    %3940 = vmatpush1.msra.mxu0 %v3939
    %v3941 = vand.u32 %v46, 4294901760
    %3942 = vmatprep.subr.mxu0 %v3941
    %v3943 = vand.u32 %v45, 4294901760
    %3944 = vmatpush1.msra.mxu0 %v3943
    %3945 = vmatprep.subr.mxu0 0.0
    %3946 = vmatpush1.msra.mxu0 0.0
    %3947 = vmatprep.subr.mxu0 0.0
    %3948 = vmatpush1.msra.mxu0 0.0
    %3949 = vmatprep.subr.mxu0 0.0
    %3950 = vmatpush1.msra.mxu0 0.0
    %3951 = vmatprep.subr.mxu0 0.0
    %3952 = vmatpush1.msra.mxu0 0.0
    %3953 = vmatprep.subr.mxu0 0.0
    %3954 = vmatpush1.msra.mxu0 0.0
    %3955 = vmatprep.subr.mxu0 0.0
    %3956 = vmatpush1.msra.mxu0 0.0
    %3957 = vmatprep.subr.mxu0 0.0
    %3958 = vmatpush1.msra.mxu0 0.0
    %3959 = vmatprep.subr.mxu0 0.0
    %3960 = vmatpush1.msra.mxu0 0.0
    %3961 = vmatprep.subr.mxu0 0.0
    %3962 = vmatpush1.msra.mxu0 0.0
    %3963 = vmatprep.subr.mxu0 0.0
    %3964 = vmatpush1.msra.mxu0 0.0
    %3965 = vmatprep.subr.mxu0 0.0
    %3966 = vmatpush1.msra.mxu0 0.0
    %3967 = vmatprep.subr.mxu0 0.0
    %3968 = vmatpush1.msra.mxu0 0.0
    %3969 = vmatprep.subr.mxu0 0.0
    %3970 = vmatpush1.msra.mxu0 0.0
    %3971 = vmatprep.subr.mxu0 0.0
    %3972 = vmatpush1.msra.mxu0 0.0
    %3973 = vmatprep.subr.mxu0 0.0
    %3974 = vmatpush1.msra.mxu0 0.0
    %3975 = vmatprep.subr.mxu0 0.0
    %3976 = vmatpush1.msra.mxu0 0.0
    %3977 = vmatprep.subr.mxu0 0.0
    %3978 = vmatpush1.msra.mxu0 0.0
    %3979 = vmatprep.subr.mxu0 0.0
    %3980 = vmatpush1.msra.mxu0 0.0
    %3981 = vmatprep.subr.mxu0 0.0
    %3982 = vmatpush1.msra.mxu0 0.0
    %3983 = vmatprep.subr.mxu0 0.0
    %3984 = vmatpush1.msra.mxu0 0.0
    %3985 = vmatprep.subr.mxu0 0.0
    %3986 = vmatpush1.msra.mxu0 0.0
    %3987 = vmatprep.subr.mxu0 0.0
    %3988 = vmatpush1.msra.mxu0 0.0
    %3989 = vmatprep.subr.mxu0 0.0
    %3990 = vmatpush1.msra.mxu0 0.0
    %3991 = vmatprep.subr.mxu0 0.0
    %3992 = vmatpush1.msra.mxu0 0.0
    %3993 = vmatprep.mubr.f32.mxu0 0.0
    %v3994 = vand.u32 %v3911, 4294901760
    %v3995 = vsub.f32 %v3911, %v3994
    %v3996 = vand.u32 %v3995, 4294901760
    %v3997 = vsub.f32 %v3995, %v3996
    %v3998 = vand.u32 %v3997, 4294901760
    %3999 = vmatmul.mubr.f32.gmra.mrb[0].mxu0 %v3998
    %v4000 = vpop.f32.mrb[0].mxu0
    %v4001 = vadd.f32 0.0, %v4000
    %v4002 = vpop.f32.mrb[0].mxu0
    %v4003 = vadd.f32 0.0, %v4002
    %4004 = vdwg.mxu0
    %v4005 = vand.u32 %v32, 4294901760
    %v4006 = vsub.f32 %v32, %v4005
    %v4007 = vand.u32 %v4006, 4294901760
    %v4008 = vsub.f32 %v4006, %v4007
    %v4009 = vand.u32 %v4008, 4294901760
    %4010 = vmatprep.subr.mxu0 %v4009
    %v4011 = vand.u32 %v31, 4294901760
    %v4012 = vsub.f32 %v31, %v4011
    %v4013 = vand.u32 %v4012, 4294901760
    %v4014 = vsub.f32 %v4012, %v4013
    %v4015 = vand.u32 %v4014, 4294901760
    %4016 = vmatpush1.msra.mxu0 %v4015
    %v4017 = vand.u32 %v34, 4294901760
    %v4018 = vsub.f32 %v34, %v4017
    %v4019 = vand.u32 %v4018, 4294901760
    %v4020 = vsub.f32 %v4018, %v4019
    %v4021 = vand.u32 %v4020, 4294901760
    %4022 = vmatprep.subr.mxu0 %v4021
    %v4023 = vand.u32 %v33, 4294901760
    %v4024 = vsub.f32 %v33, %v4023
    %v4025 = vand.u32 %v4024, 4294901760
    %v4026 = vsub.f32 %v4024, %v4025
    %v4027 = vand.u32 %v4026, 4294901760
    %4028 = vmatpush1.msra.mxu0 %v4027
    %v4029 = vand.u32 %v36, 4294901760
    %v4030 = vsub.f32 %v36, %v4029
    %v4031 = vand.u32 %v4030, 4294901760
    %v4032 = vsub.f32 %v4030, %v4031
    %v4033 = vand.u32 %v4032, 4294901760
    %4034 = vmatprep.subr.mxu0 %v4033
    %v4035 = vand.u32 %v35, 4294901760
    %v4036 = vsub.f32 %v35, %v4035
    %v4037 = vand.u32 %v4036, 4294901760
    %v4038 = vsub.f32 %v4036, %v4037
    %v4039 = vand.u32 %v4038, 4294901760
    %4040 = vmatpush1.msra.mxu0 %v4039
    %v4041 = vand.u32 %v38, 4294901760
    %v4042 = vsub.f32 %v38, %v4041
    %v4043 = vand.u32 %v4042, 4294901760
    %v4044 = vsub.f32 %v4042, %v4043
    %v4045 = vand.u32 %v4044, 4294901760
    %4046 = vmatprep.subr.mxu0 %v4045
    %v4047 = vand.u32 %v37, 4294901760
    %v4048 = vsub.f32 %v37, %v4047
    %v4049 = vand.u32 %v4048, 4294901760
    %v4050 = vsub.f32 %v4048, %v4049
    %v4051 = vand.u32 %v4050, 4294901760
    %4052 = vmatpush1.msra.mxu0 %v4051
    %v4053 = vand.u32 %v40, 4294901760
    %v4054 = vsub.f32 %v40, %v4053
    %v4055 = vand.u32 %v4054, 4294901760
    %v4056 = vsub.f32 %v4054, %v4055
    %v4057 = vand.u32 %v4056, 4294901760
    %4058 = vmatprep.subr.mxu0 %v4057
    %v4059 = vand.u32 %v39, 4294901760
    %v4060 = vsub.f32 %v39, %v4059
    %v4061 = vand.u32 %v4060, 4294901760
    %v4062 = vsub.f32 %v4060, %v4061
    %v4063 = vand.u32 %v4062, 4294901760
    %4064 = vmatpush1.msra.mxu0 %v4063
    %v4065 = vand.u32 %v42, 4294901760
    %v4066 = vsub.f32 %v42, %v4065
    %v4067 = vand.u32 %v4066, 4294901760
    %v4068 = vsub.f32 %v4066, %v4067
    %v4069 = vand.u32 %v4068, 4294901760
    %4070 = vmatprep.subr.mxu0 %v4069
    %v4071 = vand.u32 %v41, 4294901760
    %v4072 = vsub.f32 %v41, %v4071
    %v4073 = vand.u32 %v4072, 4294901760
    %v4074 = vsub.f32 %v4072, %v4073
    %v4075 = vand.u32 %v4074, 4294901760
    %4076 = vmatpush1.msra.mxu0 %v4075
    %v4077 = vand.u32 %v44, 4294901760
    %v4078 = vsub.f32 %v44, %v4077
    %v4079 = vand.u32 %v4078, 4294901760
    %v4080 = vsub.f32 %v4078, %v4079
    %v4081 = vand.u32 %v4080, 4294901760
    %4082 = vmatprep.subr.mxu0 %v4081
    %v4083 = vand.u32 %v43, 4294901760
    %v4084 = vsub.f32 %v43, %v4083
    %v4085 = vand.u32 %v4084, 4294901760
    %v4086 = vsub.f32 %v4084, %v4085
    %v4087 = vand.u32 %v4086, 4294901760
    %4088 = vmatpush1.msra.mxu0 %v4087
    %v4089 = vand.u32 %v46, 4294901760
    %v4090 = vsub.f32 %v46, %v4089
    %v4091 = vand.u32 %v4090, 4294901760
    %v4092 = vsub.f32 %v4090, %v4091
    %v4093 = vand.u32 %v4092, 4294901760
    %4094 = vmatprep.subr.mxu0 %v4093
    %v4095 = vand.u32 %v45, 4294901760
    %v4096 = vsub.f32 %v45, %v4095
    %v4097 = vand.u32 %v4096, 4294901760
    %v4098 = vsub.f32 %v4096, %v4097
    %v4099 = vand.u32 %v4098, 4294901760
    %4100 = vmatpush1.msra.mxu0 %v4099
    %4101 = vmatprep.subr.mxu0 0.0
    %4102 = vmatpush1.msra.mxu0 0.0
    %4103 = vmatprep.subr.mxu0 0.0
    %4104 = vmatpush1.msra.mxu0 0.0
    %4105 = vmatprep.subr.mxu0 0.0
    %4106 = vmatpush1.msra.mxu0 0.0
    %4107 = vmatprep.subr.mxu0 0.0
    %4108 = vmatpush1.msra.mxu0 0.0
    %4109 = vmatprep.subr.mxu0 0.0
    %4110 = vmatpush1.msra.mxu0 0.0
    %4111 = vmatprep.subr.mxu0 0.0
    %4112 = vmatpush1.msra.mxu0 0.0
    %4113 = vmatprep.subr.mxu0 0.0
    %4114 = vmatpush1.msra.mxu0 0.0
    %4115 = vmatprep.subr.mxu0 0.0
    %4116 = vmatpush1.msra.mxu0 0.0
    %4117 = vmatprep.subr.mxu0 0.0
    %4118 = vmatpush1.msra.mxu0 0.0
    %4119 = vmatprep.subr.mxu0 0.0
    %4120 = vmatpush1.msra.mxu0 0.0
    %4121 = vmatprep.subr.mxu0 0.0
    %4122 = vmatpush1.msra.mxu0 0.0
    %4123 = vmatprep.subr.mxu0 0.0
    %4124 = vmatpush1.msra.mxu0 0.0
    %4125 = vmatprep.subr.mxu0 0.0
    %4126 = vmatpush1.msra.mxu0 0.0
    %4127 = vmatprep.subr.mxu0 0.0
    %4128 = vmatpush1.msra.mxu0 0.0
    %4129 = vmatprep.subr.mxu0 0.0
    %4130 = vmatpush1.msra.mxu0 0.0
    %4131 = vmatprep.subr.mxu0 0.0
    %4132 = vmatpush1.msra.mxu0 0.0
    %4133 = vmatprep.subr.mxu0 0.0
    %4134 = vmatpush1.msra.mxu0 0.0
    %4135 = vmatprep.subr.mxu0 0.0
    %4136 = vmatpush1.msra.mxu0 0.0
    %4137 = vmatprep.subr.mxu0 0.0
    %4138 = vmatpush1.msra.mxu0 0.0
    %4139 = vmatprep.subr.mxu0 0.0
    %4140 = vmatpush1.msra.mxu0 0.0
    %4141 = vmatprep.subr.mxu0 0.0
    %4142 = vmatpush1.msra.mxu0 0.0
    %4143 = vmatprep.subr.mxu0 0.0
    %4144 = vmatpush1.msra.mxu0 0.0
    %4145 = vmatprep.subr.mxu0 0.0
    %4146 = vmatpush1.msra.mxu0 0.0
    %4147 = vmatprep.subr.mxu0 0.0
    %4148 = vmatpush1.msra.mxu0 0.0
    %4149 = vmatprep.mubr.f32.mxu0 0.0
    %v4150 = vand.u32 %v3911, 4294901760
    %4151 = vmatmul.mubr.f32.gmra.mrb[0].mxu0 %v4150
    %v4152 = vpop.f32.mrb[0].mxu0
    %v4153 = vadd.f32 %v4001, %v4152
    %v4154 = vpop.f32.mrb[0].mxu0
    %v4155 = vadd.f32 %v4003, %v4154
    %4156 = vdwg.mxu0
    %v4157 = vand.u32 %v32, 4294901760
    %v4158 = vsub.f32 %v32, %v4157
    %4159 = vmatprep.subr.mxu0 %v4158
    %v4160 = vand.u32 %v31, 4294901760
    %v4161 = vsub.f32 %v31, %v4160
    %4162 = vmatpush1.msra.mxu0 %v4161
    %v4163 = vand.u32 %v34, 4294901760
    %v4164 = vsub.f32 %v34, %v4163
    %4165 = vmatprep.subr.mxu0 %v4164
    %v4166 = vand.u32 %v33, 4294901760
    %v4167 = vsub.f32 %v33, %v4166
    %4168 = vmatpush1.msra.mxu0 %v4167
    %v4169 = vand.u32 %v36, 4294901760
    %v4170 = vsub.f32 %v36, %v4169
    %4171 = vmatprep.subr.mxu0 %v4170
    %v4172 = vand.u32 %v35, 4294901760
    %v4173 = vsub.f32 %v35, %v4172
    %4174 = vmatpush1.msra.mxu0 %v4173
    %v4175 = vand.u32 %v38, 4294901760
    %v4176 = vsub.f32 %v38, %v4175
    %4177 = vmatprep.subr.mxu0 %v4176
    %v4178 = vand.u32 %v37, 4294901760
    %v4179 = vsub.f32 %v37, %v4178
    %4180 = vmatpush1.msra.mxu0 %v4179
    %v4181 = vand.u32 %v40, 4294901760
    %v4182 = vsub.f32 %v40, %v4181
    %4183 = vmatprep.subr.mxu0 %v4182
    %v4184 = vand.u32 %v39, 4294901760
    %v4185 = vsub.f32 %v39, %v4184
    %4186 = vmatpush1.msra.mxu0 %v4185
    %v4187 = vand.u32 %v42, 4294901760
    %v4188 = vsub.f32 %v42, %v4187
    %4189 = vmatprep.subr.mxu0 %v4188
    %v4190 = vand.u32 %v41, 4294901760
    %v4191 = vsub.f32 %v41, %v4190
    %4192 = vmatpush1.msra.mxu0 %v4191
    %v4193 = vand.u32 %v44, 4294901760
    %v4194 = vsub.f32 %v44, %v4193
    %4195 = vmatprep.subr.mxu0 %v4194
    %v4196 = vand.u32 %v43, 4294901760
    %v4197 = vsub.f32 %v43, %v4196
    %4198 = vmatpush1.msra.mxu0 %v4197
    %v4199 = vand.u32 %v46, 4294901760
    %v4200 = vsub.f32 %v46, %v4199
    %4201 = vmatprep.subr.mxu0 %v4200
    %v4202 = vand.u32 %v45, 4294901760
    %v4203 = vsub.f32 %v45, %v4202
    %4204 = vmatpush1.msra.mxu0 %v4203
    %4205 = vmatprep.subr.mxu0 0.0
    %4206 = vmatpush1.msra.mxu0 0.0
    %4207 = vmatprep.subr.mxu0 0.0
    %4208 = vmatpush1.msra.mxu0 0.0
    %4209 = vmatprep.subr.mxu0 0.0
    %4210 = vmatpush1.msra.mxu0 0.0
    %4211 = vmatprep.subr.mxu0 0.0
    %4212 = vmatpush1.msra.mxu0 0.0
    %4213 = vmatprep.subr.mxu0 0.0
    %4214 = vmatpush1.msra.mxu0 0.0
    %4215 = vmatprep.subr.mxu0 0.0
    %4216 = vmatpush1.msra.mxu0 0.0
    %4217 = vmatprep.subr.mxu0 0.0
    %4218 = vmatpush1.msra.mxu0 0.0
    %4219 = vmatprep.subr.mxu0 0.0
    %4220 = vmatpush1.msra.mxu0 0.0
    %4221 = vmatprep.subr.mxu0 0.0
    %4222 = vmatpush1.msra.mxu0 0.0
    %4223 = vmatprep.subr.mxu0 0.0
    %4224 = vmatpush1.msra.mxu0 0.0
    %4225 = vmatprep.subr.mxu0 0.0
    %4226 = vmatpush1.msra.mxu0 0.0
    %4227 = vmatprep.subr.mxu0 0.0
    %4228 = vmatpush1.msra.mxu0 0.0
    %4229 = vmatprep.subr.mxu0 0.0
    %4230 = vmatpush1.msra.mxu0 0.0
    %4231 = vmatprep.subr.mxu0 0.0
    %4232 = vmatpush1.msra.mxu0 0.0
    %4233 = vmatprep.subr.mxu0 0.0
    %4234 = vmatpush1.msra.mxu0 0.0
    %4235 = vmatprep.subr.mxu0 0.0
    %4236 = vmatpush1.msra.mxu0 0.0
    %4237 = vmatprep.subr.mxu0 0.0
    %4238 = vmatpush1.msra.mxu0 0.0
    %4239 = vmatprep.subr.mxu0 0.0
    %4240 = vmatpush1.msra.mxu0 0.0
    %4241 = vmatprep.subr.mxu0 0.0
    %4242 = vmatpush1.msra.mxu0 0.0
    %4243 = vmatprep.subr.mxu0 0.0
    %4244 = vmatpush1.msra.mxu0 0.0
    %4245 = vmatprep.subr.mxu0 0.0
    %4246 = vmatpush1.msra.mxu0 0.0
    %4247 = vmatprep.subr.mxu0 0.0
    %4248 = vmatpush1.msra.mxu0 0.0
    %4249 = vmatprep.subr.mxu0 0.0
    %4250 = vmatpush1.msra.mxu0 0.0
    %4251 = vmatprep.subr.mxu0 0.0
    %4252 = vmatpush1.msra.mxu0 0.0
    %4253 = vmatprep.mubr.f32.mxu0 0.0
    %v4254 = vand.u32 %v3911, 4294901760
    %v4255 = vsub.f32 %v3911, %v4254
    %4256 = vmatmul.mubr.f32.gmra.mrb[0].mxu0 %v4255
    %v4257 = vpop.f32.mrb[0].mxu0
    %v4258 = vadd.f32 %v4153, %v4257
    %v4259 = vpop.f32.mrb[0].mxu0
    %v4260 = vadd.f32 %v4155, %v4259
    %4261 = vdwg.mxu0
    %v4262 = vand.u32 %v32, 4294901760
    %4263 = vmatprep.subr.mxu0 %v4262
    %v4264 = vand.u32 %v31, 4294901760
    %4265 = vmatpush1.msra.mxu0 %v4264
    %v4266 = vand.u32 %v34, 4294901760
    %4267 = vmatprep.subr.mxu0 %v4266
    %v4268 = vand.u32 %v33, 4294901760
    %4269 = vmatpush1.msra.mxu0 %v4268
    %v4270 = vand.u32 %v36, 4294901760
    %4271 = vmatprep.subr.mxu0 %v4270
    %v4272 = vand.u32 %v35, 4294901760
    %4273 = vmatpush1.msra.mxu0 %v4272
    %v4274 = vand.u32 %v38, 4294901760
    %4275 = vmatprep.subr.mxu0 %v4274
    %v4276 = vand.u32 %v37, 4294901760
    %4277 = vmatpush1.msra.mxu0 %v4276
    %v4278 = vand.u32 %v40, 4294901760
    %4279 = vmatprep.subr.mxu0 %v4278
    %v4280 = vand.u32 %v39, 4294901760
    %4281 = vmatpush1.msra.mxu0 %v4280
    %v4282 = vand.u32 %v42, 4294901760
    %4283 = vmatprep.subr.mxu0 %v4282
    %v4284 = vand.u32 %v41, 4294901760
    %4285 = vmatpush1.msra.mxu0 %v4284
    %v4286 = vand.u32 %v44, 4294901760
    %4287 = vmatprep.subr.mxu0 %v4286
    %v4288 = vand.u32 %v43, 4294901760
    %4289 = vmatpush1.msra.mxu0 %v4288
    %v4290 = vand.u32 %v46, 4294901760
    %4291 = vmatprep.subr.mxu0 %v4290
    %v4292 = vand.u32 %v45, 4294901760
    %4293 = vmatpush1.msra.mxu0 %v4292
    %4294 = vmatprep.subr.mxu0 0.0
    %4295 = vmatpush1.msra.mxu0 0.0
    %4296 = vmatprep.subr.mxu0 0.0
    %4297 = vmatpush1.msra.mxu0 0.0
    %4298 = vmatprep.subr.mxu0 0.0
    %4299 = vmatpush1.msra.mxu0 0.0
    %4300 = vmatprep.subr.mxu0 0.0
    %4301 = vmatpush1.msra.mxu0 0.0
    %4302 = vmatprep.subr.mxu0 0.0
    %4303 = vmatpush1.msra.mxu0 0.0
    %4304 = vmatprep.subr.mxu0 0.0
    %4305 = vmatpush1.msra.mxu0 0.0
    %4306 = vmatprep.subr.mxu0 0.0
    %4307 = vmatpush1.msra.mxu0 0.0
    %4308 = vmatprep.subr.mxu0 0.0
    %4309 = vmatpush1.msra.mxu0 0.0
    %4310 = vmatprep.subr.mxu0 0.0
    %4311 = vmatpush1.msra.mxu0 0.0
    %4312 = vmatprep.subr.mxu0 0.0
    %4313 = vmatpush1.msra.mxu0 0.0
    %4314 = vmatprep.subr.mxu0 0.0
    %4315 = vmatpush1.msra.mxu0 0.0
    %4316 = vmatprep.subr.mxu0 0.0
    %4317 = vmatpush1.msra.mxu0 0.0
    %4318 = vmatprep.subr.mxu0 0.0
    %4319 = vmatpush1.msra.mxu0 0.0
    %4320 = vmatprep.subr.mxu0 0.0
    %4321 = vmatpush1.msra.mxu0 0.0
    %4322 = vmatprep.subr.mxu0 0.0
    %4323 = vmatpush1.msra.mxu0 0.0
    %4324 = vmatprep.subr.mxu0 0.0
    %4325 = vmatpush1.msra.mxu0 0.0
    %4326 = vmatprep.subr.mxu0 0.0
    %4327 = vmatpush1.msra.mxu0 0.0
    %4328 = vmatprep.subr.mxu0 0.0
    %4329 = vmatpush1.msra.mxu0 0.0
    %4330 = vmatprep.subr.mxu0 0.0
    %4331 = vmatpush1.msra.mxu0 0.0
    %4332 = vmatprep.subr.mxu0 0.0
    %4333 = vmatpush1.msra.mxu0 0.0
    %4334 = vmatprep.subr.mxu0 0.0
    %4335 = vmatpush1.msra.mxu0 0.0
    %4336 = vmatprep.subr.mxu0 0.0
    %4337 = vmatpush1.msra.mxu0 0.0
    %4338 = vmatprep.subr.mxu0 0.0
    %4339 = vmatpush1.msra.mxu0 0.0
    %4340 = vmatprep.subr.mxu0 0.0
    %4341 = vmatpush1.msra.mxu0 0.0
    %4342 = vmatprep.mubr.f32.mxu0 0.0
    %v4343 = vand.u32 %v3911, 4294901760
    %v4344 = vsub.f32 %v3911, %v4343
    %v4345 = vand.u32 %v4344, 4294901760
    %4346 = vmatmul.mubr.f32.gmra.mrb[0].mxu0 %v4345
    %v4347 = vpop.f32.mrb[0].mxu0
    %v4348 = vadd.f32 %v4258, %v4347
    %v4349 = vpop.f32.mrb[0].mxu0
    %v4350 = vadd.f32 %v4260, %v4349
    %4351 = vdwg.mxu0
    %v4352 = vand.u32 %v32, 4294901760
    %v4353 = vsub.f32 %v32, %v4352
    %v4354 = vand.u32 %v4353, 4294901760
    %4355 = vmatprep.subr.mxu0 %v4354
    %v4356 = vand.u32 %v31, 4294901760
    %v4357 = vsub.f32 %v31, %v4356
    %v4358 = vand.u32 %v4357, 4294901760
    %4359 = vmatpush1.msra.mxu0 %v4358
    %v4360 = vand.u32 %v34, 4294901760
    %v4361 = vsub.f32 %v34, %v4360
    %v4362 = vand.u32 %v4361, 4294901760
    %4363 = vmatprep.subr.mxu0 %v4362
    %v4364 = vand.u32 %v33, 4294901760
    %v4365 = vsub.f32 %v33, %v4364
    %v4366 = vand.u32 %v4365, 4294901760
    %4367 = vmatpush1.msra.mxu0 %v4366
    %v4368 = vand.u32 %v36, 4294901760
    %v4369 = vsub.f32 %v36, %v4368
    %v4370 = vand.u32 %v4369, 4294901760
    %4371 = vmatprep.subr.mxu0 %v4370
    %v4372 = vand.u32 %v35, 4294901760
    %v4373 = vsub.f32 %v35, %v4372
    %v4374 = vand.u32 %v4373, 4294901760
    %4375 = vmatpush1.msra.mxu0 %v4374
    %v4376 = vand.u32 %v38, 4294901760
    %v4377 = vsub.f32 %v38, %v4376
    %v4378 = vand.u32 %v4377, 4294901760
    %4379 = vmatprep.subr.mxu0 %v4378
    %v4380 = vand.u32 %v37, 4294901760
    %v4381 = vsub.f32 %v37, %v4380
    %v4382 = vand.u32 %v4381, 4294901760
    %4383 = vmatpush1.msra.mxu0 %v4382
    %v4384 = vand.u32 %v40, 4294901760
    %v4385 = vsub.f32 %v40, %v4384
    %v4386 = vand.u32 %v4385, 4294901760
    %4387 = vmatprep.subr.mxu0 %v4386
    %v4388 = vand.u32 %v39, 4294901760
    %v4389 = vsub.f32 %v39, %v4388
    %v4390 = vand.u32 %v4389, 4294901760
    %4391 = vmatpush1.msra.mxu0 %v4390
    %v4392 = vand.u32 %v42, 4294901760
    %v4393 = vsub.f32 %v42, %v4392
    %v4394 = vand.u32 %v4393, 4294901760
    %4395 = vmatprep.subr.mxu0 %v4394
    %v4396 = vand.u32 %v41, 4294901760
    %v4397 = vsub.f32 %v41, %v4396
    %v4398 = vand.u32 %v4397, 4294901760
    %4399 = vmatpush1.msra.mxu0 %v4398
    %v4400 = vand.u32 %v44, 4294901760
    %v4401 = vsub.f32 %v44, %v4400
    %v4402 = vand.u32 %v4401, 4294901760
    %4403 = vmatprep.subr.mxu0 %v4402
    %v4404 = vand.u32 %v43, 4294901760
    %v4405 = vsub.f32 %v43, %v4404
    %v4406 = vand.u32 %v4405, 4294901760
    %4407 = vmatpush1.msra.mxu0 %v4406
    %v4408 = vand.u32 %v46, 4294901760
    %v4409 = vsub.f32 %v46, %v4408
    %v4410 = vand.u32 %v4409, 4294901760
    %4411 = vmatprep.subr.mxu0 %v4410
    %v4412 = vand.u32 %v45, 4294901760
    %v4413 = vsub.f32 %v45, %v4412
    %v4414 = vand.u32 %v4413, 4294901760
    %4415 = vmatpush1.msra.mxu0 %v4414
    %4416 = vmatprep.subr.mxu0 0.0
    %4417 = vmatpush1.msra.mxu0 0.0
    %4418 = vmatprep.subr.mxu0 0.0
    %4419 = vmatpush1.msra.mxu0 0.0
    %4420 = vmatprep.subr.mxu0 0.0
    %4421 = vmatpush1.msra.mxu0 0.0
    %4422 = vmatprep.subr.mxu0 0.0
    %4423 = vmatpush1.msra.mxu0 0.0
    %4424 = vmatprep.subr.mxu0 0.0
    %4425 = vmatpush1.msra.mxu0 0.0
    %4426 = vmatprep.subr.mxu0 0.0
    %4427 = vmatpush1.msra.mxu0 0.0
    %4428 = vmatprep.subr.mxu0 0.0
    %4429 = vmatpush1.msra.mxu0 0.0
    %4430 = vmatprep.subr.mxu0 0.0
    %4431 = vmatpush1.msra.mxu0 0.0
    %4432 = vmatprep.subr.mxu0 0.0
    %4433 = vmatpush1.msra.mxu0 0.0
    %4434 = vmatprep.subr.mxu0 0.0
    %4435 = vmatpush1.msra.mxu0 0.0
    %4436 = vmatprep.subr.mxu0 0.0
    %4437 = vmatpush1.msra.mxu0 0.0
    %4438 = vmatprep.subr.mxu0 0.0
    %4439 = vmatpush1.msra.mxu0 0.0
    %4440 = vmatprep.subr.mxu0 0.0
    %4441 = vmatpush1.msra.mxu0 0.0
    %4442 = vmatprep.subr.mxu0 0.0
    %4443 = vmatpush1.msra.mxu0 0.0
    %4444 = vmatprep.subr.mxu0 0.0
    %4445 = vmatpush1.msra.mxu0 0.0
    %4446 = vmatprep.subr.mxu0 0.0
    %4447 = vmatpush1.msra.mxu0 0.0
    %4448 = vmatprep.subr.mxu0 0.0
    %4449 = vmatpush1.msra.mxu0 0.0
    %4450 = vmatprep.subr.mxu0 0.0
    %4451 = vmatpush1.msra.mxu0 0.0
    %4452 = vmatprep.subr.mxu0 0.0
    %4453 = vmatpush1.msra.mxu0 0.0
    %4454 = vmatprep.subr.mxu0 0.0
    %4455 = vmatpush1.msra.mxu0 0.0
    %4456 = vmatprep.subr.mxu0 0.0
    %4457 = vmatpush1.msra.mxu0 0.0
    %4458 = vmatprep.subr.mxu0 0.0
    %4459 = vmatpush1.msra.mxu0 0.0
    %4460 = vmatprep.subr.mxu0 0.0
    %4461 = vmatpush1.msra.mxu0 0.0
    %4462 = vmatprep.subr.mxu0 0.0
    %4463 = vmatpush1.msra.mxu0 0.0
    %4464 = vmatprep.mubr.f32.mxu0 0.0
    %v4465 = vand.u32 %v3911, 4294901760
    %4466 = vmatmul.mubr.f32.gmra.mrb[0].mxu0 %v4465
    %v4467 = vpop.f32.mrb[0].mxu0
    %v4468 = vadd.f32 %v4348, %v4467
    %v4469 = vpop.f32.mrb[0].mxu0
    %v4470 = vadd.f32 %v4350, %v4469
    %4471 = vdwg.mxu0
    %v4472 = vand.u32 %v32, 4294901760
    %4473 = vmatprep.subr.mxu0 %v4472
    %v4474 = vand.u32 %v31, 4294901760
    %4475 = vmatpush1.msra.mxu0 %v4474
    %v4476 = vand.u32 %v34, 4294901760
    %4477 = vmatprep.subr.mxu0 %v4476
    %v4478 = vand.u32 %v33, 4294901760
    %4479 = vmatpush1.msra.mxu0 %v4478
    %v4480 = vand.u32 %v36, 4294901760
    %4481 = vmatprep.subr.mxu0 %v4480
    %v4482 = vand.u32 %v35, 4294901760
    %4483 = vmatpush1.msra.mxu0 %v4482
    %v4484 = vand.u32 %v38, 4294901760
    %4485 = vmatprep.subr.mxu0 %v4484
    %v4486 = vand.u32 %v37, 4294901760
    %4487 = vmatpush1.msra.mxu0 %v4486
    %v4488 = vand.u32 %v40, 4294901760
    %4489 = vmatprep.subr.mxu0 %v4488
    %v4490 = vand.u32 %v39, 4294901760
    %4491 = vmatpush1.msra.mxu0 %v4490
    %v4492 = vand.u32 %v42, 4294901760
    %4493 = vmatprep.subr.mxu0 %v4492
    %v4494 = vand.u32 %v41, 4294901760
    %4495 = vmatpush1.msra.mxu0 %v4494
    %v4496 = vand.u32 %v44, 4294901760
    %4497 = vmatprep.subr.mxu0 %v4496
    %v4498 = vand.u32 %v43, 4294901760
    %4499 = vmatpush1.msra.mxu0 %v4498
    %v4500 = vand.u32 %v46, 4294901760
    %4501 = vmatprep.subr.mxu0 %v4500
    %v4502 = vand.u32 %v45, 4294901760
    %4503 = vmatpush1.msra.mxu0 %v4502
    %4504 = vmatprep.subr.mxu0 0.0
    %4505 = vmatpush1.msra.mxu0 0.0
    %4506 = vmatprep.subr.mxu0 0.0
    %4507 = vmatpush1.msra.mxu0 0.0
    %4508 = vmatprep.subr.mxu0 0.0
    %4509 = vmatpush1.msra.mxu0 0.0
    %4510 = vmatprep.subr.mxu0 0.0
    %4511 = vmatpush1.msra.mxu0 0.0
    %4512 = vmatprep.subr.mxu0 0.0
    %4513 = vmatpush1.msra.mxu0 0.0
    %4514 = vmatprep.subr.mxu0 0.0
    %4515 = vmatpush1.msra.mxu0 0.0
    %4516 = vmatprep.subr.mxu0 0.0
    %4517 = vmatpush1.msra.mxu0 0.0
    %4518 = vmatprep.subr.mxu0 0.0
    %4519 = vmatpush1.msra.mxu0 0.0
    %4520 = vmatprep.subr.mxu0 0.0
    %4521 = vmatpush1.msra.mxu0 0.0
    %4522 = vmatprep.subr.mxu0 0.0
    %4523 = vmatpush1.msra.mxu0 0.0
    %4524 = vmatprep.subr.mxu0 0.0
    %4525 = vmatpush1.msra.mxu0 0.0
    %4526 = vmatprep.subr.mxu0 0.0
    %4527 = vmatpush1.msra.mxu0 0.0
    %4528 = vmatprep.subr.mxu0 0.0
    %4529 = vmatpush1.msra.mxu0 0.0
    %4530 = vmatprep.subr.mxu0 0.0
    %4531 = vmatpush1.msra.mxu0 0.0
    %4532 = vmatprep.subr.mxu0 0.0
    %4533 = vmatpush1.msra.mxu0 0.0
    %4534 = vmatprep.subr.mxu0 0.0
    %4535 = vmatpush1.msra.mxu0 0.0
    %4536 = vmatprep.subr.mxu0 0.0
    %4537 = vmatpush1.msra.mxu0 0.0
    %4538 = vmatprep.subr.mxu0 0.0
    %4539 = vmatpush1.msra.mxu0 0.0
    %4540 = vmatprep.subr.mxu0 0.0
    %4541 = vmatpush1.msra.mxu0 0.0
    %4542 = vmatprep.subr.mxu0 0.0
    %4543 = vmatpush1.msra.mxu0 0.0
    %4544 = vmatprep.subr.mxu0 0.0
    %4545 = vmatpush1.msra.mxu0 0.0
    %4546 = vmatprep.subr.mxu0 0.0
    %4547 = vmatpush1.msra.mxu0 0.0
    %4548 = vmatprep.subr.mxu0 0.0
    %4549 = vmatpush1.msra.mxu0 0.0
    %4550 = vmatprep.subr.mxu0 0.0
    %4551 = vmatpush1.msra.mxu0 0.0
    %4552 = vmatprep.mubr.f32.mxu0 0.0
    %v4553 = vand.u32 %v3911, 4294901760
    %4554 = vmatmul.mubr.f32.gmra.mrb[0].mxu0 %v4553
    %v4555 = vpop.f32.mrb[0].mxu0
    %v4556 = vadd.f32 %v4468, %v4555
    %v4557 = vpop.f32.mrb[0].mxu0
    %v4558 = vadd.f32 %v4470, %v4557
    %4559 = vdwg.mxu0
    %v4560 = vadd.f32 %v4558, %v53
    %v4561 = vxor.u32 %v4560, 2147483648
    %v4562 = vmul.f32 %v4561, 1.442695
    %v4563 = vpow.pop %v4562
    %v4564 = vadd.f32 %v4563, 1.0
    %v4565 = vrcp.pop %v4564
    %v4566 = vmul.f32 1.0, %v4565
    %v4567 = vtanh.pop %v4560
    %v4568 = vmul.f32 %v4566, %v3861
    %4570 = vrot.lane.b32.xlu0 %v4567, 64
    %v4571 = vpop.permute.xlu0 %4570
    %v4573 = vmul.f32 %v4566, %v4571
    %4575 = vrot.lane.b32.xlu0 %v4573, 32
    %v4576 = vpop.permute.xlu0 %4575
    %v4578 = vadd.f32 %v4568, %v4576
    %v4579 = vtanh.pop %v4578
    %4581 = vrot.lane.b32.xlu0 %v4579, 64
    %v4582 = vpop.permute.xlu0 %4581
    %v4584 = vmul.f32 %v4566, %v4582
    %v4586 = vrot.slane %v4556, 3
    %v4588 = vadd.f32 %v503, %v4586
    %v4589 = vxor.u32 %v4588, 2147483648
    %v4590 = vmul.f32 %v4589, 1.442695
    %v4591 = vpow.pop %v4590
    %v4592 = vadd.f32 %v4591, 1.0
    %v4593 = vrcp.pop %v4592
    %v4594 = vmul.f32 1.0, %v4593
    %v4595 = vtanh.pop %v4588
    %v4597 = vrot.slane %v3892, 7
    %v4599 = vmul.f32 %v4594, %v4597
    %4601 = vrot.lane.b32.xlu0 %v4595, 64
    %v4602 = vpop.permute.xlu0 %4601
    %v4604 = vmul.f32 %v4594, %v4602
    %4606 = vrot.lane.b32.xlu0 %v4604, 32
    %v4607 = vpop.permute.xlu0 %4606
    %v4609 = vadd.f32 %v4599, %v4607
    %v4610 = vtanh.pop %v4609
    %4612 = vrot.lane.b32.xlu0 %v4610, 64
    %v4613 = vpop.permute.xlu0 %4612
    %v4615 = vmul.f32 %v4594, %v4613
    %4617 = vrot.lane.b32.xlu0 %v4615, 32
    %v4618 = vpop.permute.xlu0 %4617
    %v4621 = vrot.slane %v4584, 3
    %4622 = vrot.lane.b32.xlu0 %v4621, 64
    %v4623 = vpop.permute.xlu0 %4622
    %v4625 = vsel %vm510, %v4618, %v4623
    %v4627 = vrot.slane %v4625, 5
    %v4628 = vsel %vm1037, %v4627, 0
    %v4630 = vand.u32 %v32, 4294901760
    %4631 = vmatprep.subr.mxu0 %v4630
    %v4632 = vand.u32 %v31, 4294901760
    %4633 = vmatpush1.msra.mxu0 %v4632
    %v4634 = vand.u32 %v34, 4294901760
    %4635 = vmatprep.subr.mxu0 %v4634
    %v4636 = vand.u32 %v33, 4294901760
    %4637 = vmatpush1.msra.mxu0 %v4636
    %v4638 = vand.u32 %v36, 4294901760
    %4639 = vmatprep.subr.mxu0 %v4638
    %v4640 = vand.u32 %v35, 4294901760
    %4641 = vmatpush1.msra.mxu0 %v4640
    %v4642 = vand.u32 %v38, 4294901760
    %4643 = vmatprep.subr.mxu0 %v4642
    %v4644 = vand.u32 %v37, 4294901760
    %4645 = vmatpush1.msra.mxu0 %v4644
    %v4646 = vand.u32 %v40, 4294901760
    %4647 = vmatprep.subr.mxu0 %v4646
    %v4648 = vand.u32 %v39, 4294901760
    %4649 = vmatpush1.msra.mxu0 %v4648
    %v4650 = vand.u32 %v42, 4294901760
    %4651 = vmatprep.subr.mxu0 %v4650
    %v4652 = vand.u32 %v41, 4294901760
    %4653 = vmatpush1.msra.mxu0 %v4652
    %v4654 = vand.u32 %v44, 4294901760
    %4655 = vmatprep.subr.mxu0 %v4654
    %v4656 = vand.u32 %v43, 4294901760
    %4657 = vmatpush1.msra.mxu0 %v4656
    %v4658 = vand.u32 %v46, 4294901760
    %4659 = vmatprep.subr.mxu0 %v4658
    %v4660 = vand.u32 %v45, 4294901760
    %4661 = vmatpush1.msra.mxu0 %v4660
    %4662 = vmatprep.subr.mxu0 0.0
    %4663 = vmatpush1.msra.mxu0 0.0
    %4664 = vmatprep.subr.mxu0 0.0
    %4665 = vmatpush1.msra.mxu0 0.0
    %4666 = vmatprep.subr.mxu0 0.0
    %4667 = vmatpush1.msra.mxu0 0.0
    %4668 = vmatprep.subr.mxu0 0.0
    %4669 = vmatpush1.msra.mxu0 0.0
    %4670 = vmatprep.subr.mxu0 0.0
    %4671 = vmatpush1.msra.mxu0 0.0
    %4672 = vmatprep.subr.mxu0 0.0
    %4673 = vmatpush1.msra.mxu0 0.0
    %4674 = vmatprep.subr.mxu0 0.0
    %4675 = vmatpush1.msra.mxu0 0.0
    %4676 = vmatprep.subr.mxu0 0.0
    %4677 = vmatpush1.msra.mxu0 0.0
    %4678 = vmatprep.subr.mxu0 0.0
    %4679 = vmatpush1.msra.mxu0 0.0
    %4680 = vmatprep.subr.mxu0 0.0
    %4681 = vmatpush1.msra.mxu0 0.0
    %4682 = vmatprep.subr.mxu0 0.0
    %4683 = vmatpush1.msra.mxu0 0.0
    %4684 = vmatprep.subr.mxu0 0.0
    %4685 = vmatpush1.msra.mxu0 0.0
    %4686 = vmatprep.subr.mxu0 0.0
    %4687 = vmatpush1.msra.mxu0 0.0
    %4688 = vmatprep.subr.mxu0 0.0
    %4689 = vmatpush1.msra.mxu0 0.0
    %4690 = vmatprep.subr.mxu0 0.0
    %4691 = vmatpush1.msra.mxu0 0.0
    %4692 = vmatprep.subr.mxu0 0.0
    %4693 = vmatpush1.msra.mxu0 0.0
    %4694 = vmatprep.subr.mxu0 0.0
    %4695 = vmatpush1.msra.mxu0 0.0
    %4696 = vmatprep.subr.mxu0 0.0
    %4697 = vmatpush1.msra.mxu0 0.0
    %4698 = vmatprep.subr.mxu0 0.0
    %4699 = vmatpush1.msra.mxu0 0.0
    %4700 = vmatprep.subr.mxu0 0.0
    %4701 = vmatpush1.msra.mxu0 0.0
    %4702 = vmatprep.subr.mxu0 0.0
    %4703 = vmatpush1.msra.mxu0 0.0
    %4704 = vmatprep.subr.mxu0 0.0
    %4705 = vmatpush1.msra.mxu0 0.0
    %4706 = vmatprep.subr.mxu0 0.0
    %4707 = vmatpush1.msra.mxu0 0.0
    %4708 = vmatprep.subr.mxu0 0.0
    %4709 = vmatpush1.msra.mxu0 0.0
    %4710 = vmatprep.mubr.f32.mxu0 0.0
    %v4711 = vand.u32 %v4628, 4294901760
    %v4712 = vsub.f32 %v4628, %v4711
    %v4713 = vand.u32 %v4712, 4294901760
    %v4714 = vsub.f32 %v4712, %v4713
    %v4715 = vand.u32 %v4714, 4294901760
    %4716 = vmatmul.mubr.f32.gmra.mrb[0].mxu0 %v4715
    %v4717 = vpop.f32.mrb[0].mxu0
    %v4718 = vadd.f32 0.0, %v4717
    %v4719 = vpop.f32.mrb[0].mxu0
    %v4720 = vadd.f32 0.0, %v4719
    %4721 = vdwg.mxu0
    %v4722 = vand.u32 %v32, 4294901760
    %v4723 = vsub.f32 %v32, %v4722
    %v4724 = vand.u32 %v4723, 4294901760
    %v4725 = vsub.f32 %v4723, %v4724
    %v4726 = vand.u32 %v4725, 4294901760
    %4727 = vmatprep.subr.mxu0 %v4726
    %v4728 = vand.u32 %v31, 4294901760
    %v4729 = vsub.f32 %v31, %v4728
    %v4730 = vand.u32 %v4729, 4294901760
    %v4731 = vsub.f32 %v4729, %v4730
    %v4732 = vand.u32 %v4731, 4294901760
    %4733 = vmatpush1.msra.mxu0 %v4732
    %v4734 = vand.u32 %v34, 4294901760
    %v4735 = vsub.f32 %v34, %v4734
    %v4736 = vand.u32 %v4735, 4294901760
    %v4737 = vsub.f32 %v4735, %v4736
    %v4738 = vand.u32 %v4737, 4294901760
    %4739 = vmatprep.subr.mxu0 %v4738
    %v4740 = vand.u32 %v33, 4294901760
    %v4741 = vsub.f32 %v33, %v4740
    %v4742 = vand.u32 %v4741, 4294901760
    %v4743 = vsub.f32 %v4741, %v4742
    %v4744 = vand.u32 %v4743, 4294901760
    %4745 = vmatpush1.msra.mxu0 %v4744
    %v4746 = vand.u32 %v36, 4294901760
    %v4747 = vsub.f32 %v36, %v4746
    %v4748 = vand.u32 %v4747, 4294901760
    %v4749 = vsub.f32 %v4747, %v4748
    %v4750 = vand.u32 %v4749, 4294901760
    %4751 = vmatprep.subr.mxu0 %v4750
    %v4752 = vand.u32 %v35, 4294901760
    %v4753 = vsub.f32 %v35, %v4752
    %v4754 = vand.u32 %v4753, 4294901760
    %v4755 = vsub.f32 %v4753, %v4754
    %v4756 = vand.u32 %v4755, 4294901760
    %4757 = vmatpush1.msra.mxu0 %v4756
    %v4758 = vand.u32 %v38, 4294901760
    %v4759 = vsub.f32 %v38, %v4758
    %v4760 = vand.u32 %v4759, 4294901760
    %v4761 = vsub.f32 %v4759, %v4760
    %v4762 = vand.u32 %v4761, 4294901760
    %4763 = vmatprep.subr.mxu0 %v4762
    %v4764 = vand.u32 %v37, 4294901760
    %v4765 = vsub.f32 %v37, %v4764
    %v4766 = vand.u32 %v4765, 4294901760
    %v4767 = vsub.f32 %v4765, %v4766
    %v4768 = vand.u32 %v4767, 4294901760
    %4769 = vmatpush1.msra.mxu0 %v4768
    %v4770 = vand.u32 %v40, 4294901760
    %v4771 = vsub.f32 %v40, %v4770
    %v4772 = vand.u32 %v4771, 4294901760
    %v4773 = vsub.f32 %v4771, %v4772
    %v4774 = vand.u32 %v4773, 4294901760
    %4775 = vmatprep.subr.mxu0 %v4774
    %v4776 = vand.u32 %v39, 4294901760
    %v4777 = vsub.f32 %v39, %v4776
    %v4778 = vand.u32 %v4777, 4294901760
    %v4779 = vsub.f32 %v4777, %v4778
    %v4780 = vand.u32 %v4779, 4294901760
    %4781 = vmatpush1.msra.mxu0 %v4780
    %v4782 = vand.u32 %v42, 4294901760
    %v4783 = vsub.f32 %v42, %v4782
    %v4784 = vand.u32 %v4783, 4294901760
    %v4785 = vsub.f32 %v4783, %v4784
    %v4786 = vand.u32 %v4785, 4294901760
    %4787 = vmatprep.subr.mxu0 %v4786
    %v4788 = vand.u32 %v41, 4294901760
    %v4789 = vsub.f32 %v41, %v4788
    %v4790 = vand.u32 %v4789, 4294901760
    %v4791 = vsub.f32 %v4789, %v4790
    %v4792 = vand.u32 %v4791, 4294901760
    %4793 = vmatpush1.msra.mxu0 %v4792
    %v4794 = vand.u32 %v44, 4294901760
    %v4795 = vsub.f32 %v44, %v4794
    %v4796 = vand.u32 %v4795, 4294901760
    %v4797 = vsub.f32 %v4795, %v4796
    %v4798 = vand.u32 %v4797, 4294901760
    %4799 = vmatprep.subr.mxu0 %v4798
    %v4800 = vand.u32 %v43, 4294901760
    %v4801 = vsub.f32 %v43, %v4800
    %v4802 = vand.u32 %v4801, 4294901760
    %v4803 = vsub.f32 %v4801, %v4802
    %v4804 = vand.u32 %v4803, 4294901760
    %4805 = vmatpush1.msra.mxu0 %v4804
    %v4806 = vand.u32 %v46, 4294901760
    %v4807 = vsub.f32 %v46, %v4806
    %v4808 = vand.u32 %v4807, 4294901760
    %v4809 = vsub.f32 %v4807, %v4808
    %v4810 = vand.u32 %v4809, 4294901760
    %4811 = vmatprep.subr.mxu0 %v4810
    %v4812 = vand.u32 %v45, 4294901760
    %v4813 = vsub.f32 %v45, %v4812
    %v4814 = vand.u32 %v4813, 4294901760
    %v4815 = vsub.f32 %v4813, %v4814
    %v4816 = vand.u32 %v4815, 4294901760
    %4817 = vmatpush1.msra.mxu0 %v4816
    %4818 = vmatprep.subr.mxu0 0.0
    %4819 = vmatpush1.msra.mxu0 0.0
    %4820 = vmatprep.subr.mxu0 0.0
    %4821 = vmatpush1.msra.mxu0 0.0
    %4822 = vmatprep.subr.mxu0 0.0
    %4823 = vmatpush1.msra.mxu0 0.0
    %4824 = vmatprep.subr.mxu0 0.0
    %4825 = vmatpush1.msra.mxu0 0.0
    %4826 = vmatprep.subr.mxu0 0.0
    %4827 = vmatpush1.msra.mxu0 0.0
    %4828 = vmatprep.subr.mxu0 0.0
    %4829 = vmatpush1.msra.mxu0 0.0
    %4830 = vmatprep.subr.mxu0 0.0
    %4831 = vmatpush1.msra.mxu0 0.0
    %4832 = vmatprep.subr.mxu0 0.0
    %4833 = vmatpush1.msra.mxu0 0.0
    %4834 = vmatprep.subr.mxu0 0.0
    %4835 = vmatpush1.msra.mxu0 0.0
    %4836 = vmatprep.subr.mxu0 0.0
    %4837 = vmatpush1.msra.mxu0 0.0
    %4838 = vmatprep.subr.mxu0 0.0
    %4839 = vmatpush1.msra.mxu0 0.0
    %4840 = vmatprep.subr.mxu0 0.0
    %4841 = vmatpush1.msra.mxu0 0.0
    %4842 = vmatprep.subr.mxu0 0.0
    %4843 = vmatpush1.msra.mxu0 0.0
    %4844 = vmatprep.subr.mxu0 0.0
    %4845 = vmatpush1.msra.mxu0 0.0
    %4846 = vmatprep.subr.mxu0 0.0
    %4847 = vmatpush1.msra.mxu0 0.0
    %4848 = vmatprep.subr.mxu0 0.0
    %4849 = vmatpush1.msra.mxu0 0.0
    %4850 = vmatprep.subr.mxu0 0.0
    %4851 = vmatpush1.msra.mxu0 0.0
    %4852 = vmatprep.subr.mxu0 0.0
    %4853 = vmatpush1.msra.mxu0 0.0
    %4854 = vmatprep.subr.mxu0 0.0
    %4855 = vmatpush1.msra.mxu0 0.0
    %4856 = vmatprep.subr.mxu0 0.0
    %4857 = vmatpush1.msra.mxu0 0.0
    %4858 = vmatprep.subr.mxu0 0.0
    %4859 = vmatpush1.msra.mxu0 0.0
    %4860 = vmatprep.subr.mxu0 0.0
    %4861 = vmatpush1.msra.mxu0 0.0
    %4862 = vmatprep.subr.mxu0 0.0
    %4863 = vmatpush1.msra.mxu0 0.0
    %4864 = vmatprep.subr.mxu0 0.0
    %4865 = vmatpush1.msra.mxu0 0.0
    %4866 = vmatprep.mubr.f32.mxu0 0.0
    %v4867 = vand.u32 %v4628, 4294901760
    %4868 = vmatmul.mubr.f32.gmra.mrb[0].mxu0 %v4867
    %v4869 = vpop.f32.mrb[0].mxu0
    %v4870 = vadd.f32 %v4718, %v4869
    %v4871 = vpop.f32.mrb[0].mxu0
    %v4872 = vadd.f32 %v4720, %v4871
    %4873 = vdwg.mxu0
    %v4874 = vand.u32 %v32, 4294901760
    %v4875 = vsub.f32 %v32, %v4874
    %4876 = vmatprep.subr.mxu0 %v4875
    %v4877 = vand.u32 %v31, 4294901760
    %v4878 = vsub.f32 %v31, %v4877
    %4879 = vmatpush1.msra.mxu0 %v4878
    %v4880 = vand.u32 %v34, 4294901760
    %v4881 = vsub.f32 %v34, %v4880
    %4882 = vmatprep.subr.mxu0 %v4881
    %v4883 = vand.u32 %v33, 4294901760
    %v4884 = vsub.f32 %v33, %v4883
    %4885 = vmatpush1.msra.mxu0 %v4884
    %v4886 = vand.u32 %v36, 4294901760
    %v4887 = vsub.f32 %v36, %v4886
    %4888 = vmatprep.subr.mxu0 %v4887
    %v4889 = vand.u32 %v35, 4294901760
    %v4890 = vsub.f32 %v35, %v4889
    %4891 = vmatpush1.msra.mxu0 %v4890
    %v4892 = vand.u32 %v38, 4294901760
    %v4893 = vsub.f32 %v38, %v4892
    %4894 = vmatprep.subr.mxu0 %v4893
    %v4895 = vand.u32 %v37, 4294901760
    %v4896 = vsub.f32 %v37, %v4895
    %4897 = vmatpush1.msra.mxu0 %v4896
    %v4898 = vand.u32 %v40, 4294901760
    %v4899 = vsub.f32 %v40, %v4898
    %4900 = vmatprep.subr.mxu0 %v4899
    %v4901 = vand.u32 %v39, 4294901760
    %v4902 = vsub.f32 %v39, %v4901
    %4903 = vmatpush1.msra.mxu0 %v4902
    %v4904 = vand.u32 %v42, 4294901760
    %v4905 = vsub.f32 %v42, %v4904
    %4906 = vmatprep.subr.mxu0 %v4905
    %v4907 = vand.u32 %v41, 4294901760
    %v4908 = vsub.f32 %v41, %v4907
    %4909 = vmatpush1.msra.mxu0 %v4908
    %v4910 = vand.u32 %v44, 4294901760
    %v4911 = vsub.f32 %v44, %v4910
    %4912 = vmatprep.subr.mxu0 %v4911
    %v4913 = vand.u32 %v43, 4294901760
    %v4914 = vsub.f32 %v43, %v4913
    %4915 = vmatpush1.msra.mxu0 %v4914
    %v4916 = vand.u32 %v46, 4294901760
    %v4917 = vsub.f32 %v46, %v4916
    %4918 = vmatprep.subr.mxu0 %v4917
    %v4919 = vand.u32 %v45, 4294901760
    %v4920 = vsub.f32 %v45, %v4919
    %4921 = vmatpush1.msra.mxu0 %v4920
    %4922 = vmatprep.subr.mxu0 0.0
    %4923 = vmatpush1.msra.mxu0 0.0
    %4924 = vmatprep.subr.mxu0 0.0
    %4925 = vmatpush1.msra.mxu0 0.0
    %4926 = vmatprep.subr.mxu0 0.0
    %4927 = vmatpush1.msra.mxu0 0.0
    %4928 = vmatprep.subr.mxu0 0.0
    %4929 = vmatpush1.msra.mxu0 0.0
    %4930 = vmatprep.subr.mxu0 0.0
    %4931 = vmatpush1.msra.mxu0 0.0
    %4932 = vmatprep.subr.mxu0 0.0
    %4933 = vmatpush1.msra.mxu0 0.0
    %4934 = vmatprep.subr.mxu0 0.0
    %4935 = vmatpush1.msra.mxu0 0.0
    %4936 = vmatprep.subr.mxu0 0.0
    %4937 = vmatpush1.msra.mxu0 0.0
    %4938 = vmatprep.subr.mxu0 0.0
    %4939 = vmatpush1.msra.mxu0 0.0
    %4940 = vmatprep.subr.mxu0 0.0
    %4941 = vmatpush1.msra.mxu0 0.0
    %4942 = vmatprep.subr.mxu0 0.0
    %4943 = vmatpush1.msra.mxu0 0.0
    %4944 = vmatprep.subr.mxu0 0.0
    %4945 = vmatpush1.msra.mxu0 0.0
    %4946 = vmatprep.subr.mxu0 0.0
    %4947 = vmatpush1.msra.mxu0 0.0
    %4948 = vmatprep.subr.mxu0 0.0
    %4949 = vmatpush1.msra.mxu0 0.0
    %4950 = vmatprep.subr.mxu0 0.0
    %4951 = vmatpush1.msra.mxu0 0.0
    %4952 = vmatprep.subr.mxu0 0.0
    %4953 = vmatpush1.msra.mxu0 0.0
    %4954 = vmatprep.subr.mxu0 0.0
    %4955 = vmatpush1.msra.mxu0 0.0
    %4956 = vmatprep.subr.mxu0 0.0
    %4957 = vmatpush1.msra.mxu0 0.0
    %4958 = vmatprep.subr.mxu0 0.0
    %4959 = vmatpush1.msra.mxu0 0.0
    %4960 = vmatprep.subr.mxu0 0.0
    %4961 = vmatpush1.msra.mxu0 0.0
    %4962 = vmatprep.subr.mxu0 0.0
    %4963 = vmatpush1.msra.mxu0 0.0
    %4964 = vmatprep.subr.mxu0 0.0
    %4965 = vmatpush1.msra.mxu0 0.0
    %4966 = vmatprep.subr.mxu0 0.0
    %4967 = vmatpush1.msra.mxu0 0.0
    %4968 = vmatprep.subr.mxu0 0.0
    %4969 = vmatpush1.msra.mxu0 0.0
    %4970 = vmatprep.mubr.f32.mxu0 0.0
    %v4971 = vand.u32 %v4628, 4294901760
    %v4972 = vsub.f32 %v4628, %v4971
    %4973 = vmatmul.mubr.f32.gmra.mrb[0].mxu0 %v4972
    %v4974 = vpop.f32.mrb[0].mxu0
    %v4975 = vadd.f32 %v4870, %v4974
    %v4976 = vpop.f32.mrb[0].mxu0
    %v4977 = vadd.f32 %v4872, %v4976
    %4978 = vdwg.mxu0
    %v4979 = vand.u32 %v32, 4294901760
    %4980 = vmatprep.subr.mxu0 %v4979
    %v4981 = vand.u32 %v31, 4294901760
    %4982 = vmatpush1.msra.mxu0 %v4981
    %v4983 = vand.u32 %v34, 4294901760
    %4984 = vmatprep.subr.mxu0 %v4983
    %v4985 = vand.u32 %v33, 4294901760
    %4986 = vmatpush1.msra.mxu0 %v4985
    %v4987 = vand.u32 %v36, 4294901760
    %4988 = vmatprep.subr.mxu0 %v4987
    %v4989 = vand.u32 %v35, 4294901760
    %4990 = vmatpush1.msra.mxu0 %v4989
    %v4991 = vand.u32 %v38, 4294901760
    %4992 = vmatprep.subr.mxu0 %v4991
    %v4993 = vand.u32 %v37, 4294901760
    %4994 = vmatpush1.msra.mxu0 %v4993
    %v4995 = vand.u32 %v40, 4294901760
    %4996 = vmatprep.subr.mxu0 %v4995
    %v4997 = vand.u32 %v39, 4294901760
    %4998 = vmatpush1.msra.mxu0 %v4997
    %v4999 = vand.u32 %v42, 4294901760
    %5000 = vmatprep.subr.mxu0 %v4999
    %v5001 = vand.u32 %v41, 4294901760
    %5002 = vmatpush1.msra.mxu0 %v5001
    %v5003 = vand.u32 %v44, 4294901760
    %5004 = vmatprep.subr.mxu0 %v5003
    %v5005 = vand.u32 %v43, 4294901760
    %5006 = vmatpush1.msra.mxu0 %v5005
    %v5007 = vand.u32 %v46, 4294901760
    %5008 = vmatprep.subr.mxu0 %v5007
    %v5009 = vand.u32 %v45, 4294901760
    %5010 = vmatpush1.msra.mxu0 %v5009
    %5011 = vmatprep.subr.mxu0 0.0
    %5012 = vmatpush1.msra.mxu0 0.0
    %5013 = vmatprep.subr.mxu0 0.0
    %5014 = vmatpush1.msra.mxu0 0.0
    %5015 = vmatprep.subr.mxu0 0.0
    %5016 = vmatpush1.msra.mxu0 0.0
    %5017 = vmatprep.subr.mxu0 0.0
    %5018 = vmatpush1.msra.mxu0 0.0
    %5019 = vmatprep.subr.mxu0 0.0
    %5020 = vmatpush1.msra.mxu0 0.0
    %5021 = vmatprep.subr.mxu0 0.0
    %5022 = vmatpush1.msra.mxu0 0.0
    %5023 = vmatprep.subr.mxu0 0.0
    %5024 = vmatpush1.msra.mxu0 0.0
    %5025 = vmatprep.subr.mxu0 0.0
    %5026 = vmatpush1.msra.mxu0 0.0
    %5027 = vmatprep.subr.mxu0 0.0
    %5028 = vmatpush1.msra.mxu0 0.0
    %5029 = vmatprep.subr.mxu0 0.0
    %5030 = vmatpush1.msra.mxu0 0.0
    %5031 = vmatprep.subr.mxu0 0.0
    %5032 = vmatpush1.msra.mxu0 0.0
    %5033 = vmatprep.subr.mxu0 0.0
    %5034 = vmatpush1.msra.mxu0 0.0
    %5035 = vmatprep.subr.mxu0 0.0
    %5036 = vmatpush1.msra.mxu0 0.0
    %5037 = vmatprep.subr.mxu0 0.0
    %5038 = vmatpush1.msra.mxu0 0.0
    %5039 = vmatprep.subr.mxu0 0.0
    %5040 = vmatpush1.msra.mxu0 0.0
    %5041 = vmatprep.subr.mxu0 0.0
    %5042 = vmatpush1.msra.mxu0 0.0
    %5043 = vmatprep.subr.mxu0 0.0
    %5044 = vmatpush1.msra.mxu0 0.0
    %5045 = vmatprep.subr.mxu0 0.0
    %5046 = vmatpush1.msra.mxu0 0.0
    %5047 = vmatprep.subr.mxu0 0.0
    %5048 = vmatpush1.msra.mxu0 0.0
    %5049 = vmatprep.subr.mxu0 0.0
    %5050 = vmatpush1.msra.mxu0 0.0
    %5051 = vmatprep.subr.mxu0 0.0
    %5052 = vmatpush1.msra.mxu0 0.0
    %5053 = vmatprep.subr.mxu0 0.0
    %5054 = vmatpush1.msra.mxu0 0.0
    %5055 = vmatprep.subr.mxu0 0.0
    %5056 = vmatpush1.msra.mxu0 0.0
    %5057 = vmatprep.subr.mxu0 0.0
    %5058 = vmatpush1.msra.mxu0 0.0
    %5059 = vmatprep.mubr.f32.mxu0 0.0
    %v5060 = vand.u32 %v4628, 4294901760
    %v5061 = vsub.f32 %v4628, %v5060
    %v5062 = vand.u32 %v5061, 4294901760
    %5063 = vmatmul.mubr.f32.gmra.mrb[0].mxu0 %v5062
    %v5064 = vpop.f32.mrb[0].mxu0
    %v5065 = vadd.f32 %v4975, %v5064
    %v5066 = vpop.f32.mrb[0].mxu0
    %v5067 = vadd.f32 %v4977, %v5066
    %5068 = vdwg.mxu0
    %v5069 = vand.u32 %v32, 4294901760
    %v5070 = vsub.f32 %v32, %v5069
    %v5071 = vand.u32 %v5070, 4294901760
    %5072 = vmatprep.subr.mxu0 %v5071
    %v5073 = vand.u32 %v31, 4294901760
    %v5074 = vsub.f32 %v31, %v5073
    %v5075 = vand.u32 %v5074, 4294901760
    %5076 = vmatpush1.msra.mxu0 %v5075
    %v5077 = vand.u32 %v34, 4294901760
    %v5078 = vsub.f32 %v34, %v5077
    %v5079 = vand.u32 %v5078, 4294901760
    %5080 = vmatprep.subr.mxu0 %v5079
    %v5081 = vand.u32 %v33, 4294901760
    %v5082 = vsub.f32 %v33, %v5081
    %v5083 = vand.u32 %v5082, 4294901760
    %5084 = vmatpush1.msra.mxu0 %v5083
    %v5085 = vand.u32 %v36, 4294901760
    %v5086 = vsub.f32 %v36, %v5085
    %v5087 = vand.u32 %v5086, 4294901760
    %5088 = vmatprep.subr.mxu0 %v5087
    %v5089 = vand.u32 %v35, 4294901760
    %v5090 = vsub.f32 %v35, %v5089
    %v5091 = vand.u32 %v5090, 4294901760
    %5092 = vmatpush1.msra.mxu0 %v5091
    %v5093 = vand.u32 %v38, 4294901760
    %v5094 = vsub.f32 %v38, %v5093
    %v5095 = vand.u32 %v5094, 4294901760
    %5096 = vmatprep.subr.mxu0 %v5095
    %v5097 = vand.u32 %v37, 4294901760
    %v5098 = vsub.f32 %v37, %v5097
    %v5099 = vand.u32 %v5098, 4294901760
    %5100 = vmatpush1.msra.mxu0 %v5099
    %v5101 = vand.u32 %v40, 4294901760
    %v5102 = vsub.f32 %v40, %v5101
    %v5103 = vand.u32 %v5102, 4294901760
    %5104 = vmatprep.subr.mxu0 %v5103
    %v5105 = vand.u32 %v39, 4294901760
    %v5106 = vsub.f32 %v39, %v5105
    %v5107 = vand.u32 %v5106, 4294901760
    %5108 = vmatpush1.msra.mxu0 %v5107
    %v5109 = vand.u32 %v42, 4294901760
    %v5110 = vsub.f32 %v42, %v5109
    %v5111 = vand.u32 %v5110, 4294901760
    %5112 = vmatprep.subr.mxu0 %v5111
    %v5113 = vand.u32 %v41, 4294901760
    %v5114 = vsub.f32 %v41, %v5113
    %v5115 = vand.u32 %v5114, 4294901760
    %5116 = vmatpush1.msra.mxu0 %v5115
    %v5117 = vand.u32 %v44, 4294901760
    %v5118 = vsub.f32 %v44, %v5117
    %v5119 = vand.u32 %v5118, 4294901760
    %5120 = vmatprep.subr.mxu0 %v5119
    %v5121 = vand.u32 %v43, 4294901760
    %v5122 = vsub.f32 %v43, %v5121
    %v5123 = vand.u32 %v5122, 4294901760
    %5124 = vmatpush1.msra.mxu0 %v5123
    %v5125 = vand.u32 %v46, 4294901760
    %v5126 = vsub.f32 %v46, %v5125
    %v5127 = vand.u32 %v5126, 4294901760
    %5128 = vmatprep.subr.mxu0 %v5127
    %v5129 = vand.u32 %v45, 4294901760
    %v5130 = vsub.f32 %v45, %v5129
    %v5131 = vand.u32 %v5130, 4294901760
    %5132 = vmatpush1.msra.mxu0 %v5131
    %5133 = vmatprep.subr.mxu0 0.0
    %5134 = vmatpush1.msra.mxu0 0.0
    %5135 = vmatprep.subr.mxu0 0.0
    %5136 = vmatpush1.msra.mxu0 0.0
    %5137 = vmatprep.subr.mxu0 0.0
    %5138 = vmatpush1.msra.mxu0 0.0
    %5139 = vmatprep.subr.mxu0 0.0
    %5140 = vmatpush1.msra.mxu0 0.0
    %5141 = vmatprep.subr.mxu0 0.0
    %5142 = vmatpush1.msra.mxu0 0.0
    %5143 = vmatprep.subr.mxu0 0.0
    %5144 = vmatpush1.msra.mxu0 0.0
    %5145 = vmatprep.subr.mxu0 0.0
    %5146 = vmatpush1.msra.mxu0 0.0
    %5147 = vmatprep.subr.mxu0 0.0
    %5148 = vmatpush1.msra.mxu0 0.0
    %5149 = vmatprep.subr.mxu0 0.0
    %5150 = vmatpush1.msra.mxu0 0.0
    %5151 = vmatprep.subr.mxu0 0.0
    %5152 = vmatpush1.msra.mxu0 0.0
    %5153 = vmatprep.subr.mxu0 0.0
    %5154 = vmatpush1.msra.mxu0 0.0
    %5155 = vmatprep.subr.mxu0 0.0
    %5156 = vmatpush1.msra.mxu0 0.0
    %5157 = vmatprep.subr.mxu0 0.0
    %5158 = vmatpush1.msra.mxu0 0.0
    %5159 = vmatprep.subr.mxu0 0.0
    %5160 = vmatpush1.msra.mxu0 0.0
    %5161 = vmatprep.subr.mxu0 0.0
    %5162 = vmatpush1.msra.mxu0 0.0
    %5163 = vmatprep.subr.mxu0 0.0
    %5164 = vmatpush1.msra.mxu0 0.0
    %5165 = vmatprep.subr.mxu0 0.0
    %5166 = vmatpush1.msra.mxu0 0.0
    %5167 = vmatprep.subr.mxu0 0.0
    %5168 = vmatpush1.msra.mxu0 0.0
    %5169 = vmatprep.subr.mxu0 0.0
    %5170 = vmatpush1.msra.mxu0 0.0
    %5171 = vmatprep.subr.mxu0 0.0
    %5172 = vmatpush1.msra.mxu0 0.0
    %5173 = vmatprep.subr.mxu0 0.0
    %5174 = vmatpush1.msra.mxu0 0.0
    %5175 = vmatprep.subr.mxu0 0.0
    %5176 = vmatpush1.msra.mxu0 0.0
    %5177 = vmatprep.subr.mxu0 0.0
    %5178 = vmatpush1.msra.mxu0 0.0
    %5179 = vmatprep.subr.mxu0 0.0
    %5180 = vmatpush1.msra.mxu0 0.0
    %5181 = vmatprep.mubr.f32.mxu0 0.0
    %v5182 = vand.u32 %v4628, 4294901760
    %5183 = vmatmul.mubr.f32.gmra.mrb[0].mxu0 %v5182
    %v5184 = vpop.f32.mrb[0].mxu0
    %v5185 = vadd.f32 %v5065, %v5184
    %v5186 = vpop.f32.mrb[0].mxu0
    %v5187 = vadd.f32 %v5067, %v5186
    %5188 = vdwg.mxu0
    %v5189 = vand.u32 %v32, 4294901760
    %5190 = vmatprep.subr.mxu0 %v5189
    %v5191 = vand.u32 %v31, 4294901760
    %5192 = vmatpush1.msra.mxu0 %v5191
    %v5193 = vand.u32 %v34, 4294901760
    %5194 = vmatprep.subr.mxu0 %v5193
    %v5195 = vand.u32 %v33, 4294901760
    %5196 = vmatpush1.msra.mxu0 %v5195
    %v5197 = vand.u32 %v36, 4294901760
    %5198 = vmatprep.subr.mxu0 %v5197
    %v5199 = vand.u32 %v35, 4294901760
    %5200 = vmatpush1.msra.mxu0 %v5199
    %v5201 = vand.u32 %v38, 4294901760
    %5202 = vmatprep.subr.mxu0 %v5201
    %v5203 = vand.u32 %v37, 4294901760
    %5204 = vmatpush1.msra.mxu0 %v5203
    %v5205 = vand.u32 %v40, 4294901760
    %5206 = vmatprep.subr.mxu0 %v5205
    %v5207 = vand.u32 %v39, 4294901760
    %5208 = vmatpush1.msra.mxu0 %v5207
    %v5209 = vand.u32 %v42, 4294901760
    %5210 = vmatprep.subr.mxu0 %v5209
    %v5211 = vand.u32 %v41, 4294901760
    %5212 = vmatpush1.msra.mxu0 %v5211
    %v5213 = vand.u32 %v44, 4294901760
    %5214 = vmatprep.subr.mxu0 %v5213
    %v5215 = vand.u32 %v43, 4294901760
    %5216 = vmatpush1.msra.mxu0 %v5215
    %v5217 = vand.u32 %v46, 4294901760
    %5218 = vmatprep.subr.mxu0 %v5217
    %v5219 = vand.u32 %v45, 4294901760
    %5220 = vmatpush1.msra.mxu0 %v5219
    %5221 = vmatprep.subr.mxu0 0.0
    %5222 = vmatpush1.msra.mxu0 0.0
    %5223 = vmatprep.subr.mxu0 0.0
    %5224 = vmatpush1.msra.mxu0 0.0
    %5225 = vmatprep.subr.mxu0 0.0
    %5226 = vmatpush1.msra.mxu0 0.0
    %5227 = vmatprep.subr.mxu0 0.0
    %5228 = vmatpush1.msra.mxu0 0.0
    %5229 = vmatprep.subr.mxu0 0.0
    %5230 = vmatpush1.msra.mxu0 0.0
    %5231 = vmatprep.subr.mxu0 0.0
    %5232 = vmatpush1.msra.mxu0 0.0
    %5233 = vmatprep.subr.mxu0 0.0
    %5234 = vmatpush1.msra.mxu0 0.0
    %5235 = vmatprep.subr.mxu0 0.0
    %5236 = vmatpush1.msra.mxu0 0.0
    %5237 = vmatprep.subr.mxu0 0.0
    %5238 = vmatpush1.msra.mxu0 0.0
    %5239 = vmatprep.subr.mxu0 0.0
    %5240 = vmatpush1.msra.mxu0 0.0
    %5241 = vmatprep.subr.mxu0 0.0
    %5242 = vmatpush1.msra.mxu0 0.0
    %5243 = vmatprep.subr.mxu0 0.0
    %5244 = vmatpush1.msra.mxu0 0.0
    %5245 = vmatprep.subr.mxu0 0.0
    %5246 = vmatpush1.msra.mxu0 0.0
    %5247 = vmatprep.subr.mxu0 0.0
    %5248 = vmatpush1.msra.mxu0 0.0
    %5249 = vmatprep.subr.mxu0 0.0
    %5250 = vmatpush1.msra.mxu0 0.0
    %5251 = vmatprep.subr.mxu0 0.0
    %5252 = vmatpush1.msra.mxu0 0.0
    %5253 = vmatprep.subr.mxu0 0.0
    %5254 = vmatpush1.msra.mxu0 0.0
    %5255 = vmatprep.subr.mxu0 0.0
    %5256 = vmatpush1.msra.mxu0 0.0
    %5257 = vmatprep.subr.mxu0 0.0
    %5258 = vmatpush1.msra.mxu0 0.0
    %5259 = vmatprep.subr.mxu0 0.0
    %5260 = vmatpush1.msra.mxu0 0.0
    %5261 = vmatprep.subr.mxu0 0.0
    %5262 = vmatpush1.msra.mxu0 0.0
    %5263 = vmatprep.subr.mxu0 0.0
    %5264 = vmatpush1.msra.mxu0 0.0
    %5265 = vmatprep.subr.mxu0 0.0
    %5266 = vmatpush1.msra.mxu0 0.0
    %5267 = vmatprep.subr.mxu0 0.0
    %5268 = vmatpush1.msra.mxu0 0.0
    %5269 = vmatprep.mubr.f32.mxu0 0.0
    %v5270 = vand.u32 %v4628, 4294901760
    %5271 = vmatmul.mubr.f32.gmra.mrb[0].mxu0 %v5270
    %v5272 = vpop.f32.mrb[0].mxu0
    %v5273 = vadd.f32 %v5185, %v5272
    %v5274 = vpop.f32.mrb[0].mxu0
    %v5275 = vadd.f32 %v5187, %v5274
    %5276 = vdwg.mxu0
    %v5277 = vadd.f32 %v5275, %v53
    %v5278 = vxor.u32 %v5277, 2147483648
    %v5279 = vmul.f32 %v5278, 1.442695
    %v5280 = vpow.pop %v5279
    %v5281 = vadd.f32 %v5280, 1.0
    %v5282 = vrcp.pop %v5281
    %v5283 = vmul.f32 1.0, %v5282
    %v5284 = vtanh.pop %v5277
    %v5285 = vmul.f32 %v5283, %v4578
    %5287 = vrot.lane.b32.xlu0 %v5284, 64
    %v5288 = vpop.permute.xlu0 %5287
    %v5290 = vmul.f32 %v5283, %v5288
    %5292 = vrot.lane.b32.xlu0 %v5290, 32
    %v5293 = vpop.permute.xlu0 %5292
    %v5295 = vadd.f32 %v5285, %v5293
    %v5296 = vtanh.pop %v5295
    %5298 = vrot.lane.b32.xlu0 %v5296, 64
    %v5299 = vpop.permute.xlu0 %5298
    %v5301 = vmul.f32 %v5283, %v5299
    %v5303 = vrot.slane %v5273, 2
    %v5305 = vadd.f32 %v503, %v5303
    %v5306 = vxor.u32 %v5305, 2147483648
    %v5307 = vmul.f32 %v5306, 1.442695
    %v5308 = vpow.pop %v5307
    %v5309 = vadd.f32 %v5308, 1.0
    %v5310 = vrcp.pop %v5309
    %v5311 = vmul.f32 1.0, %v5310
    %v5312 = vtanh.pop %v5305
    %v5314 = vrot.slane %v4609, 7
    %v5316 = vmul.f32 %v5311, %v5314
    %5318 = vrot.lane.b32.xlu0 %v5312, 64
    %v5319 = vpop.permute.xlu0 %5318
    %v5321 = vmul.f32 %v5311, %v5319
    %5323 = vrot.lane.b32.xlu0 %v5321, 32
    %v5324 = vpop.permute.xlu0 %5323
    %v5326 = vadd.f32 %v5316, %v5324
    %v5327 = vtanh.pop %v5326
    %5329 = vrot.lane.b32.xlu0 %v5327, 64
    %v5330 = vpop.permute.xlu0 %5329
    %v5332 = vmul.f32 %v5311, %v5330
    %5334 = vrot.lane.b32.xlu0 %v5332, 32
    %v5335 = vpop.permute.xlu0 %5334
    %v5338 = vrot.slane %v5301, 2
    %5339 = vrot.lane.b32.xlu0 %v5338, 64
    %v5340 = vpop.permute.xlu0 %5339
    %v5342 = vsel %vm510, %v5335, %v5340
    %v5344 = vrot.slane %v5342, 6
    %v5345 = vsel %vm1037, %v5344, 0
    %v5347 = vand.u32 %v32, 4294901760
    %5348 = vmatprep.subr.mxu0 %v5347
    %v5349 = vand.u32 %v31, 4294901760
    %5350 = vmatpush1.msra.mxu0 %v5349
    %v5351 = vand.u32 %v34, 4294901760
    %5352 = vmatprep.subr.mxu0 %v5351
    %v5353 = vand.u32 %v33, 4294901760
    %5354 = vmatpush1.msra.mxu0 %v5353
    %v5355 = vand.u32 %v36, 4294901760
    %5356 = vmatprep.subr.mxu0 %v5355
    %v5357 = vand.u32 %v35, 4294901760
    %5358 = vmatpush1.msra.mxu0 %v5357
    %v5359 = vand.u32 %v38, 4294901760
    %5360 = vmatprep.subr.mxu0 %v5359
    %v5361 = vand.u32 %v37, 4294901760
    %5362 = vmatpush1.msra.mxu0 %v5361
    %v5363 = vand.u32 %v40, 4294901760
    %5364 = vmatprep.subr.mxu0 %v5363
    %v5365 = vand.u32 %v39, 4294901760
    %5366 = vmatpush1.msra.mxu0 %v5365
    %v5367 = vand.u32 %v42, 4294901760
    %5368 = vmatprep.subr.mxu0 %v5367
    %v5369 = vand.u32 %v41, 4294901760
    %5370 = vmatpush1.msra.mxu0 %v5369
    %v5371 = vand.u32 %v44, 4294901760
    %5372 = vmatprep.subr.mxu0 %v5371
    %v5373 = vand.u32 %v43, 4294901760
    %5374 = vmatpush1.msra.mxu0 %v5373
    %v5375 = vand.u32 %v46, 4294901760
    %5376 = vmatprep.subr.mxu0 %v5375
    %v5377 = vand.u32 %v45, 4294901760
    %5378 = vmatpush1.msra.mxu0 %v5377
    %5379 = vmatprep.subr.mxu0 0.0
    %5380 = vmatpush1.msra.mxu0 0.0
    %5381 = vmatprep.subr.mxu0 0.0
    %5382 = vmatpush1.msra.mxu0 0.0
    %5383 = vmatprep.subr.mxu0 0.0
    %5384 = vmatpush1.msra.mxu0 0.0
    %5385 = vmatprep.subr.mxu0 0.0
    %5386 = vmatpush1.msra.mxu0 0.0
    %5387 = vmatprep.subr.mxu0 0.0
    %5388 = vmatpush1.msra.mxu0 0.0
    %5389 = vmatprep.subr.mxu0 0.0
    %5390 = vmatpush1.msra.mxu0 0.0
    %5391 = vmatprep.subr.mxu0 0.0
    %5392 = vmatpush1.msra.mxu0 0.0
    %5393 = vmatprep.subr.mxu0 0.0
    %5394 = vmatpush1.msra.mxu0 0.0
    %5395 = vmatprep.subr.mxu0 0.0
    %5396 = vmatpush1.msra.mxu0 0.0
    %5397 = vmatprep.subr.mxu0 0.0
    %5398 = vmatpush1.msra.mxu0 0.0
    %5399 = vmatprep.subr.mxu0 0.0
    %5400 = vmatpush1.msra.mxu0 0.0
    %5401 = vmatprep.subr.mxu0 0.0
    %5402 = vmatpush1.msra.mxu0 0.0
    %5403 = vmatprep.subr.mxu0 0.0
    %5404 = vmatpush1.msra.mxu0 0.0
    %5405 = vmatprep.subr.mxu0 0.0
    %5406 = vmatpush1.msra.mxu0 0.0
    %5407 = vmatprep.subr.mxu0 0.0
    %5408 = vmatpush1.msra.mxu0 0.0
    %5409 = vmatprep.subr.mxu0 0.0
    %5410 = vmatpush1.msra.mxu0 0.0
    %5411 = vmatprep.subr.mxu0 0.0
    %5412 = vmatpush1.msra.mxu0 0.0
    %5413 = vmatprep.subr.mxu0 0.0
    %5414 = vmatpush1.msra.mxu0 0.0
    %5415 = vmatprep.subr.mxu0 0.0
    %5416 = vmatpush1.msra.mxu0 0.0
    %5417 = vmatprep.subr.mxu0 0.0
    %5418 = vmatpush1.msra.mxu0 0.0
    %5419 = vmatprep.subr.mxu0 0.0
    %5420 = vmatpush1.msra.mxu0 0.0
    %5421 = vmatprep.subr.mxu0 0.0
    %5422 = vmatpush1.msra.mxu0 0.0
    %5423 = vmatprep.subr.mxu0 0.0
    %5424 = vmatpush1.msra.mxu0 0.0
    %5425 = vmatprep.subr.mxu0 0.0
    %5426 = vmatpush1.msra.mxu0 0.0
    %5427 = vmatprep.mubr.f32.mxu0 0.0
    %v5428 = vand.u32 %v5345, 4294901760
    %v5429 = vsub.f32 %v5345, %v5428
    %v5430 = vand.u32 %v5429, 4294901760
    %v5431 = vsub.f32 %v5429, %v5430
    %v5432 = vand.u32 %v5431, 4294901760
    %5433 = vmatmul.mubr.f32.gmra.mrb[0].mxu0 %v5432
    %v5434 = vpop.f32.mrb[0].mxu0
    %v5435 = vadd.f32 0.0, %v5434
    %v5436 = vpop.f32.mrb[0].mxu0
    %v5437 = vadd.f32 0.0, %v5436
    %5438 = vdwg.mxu0
    %v5439 = vand.u32 %v32, 4294901760
    %v5440 = vsub.f32 %v32, %v5439
    %v5441 = vand.u32 %v5440, 4294901760
    %v5442 = vsub.f32 %v5440, %v5441
    %v5443 = vand.u32 %v5442, 4294901760
    %5444 = vmatprep.subr.mxu0 %v5443
    %v5445 = vand.u32 %v31, 4294901760
    %v5446 = vsub.f32 %v31, %v5445
    %v5447 = vand.u32 %v5446, 4294901760
    %v5448 = vsub.f32 %v5446, %v5447
    %v5449 = vand.u32 %v5448, 4294901760
    %5450 = vmatpush1.msra.mxu0 %v5449
    %v5451 = vand.u32 %v34, 4294901760
    %v5452 = vsub.f32 %v34, %v5451
    %v5453 = vand.u32 %v5452, 4294901760
    %v5454 = vsub.f32 %v5452, %v5453
    %v5455 = vand.u32 %v5454, 4294901760
    %5456 = vmatprep.subr.mxu0 %v5455
    %v5457 = vand.u32 %v33, 4294901760
    %v5458 = vsub.f32 %v33, %v5457
    %v5459 = vand.u32 %v5458, 4294901760
    %v5460 = vsub.f32 %v5458, %v5459
    %v5461 = vand.u32 %v5460, 4294901760
    %5462 = vmatpush1.msra.mxu0 %v5461
    %v5463 = vand.u32 %v36, 4294901760
    %v5464 = vsub.f32 %v36, %v5463
    %v5465 = vand.u32 %v5464, 4294901760
    %v5466 = vsub.f32 %v5464, %v5465
    %v5467 = vand.u32 %v5466, 4294901760
    %5468 = vmatprep.subr.mxu0 %v5467
    %v5469 = vand.u32 %v35, 4294901760
    %v5470 = vsub.f32 %v35, %v5469
    %v5471 = vand.u32 %v5470, 4294901760
    %v5472 = vsub.f32 %v5470, %v5471
    %v5473 = vand.u32 %v5472, 4294901760
    %5474 = vmatpush1.msra.mxu0 %v5473
    %v5475 = vand.u32 %v38, 4294901760
    %v5476 = vsub.f32 %v38, %v5475
    %v5477 = vand.u32 %v5476, 4294901760
    %v5478 = vsub.f32 %v5476, %v5477
    %v5479 = vand.u32 %v5478, 4294901760
    %5480 = vmatprep.subr.mxu0 %v5479
    %v5481 = vand.u32 %v37, 4294901760
    %v5482 = vsub.f32 %v37, %v5481
    %v5483 = vand.u32 %v5482, 4294901760
    %v5484 = vsub.f32 %v5482, %v5483
    %v5485 = vand.u32 %v5484, 4294901760
    %5486 = vmatpush1.msra.mxu0 %v5485
    %v5487 = vand.u32 %v40, 4294901760
    %v5488 = vsub.f32 %v40, %v5487
    %v5489 = vand.u32 %v5488, 4294901760
    %v5490 = vsub.f32 %v5488, %v5489
    %v5491 = vand.u32 %v5490, 4294901760
    %5492 = vmatprep.subr.mxu0 %v5491
    %v5493 = vand.u32 %v39, 4294901760
    %v5494 = vsub.f32 %v39, %v5493
    %v5495 = vand.u32 %v5494, 4294901760
    %v5496 = vsub.f32 %v5494, %v5495
    %v5497 = vand.u32 %v5496, 4294901760
    %5498 = vmatpush1.msra.mxu0 %v5497
    %v5499 = vand.u32 %v42, 4294901760
    %v5500 = vsub.f32 %v42, %v5499
    %v5501 = vand.u32 %v5500, 4294901760
    %v5502 = vsub.f32 %v5500, %v5501
    %v5503 = vand.u32 %v5502, 4294901760
    %5504 = vmatprep.subr.mxu0 %v5503
    %v5505 = vand.u32 %v41, 4294901760
    %v5506 = vsub.f32 %v41, %v5505
    %v5507 = vand.u32 %v5506, 4294901760
    %v5508 = vsub.f32 %v5506, %v5507
    %v5509 = vand.u32 %v5508, 4294901760
    %5510 = vmatpush1.msra.mxu0 %v5509
    %v5511 = vand.u32 %v44, 4294901760
    %v5512 = vsub.f32 %v44, %v5511
    %v5513 = vand.u32 %v5512, 4294901760
    %v5514 = vsub.f32 %v5512, %v5513
    %v5515 = vand.u32 %v5514, 4294901760
    %5516 = vmatprep.subr.mxu0 %v5515
    %v5517 = vand.u32 %v43, 4294901760
    %v5518 = vsub.f32 %v43, %v5517
    %v5519 = vand.u32 %v5518, 4294901760
    %v5520 = vsub.f32 %v5518, %v5519
    %v5521 = vand.u32 %v5520, 4294901760
    %5522 = vmatpush1.msra.mxu0 %v5521
    %v5523 = vand.u32 %v46, 4294901760
    %v5524 = vsub.f32 %v46, %v5523
    %v5525 = vand.u32 %v5524, 4294901760
    %v5526 = vsub.f32 %v5524, %v5525
    %v5527 = vand.u32 %v5526, 4294901760
    %5528 = vmatprep.subr.mxu0 %v5527
    %v5529 = vand.u32 %v45, 4294901760
    %v5530 = vsub.f32 %v45, %v5529
    %v5531 = vand.u32 %v5530, 4294901760
    %v5532 = vsub.f32 %v5530, %v5531
    %v5533 = vand.u32 %v5532, 4294901760
    %5534 = vmatpush1.msra.mxu0 %v5533
    %5535 = vmatprep.subr.mxu0 0.0
    %5536 = vmatpush1.msra.mxu0 0.0
    %5537 = vmatprep.subr.mxu0 0.0
    %5538 = vmatpush1.msra.mxu0 0.0
    %5539 = vmatprep.subr.mxu0 0.0
    %5540 = vmatpush1.msra.mxu0 0.0
    %5541 = vmatprep.subr.mxu0 0.0
    %5542 = vmatpush1.msra.mxu0 0.0
    %5543 = vmatprep.subr.mxu0 0.0
    %5544 = vmatpush1.msra.mxu0 0.0
    %5545 = vmatprep.subr.mxu0 0.0
    %5546 = vmatpush1.msra.mxu0 0.0
    %5547 = vmatprep.subr.mxu0 0.0
    %5548 = vmatpush1.msra.mxu0 0.0
    %5549 = vmatprep.subr.mxu0 0.0
    %5550 = vmatpush1.msra.mxu0 0.0
    %5551 = vmatprep.subr.mxu0 0.0
    %5552 = vmatpush1.msra.mxu0 0.0
    %5553 = vmatprep.subr.mxu0 0.0
    %5554 = vmatpush1.msra.mxu0 0.0
    %5555 = vmatprep.subr.mxu0 0.0
    %5556 = vmatpush1.msra.mxu0 0.0
    %5557 = vmatprep.subr.mxu0 0.0
    %5558 = vmatpush1.msra.mxu0 0.0
    %5559 = vmatprep.subr.mxu0 0.0
    %5560 = vmatpush1.msra.mxu0 0.0
    %5561 = vmatprep.subr.mxu0 0.0
    %5562 = vmatpush1.msra.mxu0 0.0
    %5563 = vmatprep.subr.mxu0 0.0
    %5564 = vmatpush1.msra.mxu0 0.0
    %5565 = vmatprep.subr.mxu0 0.0
    %5566 = vmatpush1.msra.mxu0 0.0
    %5567 = vmatprep.subr.mxu0 0.0
    %5568 = vmatpush1.msra.mxu0 0.0
    %5569 = vmatprep.subr.mxu0 0.0
    %5570 = vmatpush1.msra.mxu0 0.0
    %5571 = vmatprep.subr.mxu0 0.0
    %5572 = vmatpush1.msra.mxu0 0.0
    %5573 = vmatprep.subr.mxu0 0.0
    %5574 = vmatpush1.msra.mxu0 0.0
    %5575 = vmatprep.subr.mxu0 0.0
    %5576 = vmatpush1.msra.mxu0 0.0
    %5577 = vmatprep.subr.mxu0 0.0
    %5578 = vmatpush1.msra.mxu0 0.0
    %5579 = vmatprep.subr.mxu0 0.0
    %5580 = vmatpush1.msra.mxu0 0.0
    %5581 = vmatprep.subr.mxu0 0.0
    %5582 = vmatpush1.msra.mxu0 0.0
    %5583 = vmatprep.mubr.f32.mxu0 0.0
    %v5584 = vand.u32 %v5345, 4294901760
    %5585 = vmatmul.mubr.f32.gmra.mrb[0].mxu0 %v5584
    %v5586 = vpop.f32.mrb[0].mxu0
    %v5587 = vadd.f32 %v5435, %v5586
    %v5588 = vpop.f32.mrb[0].mxu0
    %v5589 = vadd.f32 %v5437, %v5588
    %5590 = vdwg.mxu0
    %v5591 = vand.u32 %v32, 4294901760
    %v5592 = vsub.f32 %v32, %v5591
    %5593 = vmatprep.subr.mxu0 %v5592
    %v5594 = vand.u32 %v31, 4294901760
    %v5595 = vsub.f32 %v31, %v5594
    %5596 = vmatpush1.msra.mxu0 %v5595
    %v5597 = vand.u32 %v34, 4294901760
    %v5598 = vsub.f32 %v34, %v5597
    %5599 = vmatprep.subr.mxu0 %v5598
    %v5600 = vand.u32 %v33, 4294901760
    %v5601 = vsub.f32 %v33, %v5600
    %5602 = vmatpush1.msra.mxu0 %v5601
    %v5603 = vand.u32 %v36, 4294901760
    %v5604 = vsub.f32 %v36, %v5603
    %5605 = vmatprep.subr.mxu0 %v5604
    %v5606 = vand.u32 %v35, 4294901760
    %v5607 = vsub.f32 %v35, %v5606
    %5608 = vmatpush1.msra.mxu0 %v5607
    %v5609 = vand.u32 %v38, 4294901760
    %v5610 = vsub.f32 %v38, %v5609
    %5611 = vmatprep.subr.mxu0 %v5610
    %v5612 = vand.u32 %v37, 4294901760
    %v5613 = vsub.f32 %v37, %v5612
    %5614 = vmatpush1.msra.mxu0 %v5613
    %v5615 = vand.u32 %v40, 4294901760
    %v5616 = vsub.f32 %v40, %v5615
    %5617 = vmatprep.subr.mxu0 %v5616
    %v5618 = vand.u32 %v39, 4294901760
    %v5619 = vsub.f32 %v39, %v5618
    %5620 = vmatpush1.msra.mxu0 %v5619
    %v5621 = vand.u32 %v42, 4294901760
    %v5622 = vsub.f32 %v42, %v5621
    %5623 = vmatprep.subr.mxu0 %v5622
    %v5624 = vand.u32 %v41, 4294901760
    %v5625 = vsub.f32 %v41, %v5624
    %5626 = vmatpush1.msra.mxu0 %v5625
    %v5627 = vand.u32 %v44, 4294901760
    %v5628 = vsub.f32 %v44, %v5627
    %5629 = vmatprep.subr.mxu0 %v5628
    %v5630 = vand.u32 %v43, 4294901760
    %v5631 = vsub.f32 %v43, %v5630
    %5632 = vmatpush1.msra.mxu0 %v5631
    %v5633 = vand.u32 %v46, 4294901760
    %v5634 = vsub.f32 %v46, %v5633
    %5635 = vmatprep.subr.mxu0 %v5634
    %v5636 = vand.u32 %v45, 4294901760
    %v5637 = vsub.f32 %v45, %v5636
    %5638 = vmatpush1.msra.mxu0 %v5637
    %5639 = vmatprep.subr.mxu0 0.0
    %5640 = vmatpush1.msra.mxu0 0.0
    %5641 = vmatprep.subr.mxu0 0.0
    %5642 = vmatpush1.msra.mxu0 0.0
    %5643 = vmatprep.subr.mxu0 0.0
    %5644 = vmatpush1.msra.mxu0 0.0
    %5645 = vmatprep.subr.mxu0 0.0
    %5646 = vmatpush1.msra.mxu0 0.0
    %5647 = vmatprep.subr.mxu0 0.0
    %5648 = vmatpush1.msra.mxu0 0.0
    %5649 = vmatprep.subr.mxu0 0.0
    %5650 = vmatpush1.msra.mxu0 0.0
    %5651 = vmatprep.subr.mxu0 0.0
    %5652 = vmatpush1.msra.mxu0 0.0
    %5653 = vmatprep.subr.mxu0 0.0
    %5654 = vmatpush1.msra.mxu0 0.0
    %5655 = vmatprep.subr.mxu0 0.0
    %5656 = vmatpush1.msra.mxu0 0.0
    %5657 = vmatprep.subr.mxu0 0.0
    %5658 = vmatpush1.msra.mxu0 0.0
    %5659 = vmatprep.subr.mxu0 0.0
    %5660 = vmatpush1.msra.mxu0 0.0
    %5661 = vmatprep.subr.mxu0 0.0
    %5662 = vmatpush1.msra.mxu0 0.0
    %5663 = vmatprep.subr.mxu0 0.0
    %5664 = vmatpush1.msra.mxu0 0.0
    %5665 = vmatprep.subr.mxu0 0.0
    %5666 = vmatpush1.msra.mxu0 0.0
    %5667 = vmatprep.subr.mxu0 0.0
    %5668 = vmatpush1.msra.mxu0 0.0
    %5669 = vmatprep.subr.mxu0 0.0
    %5670 = vmatpush1.msra.mxu0 0.0
    %5671 = vmatprep.subr.mxu0 0.0
    %5672 = vmatpush1.msra.mxu0 0.0
    %5673 = vmatprep.subr.mxu0 0.0
    %5674 = vmatpush1.msra.mxu0 0.0
    %5675 = vmatprep.subr.mxu0 0.0
    %5676 = vmatpush1.msra.mxu0 0.0
    %5677 = vmatprep.subr.mxu0 0.0
    %5678 = vmatpush1.msra.mxu0 0.0
    %5679 = vmatprep.subr.mxu0 0.0
    %5680 = vmatpush1.msra.mxu0 0.0
    %5681 = vmatprep.subr.mxu0 0.0
    %5682 = vmatpush1.msra.mxu0 0.0
    %5683 = vmatprep.subr.mxu0 0.0
    %5684 = vmatpush1.msra.mxu0 0.0
    %5685 = vmatprep.subr.mxu0 0.0
    %5686 = vmatpush1.msra.mxu0 0.0
    %5687 = vmatprep.mubr.f32.mxu0 0.0
    %v5688 = vand.u32 %v5345, 4294901760
    %v5689 = vsub.f32 %v5345, %v5688
    %5690 = vmatmul.mubr.f32.gmra.mrb[0].mxu0 %v5689
    %v5691 = vpop.f32.mrb[0].mxu0
    %v5692 = vadd.f32 %v5587, %v5691
    %v5693 = vpop.f32.mrb[0].mxu0
    %v5694 = vadd.f32 %v5589, %v5693
    %5695 = vdwg.mxu0
    %v5696 = vand.u32 %v32, 4294901760
    %5697 = vmatprep.subr.mxu0 %v5696
    %v5698 = vand.u32 %v31, 4294901760
    %5699 = vmatpush1.msra.mxu0 %v5698
    %v5700 = vand.u32 %v34, 4294901760
    %5701 = vmatprep.subr.mxu0 %v5700
    %v5702 = vand.u32 %v33, 4294901760
    %5703 = vmatpush1.msra.mxu0 %v5702
    %v5704 = vand.u32 %v36, 4294901760
    %5705 = vmatprep.subr.mxu0 %v5704
    %v5706 = vand.u32 %v35, 4294901760
    %5707 = vmatpush1.msra.mxu0 %v5706
    %v5708 = vand.u32 %v38, 4294901760
    %5709 = vmatprep.subr.mxu0 %v5708
    %v5710 = vand.u32 %v37, 4294901760
    %5711 = vmatpush1.msra.mxu0 %v5710
    %v5712 = vand.u32 %v40, 4294901760
    %5713 = vmatprep.subr.mxu0 %v5712
    %v5714 = vand.u32 %v39, 4294901760
    %5715 = vmatpush1.msra.mxu0 %v5714
    %v5716 = vand.u32 %v42, 4294901760
    %5717 = vmatprep.subr.mxu0 %v5716
    %v5718 = vand.u32 %v41, 4294901760
    %5719 = vmatpush1.msra.mxu0 %v5718
    %v5720 = vand.u32 %v44, 4294901760
    %5721 = vmatprep.subr.mxu0 %v5720
    %v5722 = vand.u32 %v43, 4294901760
    %5723 = vmatpush1.msra.mxu0 %v5722
    %v5724 = vand.u32 %v46, 4294901760
    %5725 = vmatprep.subr.mxu0 %v5724
    %v5726 = vand.u32 %v45, 4294901760
    %5727 = vmatpush1.msra.mxu0 %v5726
    %5728 = vmatprep.subr.mxu0 0.0
    %5729 = vmatpush1.msra.mxu0 0.0
    %5730 = vmatprep.subr.mxu0 0.0
    %5731 = vmatpush1.msra.mxu0 0.0
    %5732 = vmatprep.subr.mxu0 0.0
    %5733 = vmatpush1.msra.mxu0 0.0
    %5734 = vmatprep.subr.mxu0 0.0
    %5735 = vmatpush1.msra.mxu0 0.0
    %5736 = vmatprep.subr.mxu0 0.0
    %5737 = vmatpush1.msra.mxu0 0.0
    %5738 = vmatprep.subr.mxu0 0.0
    %5739 = vmatpush1.msra.mxu0 0.0
    %5740 = vmatprep.subr.mxu0 0.0
    %5741 = vmatpush1.msra.mxu0 0.0
    %5742 = vmatprep.subr.mxu0 0.0
    %5743 = vmatpush1.msra.mxu0 0.0
    %5744 = vmatprep.subr.mxu0 0.0
    %5745 = vmatpush1.msra.mxu0 0.0
    %5746 = vmatprep.subr.mxu0 0.0
    %5747 = vmatpush1.msra.mxu0 0.0
    %5748 = vmatprep.subr.mxu0 0.0
    %5749 = vmatpush1.msra.mxu0 0.0
    %5750 = vmatprep.subr.mxu0 0.0
    %5751 = vmatpush1.msra.mxu0 0.0
    %5752 = vmatprep.subr.mxu0 0.0
    %5753 = vmatpush1.msra.mxu0 0.0
    %5754 = vmatprep.subr.mxu0 0.0
    %5755 = vmatpush1.msra.mxu0 0.0
    %5756 = vmatprep.subr.mxu0 0.0
    %5757 = vmatpush1.msra.mxu0 0.0
    %5758 = vmatprep.subr.mxu0 0.0
    %5759 = vmatpush1.msra.mxu0 0.0
    %5760 = vmatprep.subr.mxu0 0.0
    %5761 = vmatpush1.msra.mxu0 0.0
    %5762 = vmatprep.subr.mxu0 0.0
    %5763 = vmatpush1.msra.mxu0 0.0
    %5764 = vmatprep.subr.mxu0 0.0
    %5765 = vmatpush1.msra.mxu0 0.0
    %5766 = vmatprep.subr.mxu0 0.0
    %5767 = vmatpush1.msra.mxu0 0.0
    %5768 = vmatprep.subr.mxu0 0.0
    %5769 = vmatpush1.msra.mxu0 0.0
    %5770 = vmatprep.subr.mxu0 0.0
    %5771 = vmatpush1.msra.mxu0 0.0
    %5772 = vmatprep.subr.mxu0 0.0
    %5773 = vmatpush1.msra.mxu0 0.0
    %5774 = vmatprep.subr.mxu0 0.0
    %5775 = vmatpush1.msra.mxu0 0.0
    %5776 = vmatprep.mubr.f32.mxu0 0.0
    %v5777 = vand.u32 %v5345, 4294901760
    %v5778 = vsub.f32 %v5345, %v5777
    %v5779 = vand.u32 %v5778, 4294901760
    %5780 = vmatmul.mubr.f32.gmra.mrb[0].mxu0 %v5779
    %v5781 = vpop.f32.mrb[0].mxu0
    %v5782 = vadd.f32 %v5692, %v5781
    %v5783 = vpop.f32.mrb[0].mxu0
    %v5784 = vadd.f32 %v5694, %v5783
    %5785 = vdwg.mxu0
    %v5786 = vand.u32 %v32, 4294901760
    %v5787 = vsub.f32 %v32, %v5786
    %v5788 = vand.u32 %v5787, 4294901760
    %5789 = vmatprep.subr.mxu0 %v5788
    %v5790 = vand.u32 %v31, 4294901760
    %v5791 = vsub.f32 %v31, %v5790
    %v5792 = vand.u32 %v5791, 4294901760
    %5793 = vmatpush1.msra.mxu0 %v5792
    %v5794 = vand.u32 %v34, 4294901760
    %v5795 = vsub.f32 %v34, %v5794
    %v5796 = vand.u32 %v5795, 4294901760
    %5797 = vmatprep.subr.mxu0 %v5796
    %v5798 = vand.u32 %v33, 4294901760
    %v5799 = vsub.f32 %v33, %v5798
    %v5800 = vand.u32 %v5799, 4294901760
    %5801 = vmatpush1.msra.mxu0 %v5800
    %v5802 = vand.u32 %v36, 4294901760
    %v5803 = vsub.f32 %v36, %v5802
    %v5804 = vand.u32 %v5803, 4294901760
    %5805 = vmatprep.subr.mxu0 %v5804
    %v5806 = vand.u32 %v35, 4294901760
    %v5807 = vsub.f32 %v35, %v5806
    %v5808 = vand.u32 %v5807, 4294901760
    %5809 = vmatpush1.msra.mxu0 %v5808
    %v5810 = vand.u32 %v38, 4294901760
    %v5811 = vsub.f32 %v38, %v5810
    %v5812 = vand.u32 %v5811, 4294901760
    %5813 = vmatprep.subr.mxu0 %v5812
    %v5814 = vand.u32 %v37, 4294901760
    %v5815 = vsub.f32 %v37, %v5814
    %v5816 = vand.u32 %v5815, 4294901760
    %5817 = vmatpush1.msra.mxu0 %v5816
    %v5818 = vand.u32 %v40, 4294901760
    %v5819 = vsub.f32 %v40, %v5818
    %v5820 = vand.u32 %v5819, 4294901760
    %5821 = vmatprep.subr.mxu0 %v5820
    %v5822 = vand.u32 %v39, 4294901760
    %v5823 = vsub.f32 %v39, %v5822
    %v5824 = vand.u32 %v5823, 4294901760
    %5825 = vmatpush1.msra.mxu0 %v5824
    %v5826 = vand.u32 %v42, 4294901760
    %v5827 = vsub.f32 %v42, %v5826
    %v5828 = vand.u32 %v5827, 4294901760
    %5829 = vmatprep.subr.mxu0 %v5828
    %v5830 = vand.u32 %v41, 4294901760
    %v5831 = vsub.f32 %v41, %v5830
    %v5832 = vand.u32 %v5831, 4294901760
    %5833 = vmatpush1.msra.mxu0 %v5832
    %v5834 = vand.u32 %v44, 4294901760
    %v5835 = vsub.f32 %v44, %v5834
    %v5836 = vand.u32 %v5835, 4294901760
    %5837 = vmatprep.subr.mxu0 %v5836
    %v5838 = vand.u32 %v43, 4294901760
    %v5839 = vsub.f32 %v43, %v5838
    %v5840 = vand.u32 %v5839, 4294901760
    %5841 = vmatpush1.msra.mxu0 %v5840
    %v5842 = vand.u32 %v46, 4294901760
    %v5843 = vsub.f32 %v46, %v5842
    %v5844 = vand.u32 %v5843, 4294901760
    %5845 = vmatprep.subr.mxu0 %v5844
    %v5846 = vand.u32 %v45, 4294901760
    %v5847 = vsub.f32 %v45, %v5846
    %v5848 = vand.u32 %v5847, 4294901760
    %5849 = vmatpush1.msra.mxu0 %v5848
    %5850 = vmatprep.subr.mxu0 0.0
    %5851 = vmatpush1.msra.mxu0 0.0
    %5852 = vmatprep.subr.mxu0 0.0
    %5853 = vmatpush1.msra.mxu0 0.0
    %5854 = vmatprep.subr.mxu0 0.0
    %5855 = vmatpush1.msra.mxu0 0.0
    %5856 = vmatprep.subr.mxu0 0.0
    %5857 = vmatpush1.msra.mxu0 0.0
    %5858 = vmatprep.subr.mxu0 0.0
    %5859 = vmatpush1.msra.mxu0 0.0
    %5860 = vmatprep.subr.mxu0 0.0
    %5861 = vmatpush1.msra.mxu0 0.0
    %5862 = vmatprep.subr.mxu0 0.0
    %5863 = vmatpush1.msra.mxu0 0.0
    %5864 = vmatprep.subr.mxu0 0.0
    %5865 = vmatpush1.msra.mxu0 0.0
    %5866 = vmatprep.subr.mxu0 0.0
    %5867 = vmatpush1.msra.mxu0 0.0
    %5868 = vmatprep.subr.mxu0 0.0
    %5869 = vmatpush1.msra.mxu0 0.0
    %5870 = vmatprep.subr.mxu0 0.0
    %5871 = vmatpush1.msra.mxu0 0.0
    %5872 = vmatprep.subr.mxu0 0.0
    %5873 = vmatpush1.msra.mxu0 0.0
    %5874 = vmatprep.subr.mxu0 0.0
    %5875 = vmatpush1.msra.mxu0 0.0
    %5876 = vmatprep.subr.mxu0 0.0
    %5877 = vmatpush1.msra.mxu0 0.0
    %5878 = vmatprep.subr.mxu0 0.0
    %5879 = vmatpush1.msra.mxu0 0.0
    %5880 = vmatprep.subr.mxu0 0.0
    %5881 = vmatpush1.msra.mxu0 0.0
    %5882 = vmatprep.subr.mxu0 0.0
    %5883 = vmatpush1.msra.mxu0 0.0
    %5884 = vmatprep.subr.mxu0 0.0
    %5885 = vmatpush1.msra.mxu0 0.0
    %5886 = vmatprep.subr.mxu0 0.0
    %5887 = vmatpush1.msra.mxu0 0.0
    %5888 = vmatprep.subr.mxu0 0.0
    %5889 = vmatpush1.msra.mxu0 0.0
    %5890 = vmatprep.subr.mxu0 0.0
    %5891 = vmatpush1.msra.mxu0 0.0
    %5892 = vmatprep.subr.mxu0 0.0
    %5893 = vmatpush1.msra.mxu0 0.0
    %5894 = vmatprep.subr.mxu0 0.0
    %5895 = vmatpush1.msra.mxu0 0.0
    %5896 = vmatprep.subr.mxu0 0.0
    %5897 = vmatpush1.msra.mxu0 0.0
    %5898 = vmatprep.mubr.f32.mxu0 0.0
    %v5899 = vand.u32 %v5345, 4294901760
    %5900 = vmatmul.mubr.f32.gmra.mrb[0].mxu0 %v5899
    %v5901 = vpop.f32.mrb[0].mxu0
    %v5902 = vadd.f32 %v5782, %v5901
    %v5903 = vpop.f32.mrb[0].mxu0
    %v5904 = vadd.f32 %v5784, %v5903
    %5905 = vdwg.mxu0
    %v5906 = vand.u32 %v32, 4294901760
    %5907 = vmatprep.subr.mxu0 %v5906
    %v5908 = vand.u32 %v31, 4294901760
    %5909 = vmatpush1.msra.mxu0 %v5908
    %v5910 = vand.u32 %v34, 4294901760
    %5911 = vmatprep.subr.mxu0 %v5910
    %v5912 = vand.u32 %v33, 4294901760
    %5913 = vmatpush1.msra.mxu0 %v5912
    %v5914 = vand.u32 %v36, 4294901760
    %5915 = vmatprep.subr.mxu0 %v5914
    %v5916 = vand.u32 %v35, 4294901760
    %5917 = vmatpush1.msra.mxu0 %v5916
    %v5918 = vand.u32 %v38, 4294901760
    %5919 = vmatprep.subr.mxu0 %v5918
    %v5920 = vand.u32 %v37, 4294901760
    %5921 = vmatpush1.msra.mxu0 %v5920
    %v5922 = vand.u32 %v40, 4294901760
    %5923 = vmatprep.subr.mxu0 %v5922
    %v5924 = vand.u32 %v39, 4294901760
    %5925 = vmatpush1.msra.mxu0 %v5924
    %v5926 = vand.u32 %v42, 4294901760
    %5927 = vmatprep.subr.mxu0 %v5926
    %v5928 = vand.u32 %v41, 4294901760
    %5929 = vmatpush1.msra.mxu0 %v5928
    %v5930 = vand.u32 %v44, 4294901760
    %5931 = vmatprep.subr.mxu0 %v5930
    %v5932 = vand.u32 %v43, 4294901760
    %5933 = vmatpush1.msra.mxu0 %v5932
    %v5934 = vand.u32 %v46, 4294901760
    %5935 = vmatprep.subr.mxu0 %v5934
    %v5936 = vand.u32 %v45, 4294901760
    %5937 = vmatpush1.msra.mxu0 %v5936
    %5938 = vmatprep.subr.mxu0 0.0
    %5939 = vmatpush1.msra.mxu0 0.0
    %5940 = vmatprep.subr.mxu0 0.0
    %5941 = vmatpush1.msra.mxu0 0.0
    %5942 = vmatprep.subr.mxu0 0.0
    %5943 = vmatpush1.msra.mxu0 0.0
    %5944 = vmatprep.subr.mxu0 0.0
    %5945 = vmatpush1.msra.mxu0 0.0
    %5946 = vmatprep.subr.mxu0 0.0
    %5947 = vmatpush1.msra.mxu0 0.0
    %5948 = vmatprep.subr.mxu0 0.0
    %5949 = vmatpush1.msra.mxu0 0.0
    %5950 = vmatprep.subr.mxu0 0.0
    %5951 = vmatpush1.msra.mxu0 0.0
    %5952 = vmatprep.subr.mxu0 0.0
    %5953 = vmatpush1.msra.mxu0 0.0
    %5954 = vmatprep.subr.mxu0 0.0
    %5955 = vmatpush1.msra.mxu0 0.0
    %5956 = vmatprep.subr.mxu0 0.0
    %5957 = vmatpush1.msra.mxu0 0.0
    %5958 = vmatprep.subr.mxu0 0.0
    %5959 = vmatpush1.msra.mxu0 0.0
    %5960 = vmatprep.subr.mxu0 0.0
    %5961 = vmatpush1.msra.mxu0 0.0
    %5962 = vmatprep.subr.mxu0 0.0
    %5963 = vmatpush1.msra.mxu0 0.0
    %5964 = vmatprep.subr.mxu0 0.0
    %5965 = vmatpush1.msra.mxu0 0.0
    %5966 = vmatprep.subr.mxu0 0.0
    %5967 = vmatpush1.msra.mxu0 0.0
    %5968 = vmatprep.subr.mxu0 0.0
    %5969 = vmatpush1.msra.mxu0 0.0
    %5970 = vmatprep.subr.mxu0 0.0
    %5971 = vmatpush1.msra.mxu0 0.0
    %5972 = vmatprep.subr.mxu0 0.0
    %5973 = vmatpush1.msra.mxu0 0.0
    %5974 = vmatprep.subr.mxu0 0.0
    %5975 = vmatpush1.msra.mxu0 0.0
    %5976 = vmatprep.subr.mxu0 0.0
    %5977 = vmatpush1.msra.mxu0 0.0
    %5978 = vmatprep.subr.mxu0 0.0
    %5979 = vmatpush1.msra.mxu0 0.0
    %5980 = vmatprep.subr.mxu0 0.0
    %5981 = vmatpush1.msra.mxu0 0.0
    %5982 = vmatprep.subr.mxu0 0.0
    %5983 = vmatpush1.msra.mxu0 0.0
    %5984 = vmatprep.subr.mxu0 0.0
    %5985 = vmatpush1.msra.mxu0 0.0
    %5986 = vmatprep.mubr.f32.mxu0 0.0
    %v5987 = vand.u32 %v5345, 4294901760
    %5988 = vmatmul.mubr.f32.gmra.mrb[0].mxu0 %v5987
    %v5989 = vpop.f32.mrb[0].mxu0
    %v5990 = vadd.f32 %v5902, %v5989
    %v5991 = vpop.f32.mrb[0].mxu0
    %v5992 = vadd.f32 %v5904, %v5991
    %5993 = vdwg.mxu0
    %v5994 = vadd.f32 %v5992, %v53
    %v5995 = vxor.u32 %v5994, 2147483648
    %v5996 = vmul.f32 %v5995, 1.442695
    %v5997 = vpow.pop %v5996
    %v5998 = vadd.f32 %v5997, 1.0
    %v5999 = vrcp.pop %v5998
    %v6000 = vmul.f32 1.0, %v5999
    %v6001 = vtanh.pop %v5994
    %v6002 = vmul.f32 %v6000, %v5295
    %6004 = vrot.lane.b32.xlu0 %v6001, 64
    %v6005 = vpop.permute.xlu0 %6004
    %v6007 = vmul.f32 %v6000, %v6005
    %6009 = vrot.lane.b32.xlu0 %v6007, 32
    %v6010 = vpop.permute.xlu0 %6009
    %v6012 = vadd.f32 %v6002, %v6010
    %v6013 = vtanh.pop %v6012
    %6015 = vrot.lane.b32.xlu0 %v6013, 64
    %v6016 = vpop.permute.xlu0 %6015
    %v6018 = vmul.f32 %v6000, %v6016
    %v6020 = vrot.slane %v5990, 1
    %v6022 = vadd.f32 %v503, %v6020
    %v6023 = vxor.u32 %v6022, 2147483648
    %v6024 = vmul.f32 %v6023, 1.442695
    %v6025 = vpow.pop %v6024
    %v6026 = vadd.f32 %v6025, 1.0
    %v6027 = vrcp.pop %v6026
    %v6028 = vmul.f32 1.0, %v6027
    %v6029 = vtanh.pop %v6022
    %v6031 = vrot.slane %v5326, 7
    %v6033 = vmul.f32 %v6028, %v6031
    %6035 = vrot.lane.b32.xlu0 %v6029, 64
    %v6036 = vpop.permute.xlu0 %6035
    %v6038 = vmul.f32 %v6028, %v6036
    %6040 = vrot.lane.b32.xlu0 %v6038, 32
    %v6041 = vpop.permute.xlu0 %6040
    %v6043 = vadd.f32 %v6033, %v6041
    %v6044 = vtanh.pop %v6043
    %6046 = vrot.lane.b32.xlu0 %v6044, 64
    %v6047 = vpop.permute.xlu0 %6046
    %v6049 = vmul.f32 %v6028, %v6047
    %6051 = vrot.lane.b32.xlu0 %v6049, 32
    %v6052 = vpop.permute.xlu0 %6051
    %v6055 = vrot.slane %v6018, 1
    %6056 = vrot.lane.b32.xlu0 %v6055, 64
    %v6057 = vpop.permute.xlu0 %6056
    %v6059 = vsel %vm510, %v6052, %v6057
    %v6061 = vrot.slane %v6059, 7
    %v6062 = vsel %vm1037, %v6061, 0
    %v6064 = vand.u32 %v32, 4294901760
    %6065 = vmatprep.subr.mxu0 %v6064
    %v6066 = vand.u32 %v31, 4294901760
    %6067 = vmatpush1.msra.mxu0 %v6066
    %v6068 = vand.u32 %v34, 4294901760
    %6069 = vmatprep.subr.mxu0 %v6068
    %v6070 = vand.u32 %v33, 4294901760
    %6071 = vmatpush1.msra.mxu0 %v6070
    %v6072 = vand.u32 %v36, 4294901760
    %6073 = vmatprep.subr.mxu0 %v6072
    %v6074 = vand.u32 %v35, 4294901760
    %6075 = vmatpush1.msra.mxu0 %v6074
    %v6076 = vand.u32 %v38, 4294901760
    %6077 = vmatprep.subr.mxu0 %v6076
    %v6078 = vand.u32 %v37, 4294901760
    %6079 = vmatpush1.msra.mxu0 %v6078
    %v6080 = vand.u32 %v40, 4294901760
    %6081 = vmatprep.subr.mxu0 %v6080
    %v6082 = vand.u32 %v39, 4294901760
    %6083 = vmatpush1.msra.mxu0 %v6082
    %v6084 = vand.u32 %v42, 4294901760
    %6085 = vmatprep.subr.mxu0 %v6084
    %v6086 = vand.u32 %v41, 4294901760
    %6087 = vmatpush1.msra.mxu0 %v6086
    %v6088 = vand.u32 %v44, 4294901760
    %6089 = vmatprep.subr.mxu0 %v6088
    %v6090 = vand.u32 %v43, 4294901760
    %6091 = vmatpush1.msra.mxu0 %v6090
    %v6092 = vand.u32 %v46, 4294901760
    %6093 = vmatprep.subr.mxu0 %v6092
    %v6094 = vand.u32 %v45, 4294901760
    %6095 = vmatpush1.msra.mxu0 %v6094
    %6096 = vmatprep.subr.mxu0 0.0
    %6097 = vmatpush1.msra.mxu0 0.0
    %6098 = vmatprep.subr.mxu0 0.0
    %6099 = vmatpush1.msra.mxu0 0.0
    %6100 = vmatprep.subr.mxu0 0.0
    %6101 = vmatpush1.msra.mxu0 0.0
    %6102 = vmatprep.subr.mxu0 0.0
    %6103 = vmatpush1.msra.mxu0 0.0
    %6104 = vmatprep.subr.mxu0 0.0
    %6105 = vmatpush1.msra.mxu0 0.0
    %6106 = vmatprep.subr.mxu0 0.0
    %6107 = vmatpush1.msra.mxu0 0.0
    %6108 = vmatprep.subr.mxu0 0.0
    %6109 = vmatpush1.msra.mxu0 0.0
    %6110 = vmatprep.subr.mxu0 0.0
    %6111 = vmatpush1.msra.mxu0 0.0
    %6112 = vmatprep.subr.mxu0 0.0
    %6113 = vmatpush1.msra.mxu0 0.0
    %6114 = vmatprep.subr.mxu0 0.0
    %6115 = vmatpush1.msra.mxu0 0.0
    %6116 = vmatprep.subr.mxu0 0.0
    %6117 = vmatpush1.msra.mxu0 0.0
    %6118 = vmatprep.subr.mxu0 0.0
    %6119 = vmatpush1.msra.mxu0 0.0
    %6120 = vmatprep.subr.mxu0 0.0
    %6121 = vmatpush1.msra.mxu0 0.0
    %6122 = vmatprep.subr.mxu0 0.0
    %6123 = vmatpush1.msra.mxu0 0.0
    %6124 = vmatprep.subr.mxu0 0.0
    %6125 = vmatpush1.msra.mxu0 0.0
    %6126 = vmatprep.subr.mxu0 0.0
    %6127 = vmatpush1.msra.mxu0 0.0
    %6128 = vmatprep.subr.mxu0 0.0
    %6129 = vmatpush1.msra.mxu0 0.0
    %6130 = vmatprep.subr.mxu0 0.0
    %6131 = vmatpush1.msra.mxu0 0.0
    %6132 = vmatprep.subr.mxu0 0.0
    %6133 = vmatpush1.msra.mxu0 0.0
    %6134 = vmatprep.subr.mxu0 0.0
    %6135 = vmatpush1.msra.mxu0 0.0
    %6136 = vmatprep.subr.mxu0 0.0
    %6137 = vmatpush1.msra.mxu0 0.0
    %6138 = vmatprep.subr.mxu0 0.0
    %6139 = vmatpush1.msra.mxu0 0.0
    %6140 = vmatprep.subr.mxu0 0.0
    %6141 = vmatpush1.msra.mxu0 0.0
    %6142 = vmatprep.subr.mxu0 0.0
    %6143 = vmatpush1.msra.mxu0 0.0
    %6144 = vmatprep.mubr.f32.mxu0 0.0
    %v6145 = vand.u32 %v6062, 4294901760
    %v6146 = vsub.f32 %v6062, %v6145
    %v6147 = vand.u32 %v6146, 4294901760
    %v6148 = vsub.f32 %v6146, %v6147
    %v6149 = vand.u32 %v6148, 4294901760
    %6150 = vmatmul.mubr.f32.gmra.mrb[0].mxu0 %v6149
    %v6151 = vpop.f32.mrb[0].mxu0
    %v6152 = vpop.f32.mrb[0].mxu0
    %v6153 = vadd.f32 0.0, %v6152
    %6154 = vdwg.mxu0
    %v6155 = vand.u32 %v32, 4294901760
    %v6156 = vsub.f32 %v32, %v6155
    %v6157 = vand.u32 %v6156, 4294901760
    %v6158 = vsub.f32 %v6156, %v6157
    %v6159 = vand.u32 %v6158, 4294901760
    %6160 = vmatprep.subr.mxu0 %v6159
    %v6161 = vand.u32 %v31, 4294901760
    %v6162 = vsub.f32 %v31, %v6161
    %v6163 = vand.u32 %v6162, 4294901760
    %v6164 = vsub.f32 %v6162, %v6163
    %v6165 = vand.u32 %v6164, 4294901760
    %6166 = vmatpush1.msra.mxu0 %v6165
    %v6167 = vand.u32 %v34, 4294901760
    %v6168 = vsub.f32 %v34, %v6167
    %v6169 = vand.u32 %v6168, 4294901760
    %v6170 = vsub.f32 %v6168, %v6169
    %v6171 = vand.u32 %v6170, 4294901760
    %6172 = vmatprep.subr.mxu0 %v6171
    %v6173 = vand.u32 %v33, 4294901760
    %v6174 = vsub.f32 %v33, %v6173
    %v6175 = vand.u32 %v6174, 4294901760
    %v6176 = vsub.f32 %v6174, %v6175
    %v6177 = vand.u32 %v6176, 4294901760
    %6178 = vmatpush1.msra.mxu0 %v6177
    %v6179 = vand.u32 %v36, 4294901760
    %v6180 = vsub.f32 %v36, %v6179
    %v6181 = vand.u32 %v6180, 4294901760
    %v6182 = vsub.f32 %v6180, %v6181
    %v6183 = vand.u32 %v6182, 4294901760
    %6184 = vmatprep.subr.mxu0 %v6183
    %v6185 = vand.u32 %v35, 4294901760
    %v6186 = vsub.f32 %v35, %v6185
    %v6187 = vand.u32 %v6186, 4294901760
    %v6188 = vsub.f32 %v6186, %v6187
    %v6189 = vand.u32 %v6188, 4294901760
    %6190 = vmatpush1.msra.mxu0 %v6189
    %v6191 = vand.u32 %v38, 4294901760
    %v6192 = vsub.f32 %v38, %v6191
    %v6193 = vand.u32 %v6192, 4294901760
    %v6194 = vsub.f32 %v6192, %v6193
    %v6195 = vand.u32 %v6194, 4294901760
    %6196 = vmatprep.subr.mxu0 %v6195
    %v6197 = vand.u32 %v37, 4294901760
    %v6198 = vsub.f32 %v37, %v6197
    %v6199 = vand.u32 %v6198, 4294901760
    %v6200 = vsub.f32 %v6198, %v6199
    %v6201 = vand.u32 %v6200, 4294901760
    %6202 = vmatpush1.msra.mxu0 %v6201
    %v6203 = vand.u32 %v40, 4294901760
    %v6204 = vsub.f32 %v40, %v6203
    %v6205 = vand.u32 %v6204, 4294901760
    %v6206 = vsub.f32 %v6204, %v6205
    %v6207 = vand.u32 %v6206, 4294901760
    %6208 = vmatprep.subr.mxu0 %v6207
    %v6209 = vand.u32 %v39, 4294901760
    %v6210 = vsub.f32 %v39, %v6209
    %v6211 = vand.u32 %v6210, 4294901760
    %v6212 = vsub.f32 %v6210, %v6211
    %v6213 = vand.u32 %v6212, 4294901760
    %6214 = vmatpush1.msra.mxu0 %v6213
    %v6215 = vand.u32 %v42, 4294901760
    %v6216 = vsub.f32 %v42, %v6215
    %v6217 = vand.u32 %v6216, 4294901760
    %v6218 = vsub.f32 %v6216, %v6217
    %v6219 = vand.u32 %v6218, 4294901760
    %6220 = vmatprep.subr.mxu0 %v6219
    %v6221 = vand.u32 %v41, 4294901760
    %v6222 = vsub.f32 %v41, %v6221
    %v6223 = vand.u32 %v6222, 4294901760
    %v6224 = vsub.f32 %v6222, %v6223
    %v6225 = vand.u32 %v6224, 4294901760
    %6226 = vmatpush1.msra.mxu0 %v6225
    %v6227 = vand.u32 %v44, 4294901760
    %v6228 = vsub.f32 %v44, %v6227
    %v6229 = vand.u32 %v6228, 4294901760
    %v6230 = vsub.f32 %v6228, %v6229
    %v6231 = vand.u32 %v6230, 4294901760
    %6232 = vmatprep.subr.mxu0 %v6231
    %v6233 = vand.u32 %v43, 4294901760
    %v6234 = vsub.f32 %v43, %v6233
    %v6235 = vand.u32 %v6234, 4294901760
    %v6236 = vsub.f32 %v6234, %v6235
    %v6237 = vand.u32 %v6236, 4294901760
    %6238 = vmatpush1.msra.mxu0 %v6237
    %v6239 = vand.u32 %v46, 4294901760
    %v6240 = vsub.f32 %v46, %v6239
    %v6241 = vand.u32 %v6240, 4294901760
    %v6242 = vsub.f32 %v6240, %v6241
    %v6243 = vand.u32 %v6242, 4294901760
    %6244 = vmatprep.subr.mxu0 %v6243
    %v6245 = vand.u32 %v45, 4294901760
    %v6246 = vsub.f32 %v45, %v6245
    %v6247 = vand.u32 %v6246, 4294901760
    %v6248 = vsub.f32 %v6246, %v6247
    %v6249 = vand.u32 %v6248, 4294901760
    %6250 = vmatpush1.msra.mxu0 %v6249
    %6251 = vmatprep.subr.mxu0 0.0
    %6252 = vmatpush1.msra.mxu0 0.0
    %6253 = vmatprep.subr.mxu0 0.0
    %6254 = vmatpush1.msra.mxu0 0.0
    %6255 = vmatprep.subr.mxu0 0.0
    %6256 = vmatpush1.msra.mxu0 0.0
    %6257 = vmatprep.subr.mxu0 0.0
    %6258 = vmatpush1.msra.mxu0 0.0
    %6259 = vmatprep.subr.mxu0 0.0
    %6260 = vmatpush1.msra.mxu0 0.0
    %6261 = vmatprep.subr.mxu0 0.0
    %6262 = vmatpush1.msra.mxu0 0.0
    %6263 = vmatprep.subr.mxu0 0.0
    %6264 = vmatpush1.msra.mxu0 0.0
    %6265 = vmatprep.subr.mxu0 0.0
    %6266 = vmatpush1.msra.mxu0 0.0
    %6267 = vmatprep.subr.mxu0 0.0
    %6268 = vmatpush1.msra.mxu0 0.0
    %6269 = vmatprep.subr.mxu0 0.0
    %6270 = vmatpush1.msra.mxu0 0.0
    %6271 = vmatprep.subr.mxu0 0.0
    %6272 = vmatpush1.msra.mxu0 0.0
    %6273 = vmatprep.subr.mxu0 0.0
    %6274 = vmatpush1.msra.mxu0 0.0
    %6275 = vmatprep.subr.mxu0 0.0
    %6276 = vmatpush1.msra.mxu0 0.0
    %6277 = vmatprep.subr.mxu0 0.0
    %6278 = vmatpush1.msra.mxu0 0.0
    %6279 = vmatprep.subr.mxu0 0.0
    %6280 = vmatpush1.msra.mxu0 0.0
    %6281 = vmatprep.subr.mxu0 0.0
    %6282 = vmatpush1.msra.mxu0 0.0
    %6283 = vmatprep.subr.mxu0 0.0
    %6284 = vmatpush1.msra.mxu0 0.0
    %6285 = vmatprep.subr.mxu0 0.0
    %6286 = vmatpush1.msra.mxu0 0.0
    %6287 = vmatprep.subr.mxu0 0.0
    %6288 = vmatpush1.msra.mxu0 0.0
    %6289 = vmatprep.subr.mxu0 0.0
    %6290 = vmatpush1.msra.mxu0 0.0
    %6291 = vmatprep.subr.mxu0 0.0
    %6292 = vmatpush1.msra.mxu0 0.0
    %6293 = vmatprep.subr.mxu0 0.0
    %6294 = vmatpush1.msra.mxu0 0.0
    %6295 = vmatprep.subr.mxu0 0.0
    %6296 = vmatpush1.msra.mxu0 0.0
    %6297 = vmatprep.subr.mxu0 0.0
    %6298 = vmatpush1.msra.mxu0 0.0
    %6299 = vmatprep.mubr.f32.mxu0 0.0
    %v6300 = vand.u32 %v6062, 4294901760
    %6301 = vmatmul.mubr.f32.gmra.mrb[0].mxu0 %v6300
    %v6302 = vpop.f32.mrb[0].mxu0
    %v6303 = vpop.f32.mrb[0].mxu0
    %v6304 = vadd.f32 %v6153, %v6303
    %6305 = vdwg.mxu0
    %v6306 = vand.u32 %v32, 4294901760
    %v6307 = vsub.f32 %v32, %v6306
    %6308 = vmatprep.subr.mxu0 %v6307
    %v6309 = vand.u32 %v31, 4294901760
    %v6310 = vsub.f32 %v31, %v6309
    %6311 = vmatpush1.msra.mxu0 %v6310
    %v6312 = vand.u32 %v34, 4294901760
    %v6313 = vsub.f32 %v34, %v6312
    %6314 = vmatprep.subr.mxu0 %v6313
    %v6315 = vand.u32 %v33, 4294901760
    %v6316 = vsub.f32 %v33, %v6315
    %6317 = vmatpush1.msra.mxu0 %v6316
    %v6318 = vand.u32 %v36, 4294901760
    %v6319 = vsub.f32 %v36, %v6318
    %6320 = vmatprep.subr.mxu0 %v6319
    %v6321 = vand.u32 %v35, 4294901760
    %v6322 = vsub.f32 %v35, %v6321
    %6323 = vmatpush1.msra.mxu0 %v6322
    %v6324 = vand.u32 %v38, 4294901760
    %v6325 = vsub.f32 %v38, %v6324
    %6326 = vmatprep.subr.mxu0 %v6325
    %v6327 = vand.u32 %v37, 4294901760
    %v6328 = vsub.f32 %v37, %v6327
    %6329 = vmatpush1.msra.mxu0 %v6328
    %v6330 = vand.u32 %v40, 4294901760
    %v6331 = vsub.f32 %v40, %v6330
    %6332 = vmatprep.subr.mxu0 %v6331
    %v6333 = vand.u32 %v39, 4294901760
    %v6334 = vsub.f32 %v39, %v6333
    %6335 = vmatpush1.msra.mxu0 %v6334
    %v6336 = vand.u32 %v42, 4294901760
    %v6337 = vsub.f32 %v42, %v6336
    %6338 = vmatprep.subr.mxu0 %v6337
    %v6339 = vand.u32 %v41, 4294901760
    %v6340 = vsub.f32 %v41, %v6339
    %6341 = vmatpush1.msra.mxu0 %v6340
    %v6342 = vand.u32 %v44, 4294901760
    %v6343 = vsub.f32 %v44, %v6342
    %6344 = vmatprep.subr.mxu0 %v6343
    %v6345 = vand.u32 %v43, 4294901760
    %v6346 = vsub.f32 %v43, %v6345
    %6347 = vmatpush1.msra.mxu0 %v6346
    %v6348 = vand.u32 %v46, 4294901760
    %v6349 = vsub.f32 %v46, %v6348
    %6350 = vmatprep.subr.mxu0 %v6349
    %v6351 = vand.u32 %v45, 4294901760
    %v6352 = vsub.f32 %v45, %v6351
    %6353 = vmatpush1.msra.mxu0 %v6352
    %6354 = vmatprep.subr.mxu0 0.0
    %6355 = vmatpush1.msra.mxu0 0.0
    %6356 = vmatprep.subr.mxu0 0.0
    %6357 = vmatpush1.msra.mxu0 0.0
    %6358 = vmatprep.subr.mxu0 0.0
    %6359 = vmatpush1.msra.mxu0 0.0
    %6360 = vmatprep.subr.mxu0 0.0
    %6361 = vmatpush1.msra.mxu0 0.0
    %6362 = vmatprep.subr.mxu0 0.0
    %6363 = vmatpush1.msra.mxu0 0.0
    %6364 = vmatprep.subr.mxu0 0.0
    %6365 = vmatpush1.msra.mxu0 0.0
    %6366 = vmatprep.subr.mxu0 0.0
    %6367 = vmatpush1.msra.mxu0 0.0
    %6368 = vmatprep.subr.mxu0 0.0
    %6369 = vmatpush1.msra.mxu0 0.0
    %6370 = vmatprep.subr.mxu0 0.0
    %6371 = vmatpush1.msra.mxu0 0.0
    %6372 = vmatprep.subr.mxu0 0.0
    %6373 = vmatpush1.msra.mxu0 0.0
    %6374 = vmatprep.subr.mxu0 0.0
    %6375 = vmatpush1.msra.mxu0 0.0
    %6376 = vmatprep.subr.mxu0 0.0
    %6377 = vmatpush1.msra.mxu0 0.0
    %6378 = vmatprep.subr.mxu0 0.0
    %6379 = vmatpush1.msra.mxu0 0.0
    %6380 = vmatprep.subr.mxu0 0.0
    %6381 = vmatpush1.msra.mxu0 0.0
    %6382 = vmatprep.subr.mxu0 0.0
    %6383 = vmatpush1.msra.mxu0 0.0
    %6384 = vmatprep.subr.mxu0 0.0
    %6385 = vmatpush1.msra.mxu0 0.0
    %6386 = vmatprep.subr.mxu0 0.0
    %6387 = vmatpush1.msra.mxu0 0.0
    %6388 = vmatprep.subr.mxu0 0.0
    %6389 = vmatpush1.msra.mxu0 0.0
    %6390 = vmatprep.subr.mxu0 0.0
    %6391 = vmatpush1.msra.mxu0 0.0
    %6392 = vmatprep.subr.mxu0 0.0
    %6393 = vmatpush1.msra.mxu0 0.0
    %6394 = vmatprep.subr.mxu0 0.0
    %6395 = vmatpush1.msra.mxu0 0.0
    %6396 = vmatprep.subr.mxu0 0.0
    %6397 = vmatpush1.msra.mxu0 0.0
    %6398 = vmatprep.subr.mxu0 0.0
    %6399 = vmatpush1.msra.mxu0 0.0
    %6400 = vmatprep.subr.mxu0 0.0
    %6401 = vmatpush1.msra.mxu0 0.0
    %6402 = vmatprep.mubr.f32.mxu0 0.0
    %v6403 = vand.u32 %v6062, 4294901760
    %v6404 = vsub.f32 %v6062, %v6403
    %6405 = vmatmul.mubr.f32.gmra.mrb[0].mxu0 %v6404
    %v6406 = vpop.f32.mrb[0].mxu0
    %v6407 = vpop.f32.mrb[0].mxu0
    %v6408 = vadd.f32 %v6304, %v6407
    %6409 = vdwg.mxu0
    %v6410 = vand.u32 %v32, 4294901760
    %6411 = vmatprep.subr.mxu0 %v6410
    %v6412 = vand.u32 %v31, 4294901760
    %6413 = vmatpush1.msra.mxu0 %v6412
    %v6414 = vand.u32 %v34, 4294901760
    %6415 = vmatprep.subr.mxu0 %v6414
    %v6416 = vand.u32 %v33, 4294901760
    %6417 = vmatpush1.msra.mxu0 %v6416
    %v6418 = vand.u32 %v36, 4294901760
    %6419 = vmatprep.subr.mxu0 %v6418
    %v6420 = vand.u32 %v35, 4294901760
    %6421 = vmatpush1.msra.mxu0 %v6420
    %v6422 = vand.u32 %v38, 4294901760
    %6423 = vmatprep.subr.mxu0 %v6422
    %v6424 = vand.u32 %v37, 4294901760
    %6425 = vmatpush1.msra.mxu0 %v6424
    %v6426 = vand.u32 %v40, 4294901760
    %6427 = vmatprep.subr.mxu0 %v6426
    %v6428 = vand.u32 %v39, 4294901760
    %6429 = vmatpush1.msra.mxu0 %v6428
    %v6430 = vand.u32 %v42, 4294901760
    %6431 = vmatprep.subr.mxu0 %v6430
    %v6432 = vand.u32 %v41, 4294901760
    %6433 = vmatpush1.msra.mxu0 %v6432
    %v6434 = vand.u32 %v44, 4294901760
    %6435 = vmatprep.subr.mxu0 %v6434
    %v6436 = vand.u32 %v43, 4294901760
    %6437 = vmatpush1.msra.mxu0 %v6436
    %v6438 = vand.u32 %v46, 4294901760
    %6439 = vmatprep.subr.mxu0 %v6438
    %v6440 = vand.u32 %v45, 4294901760
    %6441 = vmatpush1.msra.mxu0 %v6440
    %6442 = vmatprep.subr.mxu0 0.0
    %6443 = vmatpush1.msra.mxu0 0.0
    %6444 = vmatprep.subr.mxu0 0.0
    %6445 = vmatpush1.msra.mxu0 0.0
    %6446 = vmatprep.subr.mxu0 0.0
    %6447 = vmatpush1.msra.mxu0 0.0
    %6448 = vmatprep.subr.mxu0 0.0
    %6449 = vmatpush1.msra.mxu0 0.0
    %6450 = vmatprep.subr.mxu0 0.0
    %6451 = vmatpush1.msra.mxu0 0.0
    %6452 = vmatprep.subr.mxu0 0.0
    %6453 = vmatpush1.msra.mxu0 0.0
    %6454 = vmatprep.subr.mxu0 0.0
    %6455 = vmatpush1.msra.mxu0 0.0
    %6456 = vmatprep.subr.mxu0 0.0
    %6457 = vmatpush1.msra.mxu0 0.0
    %6458 = vmatprep.subr.mxu0 0.0
    %6459 = vmatpush1.msra.mxu0 0.0
    %6460 = vmatprep.subr.mxu0 0.0
    %6461 = vmatpush1.msra.mxu0 0.0
    %6462 = vmatprep.subr.mxu0 0.0
    %6463 = vmatpush1.msra.mxu0 0.0
    %6464 = vmatprep.subr.mxu0 0.0
    %6465 = vmatpush1.msra.mxu0 0.0
    %6466 = vmatprep.subr.mxu0 0.0
    %6467 = vmatpush1.msra.mxu0 0.0
    %6468 = vmatprep.subr.mxu0 0.0
    %6469 = vmatpush1.msra.mxu0 0.0
    %6470 = vmatprep.subr.mxu0 0.0
    %6471 = vmatpush1.msra.mxu0 0.0
    %6472 = vmatprep.subr.mxu0 0.0
    %6473 = vmatpush1.msra.mxu0 0.0
    %6474 = vmatprep.subr.mxu0 0.0
    %6475 = vmatpush1.msra.mxu0 0.0
    %6476 = vmatprep.subr.mxu0 0.0
    %6477 = vmatpush1.msra.mxu0 0.0
    %6478 = vmatprep.subr.mxu0 0.0
    %6479 = vmatpush1.msra.mxu0 0.0
    %6480 = vmatprep.subr.mxu0 0.0
    %6481 = vmatpush1.msra.mxu0 0.0
    %6482 = vmatprep.subr.mxu0 0.0
    %6483 = vmatpush1.msra.mxu0 0.0
    %6484 = vmatprep.subr.mxu0 0.0
    %6485 = vmatpush1.msra.mxu0 0.0
    %6486 = vmatprep.subr.mxu0 0.0
    %6487 = vmatpush1.msra.mxu0 0.0
    %6488 = vmatprep.subr.mxu0 0.0
    %6489 = vmatpush1.msra.mxu0 0.0
    %6490 = vmatprep.mubr.f32.mxu0 0.0
    %v6491 = vand.u32 %v6062, 4294901760
    %v6492 = vsub.f32 %v6062, %v6491
    %v6493 = vand.u32 %v6492, 4294901760
    %6494 = vmatmul.mubr.f32.gmra.mrb[0].mxu0 %v6493
    %v6495 = vpop.f32.mrb[0].mxu0
    %v6496 = vpop.f32.mrb[0].mxu0
    %v6497 = vadd.f32 %v6408, %v6496
    %6498 = vdwg.mxu0
    %v6499 = vand.u32 %v32, 4294901760
    %v6500 = vsub.f32 %v32, %v6499
    %v6501 = vand.u32 %v6500, 4294901760
    %6502 = vmatprep.subr.mxu0 %v6501
    %v6503 = vand.u32 %v31, 4294901760
    %v6504 = vsub.f32 %v31, %v6503
    %v6505 = vand.u32 %v6504, 4294901760
    %6506 = vmatpush1.msra.mxu0 %v6505
    %v6507 = vand.u32 %v34, 4294901760
    %v6508 = vsub.f32 %v34, %v6507
    %v6509 = vand.u32 %v6508, 4294901760
    %6510 = vmatprep.subr.mxu0 %v6509
    %v6511 = vand.u32 %v33, 4294901760
    %v6512 = vsub.f32 %v33, %v6511
    %v6513 = vand.u32 %v6512, 4294901760
    %6514 = vmatpush1.msra.mxu0 %v6513
    %v6515 = vand.u32 %v36, 4294901760
    %v6516 = vsub.f32 %v36, %v6515
    %v6517 = vand.u32 %v6516, 4294901760
    %6518 = vmatprep.subr.mxu0 %v6517
    %v6519 = vand.u32 %v35, 4294901760
    %v6520 = vsub.f32 %v35, %v6519
    %v6521 = vand.u32 %v6520, 4294901760
    %6522 = vmatpush1.msra.mxu0 %v6521
    %v6523 = vand.u32 %v38, 4294901760
    %v6524 = vsub.f32 %v38, %v6523
    %v6525 = vand.u32 %v6524, 4294901760
    %6526 = vmatprep.subr.mxu0 %v6525
    %v6527 = vand.u32 %v37, 4294901760
    %v6528 = vsub.f32 %v37, %v6527
    %v6529 = vand.u32 %v6528, 4294901760
    %6530 = vmatpush1.msra.mxu0 %v6529
    %v6531 = vand.u32 %v40, 4294901760
    %v6532 = vsub.f32 %v40, %v6531
    %v6533 = vand.u32 %v6532, 4294901760
    %6534 = vmatprep.subr.mxu0 %v6533
    %v6535 = vand.u32 %v39, 4294901760
    %v6536 = vsub.f32 %v39, %v6535
    %v6537 = vand.u32 %v6536, 4294901760
    %6538 = vmatpush1.msra.mxu0 %v6537
    %v6539 = vand.u32 %v42, 4294901760
    %v6540 = vsub.f32 %v42, %v6539
    %v6541 = vand.u32 %v6540, 4294901760
    %6542 = vmatprep.subr.mxu0 %v6541
    %v6543 = vand.u32 %v41, 4294901760
    %v6544 = vsub.f32 %v41, %v6543
    %v6545 = vand.u32 %v6544, 4294901760
    %6546 = vmatpush1.msra.mxu0 %v6545
    %v6547 = vand.u32 %v44, 4294901760
    %v6548 = vsub.f32 %v44, %v6547
    %v6549 = vand.u32 %v6548, 4294901760
    %6550 = vmatprep.subr.mxu0 %v6549
    %v6551 = vand.u32 %v43, 4294901760
    %v6552 = vsub.f32 %v43, %v6551
    %v6553 = vand.u32 %v6552, 4294901760
    %6554 = vmatpush1.msra.mxu0 %v6553
    %v6555 = vand.u32 %v46, 4294901760
    %v6556 = vsub.f32 %v46, %v6555
    %v6557 = vand.u32 %v6556, 4294901760
    %6558 = vmatprep.subr.mxu0 %v6557
    %v6559 = vand.u32 %v45, 4294901760
    %v6560 = vsub.f32 %v45, %v6559
    %v6561 = vand.u32 %v6560, 4294901760
    %6562 = vmatpush1.msra.mxu0 %v6561
    %6563 = vmatprep.subr.mxu0 0.0
    %6564 = vmatpush1.msra.mxu0 0.0
    %6565 = vmatprep.subr.mxu0 0.0
    %6566 = vmatpush1.msra.mxu0 0.0
    %6567 = vmatprep.subr.mxu0 0.0
    %6568 = vmatpush1.msra.mxu0 0.0
    %6569 = vmatprep.subr.mxu0 0.0
    %6570 = vmatpush1.msra.mxu0 0.0
    %6571 = vmatprep.subr.mxu0 0.0
    %6572 = vmatpush1.msra.mxu0 0.0
    %6573 = vmatprep.subr.mxu0 0.0
    %6574 = vmatpush1.msra.mxu0 0.0
    %6575 = vmatprep.subr.mxu0 0.0
    %6576 = vmatpush1.msra.mxu0 0.0
    %6577 = vmatprep.subr.mxu0 0.0
    %6578 = vmatpush1.msra.mxu0 0.0
    %6579 = vmatprep.subr.mxu0 0.0
    %6580 = vmatpush1.msra.mxu0 0.0
    %6581 = vmatprep.subr.mxu0 0.0
    %6582 = vmatpush1.msra.mxu0 0.0
    %6583 = vmatprep.subr.mxu0 0.0
    %6584 = vmatpush1.msra.mxu0 0.0
    %6585 = vmatprep.subr.mxu0 0.0
    %6586 = vmatpush1.msra.mxu0 0.0
    %6587 = vmatprep.subr.mxu0 0.0
    %6588 = vmatpush1.msra.mxu0 0.0
    %6589 = vmatprep.subr.mxu0 0.0
    %6590 = vmatpush1.msra.mxu0 0.0
    %6591 = vmatprep.subr.mxu0 0.0
    %6592 = vmatpush1.msra.mxu0 0.0
    %6593 = vmatprep.subr.mxu0 0.0
    %6594 = vmatpush1.msra.mxu0 0.0
    %6595 = vmatprep.subr.mxu0 0.0
    %6596 = vmatpush1.msra.mxu0 0.0
    %6597 = vmatprep.subr.mxu0 0.0
    %6598 = vmatpush1.msra.mxu0 0.0
    %6599 = vmatprep.subr.mxu0 0.0
    %6600 = vmatpush1.msra.mxu0 0.0
    %6601 = vmatprep.subr.mxu0 0.0
    %6602 = vmatpush1.msra.mxu0 0.0
    %6603 = vmatprep.subr.mxu0 0.0
    %6604 = vmatpush1.msra.mxu0 0.0
    %6605 = vmatprep.subr.mxu0 0.0
    %6606 = vmatpush1.msra.mxu0 0.0
    %6607 = vmatprep.subr.mxu0 0.0
    %6608 = vmatpush1.msra.mxu0 0.0
    %6609 = vmatprep.subr.mxu0 0.0
    %6610 = vmatpush1.msra.mxu0 0.0
    %6611 = vmatprep.mubr.f32.mxu0 0.0
    %v6612 = vand.u32 %v6062, 4294901760
    %6613 = vmatmul.mubr.f32.gmra.mrb[0].mxu0 %v6612
    %v6614 = vpop.f32.mrb[0].mxu0
    %v6615 = vpop.f32.mrb[0].mxu0
    %v6616 = vadd.f32 %v6497, %v6615
    %6617 = vdwg.mxu0
    %v6618 = vand.u32 %v32, 4294901760
    %6619 = vmatprep.subr.mxu0 %v6618
    %v6620 = vand.u32 %v31, 4294901760
    %6621 = vmatpush1.msra.mxu0 %v6620
    %v6622 = vand.u32 %v34, 4294901760
    %6623 = vmatprep.subr.mxu0 %v6622
    %v6624 = vand.u32 %v33, 4294901760
    %6625 = vmatpush1.msra.mxu0 %v6624
    %v6626 = vand.u32 %v36, 4294901760
    %6627 = vmatprep.subr.mxu0 %v6626
    %v6628 = vand.u32 %v35, 4294901760
    %6629 = vmatpush1.msra.mxu0 %v6628
    %v6630 = vand.u32 %v38, 4294901760
    %6631 = vmatprep.subr.mxu0 %v6630
    %v6632 = vand.u32 %v37, 4294901760
    %6633 = vmatpush1.msra.mxu0 %v6632
    %v6634 = vand.u32 %v40, 4294901760
    %6635 = vmatprep.subr.mxu0 %v6634
    %v6636 = vand.u32 %v39, 4294901760
    %6637 = vmatpush1.msra.mxu0 %v6636
    %v6638 = vand.u32 %v42, 4294901760
    %6639 = vmatprep.subr.mxu0 %v6638
    %v6640 = vand.u32 %v41, 4294901760
    %6641 = vmatpush1.msra.mxu0 %v6640
    %v6642 = vand.u32 %v44, 4294901760
    %6643 = vmatprep.subr.mxu0 %v6642
    %v6644 = vand.u32 %v43, 4294901760
    %6645 = vmatpush1.msra.mxu0 %v6644
    %v6646 = vand.u32 %v46, 4294901760
    %6647 = vmatprep.subr.mxu0 %v6646
    %v6648 = vand.u32 %v45, 4294901760
    %6649 = vmatpush1.msra.mxu0 %v6648
    %6650 = vmatprep.subr.mxu0 0.0
    %6651 = vmatpush1.msra.mxu0 0.0
    %6652 = vmatprep.subr.mxu0 0.0
    %6653 = vmatpush1.msra.mxu0 0.0
    %6654 = vmatprep.subr.mxu0 0.0
    %6655 = vmatpush1.msra.mxu0 0.0
    %6656 = vmatprep.subr.mxu0 0.0
    %6657 = vmatpush1.msra.mxu0 0.0
    %6658 = vmatprep.subr.mxu0 0.0
    %6659 = vmatpush1.msra.mxu0 0.0
    %6660 = vmatprep.subr.mxu0 0.0
    %6661 = vmatpush1.msra.mxu0 0.0
    %6662 = vmatprep.subr.mxu0 0.0
    %6663 = vmatpush1.msra.mxu0 0.0
    %6664 = vmatprep.subr.mxu0 0.0
    %6665 = vmatpush1.msra.mxu0 0.0
    %6666 = vmatprep.subr.mxu0 0.0
    %6667 = vmatpush1.msra.mxu0 0.0
    %6668 = vmatprep.subr.mxu0 0.0
    %6669 = vmatpush1.msra.mxu0 0.0
    %6670 = vmatprep.subr.mxu0 0.0
    %6671 = vmatpush1.msra.mxu0 0.0
    %6672 = vmatprep.subr.mxu0 0.0
    %6673 = vmatpush1.msra.mxu0 0.0
    %6674 = vmatprep.subr.mxu0 0.0
    %6675 = vmatpush1.msra.mxu0 0.0
    %6676 = vmatprep.subr.mxu0 0.0
    %6677 = vmatpush1.msra.mxu0 0.0
    %6678 = vmatprep.subr.mxu0 0.0
    %6679 = vmatpush1.msra.mxu0 0.0
    %6680 = vmatprep.subr.mxu0 0.0
    %6681 = vmatpush1.msra.mxu0 0.0
    %6682 = vmatprep.subr.mxu0 0.0
    %6683 = vmatpush1.msra.mxu0 0.0
    %6684 = vmatprep.subr.mxu0 0.0
    %6685 = vmatpush1.msra.mxu0 0.0
    %6686 = vmatprep.subr.mxu0 0.0
    %6687 = vmatpush1.msra.mxu0 0.0
    %6688 = vmatprep.subr.mxu0 0.0
    %6689 = vmatpush1.msra.mxu0 0.0
    %6690 = vmatprep.subr.mxu0 0.0
    %6691 = vmatpush1.msra.mxu0 0.0
    %6692 = vmatprep.subr.mxu0 0.0
    %6693 = vmatpush1.msra.mxu0 0.0
    %6694 = vmatprep.subr.mxu0 0.0
    %6695 = vmatpush1.msra.mxu0 0.0
    %6696 = vmatprep.subr.mxu0 0.0
    %6697 = vmatpush1.msra.mxu0 0.0
    %6698 = vmatprep.mubr.f32.mxu0 0.0
    %v6699 = vand.u32 %v6062, 4294901760
    %6700 = vmatmul.mubr.f32.gmra.mrb[0].mxu0 %v6699
    %v6701 = vpop.f32.mrb[0].mxu0
    %v6702 = vpop.f32.mrb[0].mxu0
    %v6703 = vadd.f32 %v6616, %v6702
    %6704 = vdwg.mxu0
    %v6705 = vadd.f32 %v6703, %v53
    %v6706 = vxor.u32 %v6705, 2147483648
    %v6707 = vmul.f32 %v6706, 1.442695
    %v6708 = vpow.pop %v6707
    %v6709 = vadd.f32 %v6708, 1.0
    %v6710 = vrcp.pop %v6709
    %v6711 = vmul.f32 1.0, %v6710
    %v6712 = vtanh.pop %v6705
    %v6713 = vmul.f32 %v6711, %v6012
    %6715 = vrot.lane.b32.xlu0 %v6712, 64
    %v6716 = vpop.permute.xlu0 %6715
    %v6718 = vmul.f32 %v6711, %v6716
    %6720 = vrot.lane.b32.xlu0 %v6718, 32
    %v6721 = vpop.permute.xlu0 %6720
    %v6723 = vadd.f32 %v6713, %v6721
    %v6724 = vtanh.pop %v6723
    %6726 = vrot.lane.b32.xlu0 %v6724, 64
    %v6727 = vpop.permute.xlu0 %6726
    %v6729 = vmul.f32 %v6711, %v6727
    %6731 = vrot.lane.b32.xlu0 %v6729, 32
    %v6732 = vpop.permute.xlu0 %6731
    %v6733 = vsel %vm510, %v6732, 0
    %6735 = vmatprep.subr.mxu0 0.0
    %v6736 = vand.u32 %v48, 4294901760
    %6737 = vmatpush1.msra.mxu0 %v6736
    %6738 = vmatprep.subr.mxu0 0.0
    %v6739 = vand.u32 %v49, 4294901760
    %6740 = vmatpush1.msra.mxu0 %v6739
    %6741 = vmatprep.subr.mxu0 0.0
    %v6742 = vand.u32 %v50, 4294901760
    %6743 = vmatpush1.msra.mxu0 %v6742
    %6744 = vmatprep.subr.mxu0 0.0
    %v6745 = vand.u32 %v51, 4294901760
    %6746 = vmatpush1.msra.mxu0 %v6745
    %6747 = vmatprep.subr.mxu0 0.0
    %6748 = vmatpush1.msra.mxu0 0.0
    %6749 = vmatprep.subr.mxu0 0.0
    %6750 = vmatpush1.msra.mxu0 0.0
    %6751 = vmatprep.subr.mxu0 0.0
    %6752 = vmatpush1.msra.mxu0 0.0
    %6753 = vmatprep.subr.mxu0 0.0
    %6754 = vmatpush1.msra.mxu0 0.0
    %6755 = vmatprep.subr.mxu0 0.0
    %6756 = vmatpush1.msra.mxu0 0.0
    %6757 = vmatprep.subr.mxu0 0.0
    %6758 = vmatpush1.msra.mxu0 0.0
    %6759 = vmatprep.subr.mxu0 0.0
    %6760 = vmatpush1.msra.mxu0 0.0
    %6761 = vmatprep.subr.mxu0 0.0
    %6762 = vmatpush1.msra.mxu0 0.0
    %6763 = vmatprep.subr.mxu0 0.0
    %6764 = vmatpush1.msra.mxu0 0.0
    %6765 = vmatprep.subr.mxu0 0.0
    %6766 = vmatpush1.msra.mxu0 0.0
    %6767 = vmatprep.subr.mxu0 0.0
    %6768 = vmatpush1.msra.mxu0 0.0
    %6769 = vmatprep.subr.mxu0 0.0
    %6770 = vmatpush1.msra.mxu0 0.0
    %6771 = vmatprep.subr.mxu0 0.0
    %6772 = vmatpush1.msra.mxu0 0.0
    %6773 = vmatprep.subr.mxu0 0.0
    %6774 = vmatpush1.msra.mxu0 0.0
    %6775 = vmatprep.subr.mxu0 0.0
    %6776 = vmatpush1.msra.mxu0 0.0
    %6777 = vmatprep.subr.mxu0 0.0
    %6778 = vmatpush1.msra.mxu0 0.0
    %6779 = vmatprep.subr.mxu0 0.0
    %6780 = vmatpush1.msra.mxu0 0.0
    %6781 = vmatprep.subr.mxu0 0.0
    %6782 = vmatpush1.msra.mxu0 0.0
    %6783 = vmatprep.subr.mxu0 0.0
    %6784 = vmatpush1.msra.mxu0 0.0
    %6785 = vmatprep.subr.mxu0 0.0
    %6786 = vmatpush1.msra.mxu0 0.0
    %6787 = vmatprep.subr.mxu0 0.0
    %6788 = vmatpush1.msra.mxu0 0.0
    %6789 = vmatprep.subr.mxu0 0.0
    %6790 = vmatpush1.msra.mxu0 0.0
    %6791 = vmatprep.subr.mxu0 0.0
    %6792 = vmatpush1.msra.mxu0 0.0
    %6793 = vmatprep.subr.mxu0 0.0
    %6794 = vmatpush1.msra.mxu0 0.0
    %6795 = vmatprep.subr.mxu0 0.0
    %6796 = vmatpush1.msra.mxu0 0.0
    %6797 = vmatprep.subr.mxu0 0.0
    %6798 = vmatpush1.msra.mxu0 0.0
    %6799 = vmatprep.subr.mxu0 0.0
    %6800 = vmatpush1.msra.mxu0 0.0
    %6801 = vmatprep.subr.mxu0 0.0
    %6802 = vmatpush1.msra.mxu0 0.0
    %6803 = vmatprep.mubr.f32.mxu0 0.0
    %v6804 = vand.u32 %v6733, 4294901760
    %v6805 = vsub.f32 %v6733, %v6804
    %v6806 = vand.u32 %v6805, 4294901760
    %v6807 = vsub.f32 %v6805, %v6806
    %v6808 = vand.u32 %v6807, 4294901760
    %6809 = vmatmul.mubr.f32.gmra.mrb[0].mxu0 %v6808
    %v6810 = vpop.f32.mrb[0].mxu0
    %v6811 = vadd.f32 %v54, %v6810
    %v6812 = vpop.f32.mrb[0].mxu0
    %6813 = vdwg.mxu0
    %6814 = vmatprep.subr.mxu0 0.0
    %v6815 = vand.u32 %v48, 4294901760
    %v6816 = vsub.f32 %v48, %v6815
    %v6817 = vand.u32 %v6816, 4294901760
    %v6818 = vsub.f32 %v6816, %v6817
    %v6819 = vand.u32 %v6818, 4294901760
    %6820 = vmatpush1.msra.mxu0 %v6819
    %6821 = vmatprep.subr.mxu0 0.0
    %v6822 = vand.u32 %v49, 4294901760
    %v6823 = vsub.f32 %v49, %v6822
    %v6824 = vand.u32 %v6823, 4294901760
    %v6825 = vsub.f32 %v6823, %v6824
    %v6826 = vand.u32 %v6825, 4294901760
    %6827 = vmatpush1.msra.mxu0 %v6826
    %6828 = vmatprep.subr.mxu0 0.0
    %v6829 = vand.u32 %v50, 4294901760
    %v6830 = vsub.f32 %v50, %v6829
    %v6831 = vand.u32 %v6830, 4294901760
    %v6832 = vsub.f32 %v6830, %v6831
    %v6833 = vand.u32 %v6832, 4294901760
    %6834 = vmatpush1.msra.mxu0 %v6833
    %6835 = vmatprep.subr.mxu0 0.0
    %v6836 = vand.u32 %v51, 4294901760
    %v6837 = vsub.f32 %v51, %v6836
    %v6838 = vand.u32 %v6837, 4294901760
    %v6839 = vsub.f32 %v6837, %v6838
    %v6840 = vand.u32 %v6839, 4294901760
    %6841 = vmatpush1.msra.mxu0 %v6840
    %6842 = vmatprep.subr.mxu0 0.0
    %6843 = vmatpush1.msra.mxu0 0.0
    %6844 = vmatprep.subr.mxu0 0.0
    %6845 = vmatpush1.msra.mxu0 0.0
    %6846 = vmatprep.subr.mxu0 0.0
    %6847 = vmatpush1.msra.mxu0 0.0
    %6848 = vmatprep.subr.mxu0 0.0
    %6849 = vmatpush1.msra.mxu0 0.0
    %6850 = vmatprep.subr.mxu0 0.0
    %6851 = vmatpush1.msra.mxu0 0.0
    %6852 = vmatprep.subr.mxu0 0.0
    %6853 = vmatpush1.msra.mxu0 0.0
    %6854 = vmatprep.subr.mxu0 0.0
    %6855 = vmatpush1.msra.mxu0 0.0
    %6856 = vmatprep.subr.mxu0 0.0
    %6857 = vmatpush1.msra.mxu0 0.0
    %6858 = vmatprep.subr.mxu0 0.0
    %6859 = vmatpush1.msra.mxu0 0.0
    %6860 = vmatprep.subr.mxu0 0.0
    %6861 = vmatpush1.msra.mxu0 0.0
    %6862 = vmatprep.subr.mxu0 0.0
    %6863 = vmatpush1.msra.mxu0 0.0
    %6864 = vmatprep.subr.mxu0 0.0
    %6865 = vmatpush1.msra.mxu0 0.0
    %6866 = vmatprep.subr.mxu0 0.0
    %6867 = vmatpush1.msra.mxu0 0.0
    %6868 = vmatprep.subr.mxu0 0.0
    %6869 = vmatpush1.msra.mxu0 0.0
    %6870 = vmatprep.subr.mxu0 0.0
    %6871 = vmatpush1.msra.mxu0 0.0
    %6872 = vmatprep.subr.mxu0 0.0
    %6873 = vmatpush1.msra.mxu0 0.0
    %6874 = vmatprep.subr.mxu0 0.0
    %6875 = vmatpush1.msra.mxu0 0.0
    %6876 = vmatprep.subr.mxu0 0.0
    %6877 = vmatpush1.msra.mxu0 0.0
    %6878 = vmatprep.subr.mxu0 0.0
    %6879 = vmatpush1.msra.mxu0 0.0
    %6880 = vmatprep.subr.mxu0 0.0
    %6881 = vmatpush1.msra.mxu0 0.0
    %6882 = vmatprep.subr.mxu0 0.0
    %6883 = vmatpush1.msra.mxu0 0.0
    %6884 = vmatprep.subr.mxu0 0.0
    %6885 = vmatpush1.msra.mxu0 0.0
    %6886 = vmatprep.subr.mxu0 0.0
    %6887 = vmatpush1.msra.mxu0 0.0
    %6888 = vmatprep.subr.mxu0 0.0
    %6889 = vmatpush1.msra.mxu0 0.0
    %6890 = vmatprep.subr.mxu0 0.0
    %6891 = vmatpush1.msra.mxu0 0.0
    %6892 = vmatprep.subr.mxu0 0.0
    %6893 = vmatpush1.msra.mxu0 0.0
    %6894 = vmatprep.subr.mxu0 0.0
    %6895 = vmatpush1.msra.mxu0 0.0
    %6896 = vmatprep.subr.mxu0 0.0
    %6897 = vmatpush1.msra.mxu0 0.0
    %6898 = vmatprep.mubr.f32.mxu0 0.0
    %v6899 = vand.u32 %v6733, 4294901760
    %6900 = vmatmul.mubr.f32.gmra.mrb[0].mxu0 %v6899
    %v6901 = vpop.f32.mrb[0].mxu0
    %v6902 = vadd.f32 %v6811, %v6901
    %v6903 = vpop.f32.mrb[0].mxu0
    %6904 = vdwg.mxu0
    %6905 = vmatprep.subr.mxu0 0.0
    %v6906 = vand.u32 %v48, 4294901760
    %v6907 = vsub.f32 %v48, %v6906
    %6908 = vmatpush1.msra.mxu0 %v6907
    %6909 = vmatprep.subr.mxu0 0.0
    %v6910 = vand.u32 %v49, 4294901760
    %v6911 = vsub.f32 %v49, %v6910
    %6912 = vmatpush1.msra.mxu0 %v6911
    %6913 = vmatprep.subr.mxu0 0.0
    %v6914 = vand.u32 %v50, 4294901760
    %v6915 = vsub.f32 %v50, %v6914
    %6916 = vmatpush1.msra.mxu0 %v6915
    %6917 = vmatprep.subr.mxu0 0.0
    %v6918 = vand.u32 %v51, 4294901760
    %v6919 = vsub.f32 %v51, %v6918
    %6920 = vmatpush1.msra.mxu0 %v6919
    %6921 = vmatprep.subr.mxu0 0.0
    %6922 = vmatpush1.msra.mxu0 0.0
    %6923 = vmatprep.subr.mxu0 0.0
    %6924 = vmatpush1.msra.mxu0 0.0
    %6925 = vmatprep.subr.mxu0 0.0
    %6926 = vmatpush1.msra.mxu0 0.0
    %6927 = vmatprep.subr.mxu0 0.0
    %6928 = vmatpush1.msra.mxu0 0.0
    %6929 = vmatprep.subr.mxu0 0.0
    %6930 = vmatpush1.msra.mxu0 0.0
    %6931 = vmatprep.subr.mxu0 0.0
    %6932 = vmatpush1.msra.mxu0 0.0
    %6933 = vmatprep.subr.mxu0 0.0
    %6934 = vmatpush1.msra.mxu0 0.0
    %6935 = vmatprep.subr.mxu0 0.0
    %6936 = vmatpush1.msra.mxu0 0.0
    %6937 = vmatprep.subr.mxu0 0.0
    %6938 = vmatpush1.msra.mxu0 0.0
    %6939 = vmatprep.subr.mxu0 0.0
    %6940 = vmatpush1.msra.mxu0 0.0
    %6941 = vmatprep.subr.mxu0 0.0
    %6942 = vmatpush1.msra.mxu0 0.0
    %6943 = vmatprep.subr.mxu0 0.0
    %6944 = vmatpush1.msra.mxu0 0.0
    %6945 = vmatprep.subr.mxu0 0.0
    %6946 = vmatpush1.msra.mxu0 0.0
    %6947 = vmatprep.subr.mxu0 0.0
    %6948 = vmatpush1.msra.mxu0 0.0
    %6949 = vmatprep.subr.mxu0 0.0
    %6950 = vmatpush1.msra.mxu0 0.0
    %6951 = vmatprep.subr.mxu0 0.0
    %6952 = vmatpush1.msra.mxu0 0.0
    %6953 = vmatprep.subr.mxu0 0.0
    %6954 = vmatpush1.msra.mxu0 0.0
    %6955 = vmatprep.subr.mxu0 0.0
    %6956 = vmatpush1.msra.mxu0 0.0
    %6957 = vmatprep.subr.mxu0 0.0
    %6958 = vmatpush1.msra.mxu0 0.0
    %6959 = vmatprep.subr.mxu0 0.0
    %6960 = vmatpush1.msra.mxu0 0.0
    %6961 = vmatprep.subr.mxu0 0.0
    %6962 = vmatpush1.msra.mxu0 0.0
    %6963 = vmatprep.subr.mxu0 0.0
    %6964 = vmatpush1.msra.mxu0 0.0
    %6965 = vmatprep.subr.mxu0 0.0
    %6966 = vmatpush1.msra.mxu0 0.0
    %6967 = vmatprep.subr.mxu0 0.0
    %6968 = vmatpush1.msra.mxu0 0.0
    %6969 = vmatprep.subr.mxu0 0.0
    %6970 = vmatpush1.msra.mxu0 0.0
    %6971 = vmatprep.subr.mxu0 0.0
    %6972 = vmatpush1.msra.mxu0 0.0
    %6973 = vmatprep.subr.mxu0 0.0
    %6974 = vmatpush1.msra.mxu0 0.0
    %6975 = vmatprep.subr.mxu0 0.0
    %6976 = vmatpush1.msra.mxu0 0.0
    %6977 = vmatprep.mubr.f32.mxu0 0.0
    %v6978 = vand.u32 %v6733, 4294901760
    %v6979 = vsub.f32 %v6733, %v6978
    %6980 = vmatmul.mubr.f32.gmra.mrb[0].mxu0 %v6979
    %v6981 = vpop.f32.mrb[0].mxu0
    %v6982 = vadd.f32 %v6902, %v6981
    %v6983 = vpop.f32.mrb[0].mxu0
    %6984 = vdwg.mxu0
    %6985 = vmatprep.subr.mxu0 0.0
    %v6986 = vand.u32 %v48, 4294901760
    %6987 = vmatpush1.msra.mxu0 %v6986
    %6988 = vmatprep.subr.mxu0 0.0
    %v6989 = vand.u32 %v49, 4294901760
    %6990 = vmatpush1.msra.mxu0 %v6989
    %6991 = vmatprep.subr.mxu0 0.0
    %v6992 = vand.u32 %v50, 4294901760
    %6993 = vmatpush1.msra.mxu0 %v6992
    %6994 = vmatprep.subr.mxu0 0.0
    %v6995 = vand.u32 %v51, 4294901760
    %6996 = vmatpush1.msra.mxu0 %v6995
    %6997 = vmatprep.subr.mxu0 0.0
    %6998 = vmatpush1.msra.mxu0 0.0
    %6999 = vmatprep.subr.mxu0 0.0
    %7000 = vmatpush1.msra.mxu0 0.0
    %7001 = vmatprep.subr.mxu0 0.0
    %7002 = vmatpush1.msra.mxu0 0.0
    %7003 = vmatprep.subr.mxu0 0.0
    %7004 = vmatpush1.msra.mxu0 0.0
    %7005 = vmatprep.subr.mxu0 0.0
    %7006 = vmatpush1.msra.mxu0 0.0
    %7007 = vmatprep.subr.mxu0 0.0
    %7008 = vmatpush1.msra.mxu0 0.0
    %7009 = vmatprep.subr.mxu0 0.0
    %7010 = vmatpush1.msra.mxu0 0.0
    %7011 = vmatprep.subr.mxu0 0.0
    %7012 = vmatpush1.msra.mxu0 0.0
    %7013 = vmatprep.subr.mxu0 0.0
    %7014 = vmatpush1.msra.mxu0 0.0
    %7015 = vmatprep.subr.mxu0 0.0
    %7016 = vmatpush1.msra.mxu0 0.0
    %7017 = vmatprep.subr.mxu0 0.0
    %7018 = vmatpush1.msra.mxu0 0.0
    %7019 = vmatprep.subr.mxu0 0.0
    %7020 = vmatpush1.msra.mxu0 0.0
    %7021 = vmatprep.subr.mxu0 0.0
    %7022 = vmatpush1.msra.mxu0 0.0
    %7023 = vmatprep.subr.mxu0 0.0
    %7024 = vmatpush1.msra.mxu0 0.0
    %7025 = vmatprep.subr.mxu0 0.0
    %7026 = vmatpush1.msra.mxu0 0.0
    %7027 = vmatprep.subr.mxu0 0.0
    %7028 = vmatpush1.msra.mxu0 0.0
    %7029 = vmatprep.subr.mxu0 0.0
    %7030 = vmatpush1.msra.mxu0 0.0
    %7031 = vmatprep.subr.mxu0 0.0
    %7032 = vmatpush1.msra.mxu0 0.0
    %7033 = vmatprep.subr.mxu0 0.0
    %7034 = vmatpush1.msra.mxu0 0.0
    %7035 = vmatprep.subr.mxu0 0.0
    %7036 = vmatpush1.msra.mxu0 0.0
    %7037 = vmatprep.subr.mxu0 0.0
    %7038 = vmatpush1.msra.mxu0 0.0
    %7039 = vmatprep.subr.mxu0 0.0
    %7040 = vmatpush1.msra.mxu0 0.0
    %7041 = vmatprep.subr.mxu0 0.0
    %7042 = vmatpush1.msra.mxu0 0.0
    %7043 = vmatprep.subr.mxu0 0.0
    %7044 = vmatpush1.msra.mxu0 0.0
    %7045 = vmatprep.subr.mxu0 0.0
    %7046 = vmatpush1.msra.mxu0 0.0
    %7047 = vmatprep.subr.mxu0 0.0
    %7048 = vmatpush1.msra.mxu0 0.0
    %7049 = vmatprep.subr.mxu0 0.0
    %7050 = vmatpush1.msra.mxu0 0.0
    %7051 = vmatprep.subr.mxu0 0.0
    %7052 = vmatpush1.msra.mxu0 0.0
    %7053 = vmatprep.mubr.f32.mxu0 0.0
    %v7054 = vand.u32 %v6733, 4294901760
    %v7055 = vsub.f32 %v6733, %v7054
    %v7056 = vand.u32 %v7055, 4294901760
    %7057 = vmatmul.mubr.f32.gmra.mrb[0].mxu0 %v7056
    %v7058 = vpop.f32.mrb[0].mxu0
    %v7059 = vadd.f32 %v6982, %v7058
    %v7060 = vpop.f32.mrb[0].mxu0
    %7061 = vdwg.mxu0
    %7062 = vmatprep.subr.mxu0 0.0
    %v7063 = vand.u32 %v48, 4294901760
    %v7064 = vsub.f32 %v48, %v7063
    %v7065 = vand.u32 %v7064, 4294901760
    %7066 = vmatpush1.msra.mxu0 %v7065
    %7067 = vmatprep.subr.mxu0 0.0
    %v7068 = vand.u32 %v49, 4294901760
    %v7069 = vsub.f32 %v49, %v7068
    %v7070 = vand.u32 %v7069, 4294901760
    %7071 = vmatpush1.msra.mxu0 %v7070
    %7072 = vmatprep.subr.mxu0 0.0
    %v7073 = vand.u32 %v50, 4294901760
    %v7074 = vsub.f32 %v50, %v7073
    %v7075 = vand.u32 %v7074, 4294901760
    %7076 = vmatpush1.msra.mxu0 %v7075
    %7077 = vmatprep.subr.mxu0 0.0
    %v7078 = vand.u32 %v51, 4294901760
    %v7079 = vsub.f32 %v51, %v7078
    %v7080 = vand.u32 %v7079, 4294901760
    %7081 = vmatpush1.msra.mxu0 %v7080
    %7082 = vmatprep.subr.mxu0 0.0
    %7083 = vmatpush1.msra.mxu0 0.0
    %7084 = vmatprep.subr.mxu0 0.0
    %7085 = vmatpush1.msra.mxu0 0.0
    %7086 = vmatprep.subr.mxu0 0.0
    %7087 = vmatpush1.msra.mxu0 0.0
    %7088 = vmatprep.subr.mxu0 0.0
    %7089 = vmatpush1.msra.mxu0 0.0
    %7090 = vmatprep.subr.mxu0 0.0
    %7091 = vmatpush1.msra.mxu0 0.0
    %7092 = vmatprep.subr.mxu0 0.0
    %7093 = vmatpush1.msra.mxu0 0.0
    %7094 = vmatprep.subr.mxu0 0.0
    %7095 = vmatpush1.msra.mxu0 0.0
    %7096 = vmatprep.subr.mxu0 0.0
    %7097 = vmatpush1.msra.mxu0 0.0
    %7098 = vmatprep.subr.mxu0 0.0
    %7099 = vmatpush1.msra.mxu0 0.0
    %7100 = vmatprep.subr.mxu0 0.0
    %7101 = vmatpush1.msra.mxu0 0.0
    %7102 = vmatprep.subr.mxu0 0.0
    %7103 = vmatpush1.msra.mxu0 0.0
    %7104 = vmatprep.subr.mxu0 0.0
    %7105 = vmatpush1.msra.mxu0 0.0
    %7106 = vmatprep.subr.mxu0 0.0
    %7107 = vmatpush1.msra.mxu0 0.0
    %7108 = vmatprep.subr.mxu0 0.0
    %7109 = vmatpush1.msra.mxu0 0.0
    %7110 = vmatprep.subr.mxu0 0.0
    %7111 = vmatpush1.msra.mxu0 0.0
    %7112 = vmatprep.subr.mxu0 0.0
    %7113 = vmatpush1.msra.mxu0 0.0
    %7114 = vmatprep.subr.mxu0 0.0
    %7115 = vmatpush1.msra.mxu0 0.0
    %7116 = vmatprep.subr.mxu0 0.0
    %7117 = vmatpush1.msra.mxu0 0.0
    %7118 = vmatprep.subr.mxu0 0.0
    %7119 = vmatpush1.msra.mxu0 0.0
    %7120 = vmatprep.subr.mxu0 0.0
    %7121 = vmatpush1.msra.mxu0 0.0
    %7122 = vmatprep.subr.mxu0 0.0
    %7123 = vmatpush1.msra.mxu0 0.0
    %7124 = vmatprep.subr.mxu0 0.0
    %7125 = vmatpush1.msra.mxu0 0.0
    %7126 = vmatprep.subr.mxu0 0.0
    %7127 = vmatpush1.msra.mxu0 0.0
    %7128 = vmatprep.subr.mxu0 0.0
    %7129 = vmatpush1.msra.mxu0 0.0
    %7130 = vmatprep.subr.mxu0 0.0
    %7131 = vmatpush1.msra.mxu0 0.0
    %7132 = vmatprep.subr.mxu0 0.0
    %7133 = vmatpush1.msra.mxu0 0.0
    %7134 = vmatprep.subr.mxu0 0.0
    %7135 = vmatpush1.msra.mxu0 0.0
    %7136 = vmatprep.subr.mxu0 0.0
    %7137 = vmatpush1.msra.mxu0 0.0
    %7138 = vmatprep.mubr.f32.mxu0 0.0
    %v7139 = vand.u32 %v6733, 4294901760
    %7140 = vmatmul.mubr.f32.gmra.mrb[0].mxu0 %v7139
    %v7141 = vpop.f32.mrb[0].mxu0
    %v7142 = vadd.f32 %v7059, %v7141
    %v7143 = vpop.f32.mrb[0].mxu0
    %7144 = vdwg.mxu0
    %7145 = vmatprep.subr.mxu0 0.0
    %v7146 = vand.u32 %v48, 4294901760
    %7147 = vmatpush1.msra.mxu0 %v7146
    %7148 = vmatprep.subr.mxu0 0.0
    %v7149 = vand.u32 %v49, 4294901760
    %7150 = vmatpush1.msra.mxu0 %v7149
    %7151 = vmatprep.subr.mxu0 0.0
    %v7152 = vand.u32 %v50, 4294901760
    %7153 = vmatpush1.msra.mxu0 %v7152
    %7154 = vmatprep.subr.mxu0 0.0
    %v7155 = vand.u32 %v51, 4294901760
    %7156 = vmatpush1.msra.mxu0 %v7155
    %7157 = vmatprep.subr.mxu0 0.0
    %7158 = vmatpush1.msra.mxu0 0.0
    %7159 = vmatprep.subr.mxu0 0.0
    %7160 = vmatpush1.msra.mxu0 0.0
    %7161 = vmatprep.subr.mxu0 0.0
    %7162 = vmatpush1.msra.mxu0 0.0
    %7163 = vmatprep.subr.mxu0 0.0
    %7164 = vmatpush1.msra.mxu0 0.0
    %7165 = vmatprep.subr.mxu0 0.0
    %7166 = vmatpush1.msra.mxu0 0.0
    %7167 = vmatprep.subr.mxu0 0.0
    %7168 = vmatpush1.msra.mxu0 0.0
    %7169 = vmatprep.subr.mxu0 0.0
    %7170 = vmatpush1.msra.mxu0 0.0
    %7171 = vmatprep.subr.mxu0 0.0
    %7172 = vmatpush1.msra.mxu0 0.0
    %7173 = vmatprep.subr.mxu0 0.0
    %7174 = vmatpush1.msra.mxu0 0.0
    %7175 = vmatprep.subr.mxu0 0.0
    %7176 = vmatpush1.msra.mxu0 0.0
    %7177 = vmatprep.subr.mxu0 0.0
    %7178 = vmatpush1.msra.mxu0 0.0
    %7179 = vmatprep.subr.mxu0 0.0
    %7180 = vmatpush1.msra.mxu0 0.0
    %7181 = vmatprep.subr.mxu0 0.0
    %7182 = vmatpush1.msra.mxu0 0.0
    %7183 = vmatprep.subr.mxu0 0.0
    %7184 = vmatpush1.msra.mxu0 0.0
    %7185 = vmatprep.subr.mxu0 0.0
    %7186 = vmatpush1.msra.mxu0 0.0
    %7187 = vmatprep.subr.mxu0 0.0
    %7188 = vmatpush1.msra.mxu0 0.0
    %7189 = vmatprep.subr.mxu0 0.0
    %7190 = vmatpush1.msra.mxu0 0.0
    %7191 = vmatprep.subr.mxu0 0.0
    %7192 = vmatpush1.msra.mxu0 0.0
    %7193 = vmatprep.subr.mxu0 0.0
    %7194 = vmatpush1.msra.mxu0 0.0
    %7195 = vmatprep.subr.mxu0 0.0
    %7196 = vmatpush1.msra.mxu0 0.0
    %7197 = vmatprep.subr.mxu0 0.0
    %7198 = vmatpush1.msra.mxu0 0.0
    %7199 = vmatprep.subr.mxu0 0.0
    %7200 = vmatpush1.msra.mxu0 0.0
    %7201 = vmatprep.subr.mxu0 0.0
    %7202 = vmatpush1.msra.mxu0 0.0
    %7203 = vmatprep.subr.mxu0 0.0
    %7204 = vmatpush1.msra.mxu0 0.0
    %7205 = vmatprep.subr.mxu0 0.0
    %7206 = vmatpush1.msra.mxu0 0.0
    %7207 = vmatprep.subr.mxu0 0.0
    %7208 = vmatpush1.msra.mxu0 0.0
    %7209 = vmatprep.subr.mxu0 0.0
    %7210 = vmatpush1.msra.mxu0 0.0
    %7211 = vmatprep.subr.mxu0 0.0
    %7212 = vmatpush1.msra.mxu0 0.0
    %7213 = vmatprep.mubr.f32.mxu0 0.0
    %v7214 = vand.u32 %v6733, 4294901760
    %7215 = vmatmul.mubr.f32.gmra.mrb[0].mxu0 %v7214
    %v7216 = vpop.f32.mrb[0].mxu0
    %v7217 = vadd.f32 %v7142, %v7216
    %v7218 = vpop.f32.mrb[0].mxu0
    %7219 = vdwg.mxu0
    %v7220 = vrot.slane %v6729, 1
    %7221 = vrot.lane.b32.xlu0 %v7220, 64
    %v7222 = vpop.permute.xlu0 %7221
    %7225 = vrot.lane.b32.xlu0 %v6043, 32
    %v7226 = vpop.permute.xlu0 %7225
    %v7229 = vrot.slane %v6723, 1
    %7230 = vrot.lane.b32.xlu0 %v7229, 64
    %v7231 = vpop.permute.xlu0 %7230
    %v7233 = vsel %vm510, %v6052, %v7222
    %v7234 = vsel %vm1037, %v7233, %v7226
    %vm7235 = vcmask 785408
    %v7236 = vsel %vm7235, %v7234, %v7231
    %v7238 = vrot.slane %v7236, 6
    %vm7240 = vcmask 1040384
    %v7241 = vsel %vm7240, %v7217, %v7238
    %7242 = vst [vmem:[%s4] sm:$0x3] %v7241
    // Predicated region
    $region22: #{_lstm_apply.1} parent=1 // pred_check
      _
    $region23: #{_lstm_apply.1} parent=1 // pred_check_branch
      %7244 = sbr.rel (0) target = $region25
    $region24: #{_lstm_apply.1} parent=1 // pred_region
      _
    $region25: #{_lstm_apply.1} parent=1 // pred_fallthru
      _
    // Predicated region
    $region26: #{_lstm_apply.1} parent=1 // pred_check
      _
    $region27: #{_lstm_apply.1} parent=1 // pred_check_branch
      %7246 = sbr.rel (0) target = $region29
    $region28: #{_lstm_apply.1} parent=1 // pred_region
      _
    $region29: #{_lstm_apply.1} parent=1 // pred_fallthru
      _
    %7247 = vsyncpa [#allocation3], 1

</llo_original>
